<compile_context>
chip_gen: v7x
topology: tpu7x:2x2x1
jax: 0.10.0
libtpu: 0.0.40
codegen_flags: <defaults>
</compile_context>

<pallas_src>
import jax
import jax.numpy as jnp
from jax.experimental import pallas as pl
from jax.experimental.pallas import tpu as pltpu

HID = 32        # hidden_size (== per-head GAT out channels)
HEADS = 6
OBS_F = 6       # num_obs_node_features
FEAT_F = 5      # num_feat_node_features
OUT_C = 4       # out_channels
NUM_LAYERS = 2
DROP = 0.2      # inference -> dropout is identity


# ---------------------------------------------------------------------------
# In-kernel helpers (operate on loaded VMEM values)
# ---------------------------------------------------------------------------
def _dot(a, b):
    return jnp.dot(a, b, preferred_element_type=jnp.float32)


def _bn(h):
    # BatchNorm1d(track_running_stats=False, affine=False) with batch stats.
    mean = jnp.mean(h, axis=0, keepdims=True)
    var = jnp.mean((h - mean) ** 2, axis=0, keepdims=True)
    return (h - mean) * jax.lax.rsqrt(var + 1e-5)


def _mlp_bn_tail(h, w2, b2):
    # BN -> (Dropout = id) -> Linear -> ReLU
    return jnp.maximum(_dot(_bn(h), w2) + b2, 0.0)


def _mlp_bn(x, w1, b1, w2, b2):
    # Linear -> BN -> (Dropout = id) -> Linear -> ReLU
    return _mlp_bn_tail(_dot(x, w1) + b1, w2, b2)


def _gat(x_src, x_dst, edge_f, oh_src, oh_dst, oh_dst_t, hexp, hred,
         lin, lin_edge, att_s, att_d, att_e, bias):
    # GATConv with shared lin for src/dst, edge_dim, no self loops, concat heads.
    xs = _dot(x_src, lin)                 # [Ns, H*C]
    xd = _dot(x_dst, lin)                 # [Nd, H*C]
    xe = _dot(edge_f, lin_edge)           # [E,  H*C]
    # per-head attention logits: (x * att) summed within each head's channel block
    a_s = _dot(xs * att_s, hred)          # [Ns, H]
    a_d = _dot(xd * att_d, hred)          # [Nd, H]
    a_e = _dot(xe * att_e, hred)          # [E,  H]
    # gather per-edge logits via one-hot matmuls (stays in VMEM)
    alpha = _dot(oh_src, a_s) + _dot(oh_dst, a_d) + a_e           # [E, H]
    alpha = jnp.where(alpha > 0.0, alpha, 0.2 * alpha)            # LeakyReLU(0.2)

    # Per-head softmax over edges sharing a target.  Softmax is shift-invariant,
    # so one per-head global max gives the same function with a single vectorized
    # stabilization instead of a per-target masked scan.
    ex = jnp.exp(alpha - jnp.max(alpha, axis=0, keepdims=True))   # [E, H]
    den_d = _dot(oh_dst_t, ex)                                    # [Nd, H] per-target sums
    den_e = _dot(oh_dst, den_d)                                   # [E, H]  gathered back
    coef = ex / den_e                                             # [E, H]

    xs_e = _dot(oh_src, xs)                                       # [E, H*C] gather src feats
    msg = _dot(coef, hexp) * xs_e                                 # broadcast coef per head
    out = _dot(oh_dst_t, msg)                                     # [Nd, H*C] scatter-add
    return out + bias


def _layer(nxt, obs, feat, edge, oh_obs, oh_feat, oh_obs_t, oh_feat_t,
           adj, hexp, hred):
    # projects_obs / projects_feat
    obs = _mlp_bn(obs, nxt(), nxt(), nxt(), nxt())
    feat = _mlp_bn(feat, nxt(), nxt(), nxt(), nxt())

    # edge_embedding (layer 0: in_features == 1 -> pure VPU broadcast outer product)
    ee_w, ee_b = nxt(), nxt()
    if edge.shape[1] == 1:
        edge = edge * ee_w + ee_b
    else:
        edge = _dot(edge, ee_w) + ee_b

    # GAT feat -> obs (source = feat, target = obs)
    g_o = _gat(feat, obs, edge, oh_feat, oh_obs, oh_obs_t, hexp, hred,
               nxt(), nxt(), nxt(), nxt(), nxt(), nxt())
    g_o = _mlp_bn(g_o, nxt(), nxt(), nxt(), nxt())                # gat_linear_project_obs
    w, b = nxt(), nxt()                                           # obs_gat_project
    # cat([obs, g_o]) @ W + b  ==  obs @ W[:HID] + g_o @ W[HID:] + b
    obs = _dot(obs, w[:HID, :]) + _dot(g_o, w[HID:, :]) + b

    # SAGE (full-graph mean aggregation) + ELU
    # TODO(synk): NeighborSampler mini-batch iteration is data-loader machinery;
    #             here n_id = all obs nodes and x_target = x (single full-graph pass).
    x = _mlp_bn(obs, nxt(), nxt(), nxt(), nxt())                  # projects
    wl, bl, wr = nxt(), nxt(), nxt()
    s = _dot(_dot(adj, x), wl) + bl + _dot(x, wr)
    obs = jnp.where(s > 0.0, s, jnp.exp(jnp.minimum(s, 0.0)) - 1.0)  # ELU (overflow-safe)

    # GAT obs -> feat (source = obs, target = feat)
    g_f = _gat(obs, feat, edge, oh_obs, oh_feat, oh_feat_t, hexp, hred,
               nxt(), nxt(), nxt(), nxt(), nxt(), nxt())
    g_f = _mlp_bn(g_f, nxt(), nxt(), nxt(), nxt())                # gat_linear_project_feat
    w, b = nxt(), nxt()                                           # feat_gat_project
    feat = _dot(feat, w[:HID, :]) + _dot(g_f, w[HID:, :]) + b

    # edge_embedding_update on cat([edge, obs[obs_idx], feat[feat_idx]]) via weight split
    obs_e = _dot(oh_obs, obs)        # gather obs rows to edges
    feat_e = _dot(oh_feat, feat)     # gather feat rows to edges
    wu, bu, w2, b2 = nxt(), nxt(), nxt(), nxt()
    h = (_dot(edge, wu[:HID, :]) + _dot(obs_e, wu[HID:2 * HID, :])
         + _dot(feat_e, wu[2 * HID:, :]) + bu)
    edge = _mlp_bn_tail(h, w2, b2)
    return obs, feat, edge


# ---------------------------------------------------------------------------
# Single fused kernel: both layers + head, everything VMEM-resident
# ---------------------------------------------------------------------------
def fognn_kernel(*refs):
    out_ref = refs[-1]
    it = iter(refs[:-1])
    nxt = lambda: next(it)[...]     # load the next operand from VMEM

    obs, feat, edge = nxt(), nxt(), nxt()
    oh_obs, oh_feat = nxt(), nxt()
    oh_obs_t, oh_feat_t = nxt(), nxt()
    adj, hexp, hred = nxt(), nxt(), nxt()

    for _ in range(NUM_LAYERS):
        obs, feat, edge = _layer(nxt, obs, feat, edge, oh_obs, oh_feat,
                                 oh_obs_t, oh_feat_t, adj, hexp, hred)

    # project_Y: Linear -> LeakyReLU(0.01) -> Linear -> log_softmax
    w1, b1, w2, b2 = nxt(), nxt(), nxt(), nxt()
    h = _dot(obs, w1) + b1
    h = jnp.where(h > 0.0, h, 0.01 * h)
    y = _dot(h, w2) + b2
    z = y - jnp.max(y, axis=-1, keepdims=True)
    out_ref[...] = z - jnp.log(jnp.sum(jnp.exp(z), axis=-1, keepdims=True))


# ---------------------------------------------------------------------------
# Parameters (deterministic synthetic init)
# ---------------------------------------------------------------------------
def init_params(key):
    keys = iter(jax.random.split(key, 256))

    def lin(fi, fo, bias=True):
        w = jax.random.normal(next(keys), (fi, fo), jnp.float32) / jnp.sqrt(float(fi))
        if not bias:
            return w
        b = jax.random.normal(next(keys), (1, fo), jnp.float32) * 0.01
        return w, b

    def mlp(fi, fo):
        w1, b1 = lin(fi, fo)
        w2, b2 = lin(fo, fo)
        return (w1, b1, w2, b2)

    def gat():
        return dict(
            lin=lin(HID, HEADS * HID, bias=False),
            lin_edge=lin(HID, HEADS * HID, bias=False),
            att_src=jax.random.normal(next(keys), (1, HEADS * HID), jnp.float32) * 0.1,
            att_dst=jax.random.normal(next(keys), (1, HEADS * HID), jnp.float32) * 0.1,
            att_edge=jax.random.normal(next(keys), (1, HEADS * HID), jnp.float32) * 0.1,
            bias=jax.random.normal(next(keys), (1, HEADS * HID), jnp.float32) * 0.01,
        )

    layers = []
    for i in range(NUM_LAYERS):
        wl, bl = lin(HID, HID)
        layers.append(dict(
            projects_obs=mlp(OBS_F if i == 0 else HID, HID),
            projects_feat=mlp(FEAT_F if i == 0 else HID, HID),
            projects=mlp(HID, HID),
            edge_embedding=lin(1 if i == 0 else HID, HID),
            edge_embedding_update=mlp(3 * HID, HID),
            gat_f_to_o=gat(),
            gat_o_to_f=gat(),
            gat_linear_project_obs=mlp(HEADS * HID, HID),
            gat_linear_project_feat=mlp(HEADS * HID, HID),
            obs_gat_project=lin(2 * HID, HID),
            feat_gat_project=lin(2 * HID, HID),
            sage=dict(wl=wl, bl=bl, wr=lin(HID, HID, bias=False)),
        ))
    w1, b1 = lin(HID, HID)
    w2, b2 = lin(HID, OUT_C)
    return dict(layers=layers, project_Y=(w1, b1, w2, b2))


def _flatten_layer(p):
    # Order must match the consumption order inside _layer.
    g1, g2 = p["gat_f_to_o"], p["gat_o_to_f"]
    return [
        *p["projects_obs"], *p["projects_feat"], *p["edge_embedding"],
        g1["lin"], g1["lin_edge"], g1["att_src"], g1["att_dst"], g1["att_edge"], g1["bias"],
        *p["gat_linear_project_obs"], *p["obs_gat_project"],
        *p["projects"], p["sage"]["wl"], p["sage"]["bl"], p["sage"]["wr"],
        g2["lin"], g2["lin_edge"], g2["att_src"], g2["att_dst"], g2["att_edge"], g2["bias"],
        *p["gat_linear_project_feat"], *p["feat_gat_project"],
        *p["edge_embedding_update"],
    ]


# ---------------------------------------------------------------------------
# FOGNN forward: a single fused pallas_call (1 launch for the whole network)
# ---------------------------------------------------------------------------
def fognn_forward(params, obs, feat, otf_edge_index, otf_edge_attr, obs_edge_index):
    n_obs = obs.shape[0]
    n_feat = feat.shape[0]

    # Graph structure, built ONCE per forward (constant across layers).
    oh_obs = jax.nn.one_hot(otf_edge_index[0], n_obs, dtype=jnp.float32)    # [E, N_obs]
    oh_feat = jax.nn.one_hot(otf_edge_index[1], n_feat, dtype=jnp.float32)  # [E, N_feat]
    oh_obs_t = oh_obs.T                                                     # [N_obs, E]
    oh_feat_t = oh_feat.T                                                   # [N_feat, E]
    A = jnp.zeros((n_obs, n_obs), jnp.float32).at[
        obs_edge_index[1], obs_edge_index[0]].add(1.0)
    adj = A / jnp.maximum(jnp.sum(A, axis=1, keepdims=True), 1.0)           # mean aggregation

    # Head-indicator constants: expand [H, H*C] (coef broadcast) and its
    # transpose [H*C, H] (per-head channel reduce).
    head_of_col = jnp.arange(HEADS * HID, dtype=jnp.int32) // HID
    hexp = (head_of_col[None, :] ==
            jnp.arange(HEADS, dtype=jnp.int32)[:, None]).astype(jnp.float32)
    hred = hexp.T

    args = [obs, feat, otf_edge_attr, oh_obs, oh_feat, oh_obs_t, oh_feat_t,
            adj, hexp, hred]
    for p in params["layers"]:
        args += _flatten_layer(p)
    args += list(params["project_Y"])

    vmem = lambda: pl.BlockSpec(memory_space=pltpu.MemorySpace.VMEM)
    return pl.pallas_call(
        fognn_kernel,
        out_shape=jax.ShapeDtypeStruct((n_obs, OUT_C), jnp.float32),
        in_specs=[vmem() for _ in args],
        out_specs=vmem(),
    )(*args)


# ---------------------------------------------------------------------------
if __name__ == "__main__":
    key = jax.random.PRNGKey(0)
    kp, k1, k2, k3, k4, k5, k6, k7 = jax.random.split(key, 8)
    params = init_params(kp)

    N_OBS, N_FEAT, E_OTF, E_OBS = 16, 12, 24, 20
    obs_features = jax.random.normal(k1, (N_OBS, OBS_F), jnp.float32)
    feat_features = jax.random.normal(k2, (N_FEAT, FEAT_F), jnp.float32)
    otf_edge_index = jnp.stack([
        jax.random.randint(k3, (E_OTF,), 0, N_OBS),
        jax.random.randint(k4, (E_OTF,), 0, N_FEAT),
    ])
    otf_edge_attr = jax.random.normal(k5, (E_OTF, 1), jnp.float32)
    obs_edge_index = jnp.stack([
        jax.random.randint(k6, (E_OBS,), 0, N_OBS),
        jax.random.randint(k7, (E_OBS,), 0, N_OBS),
    ])

    fwd = jax.jit(fognn_forward)
    out = fwd(params, obs_features, feat_features,
              otf_edge_index, otf_edge_attr, obs_edge_index)
    jax.block_until_ready(out)
    assert out.shape == (N_OBS, OUT_C)
    assert bool(jnp.all(jnp.isfinite(out)))
    print("KERNEL_OK")
</pallas_src>

<mosaic_0001>
module attributes {stable_mosaic.version = 11 : i64} {
  func.func @fognn_kernel(%arg0: memref<16x6xf32, #tpu.memory_space<vmem>>, %arg1: memref<12x5xf32, #tpu.memory_space<vmem>>, %arg2: memref<24x1xf32, #tpu.memory_space<vmem>>, %arg3: memref<24x16xf32, #tpu.memory_space<vmem>>, %arg4: memref<24x12xf32, #tpu.memory_space<vmem>>, %arg5: memref<16x24xf32, #tpu.memory_space<vmem>>, %arg6: memref<12x24xf32, #tpu.memory_space<vmem>>, %arg7: memref<16x16xf32, #tpu.memory_space<vmem>>, %arg8: memref<6x192xf32, #tpu.memory_space<vmem>>, %arg9: memref<192x6xf32, #tpu.memory_space<vmem>>, %arg10: memref<6x32xf32, #tpu.memory_space<vmem>>, %arg11: memref<1x32xf32, #tpu.memory_space<vmem>>, %arg12: memref<32x32xf32, #tpu.memory_space<vmem>>, %arg13: memref<1x32xf32, #tpu.memory_space<vmem>>, %arg14: memref<5x32xf32, #tpu.memory_space<vmem>>, %arg15: memref<1x32xf32, #tpu.memory_space<vmem>>, %arg16: memref<32x32xf32, #tpu.memory_space<vmem>>, %arg17: memref<1x32xf32, #tpu.memory_space<vmem>>, %arg18: memref<1x32xf32, #tpu.memory_space<vmem>>, %arg19: memref<1x32xf32, #tpu.memory_space<vmem>>, %arg20: memref<32x192xf32, #tpu.memory_space<vmem>>, %arg21: memref<32x192xf32, #tpu.memory_space<vmem>>, %arg22: memref<1x192xf32, #tpu.memory_space<vmem>>, %arg23: memref<1x192xf32, #tpu.memory_space<vmem>>, %arg24: memref<1x192xf32, #tpu.memory_space<vmem>>, %arg25: memref<1x192xf32, #tpu.memory_space<vmem>>, %arg26: memref<192x32xf32, #tpu.memory_space<vmem>>, %arg27: memref<1x32xf32, #tpu.memory_space<vmem>>, %arg28: memref<32x32xf32, #tpu.memory_space<vmem>>, %arg29: memref<1x32xf32, #tpu.memory_space<vmem>>, %arg30: memref<64x32xf32, #tpu.memory_space<vmem>>, %arg31: memref<1x32xf32, #tpu.memory_space<vmem>>, %arg32: memref<32x32xf32, #tpu.memory_space<vmem>>, %arg33: memref<1x32xf32, #tpu.memory_space<vmem>>, %arg34: memref<32x32xf32, #tpu.memory_space<vmem>>, %arg35: memref<1x32xf32, #tpu.memory_space<vmem>>, %arg36: memref<32x32xf32, #tpu.memory_space<vmem>>, %arg37: memref<1x32xf32, #tpu.memory_space<vmem>>, %arg38: memref<32x32xf32, #tpu.memory_space<vmem>>, %arg39: memref<32x192xf32, #tpu.memory_space<vmem>>, %arg40: memref<32x192xf32, #tpu.memory_space<vmem>>, %arg41: memref<1x192xf32, #tpu.memory_space<vmem>>, %arg42: memref<1x192xf32, #tpu.memory_space<vmem>>, %arg43: memref<1x192xf32, #tpu.memory_space<vmem>>, %arg44: memref<1x192xf32, #tpu.memory_space<vmem>>, %arg45: memref<192x32xf32, #tpu.memory_space<vmem>>, %arg46: memref<1x32xf32, #tpu.memory_space<vmem>>, %arg47: memref<32x32xf32, #tpu.memory_space<vmem>>, %arg48: memref<1x32xf32, #tpu.memory_space<vmem>>, %arg49: memref<64x32xf32, #tpu.memory_space<vmem>>, %arg50: memref<1x32xf32, #tpu.memory_space<vmem>>, %arg51: memref<96x32xf32, #tpu.memory_space<vmem>>, %arg52: memref<1x32xf32, #tpu.memory_space<vmem>>, %arg53: memref<32x32xf32, #tpu.memory_space<vmem>>, %arg54: memref<1x32xf32, #tpu.memory_space<vmem>>, %arg55: memref<32x32xf32, #tpu.memory_space<vmem>>, %arg56: memref<1x32xf32, #tpu.memory_space<vmem>>, %arg57: memref<32x32xf32, #tpu.memory_space<vmem>>, %arg58: memref<1x32xf32, #tpu.memory_space<vmem>>, %arg59: memref<32x32xf32, #tpu.memory_space<vmem>>, %arg60: memref<1x32xf32, #tpu.memory_space<vmem>>, %arg61: memref<32x32xf32, #tpu.memory_space<vmem>>, %arg62: memref<1x32xf32, #tpu.memory_space<vmem>>, %arg63: memref<32x32xf32, #tpu.memory_space<vmem>>, %arg64: memref<1x32xf32, #tpu.memory_space<vmem>>, %arg65: memref<32x192xf32, #tpu.memory_space<vmem>>, %arg66: memref<32x192xf32, #tpu.memory_space<vmem>>, %arg67: memref<1x192xf32, #tpu.memory_space<vmem>>, %arg68: memref<1x192xf32, #tpu.memory_space<vmem>>, %arg69: memref<1x192xf32, #tpu.memory_space<vmem>>, %arg70: memref<1x192xf32, #tpu.memory_space<vmem>>, %arg71: memref<192x32xf32, #tpu.memory_space<vmem>>, %arg72: memref<1x32xf32, #tpu.memory_space<vmem>>, %arg73: memref<32x32xf32, #tpu.memory_space<vmem>>, %arg74: memref<1x32xf32, #tpu.memory_space<vmem>>, %arg75: memref<64x32xf32, #tpu.memory_space<vmem>>, %arg76: memref<1x32xf32, #tpu.memory_space<vmem>>, %arg77: memref<32x32xf32, #tpu.memory_space<vmem>>, %arg78: memref<1x32xf32, #tpu.memory_space<vmem>>, %arg79: memref<32x32xf32, #tpu.memory_space<vmem>>, %arg80: memref<1x32xf32, #tpu.memory_space<vmem>>, %arg81: memref<32x32xf32, #tpu.memory_space<vmem>>, %arg82: memref<1x32xf32, #tpu.memory_space<vmem>>, %arg83: memref<32x32xf32, #tpu.memory_space<vmem>>, %arg84: memref<32x192xf32, #tpu.memory_space<vmem>>, %arg85: memref<32x192xf32, #tpu.memory_space<vmem>>, %arg86: memref<1x192xf32, #tpu.memory_space<vmem>>, %arg87: memref<1x192xf32, #tpu.memory_space<vmem>>, %arg88: memref<1x192xf32, #tpu.memory_space<vmem>>, %arg89: memref<1x192xf32, #tpu.memory_space<vmem>>, %arg90: memref<192x32xf32, #tpu.memory_space<vmem>>, %arg91: memref<1x32xf32, #tpu.memory_space<vmem>>, %arg92: memref<32x32xf32, #tpu.memory_space<vmem>>, %arg93: memref<1x32xf32, #tpu.memory_space<vmem>>, %arg94: memref<64x32xf32, #tpu.memory_space<vmem>>, %arg95: memref<1x32xf32, #tpu.memory_space<vmem>>, %arg96: memref<96x32xf32, #tpu.memory_space<vmem>>, %arg97: memref<1x32xf32, #tpu.memory_space<vmem>>, %arg98: memref<32x32xf32, #tpu.memory_space<vmem>>, %arg99: memref<1x32xf32, #tpu.memory_space<vmem>>, %arg100: memref<32x32xf32, #tpu.memory_space<vmem>>, %arg101: memref<1x32xf32, #tpu.memory_space<vmem>>, %arg102: memref<32x4xf32, #tpu.memory_space<vmem>>, %arg103: memref<1x4xf32, #tpu.memory_space<vmem>>, %arg104: memref<16x4xf32, #tpu.memory_space<vmem>>) attributes {dimension_semantics = [], scalar_prefetch = 0 : i64, scratch_operands = 0 : i64, tpu.core_type = #tpu.core_type<tc>} {
    %c0 = arith.constant 0 : index
    %c0_0 = arith.constant 0 : index
    %0 = vector.load %arg0[%c0, %c0_0] : memref<16x6xf32, #tpu.memory_space<vmem>>, vector<16x6xf32>
    %c0_1 = arith.constant 0 : index
    %c0_2 = arith.constant 0 : index
    %1 = vector.load %arg1[%c0_1, %c0_2] : memref<12x5xf32, #tpu.memory_space<vmem>>, vector<12x5xf32>
    %c0_3 = arith.constant 0 : index
    %c0_4 = arith.constant 0 : index
    %2 = vector.load %arg2[%c0_3, %c0_4] : memref<24x1xf32, #tpu.memory_space<vmem>>, vector<24x1xf32>
    %c0_5 = arith.constant 0 : index
    %c0_6 = arith.constant 0 : index
    %3 = vector.load %arg3[%c0_5, %c0_6] : memref<24x16xf32, #tpu.memory_space<vmem>>, vector<24x16xf32>
    %c0_7 = arith.constant 0 : index
    %c0_8 = arith.constant 0 : index
    %4 = vector.load %arg4[%c0_7, %c0_8] : memref<24x12xf32, #tpu.memory_space<vmem>>, vector<24x12xf32>
    %c0_9 = arith.constant 0 : index
    %c0_10 = arith.constant 0 : index
    %5 = vector.load %arg5[%c0_9, %c0_10] : memref<16x24xf32, #tpu.memory_space<vmem>>, vector<16x24xf32>
    %c0_11 = arith.constant 0 : index
    %c0_12 = arith.constant 0 : index
    %6 = vector.load %arg6[%c0_11, %c0_12] : memref<12x24xf32, #tpu.memory_space<vmem>>, vector<12x24xf32>
    %c0_13 = arith.constant 0 : index
    %c0_14 = arith.constant 0 : index
    %7 = vector.load %arg7[%c0_13, %c0_14] : memref<16x16xf32, #tpu.memory_space<vmem>>, vector<16x16xf32>
    %c0_15 = arith.constant 0 : index
    %c0_16 = arith.constant 0 : index
    %8 = vector.load %arg8[%c0_15, %c0_16] : memref<6x192xf32, #tpu.memory_space<vmem>>, vector<6x192xf32>
    %c0_17 = arith.constant 0 : index
    %c0_18 = arith.constant 0 : index
    %9 = vector.load %arg9[%c0_17, %c0_18] : memref<192x6xf32, #tpu.memory_space<vmem>>, vector<192x6xf32>
    %c0_19 = arith.constant 0 : index
    %c0_20 = arith.constant 0 : index
    %10 = vector.load %arg10[%c0_19, %c0_20] : memref<6x32xf32, #tpu.memory_space<vmem>>, vector<6x32xf32>
    %c0_21 = arith.constant 0 : index
    %c0_22 = arith.constant 0 : index
    %11 = vector.load %arg11[%c0_21, %c0_22] : memref<1x32xf32, #tpu.memory_space<vmem>>, vector<1x32xf32>
    %c0_23 = arith.constant 0 : index
    %c0_24 = arith.constant 0 : index
    %12 = vector.load %arg12[%c0_23, %c0_24] : memref<32x32xf32, #tpu.memory_space<vmem>>, vector<32x32xf32>
    %c0_25 = arith.constant 0 : index
    %c0_26 = arith.constant 0 : index
    %13 = vector.load %arg13[%c0_25, %c0_26] : memref<1x32xf32, #tpu.memory_space<vmem>>, vector<1x32xf32>
    %cst = arith.constant dense<0.000000e+00> : vector<16x32xf32>
    %14 = tpu.matmul %0, %10, %cst {dimension_numbers = #tpu.dot_dimension_numbers<[1], [0], [0], [1], [0, 0, 1, 1], [], []>} : vector<16x6xf32>, vector<6x32xf32>, vector<16x32xf32> -> vector<16x32xf32>
    %15 = vector.broadcast %11 : vector<1x32xf32> to vector<16x32xf32>
    %16 = arith.addf %14, %15 : vector<16x32xf32>
    %cst_27 = arith.constant dense<0.000000e+00> : vector<32xf32>
    %17 = vector.multi_reduction <add>, %16, %cst_27 [0] : vector<16x32xf32> to vector<32xf32>
    %18 = vector.shape_cast %17 : vector<32xf32> to vector<1x32xf32>
    %cst_28 = arith.constant 1.600000e+01 : f32
    %19 = vector.broadcast %cst_28 : f32 to vector<1x32xf32>
    %20 = arith.divf %18, %19 : vector<1x32xf32>
    %21 = vector.broadcast %20 : vector<1x32xf32> to vector<16x32xf32>
    %22 = arith.subf %16, %21 : vector<16x32xf32>
    %23 = arith.mulf %22, %22 : vector<16x32xf32>
    %cst_29 = arith.constant dense<0.000000e+00> : vector<32xf32>
    %24 = vector.multi_reduction <add>, %23, %cst_29 [0] : vector<16x32xf32> to vector<32xf32>
    %25 = vector.shape_cast %24 : vector<32xf32> to vector<1x32xf32>
    %cst_30 = arith.constant 1.600000e+01 : f32
    %26 = vector.broadcast %cst_30 : f32 to vector<1x32xf32>
    %27 = arith.divf %25, %26 : vector<1x32xf32>
    %28 = vector.broadcast %20 : vector<1x32xf32> to vector<16x32xf32>
    %29 = arith.subf %16, %28 : vector<16x32xf32>
    %cst_31 = arith.constant 9.99999974E-6 : f32
    %30 = vector.broadcast %cst_31 : f32 to vector<1x32xf32>
    %31 = arith.addf %27, %30 : vector<1x32xf32>
    %32 = math.rsqrt %31 : vector<1x32xf32>
    %33 = vector.broadcast %32 : vector<1x32xf32> to vector<16x32xf32>
    %34 = arith.mulf %29, %33 : vector<16x32xf32>
    %cst_32 = arith.constant dense<0.000000e+00> : vector<16x32xf32>
    %35 = tpu.matmul %34, %12, %cst_32 {dimension_numbers = #tpu.dot_dimension_numbers<[1], [0], [0], [1], [0, 0, 1, 1], [], []>} : vector<16x32xf32>, vector<32x32xf32>, vector<16x32xf32> -> vector<16x32xf32>
    %36 = vector.broadcast %13 : vector<1x32xf32> to vector<16x32xf32>
    %37 = arith.addf %35, %36 : vector<16x32xf32>
    %cst_33 = arith.constant 0.000000e+00 : f32
    %38 = vector.broadcast %cst_33 : f32 to vector<16x32xf32>
    %39 = arith.maximumf %37, %38 : vector<16x32xf32>
    %c0_34 = arith.constant 0 : index
    %c0_35 = arith.constant 0 : index
    %40 = vector.load %arg14[%c0_34, %c0_35] : memref<5x32xf32, #tpu.memory_space<vmem>>, vector<5x32xf32>
    %c0_36 = arith.constant 0 : index
    %c0_37 = arith.constant 0 : index
    %41 = vector.load %arg15[%c0_36, %c0_37] : memref<1x32xf32, #tpu.memory_space<vmem>>, vector<1x32xf32>
    %c0_38 = arith.constant 0 : index
    %c0_39 = arith.constant 0 : index
    %42 = vector.load %arg16[%c0_38, %c0_39] : memref<32x32xf32, #tpu.memory_space<vmem>>, vector<32x32xf32>
    %c0_40 = arith.constant 0 : index
    %c0_41 = arith.constant 0 : index
    %43 = vector.load %arg17[%c0_40, %c0_41] : memref<1x32xf32, #tpu.memory_space<vmem>>, vector<1x32xf32>
    %cst_42 = arith.constant dense<0.000000e+00> : vector<12x32xf32>
    %44 = tpu.matmul %1, %40, %cst_42 {dimension_numbers = #tpu.dot_dimension_numbers<[1], [0], [0], [1], [0, 0, 1, 1], [], []>} : vector<12x5xf32>, vector<5x32xf32>, vector<12x32xf32> -> vector<12x32xf32>
    %45 = vector.broadcast %41 : vector<1x32xf32> to vector<12x32xf32>
    %46 = arith.addf %44, %45 : vector<12x32xf32>
    %cst_43 = arith.constant dense<0.000000e+00> : vector<32xf32>
    %47 = vector.multi_reduction <add>, %46, %cst_43 [0] : vector<12x32xf32> to vector<32xf32>
    %48 = vector.shape_cast %47 : vector<32xf32> to vector<1x32xf32>
    %cst_44 = arith.constant 1.200000e+01 : f32
    %49 = vector.broadcast %cst_44 : f32 to vector<1x32xf32>
    %50 = arith.divf %48, %49 : vector<1x32xf32>
    %51 = vector.broadcast %50 : vector<1x32xf32> to vector<12x32xf32>
    %52 = arith.subf %46, %51 : vector<12x32xf32>
    %53 = arith.mulf %52, %52 : vector<12x32xf32>
    %cst_45 = arith.constant dense<0.000000e+00> : vector<32xf32>
    %54 = vector.multi_reduction <add>, %53, %cst_45 [0] : vector<12x32xf32> to vector<32xf32>
    %55 = vector.shape_cast %54 : vector<32xf32> to vector<1x32xf32>
    %cst_46 = arith.constant 1.200000e+01 : f32
    %56 = vector.broadcast %cst_46 : f32 to vector<1x32xf32>
    %57 = arith.divf %55, %56 : vector<1x32xf32>
    %58 = vector.broadcast %50 : vector<1x32xf32> to vector<12x32xf32>
    %59 = arith.subf %46, %58 : vector<12x32xf32>
    %cst_47 = arith.constant 9.99999974E-6 : f32
    %60 = vector.broadcast %cst_47 : f32 to vector<1x32xf32>
    %61 = arith.addf %57, %60 : vector<1x32xf32>
    %62 = math.rsqrt %61 : vector<1x32xf32>
    %63 = vector.broadcast %62 : vector<1x32xf32> to vector<12x32xf32>
    %64 = arith.mulf %59, %63 : vector<12x32xf32>
    %cst_48 = arith.constant dense<0.000000e+00> : vector<12x32xf32>
    %65 = tpu.matmul %64, %42, %cst_48 {dimension_numbers = #tpu.dot_dimension_numbers<[1], [0], [0], [1], [0, 0, 1, 1], [], []>} : vector<12x32xf32>, vector<32x32xf32>, vector<12x32xf32> -> vector<12x32xf32>
    %66 = vector.broadcast %43 : vector<1x32xf32> to vector<12x32xf32>
    %67 = arith.addf %65, %66 : vector<12x32xf32>
    %cst_49 = arith.constant 0.000000e+00 : f32
    %68 = vector.broadcast %cst_49 : f32 to vector<12x32xf32>
    %69 = arith.maximumf %67, %68 : vector<12x32xf32>
    %c0_50 = arith.constant 0 : index
    %c0_51 = arith.constant 0 : index
    %70 = vector.load %arg18[%c0_50, %c0_51] : memref<1x32xf32, #tpu.memory_space<vmem>>, vector<1x32xf32>
    %c0_52 = arith.constant 0 : index
    %c0_53 = arith.constant 0 : index
    %71 = vector.load %arg19[%c0_52, %c0_53] : memref<1x32xf32, #tpu.memory_space<vmem>>, vector<1x32xf32>
    %72 = vector.broadcast %2 : vector<24x1xf32> to vector<24x32xf32>
    %73 = vector.broadcast %70 : vector<1x32xf32> to vector<24x32xf32>
    %74 = arith.mulf %72, %73 : vector<24x32xf32>
    %75 = vector.broadcast %71 : vector<1x32xf32> to vector<24x32xf32>
    %76 = arith.addf %74, %75 : vector<24x32xf32>
    %c0_54 = arith.constant 0 : index
    %c0_55 = arith.constant 0 : index
    %77 = vector.load %arg20[%c0_54, %c0_55] : memref<32x192xf32, #tpu.memory_space<vmem>>, vector<32x192xf32>
    %c0_56 = arith.constant 0 : index
    %c0_57 = arith.constant 0 : index
    %78 = vector.load %arg21[%c0_56, %c0_57] : memref<32x192xf32, #tpu.memory_space<vmem>>, vector<32x192xf32>
    %c0_58 = arith.constant 0 : index
    %c0_59 = arith.constant 0 : index
    %79 = vector.load %arg22[%c0_58, %c0_59] : memref<1x192xf32, #tpu.memory_space<vmem>>, vector<1x192xf32>
    %c0_60 = arith.constant 0 : index
    %c0_61 = arith.constant 0 : index
    %80 = vector.load %arg23[%c0_60, %c0_61] : memref<1x192xf32, #tpu.memory_space<vmem>>, vector<1x192xf32>
    %c0_62 = arith.constant 0 : index
    %c0_63 = arith.constant 0 : index
    %81 = vector.load %arg24[%c0_62, %c0_63] : memref<1x192xf32, #tpu.memory_space<vmem>>, vector<1x192xf32>
    %c0_64 = arith.constant 0 : index
    %c0_65 = arith.constant 0 : index
    %82 = vector.load %arg25[%c0_64, %c0_65] : memref<1x192xf32, #tpu.memory_space<vmem>>, vector<1x192xf32>
    %cst_66 = arith.constant dense<0.000000e+00> : vector<12x192xf32>
    %83 = tpu.matmul %69, %77, %cst_66 {dimension_numbers = #tpu.dot_dimension_numbers<[1], [0], [0], [1], [0, 0, 1, 1], [], []>} : vector<12x32xf32>, vector<32x192xf32>, vector<12x192xf32> -> vector<12x192xf32>
    %cst_67 = arith.constant dense<0.000000e+00> : vector<16x192xf32>
    %84 = tpu.matmul %39, %77, %cst_67 {dimension_numbers = #tpu.dot_dimension_numbers<[1], [0], [0], [1], [0, 0, 1, 1], [], []>} : vector<16x32xf32>, vector<32x192xf32>, vector<16x192xf32> -> vector<16x192xf32>
    %cst_68 = arith.constant dense<0.000000e+00> : vector<24x192xf32>
    %85 = tpu.matmul %76, %78, %cst_68 {dimension_numbers = #tpu.dot_dimension_numbers<[1], [0], [0], [1], [0, 0, 1, 1], [], []>} : vector<24x32xf32>, vector<32x192xf32>, vector<24x192xf32> -> vector<24x192xf32>
    %86 = vector.broadcast %79 : vector<1x192xf32> to vector<12x192xf32>
    %87 = arith.mulf %83, %86 : vector<12x192xf32>
    %cst_69 = arith.constant dense<0.000000e+00> : vector<12x6xf32>
    %88 = tpu.matmul %87, %9, %cst_69 {dimension_numbers = #tpu.dot_dimension_numbers<[1], [0], [0], [1], [0, 0, 1, 1], [], []>} : vector<12x192xf32>, vector<192x6xf32>, vector<12x6xf32> -> vector<12x6xf32>
    %89 = vector.broadcast %80 : vector<1x192xf32> to vector<16x192xf32>
    %90 = arith.mulf %84, %89 : vector<16x192xf32>
    %cst_70 = arith.constant dense<0.000000e+00> : vector<16x6xf32>
    %91 = tpu.matmul %90, %9, %cst_70 {dimension_numbers = #tpu.dot_dimension_numbers<[1], [0], [0], [1], [0, 0, 1, 1], [], []>} : vector<16x192xf32>, vector<192x6xf32>, vector<16x6xf32> -> vector<16x6xf32>
    %92 = vector.broadcast %81 : vector<1x192xf32> to vector<24x192xf32>
    %93 = arith.mulf %85, %92 : vector<24x192xf32>
    %cst_71 = arith.constant dense<0.000000e+00> : vector<24x6xf32>
    %94 = tpu.matmul %93, %9, %cst_71 {dimension_numbers = #tpu.dot_dimension_numbers<[1], [0], [0], [1], [0, 0, 1, 1], [], []>} : vector<24x192xf32>, vector<192x6xf32>, vector<24x6xf32> -> vector<24x6xf32>
    %cst_72 = arith.constant dense<0.000000e+00> : vector<24x6xf32>
    %95 = tpu.matmul %4, %88, %cst_72 {dimension_numbers = #tpu.dot_dimension_numbers<[1], [0], [0], [1], [0, 0, 1, 1], [], []>} : vector<24x12xf32>, vector<12x6xf32>, vector<24x6xf32> -> vector<24x6xf32>
    %cst_73 = arith.constant dense<0.000000e+00> : vector<24x6xf32>
    %96 = tpu.matmul %3, %91, %cst_73 {dimension_numbers = #tpu.dot_dimension_numbers<[1], [0], [0], [1], [0, 0, 1, 1], [], []>} : vector<24x16xf32>, vector<16x6xf32>, vector<24x6xf32> -> vector<24x6xf32>
    %97 = arith.addf %95, %96 : vector<24x6xf32>
    %98 = arith.addf %97, %94 : vector<24x6xf32>
    %cst_74 = arith.constant 0.000000e+00 : f32
    %99 = vector.broadcast %cst_74 : f32 to vector<24x6xf32>
    %100 = arith.cmpf ogt, %98, %99 : vector<24x6xf32>
    %cst_75 = arith.constant 2.000000e-01 : f32
    %101 = vector.broadcast %cst_75 : f32 to vector<24x6xf32>
    %102 = arith.mulf %101, %98 : vector<24x6xf32>
    %103 = arith.select %100, %98, %102 : vector<24x6xi1>, vector<24x6xf32>
    %cst_76 = arith.constant dense<0xFF800000> : vector<6xf32>
    %104 = vector.multi_reduction <maximumf>, %103, %cst_76 [0] : vector<24x6xf32> to vector<6xf32>
    %105 = vector.shape_cast %104 : vector<6xf32> to vector<1x6xf32>
    %106 = vector.broadcast %105 : vector<1x6xf32> to vector<24x6xf32>
    %107 = arith.subf %103, %106 : vector<24x6xf32>
    %108 = math.exp %107 : vector<24x6xf32>
    %cst_77 = arith.constant dense<0.000000e+00> : vector<16x6xf32>
    %109 = tpu.matmul %5, %108, %cst_77 {dimension_numbers = #tpu.dot_dimension_numbers<[1], [0], [0], [1], [0, 0, 1, 1], [], []>} : vector<16x24xf32>, vector<24x6xf32>, vector<16x6xf32> -> vector<16x6xf32>
    %cst_78 = arith.constant dense<0.000000e+00> : vector<24x6xf32>
    %110 = tpu.matmul %3, %109, %cst_78 {dimension_numbers = #tpu.dot_dimension_numbers<[1], [0], [0], [1], [0, 0, 1, 1], [], []>} : vector<24x16xf32>, vector<16x6xf32>, vector<24x6xf32> -> vector<24x6xf32>
    %111 = arith.divf %108, %110 : vector<24x6xf32>
    %cst_79 = arith.constant dense<0.000000e+00> : vector<24x192xf32>
    %112 = tpu.matmul %4, %83, %cst_79 {dimension_numbers = #tpu.dot_dimension_numbers<[1], [0], [0], [1], [0, 0, 1, 1], [], []>} : vector<24x12xf32>, vector<12x192xf32>, vector<24x192xf32> -> vector<24x192xf32>
    %cst_80 = arith.constant dense<0.000000e+00> : vector<24x192xf32>
    %113 = tpu.matmul %111, %8, %cst_80 {dimension_numbers = #tpu.dot_dimension_numbers<[1], [0], [0], [1], [0, 0, 1, 1], [], []>} : vector<24x6xf32>, vector<6x192xf32>, vector<24x192xf32> -> vector<24x192xf32>
    %114 = arith.mulf %113, %112 : vector<24x192xf32>
    %cst_81 = arith.constant dense<0.000000e+00> : vector<16x192xf32>
    %115 = tpu.matmul %5, %114, %cst_81 {dimension_numbers = #tpu.dot_dimension_numbers<[1], [0], [0], [1], [0, 0, 1, 1], [], []>} : vector<16x24xf32>, vector<24x192xf32>, vector<16x192xf32> -> vector<16x192xf32>
    %116 = vector.broadcast %82 : vector<1x192xf32> to vector<16x192xf32>
    %117 = arith.addf %115, %116 : vector<16x192xf32>
    %c0_82 = arith.constant 0 : index
    %c0_83 = arith.constant 0 : index
    %118 = vector.load %arg26[%c0_82, %c0_83] : memref<192x32xf32, #tpu.memory_space<vmem>>, vector<192x32xf32>
    %c0_84 = arith.constant 0 : index
    %c0_85 = arith.constant 0 : index
    %119 = vector.load %arg27[%c0_84, %c0_85] : memref<1x32xf32, #tpu.memory_space<vmem>>, vector<1x32xf32>
    %c0_86 = arith.constant 0 : index
    %c0_87 = arith.constant 0 : index
    %120 = vector.load %arg28[%c0_86, %c0_87] : memref<32x32xf32, #tpu.memory_space<vmem>>, vector<32x32xf32>
    %c0_88 = arith.constant 0 : index
    %c0_89 = arith.constant 0 : index
    %121 = vector.load %arg29[%c0_88, %c0_89] : memref<1x32xf32, #tpu.memory_space<vmem>>, vector<1x32xf32>
    %cst_90 = arith.constant dense<0.000000e+00> : vector<16x32xf32>
    %122 = tpu.matmul %117, %118, %cst_90 {dimension_numbers = #tpu.dot_dimension_numbers<[1], [0], [0], [1], [0, 0, 1, 1], [], []>} : vector<16x192xf32>, vector<192x32xf32>, vector<16x32xf32> -> vector<16x32xf32>
    %123 = vector.broadcast %119 : vector<1x32xf32> to vector<16x32xf32>
    %124 = arith.addf %122, %123 : vector<16x32xf32>
    %cst_91 = arith.constant dense<0.000000e+00> : vector<32xf32>
    %125 = vector.multi_reduction <add>, %124, %cst_91 [0] : vector<16x32xf32> to vector<32xf32>
    %126 = vector.shape_cast %125 : vector<32xf32> to vector<1x32xf32>
    %cst_92 = arith.constant 1.600000e+01 : f32
    %127 = vector.broadcast %cst_92 : f32 to vector<1x32xf32>
    %128 = arith.divf %126, %127 : vector<1x32xf32>
    %129 = vector.broadcast %128 : vector<1x32xf32> to vector<16x32xf32>
    %130 = arith.subf %124, %129 : vector<16x32xf32>
    %131 = arith.mulf %130, %130 : vector<16x32xf32>
    %cst_93 = arith.constant dense<0.000000e+00> : vector<32xf32>
    %132 = vector.multi_reduction <add>, %131, %cst_93 [0] : vector<16x32xf32> to vector<32xf32>
    %133 = vector.shape_cast %132 : vector<32xf32> to vector<1x32xf32>
    %cst_94 = arith.constant 1.600000e+01 : f32
    %134 = vector.broadcast %cst_94 : f32 to vector<1x32xf32>
    %135 = arith.divf %133, %134 : vector<1x32xf32>
    %136 = vector.broadcast %128 : vector<1x32xf32> to vector<16x32xf32>
    %137 = arith.subf %124, %136 : vector<16x32xf32>
    %cst_95 = arith.constant 9.99999974E-6 : f32
    %138 = vector.broadcast %cst_95 : f32 to vector<1x32xf32>
    %139 = arith.addf %135, %138 : vector<1x32xf32>
    %140 = math.rsqrt %139 : vector<1x32xf32>
    %141 = vector.broadcast %140 : vector<1x32xf32> to vector<16x32xf32>
    %142 = arith.mulf %137, %141 : vector<16x32xf32>
    %cst_96 = arith.constant dense<0.000000e+00> : vector<16x32xf32>
    %143 = tpu.matmul %142, %120, %cst_96 {dimension_numbers = #tpu.dot_dimension_numbers<[1], [0], [0], [1], [0, 0, 1, 1], [], []>} : vector<16x32xf32>, vector<32x32xf32>, vector<16x32xf32> -> vector<16x32xf32>
    %144 = vector.broadcast %121 : vector<1x32xf32> to vector<16x32xf32>
    %145 = arith.addf %143, %144 : vector<16x32xf32>
    %cst_97 = arith.constant 0.000000e+00 : f32
    %146 = vector.broadcast %cst_97 : f32 to vector<16x32xf32>
    %147 = arith.maximumf %145, %146 : vector<16x32xf32>
    %c0_98 = arith.constant 0 : index
    %c0_99 = arith.constant 0 : index
    %148 = vector.load %arg30[%c0_98, %c0_99] : memref<64x32xf32, #tpu.memory_space<vmem>>, vector<64x32xf32>
    %c0_100 = arith.constant 0 : index
    %c0_101 = arith.constant 0 : index
    %149 = vector.load %arg31[%c0_100, %c0_101] : memref<1x32xf32, #tpu.memory_space<vmem>>, vector<1x32xf32>
    %150 = vector.extract_strided_slice %148 {offsets = [0, 0], sizes = [32, 32], strides = [1, 1]} : vector<64x32xf32> to vector<32x32xf32>
    %cst_102 = arith.constant dense<0.000000e+00> : vector<16x32xf32>
    %151 = tpu.matmul %39, %150, %cst_102 {dimension_numbers = #tpu.dot_dimension_numbers<[1], [0], [0], [1], [0, 0, 1, 1], [], []>} : vector<16x32xf32>, vector<32x32xf32>, vector<16x32xf32> -> vector<16x32xf32>
    %152 = vector.extract_strided_slice %148 {offsets = [32, 0], sizes = [32, 32], strides = [1, 1]} : vector<64x32xf32> to vector<32x32xf32>
    %cst_103 = arith.constant dense<0.000000e+00> : vector<16x32xf32>
    %153 = tpu.matmul %147, %152, %cst_103 {dimension_numbers = #tpu.dot_dimension_numbers<[1], [0], [0], [1], [0, 0, 1, 1], [], []>} : vector<16x32xf32>, vector<32x32xf32>, vector<16x32xf32> -> vector<16x32xf32>
    %154 = arith.addf %151, %153 : vector<16x32xf32>
    %155 = vector.broadcast %149 : vector<1x32xf32> to vector<16x32xf32>
    %156 = arith.addf %154, %155 : vector<16x32xf32>
    %c0_104 = arith.constant 0 : index
    %c0_105 = arith.constant 0 : index
    %157 = vector.load %arg32[%c0_104, %c0_105] : memref<32x32xf32, #tpu.memory_space<vmem>>, vector<32x32xf32>
    %c0_106 = arith.constant 0 : index
    %c0_107 = arith.constant 0 : index
    %158 = vector.load %arg33[%c0_106, %c0_107] : memref<1x32xf32, #tpu.memory_space<vmem>>, vector<1x32xf32>
    %c0_108 = arith.constant 0 : index
    %c0_109 = arith.constant 0 : index
    %159 = vector.load %arg34[%c0_108, %c0_109] : memref<32x32xf32, #tpu.memory_space<vmem>>, vector<32x32xf32>
    %c0_110 = arith.constant 0 : index
    %c0_111 = arith.constant 0 : index
    %160 = vector.load %arg35[%c0_110, %c0_111] : memref<1x32xf32, #tpu.memory_space<vmem>>, vector<1x32xf32>
    %cst_112 = arith.constant dense<0.000000e+00> : vector<16x32xf32>
    %161 = tpu.matmul %156, %157, %cst_112 {dimension_numbers = #tpu.dot_dimension_numbers<[1], [0], [0], [1], [0, 0, 1, 1], [], []>} : vector<16x32xf32>, vector<32x32xf32>, vector<16x32xf32> -> vector<16x32xf32>
    %162 = vector.broadcast %158 : vector<1x32xf32> to vector<16x32xf32>
    %163 = arith.addf %161, %162 : vector<16x32xf32>
    %cst_113 = arith.constant dense<0.000000e+00> : vector<32xf32>
    %164 = vector.multi_reduction <add>, %163, %cst_113 [0] : vector<16x32xf32> to vector<32xf32>
    %165 = vector.shape_cast %164 : vector<32xf32> to vector<1x32xf32>
    %cst_114 = arith.constant 1.600000e+01 : f32
    %166 = vector.broadcast %cst_114 : f32 to vector<1x32xf32>
    %167 = arith.divf %165, %166 : vector<1x32xf32>
    %168 = vector.broadcast %167 : vector<1x32xf32> to vector<16x32xf32>
    %169 = arith.subf %163, %168 : vector<16x32xf32>
    %170 = arith.mulf %169, %169 : vector<16x32xf32>
    %cst_115 = arith.constant dense<0.000000e+00> : vector<32xf32>
    %171 = vector.multi_reduction <add>, %170, %cst_115 [0] : vector<16x32xf32> to vector<32xf32>
    %172 = vector.shape_cast %171 : vector<32xf32> to vector<1x32xf32>
    %cst_116 = arith.constant 1.600000e+01 : f32
    %173 = vector.broadcast %cst_116 : f32 to vector<1x32xf32>
    %174 = arith.divf %172, %173 : vector<1x32xf32>
    %175 = vector.broadcast %167 : vector<1x32xf32> to vector<16x32xf32>
    %176 = arith.subf %163, %175 : vector<16x32xf32>
    %cst_117 = arith.constant 9.99999974E-6 : f32
    %177 = vector.broadcast %cst_117 : f32 to vector<1x32xf32>
    %178 = arith.addf %174, %177 : vector<1x32xf32>
    %179 = math.rsqrt %178 : vector<1x32xf32>
    %180 = vector.broadcast %179 : vector<1x32xf32> to vector<16x32xf32>
    %181 = arith.mulf %176, %180 : vector<16x32xf32>
    %cst_118 = arith.constant dense<0.000000e+00> : vector<16x32xf32>
    %182 = tpu.matmul %181, %159, %cst_118 {dimension_numbers = #tpu.dot_dimension_numbers<[1], [0], [0], [1], [0, 0, 1, 1], [], []>} : vector<16x32xf32>, vector<32x32xf32>, vector<16x32xf32> -> vector<16x32xf32>
    %183 = vector.broadcast %160 : vector<1x32xf32> to vector<16x32xf32>
    %184 = arith.addf %182, %183 : vector<16x32xf32>
    %cst_119 = arith.constant 0.000000e+00 : f32
    %185 = vector.broadcast %cst_119 : f32 to vector<16x32xf32>
    %186 = arith.maximumf %184, %185 : vector<16x32xf32>
    %c0_120 = arith.constant 0 : index
    %c0_121 = arith.constant 0 : index
    %187 = vector.load %arg36[%c0_120, %c0_121] : memref<32x32xf32, #tpu.memory_space<vmem>>, vector<32x32xf32>
    %c0_122 = arith.constant 0 : index
    %c0_123 = arith.constant 0 : index
    %188 = vector.load %arg37[%c0_122, %c0_123] : memref<1x32xf32, #tpu.memory_space<vmem>>, vector<1x32xf32>
    %c0_124 = arith.constant 0 : index
    %c0_125 = arith.constant 0 : index
    %189 = vector.load %arg38[%c0_124, %c0_125] : memref<32x32xf32, #tpu.memory_space<vmem>>, vector<32x32xf32>
    %cst_126 = arith.constant dense<0.000000e+00> : vector<16x32xf32>
    %190 = tpu.matmul %7, %186, %cst_126 {dimension_numbers = #tpu.dot_dimension_numbers<[1], [0], [0], [1], [0, 0, 1, 1], [], []>} : vector<16x16xf32>, vector<16x32xf32>, vector<16x32xf32> -> vector<16x32xf32>
    %cst_127 = arith.constant dense<0.000000e+00> : vector<16x32xf32>
    %191 = tpu.matmul %190, %187, %cst_127 {dimension_numbers = #tpu.dot_dimension_numbers<[1], [0], [0], [1], [0, 0, 1, 1], [], []>} : vector<16x32xf32>, vector<32x32xf32>, vector<16x32xf32> -> vector<16x32xf32>
    %192 = vector.broadcast %188 : vector<1x32xf32> to vector<16x32xf32>
    %193 = arith.addf %191, %192 : vector<16x32xf32>
    %cst_128 = arith.constant dense<0.000000e+00> : vector<16x32xf32>
    %194 = tpu.matmul %186, %189, %cst_128 {dimension_numbers = #tpu.dot_dimension_numbers<[1], [0], [0], [1], [0, 0, 1, 1], [], []>} : vector<16x32xf32>, vector<32x32xf32>, vector<16x32xf32> -> vector<16x32xf32>
    %195 = arith.addf %193, %194 : vector<16x32xf32>
    %cst_129 = arith.constant 0.000000e+00 : f32
    %196 = vector.broadcast %cst_129 : f32 to vector<16x32xf32>
    %197 = arith.cmpf ogt, %195, %196 : vector<16x32xf32>
    %cst_130 = arith.constant 0.000000e+00 : f32
    %198 = vector.broadcast %cst_130 : f32 to vector<16x32xf32>
    %199 = arith.minimumf %195, %198 : vector<16x32xf32>
    %200 = math.exp %199 : vector<16x32xf32>
    %cst_131 = arith.constant 1.000000e+00 : f32
    %201 = vector.broadcast %cst_131 : f32 to vector<16x32xf32>
    %202 = arith.subf %200, %201 : vector<16x32xf32>
    %203 = arith.select %197, %195, %202 : vector<16x32xi1>, vector<16x32xf32>
    %c0_132 = arith.constant 0 : index
    %c0_133 = arith.constant 0 : index
    %204 = vector.load %arg39[%c0_132, %c0_133] : memref<32x192xf32, #tpu.memory_space<vmem>>, vector<32x192xf32>
    %c0_134 = arith.constant 0 : index
    %c0_135 = arith.constant 0 : index
    %205 = vector.load %arg40[%c0_134, %c0_135] : memref<32x192xf32, #tpu.memory_space<vmem>>, vector<32x192xf32>
    %c0_136 = arith.constant 0 : index
    %c0_137 = arith.constant 0 : index
    %206 = vector.load %arg41[%c0_136, %c0_137] : memref<1x192xf32, #tpu.memory_space<vmem>>, vector<1x192xf32>
    %c0_138 = arith.constant 0 : index
    %c0_139 = arith.constant 0 : index
    %207 = vector.load %arg42[%c0_138, %c0_139] : memref<1x192xf32, #tpu.memory_space<vmem>>, vector<1x192xf32>
    %c0_140 = arith.constant 0 : index
    %c0_141 = arith.constant 0 : index
    %208 = vector.load %arg43[%c0_140, %c0_141] : memref<1x192xf32, #tpu.memory_space<vmem>>, vector<1x192xf32>
    %c0_142 = arith.constant 0 : index
    %c0_143 = arith.constant 0 : index
    %209 = vector.load %arg44[%c0_142, %c0_143] : memref<1x192xf32, #tpu.memory_space<vmem>>, vector<1x192xf32>
    %cst_144 = arith.constant dense<0.000000e+00> : vector<16x192xf32>
    %210 = tpu.matmul %203, %204, %cst_144 {dimension_numbers = #tpu.dot_dimension_numbers<[1], [0], [0], [1], [0, 0, 1, 1], [], []>} : vector<16x32xf32>, vector<32x192xf32>, vector<16x192xf32> -> vector<16x192xf32>
    %cst_145 = arith.constant dense<0.000000e+00> : vector<12x192xf32>
    %211 = tpu.matmul %69, %204, %cst_145 {dimension_numbers = #tpu.dot_dimension_numbers<[1], [0], [0], [1], [0, 0, 1, 1], [], []>} : vector<12x32xf32>, vector<32x192xf32>, vector<12x192xf32> -> vector<12x192xf32>
    %cst_146 = arith.constant dense<0.000000e+00> : vector<24x192xf32>
    %212 = tpu.matmul %76, %205, %cst_146 {dimension_numbers = #tpu.dot_dimension_numbers<[1], [0], [0], [1], [0, 0, 1, 1], [], []>} : vector<24x32xf32>, vector<32x192xf32>, vector<24x192xf32> -> vector<24x192xf32>
    %213 = vector.broadcast %206 : vector<1x192xf32> to vector<16x192xf32>
    %214 = arith.mulf %210, %213 : vector<16x192xf32>
    %cst_147 = arith.constant dense<0.000000e+00> : vector<16x6xf32>
    %215 = tpu.matmul %214, %9, %cst_147 {dimension_numbers = #tpu.dot_dimension_numbers<[1], [0], [0], [1], [0, 0, 1, 1], [], []>} : vector<16x192xf32>, vector<192x6xf32>, vector<16x6xf32> -> vector<16x6xf32>
    %216 = vector.broadcast %207 : vector<1x192xf32> to vector<12x192xf32>
    %217 = arith.mulf %211, %216 : vector<12x192xf32>
    %cst_148 = arith.constant dense<0.000000e+00> : vector<12x6xf32>
    %218 = tpu.matmul %217, %9, %cst_148 {dimension_numbers = #tpu.dot_dimension_numbers<[1], [0], [0], [1], [0, 0, 1, 1], [], []>} : vector<12x192xf32>, vector<192x6xf32>, vector<12x6xf32> -> vector<12x6xf32>
    %219 = vector.broadcast %208 : vector<1x192xf32> to vector<24x192xf32>
    %220 = arith.mulf %212, %219 : vector<24x192xf32>
    %cst_149 = arith.constant dense<0.000000e+00> : vector<24x6xf32>
    %221 = tpu.matmul %220, %9, %cst_149 {dimension_numbers = #tpu.dot_dimension_numbers<[1], [0], [0], [1], [0, 0, 1, 1], [], []>} : vector<24x192xf32>, vector<192x6xf32>, vector<24x6xf32> -> vector<24x6xf32>
    %cst_150 = arith.constant dense<0.000000e+00> : vector<24x6xf32>
    %222 = tpu.matmul %3, %215, %cst_150 {dimension_numbers = #tpu.dot_dimension_numbers<[1], [0], [0], [1], [0, 0, 1, 1], [], []>} : vector<24x16xf32>, vector<16x6xf32>, vector<24x6xf32> -> vector<24x6xf32>
    %cst_151 = arith.constant dense<0.000000e+00> : vector<24x6xf32>
    %223 = tpu.matmul %4, %218, %cst_151 {dimension_numbers = #tpu.dot_dimension_numbers<[1], [0], [0], [1], [0, 0, 1, 1], [], []>} : vector<24x12xf32>, vector<12x6xf32>, vector<24x6xf32> -> vector<24x6xf32>
    %224 = arith.addf %222, %223 : vector<24x6xf32>
    %225 = arith.addf %224, %221 : vector<24x6xf32>
    %cst_152 = arith.constant 0.000000e+00 : f32
    %226 = vector.broadcast %cst_152 : f32 to vector<24x6xf32>
    %227 = arith.cmpf ogt, %225, %226 : vector<24x6xf32>
    %cst_153 = arith.constant 2.000000e-01 : f32
    %228 = vector.broadcast %cst_153 : f32 to vector<24x6xf32>
    %229 = arith.mulf %228, %225 : vector<24x6xf32>
    %230 = arith.select %227, %225, %229 : vector<24x6xi1>, vector<24x6xf32>
    %cst_154 = arith.constant dense<0xFF800000> : vector<6xf32>
    %231 = vector.multi_reduction <maximumf>, %230, %cst_154 [0] : vector<24x6xf32> to vector<6xf32>
    %232 = vector.shape_cast %231 : vector<6xf32> to vector<1x6xf32>
    %233 = vector.broadcast %232 : vector<1x6xf32> to vector<24x6xf32>
    %234 = arith.subf %230, %233 : vector<24x6xf32>
    %235 = math.exp %234 : vector<24x6xf32>
    %cst_155 = arith.constant dense<0.000000e+00> : vector<12x6xf32>
    %236 = tpu.matmul %6, %235, %cst_155 {dimension_numbers = #tpu.dot_dimension_numbers<[1], [0], [0], [1], [0, 0, 1, 1], [], []>} : vector<12x24xf32>, vector<24x6xf32>, vector<12x6xf32> -> vector<12x6xf32>
    %cst_156 = arith.constant dense<0.000000e+00> : vector<24x6xf32>
    %237 = tpu.matmul %4, %236, %cst_156 {dimension_numbers = #tpu.dot_dimension_numbers<[1], [0], [0], [1], [0, 0, 1, 1], [], []>} : vector<24x12xf32>, vector<12x6xf32>, vector<24x6xf32> -> vector<24x6xf32>
    %238 = arith.divf %235, %237 : vector<24x6xf32>
    %cst_157 = arith.constant dense<0.000000e+00> : vector<24x192xf32>
    %239 = tpu.matmul %3, %210, %cst_157 {dimension_numbers = #tpu.dot_dimension_numbers<[1], [0], [0], [1], [0, 0, 1, 1], [], []>} : vector<24x16xf32>, vector<16x192xf32>, vector<24x192xf32> -> vector<24x192xf32>
    %cst_158 = arith.constant dense<0.000000e+00> : vector<24x192xf32>
    %240 = tpu.matmul %238, %8, %cst_158 {dimension_numbers = #tpu.dot_dimension_numbers<[1], [0], [0], [1], [0, 0, 1, 1], [], []>} : vector<24x6xf32>, vector<6x192xf32>, vector<24x192xf32> -> vector<24x192xf32>
    %241 = arith.mulf %240, %239 : vector<24x192xf32>
    %cst_159 = arith.constant dense<0.000000e+00> : vector<12x192xf32>
    %242 = tpu.matmul %6, %241, %cst_159 {dimension_numbers = #tpu.dot_dimension_numbers<[1], [0], [0], [1], [0, 0, 1, 1], [], []>} : vector<12x24xf32>, vector<24x192xf32>, vector<12x192xf32> -> vector<12x192xf32>
    %243 = vector.broadcast %209 : vector<1x192xf32> to vector<12x192xf32>
    %244 = arith.addf %242, %243 : vector<12x192xf32>
    %c0_160 = arith.constant 0 : index
    %c0_161 = arith.constant 0 : index
    %245 = vector.load %arg45[%c0_160, %c0_161] : memref<192x32xf32, #tpu.memory_space<vmem>>, vector<192x32xf32>
    %c0_162 = arith.constant 0 : index
    %c0_163 = arith.constant 0 : index
    %246 = vector.load %arg46[%c0_162, %c0_163] : memref<1x32xf32, #tpu.memory_space<vmem>>, vector<1x32xf32>
    %c0_164 = arith.constant 0 : index
    %c0_165 = arith.constant 0 : index
    %247 = vector.load %arg47[%c0_164, %c0_165] : memref<32x32xf32, #tpu.memory_space<vmem>>, vector<32x32xf32>
    %c0_166 = arith.constant 0 : index
    %c0_167 = arith.constant 0 : index
    %248 = vector.load %arg48[%c0_166, %c0_167] : memref<1x32xf32, #tpu.memory_space<vmem>>, vector<1x32xf32>
    %cst_168 = arith.constant dense<0.000000e+00> : vector<12x32xf32>
    %249 = tpu.matmul %244, %245, %cst_168 {dimension_numbers = #tpu.dot_dimension_numbers<[1], [0], [0], [1], [0, 0, 1, 1], [], []>} : vector<12x192xf32>, vector<192x32xf32>, vector<12x32xf32> -> vector<12x32xf32>
    %250 = vector.broadcast %246 : vector<1x32xf32> to vector<12x32xf32>
    %251 = arith.addf %249, %250 : vector<12x32xf32>
    %cst_169 = arith.constant dense<0.000000e+00> : vector<32xf32>
    %252 = vector.multi_reduction <add>, %251, %cst_169 [0] : vector<12x32xf32> to vector<32xf32>
    %253 = vector.shape_cast %252 : vector<32xf32> to vector<1x32xf32>
    %cst_170 = arith.constant 1.200000e+01 : f32
    %254 = vector.broadcast %cst_170 : f32 to vector<1x32xf32>
    %255 = arith.divf %253, %254 : vector<1x32xf32>
    %256 = vector.broadcast %255 : vector<1x32xf32> to vector<12x32xf32>
    %257 = arith.subf %251, %256 : vector<12x32xf32>
    %258 = arith.mulf %257, %257 : vector<12x32xf32>
    %cst_171 = arith.constant dense<0.000000e+00> : vector<32xf32>
    %259 = vector.multi_reduction <add>, %258, %cst_171 [0] : vector<12x32xf32> to vector<32xf32>
    %260 = vector.shape_cast %259 : vector<32xf32> to vector<1x32xf32>
    %cst_172 = arith.constant 1.200000e+01 : f32
    %261 = vector.broadcast %cst_172 : f32 to vector<1x32xf32>
    %262 = arith.divf %260, %261 : vector<1x32xf32>
    %263 = vector.broadcast %255 : vector<1x32xf32> to vector<12x32xf32>
    %264 = arith.subf %251, %263 : vector<12x32xf32>
    %cst_173 = arith.constant 9.99999974E-6 : f32
    %265 = vector.broadcast %cst_173 : f32 to vector<1x32xf32>
    %266 = arith.addf %262, %265 : vector<1x32xf32>
    %267 = math.rsqrt %266 : vector<1x32xf32>
    %268 = vector.broadcast %267 : vector<1x32xf32> to vector<12x32xf32>
    %269 = arith.mulf %264, %268 : vector<12x32xf32>
    %cst_174 = arith.constant dense<0.000000e+00> : vector<12x32xf32>
    %270 = tpu.matmul %269, %247, %cst_174 {dimension_numbers = #tpu.dot_dimension_numbers<[1], [0], [0], [1], [0, 0, 1, 1], [], []>} : vector<12x32xf32>, vector<32x32xf32>, vector<12x32xf32> -> vector<12x32xf32>
    %271 = vector.broadcast %248 : vector<1x32xf32> to vector<12x32xf32>
    %272 = arith.addf %270, %271 : vector<12x32xf32>
    %cst_175 = arith.constant 0.000000e+00 : f32
    %273 = vector.broadcast %cst_175 : f32 to vector<12x32xf32>
    %274 = arith.maximumf %272, %273 : vector<12x32xf32>
    %c0_176 = arith.constant 0 : index
    %c0_177 = arith.constant 0 : index
    %275 = vector.load %arg49[%c0_176, %c0_177] : memref<64x32xf32, #tpu.memory_space<vmem>>, vector<64x32xf32>
    %c0_178 = arith.constant 0 : index
    %c0_179 = arith.constant 0 : index
    %276 = vector.load %arg50[%c0_178, %c0_179] : memref<1x32xf32, #tpu.memory_space<vmem>>, vector<1x32xf32>
    %277 = vector.extract_strided_slice %275 {offsets = [0, 0], sizes = [32, 32], strides = [1, 1]} : vector<64x32xf32> to vector<32x32xf32>
    %cst_180 = arith.constant dense<0.000000e+00> : vector<12x32xf32>
    %278 = tpu.matmul %69, %277, %cst_180 {dimension_numbers = #tpu.dot_dimension_numbers<[1], [0], [0], [1], [0, 0, 1, 1], [], []>} : vector<12x32xf32>, vector<32x32xf32>, vector<12x32xf32> -> vector<12x32xf32>
    %279 = vector.extract_strided_slice %275 {offsets = [32, 0], sizes = [32, 32], strides = [1, 1]} : vector<64x32xf32> to vector<32x32xf32>
    %cst_181 = arith.constant dense<0.000000e+00> : vector<12x32xf32>
    %280 = tpu.matmul %274, %279, %cst_181 {dimension_numbers = #tpu.dot_dimension_numbers<[1], [0], [0], [1], [0, 0, 1, 1], [], []>} : vector<12x32xf32>, vector<32x32xf32>, vector<12x32xf32> -> vector<12x32xf32>
    %281 = arith.addf %278, %280 : vector<12x32xf32>
    %282 = vector.broadcast %276 : vector<1x32xf32> to vector<12x32xf32>
    %283 = arith.addf %281, %282 : vector<12x32xf32>
    %cst_182 = arith.constant dense<0.000000e+00> : vector<24x32xf32>
    %284 = tpu.matmul %3, %203, %cst_182 {dimension_numbers = #tpu.dot_dimension_numbers<[1], [0], [0], [1], [0, 0, 1, 1], [], []>} : vector<24x16xf32>, vector<16x32xf32>, vector<24x32xf32> -> vector<24x32xf32>
    %cst_183 = arith.constant dense<0.000000e+00> : vector<24x32xf32>
    %285 = tpu.matmul %4, %283, %cst_183 {dimension_numbers = #tpu.dot_dimension_numbers<[1], [0], [0], [1], [0, 0, 1, 1], [], []>} : vector<24x12xf32>, vector<12x32xf32>, vector<24x32xf32> -> vector<24x32xf32>
    %c0_184 = arith.constant 0 : index
    %c0_185 = arith.constant 0 : index
    %286 = vector.load %arg51[%c0_184, %c0_185] : memref<96x32xf32, #tpu.memory_space<vmem>>, vector<96x32xf32>
    %c0_186 = arith.constant 0 : index
    %c0_187 = arith.constant 0 : index
    %287 = vector.load %arg52[%c0_186, %c0_187] : memref<1x32xf32, #tpu.memory_space<vmem>>, vector<1x32xf32>
    %c0_188 = arith.constant 0 : index
    %c0_189 = arith.constant 0 : index
    %288 = vector.load %arg53[%c0_188, %c0_189] : memref<32x32xf32, #tpu.memory_space<vmem>>, vector<32x32xf32>
    %c0_190 = arith.constant 0 : index
    %c0_191 = arith.constant 0 : index
    %289 = vector.load %arg54[%c0_190, %c0_191] : memref<1x32xf32, #tpu.memory_space<vmem>>, vector<1x32xf32>
    %290 = vector.extract_strided_slice %286 {offsets = [0, 0], sizes = [32, 32], strides = [1, 1]} : vector<96x32xf32> to vector<32x32xf32>
    %cst_192 = arith.constant dense<0.000000e+00> : vector<24x32xf32>
    %291 = tpu.matmul %76, %290, %cst_192 {dimension_numbers = #tpu.dot_dimension_numbers<[1], [0], [0], [1], [0, 0, 1, 1], [], []>} : vector<24x32xf32>, vector<32x32xf32>, vector<24x32xf32> -> vector<24x32xf32>
    %292 = vector.extract_strided_slice %286 {offsets = [32, 0], sizes = [32, 32], strides = [1, 1]} : vector<96x32xf32> to vector<32x32xf32>
    %cst_193 = arith.constant dense<0.000000e+00> : vector<24x32xf32>
    %293 = tpu.matmul %284, %292, %cst_193 {dimension_numbers = #tpu.dot_dimension_numbers<[1], [0], [0], [1], [0, 0, 1, 1], [], []>} : vector<24x32xf32>, vector<32x32xf32>, vector<24x32xf32> -> vector<24x32xf32>
    %294 = arith.addf %291, %293 : vector<24x32xf32>
    %295 = vector.extract_strided_slice %286 {offsets = [64, 0], sizes = [32, 32], strides = [1, 1]} : vector<96x32xf32> to vector<32x32xf32>
    %cst_194 = arith.constant dense<0.000000e+00> : vector<24x32xf32>
    %296 = tpu.matmul %285, %295, %cst_194 {dimension_numbers = #tpu.dot_dimension_numbers<[1], [0], [0], [1], [0, 0, 1, 1], [], []>} : vector<24x32xf32>, vector<32x32xf32>, vector<24x32xf32> -> vector<24x32xf32>
    %297 = arith.addf %294, %296 : vector<24x32xf32>
    %298 = vector.broadcast %287 : vector<1x32xf32> to vector<24x32xf32>
    %299 = arith.addf %297, %298 : vector<24x32xf32>
    %cst_195 = arith.constant dense<0.000000e+00> : vector<32xf32>
    %300 = vector.multi_reduction <add>, %299, %cst_195 [0] : vector<24x32xf32> to vector<32xf32>
    %301 = vector.shape_cast %300 : vector<32xf32> to vector<1x32xf32>
    %cst_196 = arith.constant 2.400000e+01 : f32
    %302 = vector.broadcast %cst_196 : f32 to vector<1x32xf32>
    %303 = arith.divf %301, %302 : vector<1x32xf32>
    %304 = vector.broadcast %303 : vector<1x32xf32> to vector<24x32xf32>
    %305 = arith.subf %299, %304 : vector<24x32xf32>
    %306 = arith.mulf %305, %305 : vector<24x32xf32>
    %cst_197 = arith.constant dense<0.000000e+00> : vector<32xf32>
    %307 = vector.multi_reduction <add>, %306, %cst_197 [0] : vector<24x32xf32> to vector<32xf32>
    %308 = vector.shape_cast %307 : vector<32xf32> to vector<1x32xf32>
    %cst_198 = arith.constant 2.400000e+01 : f32
    %309 = vector.broadcast %cst_198 : f32 to vector<1x32xf32>
    %310 = arith.divf %308, %309 : vector<1x32xf32>
    %311 = vector.broadcast %303 : vector<1x32xf32> to vector<24x32xf32>
    %312 = arith.subf %299, %311 : vector<24x32xf32>
    %cst_199 = arith.constant 9.99999974E-6 : f32
    %313 = vector.broadcast %cst_199 : f32 to vector<1x32xf32>
    %314 = arith.addf %310, %313 : vector<1x32xf32>
    %315 = math.rsqrt %314 : vector<1x32xf32>
    %316 = vector.broadcast %315 : vector<1x32xf32> to vector<24x32xf32>
    %317 = arith.mulf %312, %316 : vector<24x32xf32>
    %cst_200 = arith.constant dense<0.000000e+00> : vector<24x32xf32>
    %318 = tpu.matmul %317, %288, %cst_200 {dimension_numbers = #tpu.dot_dimension_numbers<[1], [0], [0], [1], [0, 0, 1, 1], [], []>} : vector<24x32xf32>, vector<32x32xf32>, vector<24x32xf32> -> vector<24x32xf32>
    %319 = vector.broadcast %289 : vector<1x32xf32> to vector<24x32xf32>
    %320 = arith.addf %318, %319 : vector<24x32xf32>
    %cst_201 = arith.constant 0.000000e+00 : f32
    %321 = vector.broadcast %cst_201 : f32 to vector<24x32xf32>
    %322 = arith.maximumf %320, %321 : vector<24x32xf32>
    %c0_202 = arith.constant 0 : index
    %c0_203 = arith.constant 0 : index
    %323 = vector.load %arg55[%c0_202, %c0_203] : memref<32x32xf32, #tpu.memory_space<vmem>>, vector<32x32xf32>
    %c0_204 = arith.constant 0 : index
    %c0_205 = arith.constant 0 : index
    %324 = vector.load %arg56[%c0_204, %c0_205] : memref<1x32xf32, #tpu.memory_space<vmem>>, vector<1x32xf32>
    %c0_206 = arith.constant 0 : index
    %c0_207 = arith.constant 0 : index
    %325 = vector.load %arg57[%c0_206, %c0_207] : memref<32x32xf32, #tpu.memory_space<vmem>>, vector<32x32xf32>
    %c0_208 = arith.constant 0 : index
    %c0_209 = arith.constant 0 : index
    %326 = vector.load %arg58[%c0_208, %c0_209] : memref<1x32xf32, #tpu.memory_space<vmem>>, vector<1x32xf32>
    %cst_210 = arith.constant dense<0.000000e+00> : vector<16x32xf32>
    %327 = tpu.matmul %203, %323, %cst_210 {dimension_numbers = #tpu.dot_dimension_numbers<[1], [0], [0], [1], [0, 0, 1, 1], [], []>} : vector<16x32xf32>, vector<32x32xf32>, vector<16x32xf32> -> vector<16x32xf32>
    %328 = vector.broadcast %324 : vector<1x32xf32> to vector<16x32xf32>
    %329 = arith.addf %327, %328 : vector<16x32xf32>
    %cst_211 = arith.constant dense<0.000000e+00> : vector<32xf32>
    %330 = vector.multi_reduction <add>, %329, %cst_211 [0] : vector<16x32xf32> to vector<32xf32>
    %331 = vector.shape_cast %330 : vector<32xf32> to vector<1x32xf32>
    %cst_212 = arith.constant 1.600000e+01 : f32
    %332 = vector.broadcast %cst_212 : f32 to vector<1x32xf32>
    %333 = arith.divf %331, %332 : vector<1x32xf32>
    %334 = vector.broadcast %333 : vector<1x32xf32> to vector<16x32xf32>
    %335 = arith.subf %329, %334 : vector<16x32xf32>
    %336 = arith.mulf %335, %335 : vector<16x32xf32>
    %cst_213 = arith.constant dense<0.000000e+00> : vector<32xf32>
    %337 = vector.multi_reduction <add>, %336, %cst_213 [0] : vector<16x32xf32> to vector<32xf32>
    %338 = vector.shape_cast %337 : vector<32xf32> to vector<1x32xf32>
    %cst_214 = arith.constant 1.600000e+01 : f32
    %339 = vector.broadcast %cst_214 : f32 to vector<1x32xf32>
    %340 = arith.divf %338, %339 : vector<1x32xf32>
    %341 = vector.broadcast %333 : vector<1x32xf32> to vector<16x32xf32>
    %342 = arith.subf %329, %341 : vector<16x32xf32>
    %cst_215 = arith.constant 9.99999974E-6 : f32
    %343 = vector.broadcast %cst_215 : f32 to vector<1x32xf32>
    %344 = arith.addf %340, %343 : vector<1x32xf32>
    %345 = math.rsqrt %344 : vector<1x32xf32>
    %346 = vector.broadcast %345 : vector<1x32xf32> to vector<16x32xf32>
    %347 = arith.mulf %342, %346 : vector<16x32xf32>
    %cst_216 = arith.constant dense<0.000000e+00> : vector<16x32xf32>
    %348 = tpu.matmul %347, %325, %cst_216 {dimension_numbers = #tpu.dot_dimension_numbers<[1], [0], [0], [1], [0, 0, 1, 1], [], []>} : vector<16x32xf32>, vector<32x32xf32>, vector<16x32xf32> -> vector<16x32xf32>
    %349 = vector.broadcast %326 : vector<1x32xf32> to vector<16x32xf32>
    %350 = arith.addf %348, %349 : vector<16x32xf32>
    %cst_217 = arith.constant 0.000000e+00 : f32
    %351 = vector.broadcast %cst_217 : f32 to vector<16x32xf32>
    %352 = arith.maximumf %350, %351 : vector<16x32xf32>
    %c0_218 = arith.constant 0 : index
    %c0_219 = arith.constant 0 : index
    %353 = vector.load %arg59[%c0_218, %c0_219] : memref<32x32xf32, #tpu.memory_space<vmem>>, vector<32x32xf32>
    %c0_220 = arith.constant 0 : index
    %c0_221 = arith.constant 0 : index
    %354 = vector.load %arg60[%c0_220, %c0_221] : memref<1x32xf32, #tpu.memory_space<vmem>>, vector<1x32xf32>
    %c0_222 = arith.constant 0 : index
    %c0_223 = arith.constant 0 : index
    %355 = vector.load %arg61[%c0_222, %c0_223] : memref<32x32xf32, #tpu.memory_space<vmem>>, vector<32x32xf32>
    %c0_224 = arith.constant 0 : index
    %c0_225 = arith.constant 0 : index
    %356 = vector.load %arg62[%c0_224, %c0_225] : memref<1x32xf32, #tpu.memory_space<vmem>>, vector<1x32xf32>
    %cst_226 = arith.constant dense<0.000000e+00> : vector<12x32xf32>
    %357 = tpu.matmul %283, %353, %cst_226 {dimension_numbers = #tpu.dot_dimension_numbers<[1], [0], [0], [1], [0, 0, 1, 1], [], []>} : vector<12x32xf32>, vector<32x32xf32>, vector<12x32xf32> -> vector<12x32xf32>
    %358 = vector.broadcast %354 : vector<1x32xf32> to vector<12x32xf32>
    %359 = arith.addf %357, %358 : vector<12x32xf32>
    %cst_227 = arith.constant dense<0.000000e+00> : vector<32xf32>
    %360 = vector.multi_reduction <add>, %359, %cst_227 [0] : vector<12x32xf32> to vector<32xf32>
    %361 = vector.shape_cast %360 : vector<32xf32> to vector<1x32xf32>
    %cst_228 = arith.constant 1.200000e+01 : f32
    %362 = vector.broadcast %cst_228 : f32 to vector<1x32xf32>
    %363 = arith.divf %361, %362 : vector<1x32xf32>
    %364 = vector.broadcast %363 : vector<1x32xf32> to vector<12x32xf32>
    %365 = arith.subf %359, %364 : vector<12x32xf32>
    %366 = arith.mulf %365, %365 : vector<12x32xf32>
    %cst_229 = arith.constant dense<0.000000e+00> : vector<32xf32>
    %367 = vector.multi_reduction <add>, %366, %cst_229 [0] : vector<12x32xf32> to vector<32xf32>
    %368 = vector.shape_cast %367 : vector<32xf32> to vector<1x32xf32>
    %cst_230 = arith.constant 1.200000e+01 : f32
    %369 = vector.broadcast %cst_230 : f32 to vector<1x32xf32>
    %370 = arith.divf %368, %369 : vector<1x32xf32>
    %371 = vector.broadcast %363 : vector<1x32xf32> to vector<12x32xf32>
    %372 = arith.subf %359, %371 : vector<12x32xf32>
    %cst_231 = arith.constant 9.99999974E-6 : f32
    %373 = vector.broadcast %cst_231 : f32 to vector<1x32xf32>
    %374 = arith.addf %370, %373 : vector<1x32xf32>
    %375 = math.rsqrt %374 : vector<1x32xf32>
    %376 = vector.broadcast %375 : vector<1x32xf32> to vector<12x32xf32>
    %377 = arith.mulf %372, %376 : vector<12x32xf32>
    %cst_232 = arith.constant dense<0.000000e+00> : vector<12x32xf32>
    %378 = tpu.matmul %377, %355, %cst_232 {dimension_numbers = #tpu.dot_dimension_numbers<[1], [0], [0], [1], [0, 0, 1, 1], [], []>} : vector<12x32xf32>, vector<32x32xf32>, vector<12x32xf32> -> vector<12x32xf32>
    %379 = vector.broadcast %356 : vector<1x32xf32> to vector<12x32xf32>
    %380 = arith.addf %378, %379 : vector<12x32xf32>
    %cst_233 = arith.constant 0.000000e+00 : f32
    %381 = vector.broadcast %cst_233 : f32 to vector<12x32xf32>
    %382 = arith.maximumf %380, %381 : vector<12x32xf32>
    %c0_234 = arith.constant 0 : index
    %c0_235 = arith.constant 0 : index
    %383 = vector.load %arg63[%c0_234, %c0_235] : memref<32x32xf32, #tpu.memory_space<vmem>>, vector<32x32xf32>
    %c0_236 = arith.constant 0 : index
    %c0_237 = arith.constant 0 : index
    %384 = vector.load %arg64[%c0_236, %c0_237] : memref<1x32xf32, #tpu.memory_space<vmem>>, vector<1x32xf32>
    %cst_238 = arith.constant dense<0.000000e+00> : vector<24x32xf32>
    %385 = tpu.matmul %322, %383, %cst_238 {dimension_numbers = #tpu.dot_dimension_numbers<[1], [0], [0], [1], [0, 0, 1, 1], [], []>} : vector<24x32xf32>, vector<32x32xf32>, vector<24x32xf32> -> vector<24x32xf32>
    %386 = vector.broadcast %384 : vector<1x32xf32> to vector<24x32xf32>
    %387 = arith.addf %385, %386 : vector<24x32xf32>
    %c0_239 = arith.constant 0 : index
    %c0_240 = arith.constant 0 : index
    %388 = vector.load %arg65[%c0_239, %c0_240] : memref<32x192xf32, #tpu.memory_space<vmem>>, vector<32x192xf32>
    %c0_241 = arith.constant 0 : index
    %c0_242 = arith.constant 0 : index
    %389 = vector.load %arg66[%c0_241, %c0_242] : memref<32x192xf32, #tpu.memory_space<vmem>>, vector<32x192xf32>
    %c0_243 = arith.constant 0 : index
    %c0_244 = arith.constant 0 : index
    %390 = vector.load %arg67[%c0_243, %c0_244] : memref<1x192xf32, #tpu.memory_space<vmem>>, vector<1x192xf32>
    %c0_245 = arith.constant 0 : index
    %c0_246 = arith.constant 0 : index
    %391 = vector.load %arg68[%c0_245, %c0_246] : memref<1x192xf32, #tpu.memory_space<vmem>>, vector<1x192xf32>
    %c0_247 = arith.constant 0 : index
    %c0_248 = arith.constant 0 : index
    %392 = vector.load %arg69[%c0_247, %c0_248] : memref<1x192xf32, #tpu.memory_space<vmem>>, vector<1x192xf32>
    %c0_249 = arith.constant 0 : index
    %c0_250 = arith.constant 0 : index
    %393 = vector.load %arg70[%c0_249, %c0_250] : memref<1x192xf32, #tpu.memory_space<vmem>>, vector<1x192xf32>
    %cst_251 = arith.constant dense<0.000000e+00> : vector<12x192xf32>
    %394 = tpu.matmul %382, %388, %cst_251 {dimension_numbers = #tpu.dot_dimension_numbers<[1], [0], [0], [1], [0, 0, 1, 1], [], []>} : vector<12x32xf32>, vector<32x192xf32>, vector<12x192xf32> -> vector<12x192xf32>
    %cst_252 = arith.constant dense<0.000000e+00> : vector<16x192xf32>
    %395 = tpu.matmul %352, %388, %cst_252 {dimension_numbers = #tpu.dot_dimension_numbers<[1], [0], [0], [1], [0, 0, 1, 1], [], []>} : vector<16x32xf32>, vector<32x192xf32>, vector<16x192xf32> -> vector<16x192xf32>
    %cst_253 = arith.constant dense<0.000000e+00> : vector<24x192xf32>
    %396 = tpu.matmul %387, %389, %cst_253 {dimension_numbers = #tpu.dot_dimension_numbers<[1], [0], [0], [1], [0, 0, 1, 1], [], []>} : vector<24x32xf32>, vector<32x192xf32>, vector<24x192xf32> -> vector<24x192xf32>
    %397 = vector.broadcast %390 : vector<1x192xf32> to vector<12x192xf32>
    %398 = arith.mulf %394, %397 : vector<12x192xf32>
    %cst_254 = arith.constant dense<0.000000e+00> : vector<12x6xf32>
    %399 = tpu.matmul %398, %9, %cst_254 {dimension_numbers = #tpu.dot_dimension_numbers<[1], [0], [0], [1], [0, 0, 1, 1], [], []>} : vector<12x192xf32>, vector<192x6xf32>, vector<12x6xf32> -> vector<12x6xf32>
    %400 = vector.broadcast %391 : vector<1x192xf32> to vector<16x192xf32>
    %401 = arith.mulf %395, %400 : vector<16x192xf32>
    %cst_255 = arith.constant dense<0.000000e+00> : vector<16x6xf32>
    %402 = tpu.matmul %401, %9, %cst_255 {dimension_numbers = #tpu.dot_dimension_numbers<[1], [0], [0], [1], [0, 0, 1, 1], [], []>} : vector<16x192xf32>, vector<192x6xf32>, vector<16x6xf32> -> vector<16x6xf32>
    %403 = vector.broadcast %392 : vector<1x192xf32> to vector<24x192xf32>
    %404 = arith.mulf %396, %403 : vector<24x192xf32>
    %cst_256 = arith.constant dense<0.000000e+00> : vector<24x6xf32>
    %405 = tpu.matmul %404, %9, %cst_256 {dimension_numbers = #tpu.dot_dimension_numbers<[1], [0], [0], [1], [0, 0, 1, 1], [], []>} : vector<24x192xf32>, vector<192x6xf32>, vector<24x6xf32> -> vector<24x6xf32>
    %cst_257 = arith.constant dense<0.000000e+00> : vector<24x6xf32>
    %406 = tpu.matmul %4, %399, %cst_257 {dimension_numbers = #tpu.dot_dimension_numbers<[1], [0], [0], [1], [0, 0, 1, 1], [], []>} : vector<24x12xf32>, vector<12x6xf32>, vector<24x6xf32> -> vector<24x6xf32>
    %cst_258 = arith.constant dense<0.000000e+00> : vector<24x6xf32>
    %407 = tpu.matmul %3, %402, %cst_258 {dimension_numbers = #tpu.dot_dimension_numbers<[1], [0], [0], [1], [0, 0, 1, 1], [], []>} : vector<24x16xf32>, vector<16x6xf32>, vector<24x6xf32> -> vector<24x6xf32>
    %408 = arith.addf %406, %407 : vector<24x6xf32>
    %409 = arith.addf %408, %405 : vector<24x6xf32>
    %cst_259 = arith.constant 0.000000e+00 : f32
    %410 = vector.broadcast %cst_259 : f32 to vector<24x6xf32>
    %411 = arith.cmpf ogt, %409, %410 : vector<24x6xf32>
    %cst_260 = arith.constant 2.000000e-01 : f32
    %412 = vector.broadcast %cst_260 : f32 to vector<24x6xf32>
    %413 = arith.mulf %412, %409 : vector<24x6xf32>
    %414 = arith.select %411, %409, %413 : vector<24x6xi1>, vector<24x6xf32>
    %cst_261 = arith.constant dense<0xFF800000> : vector<6xf32>
    %415 = vector.multi_reduction <maximumf>, %414, %cst_261 [0] : vector<24x6xf32> to vector<6xf32>
    %416 = vector.shape_cast %415 : vector<6xf32> to vector<1x6xf32>
    %417 = vector.broadcast %416 : vector<1x6xf32> to vector<24x6xf32>
    %418 = arith.subf %414, %417 : vector<24x6xf32>
    %419 = math.exp %418 : vector<24x6xf32>
    %cst_262 = arith.constant dense<0.000000e+00> : vector<16x6xf32>
    %420 = tpu.matmul %5, %419, %cst_262 {dimension_numbers = #tpu.dot_dimension_numbers<[1], [0], [0], [1], [0, 0, 1, 1], [], []>} : vector<16x24xf32>, vector<24x6xf32>, vector<16x6xf32> -> vector<16x6xf32>
    %cst_263 = arith.constant dense<0.000000e+00> : vector<24x6xf32>
    %421 = tpu.matmul %3, %420, %cst_263 {dimension_numbers = #tpu.dot_dimension_numbers<[1], [0], [0], [1], [0, 0, 1, 1], [], []>} : vector<24x16xf32>, vector<16x6xf32>, vector<24x6xf32> -> vector<24x6xf32>
    %422 = arith.divf %419, %421 : vector<24x6xf32>
    %cst_264 = arith.constant dense<0.000000e+00> : vector<24x192xf32>
    %423 = tpu.matmul %4, %394, %cst_264 {dimension_numbers = #tpu.dot_dimension_numbers<[1], [0], [0], [1], [0, 0, 1, 1], [], []>} : vector<24x12xf32>, vector<12x192xf32>, vector<24x192xf32> -> vector<24x192xf32>
    %cst_265 = arith.constant dense<0.000000e+00> : vector<24x192xf32>
    %424 = tpu.matmul %422, %8, %cst_265 {dimension_numbers = #tpu.dot_dimension_numbers<[1], [0], [0], [1], [0, 0, 1, 1], [], []>} : vector<24x6xf32>, vector<6x192xf32>, vector<24x192xf32> -> vector<24x192xf32>
    %425 = arith.mulf %424, %423 : vector<24x192xf32>
    %cst_266 = arith.constant dense<0.000000e+00> : vector<16x192xf32>
    %426 = tpu.matmul %5, %425, %cst_266 {dimension_numbers = #tpu.dot_dimension_numbers<[1], [0], [0], [1], [0, 0, 1, 1], [], []>} : vector<16x24xf32>, vector<24x192xf32>, vector<16x192xf32> -> vector<16x192xf32>
    %427 = vector.broadcast %393 : vector<1x192xf32> to vector<16x192xf32>
    %428 = arith.addf %426, %427 : vector<16x192xf32>
    %c0_267 = arith.constant 0 : index
    %c0_268 = arith.constant 0 : index
    %429 = vector.load %arg71[%c0_267, %c0_268] : memref<192x32xf32, #tpu.memory_space<vmem>>, vector<192x32xf32>
    %c0_269 = arith.constant 0 : index
    %c0_270 = arith.constant 0 : index
    %430 = vector.load %arg72[%c0_269, %c0_270] : memref<1x32xf32, #tpu.memory_space<vmem>>, vector<1x32xf32>
    %c0_271 = arith.constant 0 : index
    %c0_272 = arith.constant 0 : index
    %431 = vector.load %arg73[%c0_271, %c0_272] : memref<32x32xf32, #tpu.memory_space<vmem>>, vector<32x32xf32>
    %c0_273 = arith.constant 0 : index
    %c0_274 = arith.constant 0 : index
    %432 = vector.load %arg74[%c0_273, %c0_274] : memref<1x32xf32, #tpu.memory_space<vmem>>, vector<1x32xf32>
    %cst_275 = arith.constant dense<0.000000e+00> : vector<16x32xf32>
    %433 = tpu.matmul %428, %429, %cst_275 {dimension_numbers = #tpu.dot_dimension_numbers<[1], [0], [0], [1], [0, 0, 1, 1], [], []>} : vector<16x192xf32>, vector<192x32xf32>, vector<16x32xf32> -> vector<16x32xf32>
    %434 = vector.broadcast %430 : vector<1x32xf32> to vector<16x32xf32>
    %435 = arith.addf %433, %434 : vector<16x32xf32>
    %cst_276 = arith.constant dense<0.000000e+00> : vector<32xf32>
    %436 = vector.multi_reduction <add>, %435, %cst_276 [0] : vector<16x32xf32> to vector<32xf32>
    %437 = vector.shape_cast %436 : vector<32xf32> to vector<1x32xf32>
    %cst_277 = arith.constant 1.600000e+01 : f32
    %438 = vector.broadcast %cst_277 : f32 to vector<1x32xf32>
    %439 = arith.divf %437, %438 : vector<1x32xf32>
    %440 = vector.broadcast %439 : vector<1x32xf32> to vector<16x32xf32>
    %441 = arith.subf %435, %440 : vector<16x32xf32>
    %442 = arith.mulf %441, %441 : vector<16x32xf32>
    %cst_278 = arith.constant dense<0.000000e+00> : vector<32xf32>
    %443 = vector.multi_reduction <add>, %442, %cst_278 [0] : vector<16x32xf32> to vector<32xf32>
    %444 = vector.shape_cast %443 : vector<32xf32> to vector<1x32xf32>
    %cst_279 = arith.constant 1.600000e+01 : f32
    %445 = vector.broadcast %cst_279 : f32 to vector<1x32xf32>
    %446 = arith.divf %444, %445 : vector<1x32xf32>
    %447 = vector.broadcast %439 : vector<1x32xf32> to vector<16x32xf32>
    %448 = arith.subf %435, %447 : vector<16x32xf32>
    %cst_280 = arith.constant 9.99999974E-6 : f32
    %449 = vector.broadcast %cst_280 : f32 to vector<1x32xf32>
    %450 = arith.addf %446, %449 : vector<1x32xf32>
    %451 = math.rsqrt %450 : vector<1x32xf32>
    %452 = vector.broadcast %451 : vector<1x32xf32> to vector<16x32xf32>
    %453 = arith.mulf %448, %452 : vector<16x32xf32>
    %cst_281 = arith.constant dense<0.000000e+00> : vector<16x32xf32>
    %454 = tpu.matmul %453, %431, %cst_281 {dimension_numbers = #tpu.dot_dimension_numbers<[1], [0], [0], [1], [0, 0, 1, 1], [], []>} : vector<16x32xf32>, vector<32x32xf32>, vector<16x32xf32> -> vector<16x32xf32>
    %455 = vector.broadcast %432 : vector<1x32xf32> to vector<16x32xf32>
    %456 = arith.addf %454, %455 : vector<16x32xf32>
    %cst_282 = arith.constant 0.000000e+00 : f32
    %457 = vector.broadcast %cst_282 : f32 to vector<16x32xf32>
    %458 = arith.maximumf %456, %457 : vector<16x32xf32>
    %c0_283 = arith.constant 0 : index
    %c0_284 = arith.constant 0 : index
    %459 = vector.load %arg75[%c0_283, %c0_284] : memref<64x32xf32, #tpu.memory_space<vmem>>, vector<64x32xf32>
    %c0_285 = arith.constant 0 : index
    %c0_286 = arith.constant 0 : index
    %460 = vector.load %arg76[%c0_285, %c0_286] : memref<1x32xf32, #tpu.memory_space<vmem>>, vector<1x32xf32>
    %461 = vector.extract_strided_slice %459 {offsets = [0, 0], sizes = [32, 32], strides = [1, 1]} : vector<64x32xf32> to vector<32x32xf32>
    %cst_287 = arith.constant dense<0.000000e+00> : vector<16x32xf32>
    %462 = tpu.matmul %352, %461, %cst_287 {dimension_numbers = #tpu.dot_dimension_numbers<[1], [0], [0], [1], [0, 0, 1, 1], [], []>} : vector<16x32xf32>, vector<32x32xf32>, vector<16x32xf32> -> vector<16x32xf32>
    %463 = vector.extract_strided_slice %459 {offsets = [32, 0], sizes = [32, 32], strides = [1, 1]} : vector<64x32xf32> to vector<32x32xf32>
    %cst_288 = arith.constant dense<0.000000e+00> : vector<16x32xf32>
    %464 = tpu.matmul %458, %463, %cst_288 {dimension_numbers = #tpu.dot_dimension_numbers<[1], [0], [0], [1], [0, 0, 1, 1], [], []>} : vector<16x32xf32>, vector<32x32xf32>, vector<16x32xf32> -> vector<16x32xf32>
    %465 = arith.addf %462, %464 : vector<16x32xf32>
    %466 = vector.broadcast %460 : vector<1x32xf32> to vector<16x32xf32>
    %467 = arith.addf %465, %466 : vector<16x32xf32>
    %c0_289 = arith.constant 0 : index
    %c0_290 = arith.constant 0 : index
    %468 = vector.load %arg77[%c0_289, %c0_290] : memref<32x32xf32, #tpu.memory_space<vmem>>, vector<32x32xf32>
    %c0_291 = arith.constant 0 : index
    %c0_292 = arith.constant 0 : index
    %469 = vector.load %arg78[%c0_291, %c0_292] : memref<1x32xf32, #tpu.memory_space<vmem>>, vector<1x32xf32>
    %c0_293 = arith.constant 0 : index
    %c0_294 = arith.constant 0 : index
    %470 = vector.load %arg79[%c0_293, %c0_294] : memref<32x32xf32, #tpu.memory_space<vmem>>, vector<32x32xf32>
    %c0_295 = arith.constant 0 : index
    %c0_296 = arith.constant 0 : index
    %471 = vector.load %arg80[%c0_295, %c0_296] : memref<1x32xf32, #tpu.memory_space<vmem>>, vector<1x32xf32>
    %cst_297 = arith.constant dense<0.000000e+00> : vector<16x32xf32>
    %472 = tpu.matmul %467, %468, %cst_297 {dimension_numbers = #tpu.dot_dimension_numbers<[1], [0], [0], [1], [0, 0, 1, 1], [], []>} : vector<16x32xf32>, vector<32x32xf32>, vector<16x32xf32> -> vector<16x32xf32>
    %473 = vector.broadcast %469 : vector<1x32xf32> to vector<16x32xf32>
    %474 = arith.addf %472, %473 : vector<16x32xf32>
    %cst_298 = arith.constant dense<0.000000e+00> : vector<32xf32>
    %475 = vector.multi_reduction <add>, %474, %cst_298 [0] : vector<16x32xf32> to vector<32xf32>
    %476 = vector.shape_cast %475 : vector<32xf32> to vector<1x32xf32>
    %cst_299 = arith.constant 1.600000e+01 : f32
    %477 = vector.broadcast %cst_299 : f32 to vector<1x32xf32>
    %478 = arith.divf %476, %477 : vector<1x32xf32>
    %479 = vector.broadcast %478 : vector<1x32xf32> to vector<16x32xf32>
    %480 = arith.subf %474, %479 : vector<16x32xf32>
    %481 = arith.mulf %480, %480 : vector<16x32xf32>
    %cst_300 = arith.constant dense<0.000000e+00> : vector<32xf32>
    %482 = vector.multi_reduction <add>, %481, %cst_300 [0] : vector<16x32xf32> to vector<32xf32>
    %483 = vector.shape_cast %482 : vector<32xf32> to vector<1x32xf32>
    %cst_301 = arith.constant 1.600000e+01 : f32
    %484 = vector.broadcast %cst_301 : f32 to vector<1x32xf32>
    %485 = arith.divf %483, %484 : vector<1x32xf32>
    %486 = vector.broadcast %478 : vector<1x32xf32> to vector<16x32xf32>
    %487 = arith.subf %474, %486 : vector<16x32xf32>
    %cst_302 = arith.constant 9.99999974E-6 : f32
    %488 = vector.broadcast %cst_302 : f32 to vector<1x32xf32>
    %489 = arith.addf %485, %488 : vector<1x32xf32>
    %490 = math.rsqrt %489 : vector<1x32xf32>
    %491 = vector.broadcast %490 : vector<1x32xf32> to vector<16x32xf32>
    %492 = arith.mulf %487, %491 : vector<16x32xf32>
    %cst_303 = arith.constant dense<0.000000e+00> : vector<16x32xf32>
    %493 = tpu.matmul %492, %470, %cst_303 {dimension_numbers = #tpu.dot_dimension_numbers<[1], [0], [0], [1], [0, 0, 1, 1], [], []>} : vector<16x32xf32>, vector<32x32xf32>, vector<16x32xf32> -> vector<16x32xf32>
    %494 = vector.broadcast %471 : vector<1x32xf32> to vector<16x32xf32>
    %495 = arith.addf %493, %494 : vector<16x32xf32>
    %cst_304 = arith.constant 0.000000e+00 : f32
    %496 = vector.broadcast %cst_304 : f32 to vector<16x32xf32>
    %497 = arith.maximumf %495, %496 : vector<16x32xf32>
    %c0_305 = arith.constant 0 : index
    %c0_306 = arith.constant 0 : index
    %498 = vector.load %arg81[%c0_305, %c0_306] : memref<32x32xf32, #tpu.memory_space<vmem>>, vector<32x32xf32>
    %c0_307 = arith.constant 0 : index
    %c0_308 = arith.constant 0 : index
    %499 = vector.load %arg82[%c0_307, %c0_308] : memref<1x32xf32, #tpu.memory_space<vmem>>, vector<1x32xf32>
    %c0_309 = arith.constant 0 : index
    %c0_310 = arith.constant 0 : index
    %500 = vector.load %arg83[%c0_309, %c0_310] : memref<32x32xf32, #tpu.memory_space<vmem>>, vector<32x32xf32>
    %cst_311 = arith.constant dense<0.000000e+00> : vector<16x32xf32>
    %501 = tpu.matmul %7, %497, %cst_311 {dimension_numbers = #tpu.dot_dimension_numbers<[1], [0], [0], [1], [0, 0, 1, 1], [], []>} : vector<16x16xf32>, vector<16x32xf32>, vector<16x32xf32> -> vector<16x32xf32>
    %cst_312 = arith.constant dense<0.000000e+00> : vector<16x32xf32>
    %502 = tpu.matmul %501, %498, %cst_312 {dimension_numbers = #tpu.dot_dimension_numbers<[1], [0], [0], [1], [0, 0, 1, 1], [], []>} : vector<16x32xf32>, vector<32x32xf32>, vector<16x32xf32> -> vector<16x32xf32>
    %503 = vector.broadcast %499 : vector<1x32xf32> to vector<16x32xf32>
    %504 = arith.addf %502, %503 : vector<16x32xf32>
    %cst_313 = arith.constant dense<0.000000e+00> : vector<16x32xf32>
    %505 = tpu.matmul %497, %500, %cst_313 {dimension_numbers = #tpu.dot_dimension_numbers<[1], [0], [0], [1], [0, 0, 1, 1], [], []>} : vector<16x32xf32>, vector<32x32xf32>, vector<16x32xf32> -> vector<16x32xf32>
    %506 = arith.addf %504, %505 : vector<16x32xf32>
    %cst_314 = arith.constant 0.000000e+00 : f32
    %507 = vector.broadcast %cst_314 : f32 to vector<16x32xf32>
    %508 = arith.cmpf ogt, %506, %507 : vector<16x32xf32>
    %cst_315 = arith.constant 0.000000e+00 : f32
    %509 = vector.broadcast %cst_315 : f32 to vector<16x32xf32>
    %510 = arith.minimumf %506, %509 : vector<16x32xf32>
    %511 = math.exp %510 : vector<16x32xf32>
    %cst_316 = arith.constant 1.000000e+00 : f32
    %512 = vector.broadcast %cst_316 : f32 to vector<16x32xf32>
    %513 = arith.subf %511, %512 : vector<16x32xf32>
    %514 = arith.select %508, %506, %513 : vector<16x32xi1>, vector<16x32xf32>
    %c0_317 = arith.constant 0 : index
    %c0_318 = arith.constant 0 : index
    %515 = vector.load %arg100[%c0_317, %c0_318] : memref<32x32xf32, #tpu.memory_space<vmem>>, vector<32x32xf32>
    %c0_319 = arith.constant 0 : index
    %c0_320 = arith.constant 0 : index
    %516 = vector.load %arg101[%c0_319, %c0_320] : memref<1x32xf32, #tpu.memory_space<vmem>>, vector<1x32xf32>
    %c0_321 = arith.constant 0 : index
    %c0_322 = arith.constant 0 : index
    %517 = vector.load %arg102[%c0_321, %c0_322] : memref<32x4xf32, #tpu.memory_space<vmem>>, vector<32x4xf32>
    %c0_323 = arith.constant 0 : index
    %c0_324 = arith.constant 0 : index
    %518 = vector.load %arg103[%c0_323, %c0_324] : memref<1x4xf32, #tpu.memory_space<vmem>>, vector<1x4xf32>
    %cst_325 = arith.constant dense<0.000000e+00> : vector<16x32xf32>
    %519 = tpu.matmul %514, %515, %cst_325 {dimension_numbers = #tpu.dot_dimension_numbers<[1], [0], [0], [1], [0, 0, 1, 1], [], []>} : vector<16x32xf32>, vector<32x32xf32>, vector<16x32xf32> -> vector<16x32xf32>
    %520 = vector.broadcast %516 : vector<1x32xf32> to vector<16x32xf32>
    %521 = arith.addf %519, %520 : vector<16x32xf32>
    %cst_326 = arith.constant 0.000000e+00 : f32
    %522 = vector.broadcast %cst_326 : f32 to vector<16x32xf32>
    %523 = arith.cmpf ogt, %521, %522 : vector<16x32xf32>
    %cst_327 = arith.constant 0.00999999977 : f32
    %524 = vector.broadcast %cst_327 : f32 to vector<16x32xf32>
    %525 = arith.mulf %524, %521 : vector<16x32xf32>
    %526 = arith.select %523, %521, %525 : vector<16x32xi1>, vector<16x32xf32>
    %cst_328 = arith.constant dense<0.000000e+00> : vector<16x4xf32>
    %527 = tpu.matmul %526, %517, %cst_328 {dimension_numbers = #tpu.dot_dimension_numbers<[1], [0], [0], [1], [0, 0, 1, 1], [], []>} : vector<16x32xf32>, vector<32x4xf32>, vector<16x4xf32> -> vector<16x4xf32>
    %528 = vector.broadcast %518 : vector<1x4xf32> to vector<16x4xf32>
    %529 = arith.addf %527, %528 : vector<16x4xf32>
    %cst_329 = arith.constant dense<0xFF800000> : vector<16xf32>
    %530 = vector.multi_reduction <maximumf>, %529, %cst_329 [1] : vector<16x4xf32> to vector<16xf32>
    %531 = vector.shape_cast %530 : vector<16xf32> to vector<16x1xf32>
    %532 = vector.broadcast %531 : vector<16x1xf32> to vector<16x4xf32>
    %533 = arith.subf %529, %532 : vector<16x4xf32>
    %534 = math.exp %533 : vector<16x4xf32>
    %cst_330 = arith.constant dense<0.000000e+00> : vector<16xf32>
    %535 = vector.multi_reduction <add>, %534, %cst_330 [1] : vector<16x4xf32> to vector<16xf32>
    %536 = vector.shape_cast %535 : vector<16xf32> to vector<16x1xf32>
    %537 = math.log %536 : vector<16x1xf32>
    %538 = vector.broadcast %537 : vector<16x1xf32> to vector<16x4xf32>
    %539 = arith.subf %533, %538 : vector<16x4xf32>
    %c0_331 = arith.constant 0 : index
    %c0_332 = arith.constant 0 : index
    %540 = vector.load %arg104[%c0_331, %c0_332] : memref<16x4xf32, #tpu.memory_space<vmem>>, vector<16x4xf32>
    tpu.vector_store %arg104[%c0_331, %c0_332], %539 {strides = array<i32>} : memref<16x4xf32, #tpu.memory_space<vmem>>, vector<16x4xf32>,
    return
  }
}

</mosaic_0001>

<llo_original>
// kernel: fognn_forward.1
$region0: #{fognn_forward.1}
  #allocation0 [shape = 'u32[]', space=smem, size = 0x4, offset = 0x4, fixed_abs, tag = 'smem constant byte address 0x4 - core index']
  #allocation1 [shape = 'u32[144,128]{1,0:T(1,128)}', space=vmem, size = 0x12000, scoped, tag = 'internal scratch']
  %s0 = inlined_call_operand.smem [shape: u32[105], index: -1, kind: input, shape index: {}]
  %s1 = sld [smem:[%s0]]
  %s2 = scalar_lea.smem %s0, 1
  %s3 = sld [smem:[%s2]]
  %s4 = scalar_lea.smem %s0, 2
  %s5 = sld [smem:[%s4]]
  %s6 = scalar_lea.smem %s0, 3
  %s7 = sld [smem:[%s6]]
  %s8 = scalar_lea.smem %s0, 4
  %s9 = sld [smem:[%s8]]
  %s10 = scalar_lea.smem %s0, 5
  %s11 = sld [smem:[%s10]]
  %s12 = scalar_lea.smem %s0, 6
  %s13 = sld [smem:[%s12]]
  %s14 = scalar_lea.smem %s0, 7
  %s15 = sld [smem:[%s14]]
  %s16 = scalar_lea.smem %s0, 8
  %s17 = sld [smem:[%s16]]
  %s18 = scalar_lea.smem %s0, 9
  %s19 = sld [smem:[%s18]]
  %s20 = scalar_lea.smem %s0, 10
  %s21 = sld [smem:[%s20]]
  %s22 = scalar_lea.smem %s0, 11
  %s23 = sld [smem:[%s22]]
  %s24 = scalar_lea.smem %s0, 12
  %s25 = sld [smem:[%s24]]
  %s26 = scalar_lea.smem %s0, 13
  %s27 = sld [smem:[%s26]]
  %s28 = scalar_lea.smem %s0, 14
  %s29 = sld [smem:[%s28]]
  %s30 = scalar_lea.smem %s0, 15
  %s31 = sld [smem:[%s30]]
  %s32 = scalar_lea.smem %s0, 16
  %s33 = sld [smem:[%s32]]
  %s34 = scalar_lea.smem %s0, 17
  %s35 = sld [smem:[%s34]]
  %s36 = scalar_lea.smem %s0, 18
  %s37 = sld [smem:[%s36]]
  %s38 = scalar_lea.smem %s0, 19
  %s39 = sld [smem:[%s38]]
  %s40 = scalar_lea.smem %s0, 20
  %s41 = sld [smem:[%s40]]
  %s42 = scalar_lea.smem %s0, 21
  %s43 = sld [smem:[%s42]]
  %s44 = scalar_lea.smem %s0, 22
  %s45 = sld [smem:[%s44]]
  %s46 = scalar_lea.smem %s0, 23
  %s47 = sld [smem:[%s46]]
  %s48 = scalar_lea.smem %s0, 24
  %s49 = sld [smem:[%s48]]
  %s50 = scalar_lea.smem %s0, 25
  %s51 = sld [smem:[%s50]]
  %s52 = scalar_lea.smem %s0, 26
  %s53 = sld [smem:[%s52]]
  %s54 = scalar_lea.smem %s0, 27
  %s55 = sld [smem:[%s54]]
  %s56 = scalar_lea.smem %s0, 28
  %s57 = sld [smem:[%s56]]
  %s58 = scalar_lea.smem %s0, 29
  %s59 = sld [smem:[%s58]]
  %s60 = scalar_lea.smem %s0, 30
  %s61 = sld [smem:[%s60]]
  %s62 = scalar_lea.smem %s0, 31
  %s63 = sld [smem:[%s62]]
  %s64 = scalar_lea.smem %s0, 32
  %s65 = sld [smem:[%s64]]
  %s66 = scalar_lea.smem %s0, 33
  %s67 = sld [smem:[%s66]]
  %s68 = scalar_lea.smem %s0, 34
  %s69 = sld [smem:[%s68]]
  %s70 = scalar_lea.smem %s0, 35
  %s71 = sld [smem:[%s70]]
  %s72 = scalar_lea.smem %s0, 36
  %s73 = sld [smem:[%s72]]
  %s74 = scalar_lea.smem %s0, 37
  %s75 = sld [smem:[%s74]]
  %s76 = scalar_lea.smem %s0, 38
  %s77 = sld [smem:[%s76]]
  %s78 = scalar_lea.smem %s0, 39
  %s79 = sld [smem:[%s78]]
  %s80 = scalar_lea.smem %s0, 40
  %s81 = sld [smem:[%s80]]
  %s82 = scalar_lea.smem %s0, 41
  %s83 = sld [smem:[%s82]]
  %s84 = scalar_lea.smem %s0, 42
  %s85 = sld [smem:[%s84]]
  %s86 = scalar_lea.smem %s0, 43
  %s87 = sld [smem:[%s86]]
  %s88 = scalar_lea.smem %s0, 44
  %s89 = sld [smem:[%s88]]
  %s90 = scalar_lea.smem %s0, 45
  %s91 = sld [smem:[%s90]]
  %s92 = scalar_lea.smem %s0, 46
  %s93 = sld [smem:[%s92]]
  %s94 = scalar_lea.smem %s0, 47
  %s95 = sld [smem:[%s94]]
  %s96 = scalar_lea.smem %s0, 48
  %s97 = sld [smem:[%s96]]
  %s98 = scalar_lea.smem %s0, 49
  %s99 = sld [smem:[%s98]]
  %s100 = scalar_lea.smem %s0, 50
  %s101 = sld [smem:[%s100]]
  %s102 = scalar_lea.smem %s0, 51
  %s103 = sld [smem:[%s102]]
  %s104 = scalar_lea.smem %s0, 52
  %s105 = sld [smem:[%s104]]
  %s106 = scalar_lea.smem %s0, 53
  %s107 = sld [smem:[%s106]]
  %s108 = scalar_lea.smem %s0, 54
  %s109 = sld [smem:[%s108]]
  %s110 = scalar_lea.smem %s0, 55
  %s111 = sld [smem:[%s110]]
  %s112 = scalar_lea.smem %s0, 56
  %s113 = sld [smem:[%s112]]
  %s114 = scalar_lea.smem %s0, 57
  %s115 = sld [smem:[%s114]]
  %s116 = scalar_lea.smem %s0, 58
  %s117 = sld [smem:[%s116]]
  %s118 = scalar_lea.smem %s0, 59
  %s119 = sld [smem:[%s118]]
  %s120 = scalar_lea.smem %s0, 60
  %s121 = sld [smem:[%s120]]
  %s122 = scalar_lea.smem %s0, 61
  %s123 = sld [smem:[%s122]]
  %s124 = scalar_lea.smem %s0, 62
  %s125 = sld [smem:[%s124]]
  %s126 = scalar_lea.smem %s0, 63
  %s127 = sld [smem:[%s126]]
  %s128 = scalar_lea.smem %s0, 64
  %s129 = sld [smem:[%s128]]
  %s130 = scalar_lea.smem %s0, 65
  %s131 = sld [smem:[%s130]]
  %s132 = scalar_lea.smem %s0, 66
  %s133 = sld [smem:[%s132]]
  %s134 = scalar_lea.smem %s0, 67
  %s135 = sld [smem:[%s134]]
  %s136 = scalar_lea.smem %s0, 68
  %s137 = sld [smem:[%s136]]
  %s138 = scalar_lea.smem %s0, 69
  %s139 = sld [smem:[%s138]]
  %s140 = scalar_lea.smem %s0, 70
  %s141 = sld [smem:[%s140]]
  %s142 = scalar_lea.smem %s0, 71
  %s143 = sld [smem:[%s142]]
  %s144 = scalar_lea.smem %s0, 72
  %s145 = sld [smem:[%s144]]
  %s146 = scalar_lea.smem %s0, 73
  %s147 = sld [smem:[%s146]]
  %s148 = scalar_lea.smem %s0, 74
  %s149 = sld [smem:[%s148]]
  %s150 = scalar_lea.smem %s0, 75
  %s151 = sld [smem:[%s150]]
  %s152 = scalar_lea.smem %s0, 76
  %s153 = sld [smem:[%s152]]
  %s154 = scalar_lea.smem %s0, 77
  %s155 = sld [smem:[%s154]]
  %s156 = scalar_lea.smem %s0, 78
  %s157 = sld [smem:[%s156]]
  %s158 = scalar_lea.smem %s0, 79
  %s159 = sld [smem:[%s158]]
  %s160 = scalar_lea.smem %s0, 80
  %s161 = sld [smem:[%s160]]
  %s162 = scalar_lea.smem %s0, 81
  %s163 = sld [smem:[%s162]]
  %s164 = scalar_lea.smem %s0, 82
  %s165 = sld [smem:[%s164]]
  %s166 = scalar_lea.smem %s0, 83
  %s167 = sld [smem:[%s166]]
  %s168 = scalar_lea.smem %s0, 84
  %s169 = sld [smem:[%s168]]
  %s170 = scalar_lea.smem %s0, 85
  %s171 = sld [smem:[%s170]]
  %s172 = scalar_lea.smem %s0, 86
  %s173 = sld [smem:[%s172]]
  %s174 = scalar_lea.smem %s0, 87
  %s175 = sld [smem:[%s174]]
  %s176 = scalar_lea.smem %s0, 88
  %s177 = sld [smem:[%s176]]
  %s178 = scalar_lea.smem %s0, 89
  %s179 = sld [smem:[%s178]]
  %s180 = scalar_lea.smem %s0, 90
  %s181 = sld [smem:[%s180]]
  %s182 = scalar_lea.smem %s0, 91
  %s183 = sld [smem:[%s182]]
  %s184 = scalar_lea.smem %s0, 92
  %s185 = sld [smem:[%s184]]
  %s186 = scalar_lea.smem %s0, 93
  %s187 = sld [smem:[%s186]]
  %s188 = scalar_lea.smem %s0, 94
  %s189 = sld [smem:[%s188]]
  %s190 = scalar_lea.smem %s0, 95
  %s191 = sld [smem:[%s190]]
  %s192 = scalar_lea.smem %s0, 96
  %s193 = sld [smem:[%s192]]
  %s194 = scalar_lea.smem %s0, 97
  %s195 = sld [smem:[%s194]]
  %s196 = scalar_lea.smem %s0, 98
  %s197 = sld [smem:[%s196]]
  %s198 = scalar_lea.smem %s0, 99
  %s199 = sld [smem:[%s198]]
  %s200 = scalar_lea.smem %s0, 100
  %s201 = sld [smem:[%s200]]
  %s202 = scalar_lea.smem %s0, 101
  %s203 = sld [smem:[%s202]]
  %s204 = scalar_lea.smem %s0, 102
  %s205 = sld [smem:[%s204]]
  %s206 = scalar_lea.smem %s0, 103
  %s207 = sld [smem:[%s206]]
  %s208 = scalar_lea.smem %s0, 104
  %s209 = sld [smem:[%s208]]
  %s210 = sld [smem:[#allocation0]]
  $region626: #{fognn_forward.1} parent=0
    _
  %s212 = ssub.s32 1, %s210
  %s213 = scalar_select 0, %s212, %s210
  $region1: #{fognn_forward.1} parent=0
    #allocation2 [shape = 'u8[512]{0}', space=vmem, size = 0x400, scoped, tag = 'input window, operand 11, single buffered']
    #allocation3 [shape = 's32[1]{0}', space=sflag, size = 0x4, scoped, tag = 'scoped memory for fognn_forward.1']
    #allocation4 [shape = 'u8[512]{0}', space=vmem, size = 0x400, scoped, tag = 'input window, operand 13, single buffered']
    #allocation5 [shape = 's32[1]{0}', space=sflag, size = 0x4, scoped, tag = 'scoped memory for fognn_forward.1']
    #allocation6 [shape = 'u8[512]{0}', space=vmem, size = 0x400, scoped, tag = 'input window, operand 15, single buffered']
    #allocation7 [shape = 'u8[512]{0}', space=vmem, size = 0x400, scoped, tag = 'input window, operand 17, single buffered']
    #allocation8 [shape = 's32[1]{0}', space=sflag, size = 0x4, scoped, tag = 'scoped memory for fognn_forward.1']
    #allocation9 [shape = 'u8[512]{0}', space=vmem, size = 0x400, scoped, tag = 'input window, operand 18, single buffered']
    #allocation10 [shape = 'u8[512]{0}', space=vmem, size = 0x400, scoped, tag = 'input window, operand 19, single buffered']
    #allocation11 [shape = 's32[1]{0}', space=sflag, size = 0x4, scoped, tag = 'scoped memory for fognn_forward.1']
    #allocation12 [shape = 'u8[1024]{0}', space=vmem, size = 0x400, scoped, tag = 'input window, operand 23, single buffered']
    #allocation13 [shape = 'u8[1024]{0}', space=vmem, size = 0x400, scoped, tag = 'input window, operand 24, single buffered']
    #allocation14 [shape = 's32[1]{0}', space=sflag, size = 0x4, scoped, tag = 'scoped memory for fognn_forward.1']
    #allocation15 [shape = 'u8[1024]{0}', space=vmem, size = 0x400, scoped, tag = 'input window, operand 25, single buffered']
    #allocation16 [shape = 'u8[512]{0}', space=vmem, size = 0x400, scoped, tag = 'input window, operand 27, single buffered']
    #allocation17 [shape = 's32[1]{0}', space=sflag, size = 0x4, scoped, tag = 'scoped memory for fognn_forward.1']
    #allocation18 [shape = 'u8[512]{0}', space=vmem, size = 0x400, scoped, tag = 'input window, operand 29, single buffered']
    #allocation19 [shape = 'u8[512]{0}', space=vmem, size = 0x400, scoped, tag = 'input window, operand 31, single buffered']
    #allocation20 [shape = 's32[1]{0}', space=sflag, size = 0x4, scoped, tag = 'scoped memory for fognn_forward.1']
    #allocation21 [shape = 'u8[512]{0}', space=vmem, size = 0x400, scoped, tag = 'input window, operand 33, single buffered']
    #allocation22 [shape = 'u8[512]{0}', space=vmem, size = 0x400, scoped, tag = 'input window, operand 35, single buffered']
    #allocation23 [shape = 's32[1]{0}', space=sflag, size = 0x4, scoped, tag = 'scoped memory for fognn_forward.1']
    #allocation24 [shape = 'u8[512]{0}', space=vmem, size = 0x400, scoped, tag = 'input window, operand 37, single buffered']
    #allocation25 [shape = 'u8[1024]{0}', space=vmem, size = 0x400, scoped, tag = 'input window, operand 41, single buffered']
    #allocation26 [shape = 's32[1]{0}', space=sflag, size = 0x4, scoped, tag = 'scoped memory for fognn_forward.1']
    #allocation27 [shape = 'u8[1024]{0}', space=vmem, size = 0x400, scoped, tag = 'input window, operand 42, single buffered']
    #allocation28 [shape = 'u8[1024]{0}', space=vmem, size = 0x400, scoped, tag = 'input window, operand 43, single buffered']
    #allocation29 [shape = 's32[1]{0}', space=sflag, size = 0x4, scoped, tag = 'scoped memory for fognn_forward.1']
    #allocation30 [shape = 'u8[1024]{0}', space=vmem, size = 0x400, scoped, tag = 'input window, operand 44, single buffered']
    #allocation31 [shape = 'u8[512]{0}', space=vmem, size = 0x400, scoped, tag = 'input window, operand 46, single buffered']
    #allocation32 [shape = 's32[1]{0}', space=sflag, size = 0x4, scoped, tag = 'scoped memory for fognn_forward.1']
    #allocation33 [shape = 'u8[512]{0}', space=vmem, size = 0x400, scoped, tag = 'input window, operand 48, single buffered']
    #allocation34 [shape = 'u8[512]{0}', space=vmem, size = 0x400, scoped, tag = 'input window, operand 50, single buffered']
    #allocation35 [shape = 's32[1]{0}', space=sflag, size = 0x4, scoped, tag = 'scoped memory for fognn_forward.1']
    #allocation36 [shape = 'u8[512]{0}', space=vmem, size = 0x400, scoped, tag = 'input window, operand 52, single buffered']
    #allocation37 [shape = 'u8[512]{0}', space=vmem, size = 0x400, scoped, tag = 'input window, operand 54, single buffered']
    #allocation38 [shape = 's32[1]{0}', space=sflag, size = 0x4, scoped, tag = 'scoped memory for fognn_forward.1']
    #allocation39 [shape = 'u8[512]{0}', space=vmem, size = 0x400, scoped, tag = 'input window, operand 56, single buffered']
    #allocation40 [shape = 'u8[512]{0}', space=vmem, size = 0x400, scoped, tag = 'input window, operand 58, single buffered']
    #allocation41 [shape = 's32[1]{0}', space=sflag, size = 0x4, scoped, tag = 'scoped memory for fognn_forward.1']
    #allocation42 [shape = 'u8[512]{0}', space=vmem, size = 0x400, scoped, tag = 'input window, operand 60, single buffered']
    #allocation43 [shape = 'u8[512]{0}', space=vmem, size = 0x400, scoped, tag = 'input window, operand 62, single buffered']
    #allocation44 [shape = 's32[1]{0}', space=sflag, size = 0x4, scoped, tag = 'scoped memory for fognn_forward.1']
    #allocation45 [shape = 'u8[512]{0}', space=vmem, size = 0x400, scoped, tag = 'input window, operand 64, single buffered']
    #allocation46 [shape = 'u8[1024]{0}', space=vmem, size = 0x400, scoped, tag = 'input window, operand 67, single buffered']
    #allocation47 [shape = 's32[1]{0}', space=sflag, size = 0x4, scoped, tag = 'scoped memory for fognn_forward.1']
    #allocation48 [shape = 'u8[1024]{0}', space=vmem, size = 0x400, scoped, tag = 'input window, operand 68, single buffered']
    #allocation49 [shape = 'u8[1024]{0}', space=vmem, size = 0x400, scoped, tag = 'input window, operand 69, single buffered']
    #allocation50 [shape = 's32[1]{0}', space=sflag, size = 0x4, scoped, tag = 'scoped memory for fognn_forward.1']
    #allocation51 [shape = 'u8[1024]{0}', space=vmem, size = 0x400, scoped, tag = 'input window, operand 70, single buffered']
    #allocation52 [shape = 'u8[512]{0}', space=vmem, size = 0x400, scoped, tag = 'input window, operand 72, single buffered']
    #allocation53 [shape = 's32[1]{0}', space=sflag, size = 0x4, scoped, tag = 'scoped memory for fognn_forward.1']
    #allocation54 [shape = 'u8[512]{0}', space=vmem, size = 0x400, scoped, tag = 'input window, operand 74, single buffered']
    #allocation55 [shape = 'u8[512]{0}', space=vmem, size = 0x400, scoped, tag = 'input window, operand 76, single buffered']
    #allocation56 [shape = 's32[1]{0}', space=sflag, size = 0x4, scoped, tag = 'scoped memory for fognn_forward.1']
    #allocation57 [shape = 'u8[512]{0}', space=vmem, size = 0x400, scoped, tag = 'input window, operand 78, single buffered']
    #allocation58 [shape = 'u8[512]{0}', space=vmem, size = 0x400, scoped, tag = 'input window, operand 80, single buffered']
    #allocation59 [shape = 's32[1]{0}', space=sflag, size = 0x4, scoped, tag = 'scoped memory for fognn_forward.1']
    #allocation60 [shape = 'u8[512]{0}', space=vmem, size = 0x400, scoped, tag = 'input window, operand 82, single buffered']
    #allocation61 [shape = 'u8[1024]{0}', space=vmem, size = 0x400, scoped, tag = 'input window, operand 86, single buffered']
    #allocation62 [shape = 's32[1]{0}', space=sflag, size = 0x4, scoped, tag = 'scoped memory for fognn_forward.1']
    #allocation63 [shape = 'u8[1024]{0}', space=vmem, size = 0x400, scoped, tag = 'input window, operand 87, single buffered']
    #allocation64 [shape = 'u8[1024]{0}', space=vmem, size = 0x400, scoped, tag = 'input window, operand 88, single buffered']
    #allocation65 [shape = 's32[1]{0}', space=sflag, size = 0x4, scoped, tag = 'scoped memory for fognn_forward.1']
    #allocation66 [shape = 'u8[1024]{0}', space=vmem, size = 0x400, scoped, tag = 'input window, operand 89, single buffered']
    #allocation67 [shape = 'u8[512]{0}', space=vmem, size = 0x400, scoped, tag = 'input window, operand 91, single buffered']
    #allocation68 [shape = 's32[1]{0}', space=sflag, size = 0x4, scoped, tag = 'scoped memory for fognn_forward.1']
    #allocation69 [shape = 'u8[512]{0}', space=vmem, size = 0x400, scoped, tag = 'input window, operand 93, single buffered']
    #allocation70 [shape = 'u8[512]{0}', space=vmem, size = 0x400, scoped, tag = 'input window, operand 95, single buffered']
    #allocation71 [shape = 's32[1]{0}', space=sflag, size = 0x4, scoped, tag = 'scoped memory for fognn_forward.1']
    #allocation72 [shape = 'u8[512]{0}', space=vmem, size = 0x400, scoped, tag = 'input window, operand 97, single buffered']
    #allocation73 [shape = 'u8[512]{0}', space=vmem, size = 0x400, scoped, tag = 'input window, operand 99, single buffered']
    #allocation74 [shape = 's32[1]{0}', space=sflag, size = 0x4, scoped, tag = 'scoped memory for fognn_forward.1']
    #allocation75 [shape = 'u8[512]{0}', space=vmem, size = 0x400, scoped, tag = 'input window, operand 101, single buffered']
    #allocation76 [shape = 'u8[512]{0}', space=vmem, size = 0x400, scoped, tag = 'input window, operand 103, single buffered']
    #allocation77 [shape = 's32[1]{0}', space=sflag, size = 0x4, scoped, tag = 'scoped memory for fognn_forward.1']
    %214 = vsyncpa [#allocation3], 0
    %215 = vsyncpa [#allocation5], 0
    %216 = vsyncpa [#allocation8], 0
    %217 = vsyncpa [#allocation11], 0
    %218 = vsyncpa [#allocation14], 0
    %219 = vsyncpa [#allocation17], 0
    %220 = vsyncpa [#allocation20], 0
    %221 = vsyncpa [#allocation23], 0
    %222 = vsyncpa [#allocation26], 0
    %223 = vsyncpa [#allocation29], 0
    %224 = vsyncpa [#allocation32], 0
    %225 = vsyncpa [#allocation35], 0
    %226 = vsyncpa [#allocation38], 0
    %227 = vsyncpa [#allocation41], 0
    %228 = vsyncpa [#allocation44], 0
    %229 = vsyncpa [#allocation47], 0
    %230 = vsyncpa [#allocation50], 0
    %231 = vsyncpa [#allocation53], 0
    %232 = vsyncpa [#allocation56], 0
    %233 = vsyncpa [#allocation59], 0
    %234 = vsyncpa [#allocation62], 0
    %235 = vsyncpa [#allocation65], 0
    %236 = vsyncpa [#allocation68], 0
    %237 = vsyncpa [#allocation71], 0
    %238 = vsyncpa [#allocation74], 0
    %239 = vsyncpa [#allocation77], 0
    // Predicated region
    $region2: #{fognn_forward.1} parent=1 // pred_check
      _
    $region3: #{fognn_forward.1} parent=1 // pred_check_branch
      %241 = sbr.rel (0) target = $region5
    $region4: #{fognn_forward.1} parent=1 // pred_region
      _
    $region5: #{fognn_forward.1} parent=1 // pred_fallthru
      _
    // Predicated region
    $region6: #{fognn_forward.1} parent=1 // pred_check
      _
    $region7: #{fognn_forward.1} parent=1 // pred_check_branch
      %243 = sbr.rel (0) target = $region9
    $region8: #{fognn_forward.1} parent=1 // pred_region
      _
    $region9: #{fognn_forward.1} parent=1 // pred_fallthru
      _
    // Predicated region
    $region10: #{fognn_forward.1} parent=1 // pred_check
      _
    $region11: #{fognn_forward.1} parent=1 // pred_check_branch
      %245 = sbr.rel (0) target = $region13
    $region12: #{fognn_forward.1} parent=1 // pred_region
      _
    $region13: #{fognn_forward.1} parent=1 // pred_fallthru
      _
    // Predicated region
    $region14: #{fognn_forward.1} parent=1 // pred_check
      _
    $region15: #{fognn_forward.1} parent=1 // pred_check_branch
      %247 = sbr.rel (0) target = $region17
    $region16: #{fognn_forward.1} parent=1 // pred_region
      _
    $region17: #{fognn_forward.1} parent=1 // pred_fallthru
      _
    // Predicated region
    $region18: #{fognn_forward.1} parent=1 // pred_check
      _
    $region19: #{fognn_forward.1} parent=1 // pred_check_branch
      %249 = sbr.rel (0) target = $region21
    $region20: #{fognn_forward.1} parent=1 // pred_region
      _
    $region21: #{fognn_forward.1} parent=1 // pred_fallthru
      _
    // Predicated region
    $region22: #{fognn_forward.1} parent=1 // pred_check
      _
    $region23: #{fognn_forward.1} parent=1 // pred_check_branch
      %251 = sbr.rel (0) target = $region25
    $region24: #{fognn_forward.1} parent=1 // pred_region
      _
    $region25: #{fognn_forward.1} parent=1 // pred_fallthru
      _
    // Predicated region
    $region26: #{fognn_forward.1} parent=1 // pred_check
      _
    $region27: #{fognn_forward.1} parent=1 // pred_check_branch
      %253 = sbr.rel (0) target = $region29
    $region28: #{fognn_forward.1} parent=1 // pred_region
      _
    $region29: #{fognn_forward.1} parent=1 // pred_fallthru
      _
    // Predicated region
    $region30: #{fognn_forward.1} parent=1 // pred_check
      _
    $region31: #{fognn_forward.1} parent=1 // pred_check_branch
      %255 = sbr.rel (0) target = $region33
    $region32: #{fognn_forward.1} parent=1 // pred_region
      _
    $region33: #{fognn_forward.1} parent=1 // pred_fallthru
      _
    // Predicated region
    $region34: #{fognn_forward.1} parent=1 // pred_check
      _
    $region35: #{fognn_forward.1} parent=1 // pred_check_branch
      %257 = sbr.rel (0) target = $region37
    $region36: #{fognn_forward.1} parent=1 // pred_region
      _
    $region37: #{fognn_forward.1} parent=1 // pred_fallthru
      _
    // Predicated region
    $region38: #{fognn_forward.1} parent=1 // pred_check
      _
    $region39: #{fognn_forward.1} parent=1 // pred_check_branch
      %259 = sbr.rel (0) target = $region41
    $region40: #{fognn_forward.1} parent=1 // pred_region
      _
    $region41: #{fognn_forward.1} parent=1 // pred_fallthru
      _
    // Predicated region
    $region42: #{fognn_forward.1} parent=1 // pred_check
      _
    $region43: #{fognn_forward.1} parent=1 // pred_check_branch
      %261 = sbr.rel (0) target = $region45
    $region44: #{fognn_forward.1} parent=1 // pred_region
      _
    $region45: #{fognn_forward.1} parent=1 // pred_fallthru
      _
    // Predicated region
    $region46: #{fognn_forward.1} parent=1 // pred_check
      _
    $region47: #{fognn_forward.1} parent=1 // pred_check_branch
      %263 = sbr.rel (0) target = $region49
    $region48: #{fognn_forward.1} parent=1 // pred_region
      %s265 = ssub.s32 16, 16
      %266 = vsyncadd [#allocation3], %s265
      %s268 = sshll.u32 [#allocation2], 4
      %s269 = int_to_ptr.vmem [resolvable:$true] %s268
      %271 = dma.hbm_to_vmem [thread:$0]  %s23, 16, %s269, [#allocation3]
    $region49: #{fognn_forward.1} parent=1 // pred_fallthru
      _
    // Predicated region
    $region50: #{fognn_forward.1} parent=1 // pred_check
      _
    $region51: #{fognn_forward.1} parent=1 // pred_check_branch
      %273 = sbr.rel (0) target = $region53
    $region52: #{fognn_forward.1} parent=1 // pred_region
      _
    $region53: #{fognn_forward.1} parent=1 // pred_fallthru
      _
    // Predicated region
    $region54: #{fognn_forward.1} parent=1 // pred_check
      _
    $region55: #{fognn_forward.1} parent=1 // pred_check_branch
      %275 = sbr.rel (0) target = $region57
    $region56: #{fognn_forward.1} parent=1 // pred_region
      %s277 = ssub.s32 16, 16
      %278 = vsyncadd [#allocation5], %s277
      %s280 = sshll.u32 [#allocation4], 4
      %s281 = int_to_ptr.vmem [resolvable:$true] %s280
      %283 = dma.hbm_to_vmem [thread:$0]  %s27, 16, %s281, [#allocation5]
    $region57: #{fognn_forward.1} parent=1 // pred_fallthru
      _
    // Predicated region
    $region58: #{fognn_forward.1} parent=1 // pred_check
      _
    $region59: #{fognn_forward.1} parent=1 // pred_check_branch
      %285 = sbr.rel (0) target = $region61
    $region60: #{fognn_forward.1} parent=1 // pred_region
      _
    $region61: #{fognn_forward.1} parent=1 // pred_fallthru
      _
    // Predicated region
    $region62: #{fognn_forward.1} parent=1 // pred_check
      _
    $region63: #{fognn_forward.1} parent=1 // pred_check_branch
      %287 = sbr.rel (0) target = $region65
    $region64: #{fognn_forward.1} parent=1 // pred_region
      %s289 = ssub.s32 16, 16
      %290 = vsyncadd [#allocation5], %s289
      %s292 = sshll.u32 [#allocation6], 4
      %s293 = int_to_ptr.vmem [resolvable:$true] %s292
      %295 = dma.hbm_to_vmem [thread:$0]  %s31, 16, %s293, [#allocation5]
    $region65: #{fognn_forward.1} parent=1 // pred_fallthru
      _
    // Predicated region
    $region66: #{fognn_forward.1} parent=1 // pred_check
      _
    $region67: #{fognn_forward.1} parent=1 // pred_check_branch
      %297 = sbr.rel (0) target = $region69
    $region68: #{fognn_forward.1} parent=1 // pred_region
      _
    $region69: #{fognn_forward.1} parent=1 // pred_fallthru
      _
    // Predicated region
    $region70: #{fognn_forward.1} parent=1 // pred_check
      _
    $region71: #{fognn_forward.1} parent=1 // pred_check_branch
      %299 = sbr.rel (0) target = $region73
    $region72: #{fognn_forward.1} parent=1 // pred_region
      %s301 = ssub.s32 16, 16
      %302 = vsyncadd [#allocation8], %s301
      %s304 = sshll.u32 [#allocation7], 4
      %s305 = int_to_ptr.vmem [resolvable:$true] %s304
      %307 = dma.hbm_to_vmem [thread:$0]  %s35, 16, %s305, [#allocation8]
    $region73: #{fognn_forward.1} parent=1 // pred_fallthru
      _
    // Predicated region
    $region74: #{fognn_forward.1} parent=1 // pred_check
      _
    $region75: #{fognn_forward.1} parent=1 // pred_check_branch
      %309 = sbr.rel (0) target = $region77
    $region76: #{fognn_forward.1} parent=1 // pred_region
      %s311 = ssub.s32 16, 16
      %312 = vsyncadd [#allocation8], %s311
      %s314 = sshll.u32 [#allocation9], 4
      %s315 = int_to_ptr.vmem [resolvable:$true] %s314
      %317 = dma.hbm_to_vmem [thread:$0]  %s37, 16, %s315, [#allocation8]
    $region77: #{fognn_forward.1} parent=1 // pred_fallthru
      _
    // Predicated region
    $region78: #{fognn_forward.1} parent=1 // pred_check
      _
    $region79: #{fognn_forward.1} parent=1 // pred_check_branch
      %319 = sbr.rel (0) target = $region81
    $region80: #{fognn_forward.1} parent=1 // pred_region
      %s321 = ssub.s32 16, 16
      %322 = vsyncadd [#allocation11], %s321
      %s324 = sshll.u32 [#allocation10], 4
      %s325 = int_to_ptr.vmem [resolvable:$true] %s324
      %327 = dma.hbm_to_vmem [thread:$0]  %s39, 16, %s325, [#allocation11]
    $region81: #{fognn_forward.1} parent=1 // pred_fallthru
      _
    // Predicated region
    $region82: #{fognn_forward.1} parent=1 // pred_check
      _
    $region83: #{fognn_forward.1} parent=1 // pred_check_branch
      %329 = sbr.rel (0) target = $region85
    $region84: #{fognn_forward.1} parent=1 // pred_region
      _
    $region85: #{fognn_forward.1} parent=1 // pred_fallthru
      _
    // Predicated region
    $region86: #{fognn_forward.1} parent=1 // pred_check
      _
    $region87: #{fognn_forward.1} parent=1 // pred_check_branch
      %331 = sbr.rel (0) target = $region89
    $region88: #{fognn_forward.1} parent=1 // pred_region
      _
    $region89: #{fognn_forward.1} parent=1 // pred_fallthru
      _
    // Predicated region
    $region90: #{fognn_forward.1} parent=1 // pred_check
      _
    $region91: #{fognn_forward.1} parent=1 // pred_check_branch
      %333 = sbr.rel (0) target = $region93
    $region92: #{fognn_forward.1} parent=1 // pred_region
      _
    $region93: #{fognn_forward.1} parent=1 // pred_fallthru
      _
    // Predicated region
    $region94: #{fognn_forward.1} parent=1 // pred_check
      _
    $region95: #{fognn_forward.1} parent=1 // pred_check_branch
      %335 = sbr.rel (0) target = $region97
    $region96: #{fognn_forward.1} parent=1 // pred_region
      %s337 = ssub.s32 32, 32
      %338 = vsyncadd [#allocation11], %s337
      %s340 = sshll.u32 [#allocation12], 4
      %s341 = int_to_ptr.vmem [resolvable:$true] %s340
      %343 = dma.hbm_to_vmem [thread:$0]  %s47, 32, %s341, [#allocation11]
    $region97: #{fognn_forward.1} parent=1 // pred_fallthru
      _
    // Predicated region
    $region98: #{fognn_forward.1} parent=1 // pred_check
      _
    $region99: #{fognn_forward.1} parent=1 // pred_check_branch
      %345 = sbr.rel (0) target = $region101
    $region100: #{fognn_forward.1} parent=1 // pred_region
      %s347 = ssub.s32 32, 32
      %348 = vsyncadd [#allocation14], %s347
      %s350 = sshll.u32 [#allocation13], 4
      %s351 = int_to_ptr.vmem [resolvable:$true] %s350
      %353 = dma.hbm_to_vmem [thread:$0]  %s49, 32, %s351, [#allocation14]
    $region101: #{fognn_forward.1} parent=1 // pred_fallthru
      _
    // Predicated region
    $region102: #{fognn_forward.1} parent=1 // pred_check
      _
    $region103: #{fognn_forward.1} parent=1 // pred_check_branch
      %355 = sbr.rel (0) target = $region105
    $region104: #{fognn_forward.1} parent=1 // pred_region
      %s357 = ssub.s32 32, 32
      %358 = vsyncadd [#allocation14], %s357
      %s360 = sshll.u32 [#allocation15], 4
      %s361 = int_to_ptr.vmem [resolvable:$true] %s360
      %363 = dma.hbm_to_vmem [thread:$0]  %s51, 32, %s361, [#allocation14]
    $region105: #{fognn_forward.1} parent=1 // pred_fallthru
      _
    // Predicated region
    $region106: #{fognn_forward.1} parent=1 // pred_check
      _
    $region107: #{fognn_forward.1} parent=1 // pred_check_branch
      %365 = sbr.rel (0) target = $region109
    $region108: #{fognn_forward.1} parent=1 // pred_region
      _
    $region109: #{fognn_forward.1} parent=1 // pred_fallthru
      _
    // Predicated region
    $region110: #{fognn_forward.1} parent=1 // pred_check
      _
    $region111: #{fognn_forward.1} parent=1 // pred_check_branch
      %367 = sbr.rel (0) target = $region113
    $region112: #{fognn_forward.1} parent=1 // pred_region
      %s369 = ssub.s32 16, 16
      %370 = vsyncadd [#allocation17], %s369
      %s372 = sshll.u32 [#allocation16], 4
      %s373 = int_to_ptr.vmem [resolvable:$true] %s372
      %375 = dma.hbm_to_vmem [thread:$0]  %s55, 16, %s373, [#allocation17]
    $region113: #{fognn_forward.1} parent=1 // pred_fallthru
      _
    // Predicated region
    $region114: #{fognn_forward.1} parent=1 // pred_check
      _
    $region115: #{fognn_forward.1} parent=1 // pred_check_branch
      %377 = sbr.rel (0) target = $region117
    $region116: #{fognn_forward.1} parent=1 // pred_region
      _
    $region117: #{fognn_forward.1} parent=1 // pred_fallthru
      _
    // Predicated region
    $region118: #{fognn_forward.1} parent=1 // pred_check
      _
    $region119: #{fognn_forward.1} parent=1 // pred_check_branch
      %379 = sbr.rel (0) target = $region121
    $region120: #{fognn_forward.1} parent=1 // pred_region
      %s381 = ssub.s32 16, 16
      %382 = vsyncadd [#allocation17], %s381
      %s384 = sshll.u32 [#allocation18], 4
      %s385 = int_to_ptr.vmem [resolvable:$true] %s384
      %387 = dma.hbm_to_vmem [thread:$0]  %s59, 16, %s385, [#allocation17]
    $region121: #{fognn_forward.1} parent=1 // pred_fallthru
      _
    // Predicated region
    $region122: #{fognn_forward.1} parent=1 // pred_check
      _
    $region123: #{fognn_forward.1} parent=1 // pred_check_branch
      %389 = sbr.rel (0) target = $region125
    $region124: #{fognn_forward.1} parent=1 // pred_region
      _
    $region125: #{fognn_forward.1} parent=1 // pred_fallthru
      _
    // Predicated region
    $region126: #{fognn_forward.1} parent=1 // pred_check
      _
    $region127: #{fognn_forward.1} parent=1 // pred_check_branch
      %391 = sbr.rel (0) target = $region129
    $region128: #{fognn_forward.1} parent=1 // pred_region
      %s393 = ssub.s32 16, 16
      %394 = vsyncadd [#allocation20], %s393
      %s396 = sshll.u32 [#allocation19], 4
      %s397 = int_to_ptr.vmem [resolvable:$true] %s396
      %399 = dma.hbm_to_vmem [thread:$0]  %s63, 16, %s397, [#allocation20]
    $region129: #{fognn_forward.1} parent=1 // pred_fallthru
      _
    // Predicated region
    $region130: #{fognn_forward.1} parent=1 // pred_check
      _
    $region131: #{fognn_forward.1} parent=1 // pred_check_branch
      %401 = sbr.rel (0) target = $region133
    $region132: #{fognn_forward.1} parent=1 // pred_region
      _
    $region133: #{fognn_forward.1} parent=1 // pred_fallthru
      _
    // Predicated region
    $region134: #{fognn_forward.1} parent=1 // pred_check
      _
    $region135: #{fognn_forward.1} parent=1 // pred_check_branch
      %403 = sbr.rel (0) target = $region137
    $region136: #{fognn_forward.1} parent=1 // pred_region
      %s405 = ssub.s32 16, 16
      %406 = vsyncadd [#allocation20], %s405
      %s408 = sshll.u32 [#allocation21], 4
      %s409 = int_to_ptr.vmem [resolvable:$true] %s408
      %411 = dma.hbm_to_vmem [thread:$0]  %s67, 16, %s409, [#allocation20]
    $region137: #{fognn_forward.1} parent=1 // pred_fallthru
      _
    // Predicated region
    $region138: #{fognn_forward.1} parent=1 // pred_check
      _
    $region139: #{fognn_forward.1} parent=1 // pred_check_branch
      %413 = sbr.rel (0) target = $region141
    $region140: #{fognn_forward.1} parent=1 // pred_region
      _
    $region141: #{fognn_forward.1} parent=1 // pred_fallthru
      _
    // Predicated region
    $region142: #{fognn_forward.1} parent=1 // pred_check
      _
    $region143: #{fognn_forward.1} parent=1 // pred_check_branch
      %415 = sbr.rel (0) target = $region145
    $region144: #{fognn_forward.1} parent=1 // pred_region
      %s417 = ssub.s32 16, 16
      %418 = vsyncadd [#allocation23], %s417
      %s420 = sshll.u32 [#allocation22], 4
      %s421 = int_to_ptr.vmem [resolvable:$true] %s420
      %423 = dma.hbm_to_vmem [thread:$0]  %s71, 16, %s421, [#allocation23]
    $region145: #{fognn_forward.1} parent=1 // pred_fallthru
      _
    // Predicated region
    $region146: #{fognn_forward.1} parent=1 // pred_check
      _
    $region147: #{fognn_forward.1} parent=1 // pred_check_branch
      %425 = sbr.rel (0) target = $region149
    $region148: #{fognn_forward.1} parent=1 // pred_region
      _
    $region149: #{fognn_forward.1} parent=1 // pred_fallthru
      _
    // Predicated region
    $region150: #{fognn_forward.1} parent=1 // pred_check
      _
    $region151: #{fognn_forward.1} parent=1 // pred_check_branch
      %427 = sbr.rel (0) target = $region153
    $region152: #{fognn_forward.1} parent=1 // pred_region
      %s429 = ssub.s32 16, 16
      %430 = vsyncadd [#allocation23], %s429
      %s432 = sshll.u32 [#allocation24], 4
      %s433 = int_to_ptr.vmem [resolvable:$true] %s432
      %435 = dma.hbm_to_vmem [thread:$0]  %s75, 16, %s433, [#allocation23]
    $region153: #{fognn_forward.1} parent=1 // pred_fallthru
      _
    // Predicated region
    $region154: #{fognn_forward.1} parent=1 // pred_check
      _
    $region155: #{fognn_forward.1} parent=1 // pred_check_branch
      %437 = sbr.rel (0) target = $region157
    $region156: #{fognn_forward.1} parent=1 // pred_region
      _
    $region157: #{fognn_forward.1} parent=1 // pred_fallthru
      _
    // Predicated region
    $region158: #{fognn_forward.1} parent=1 // pred_check
      _
    $region159: #{fognn_forward.1} parent=1 // pred_check_branch
      %439 = sbr.rel (0) target = $region161
    $region160: #{fognn_forward.1} parent=1 // pred_region
      _
    $region161: #{fognn_forward.1} parent=1 // pred_fallthru
      _
    // Predicated region
    $region162: #{fognn_forward.1} parent=1 // pred_check
      _
    $region163: #{fognn_forward.1} parent=1 // pred_check_branch
      %441 = sbr.rel (0) target = $region165
    $region164: #{fognn_forward.1} parent=1 // pred_region
      _
    $region165: #{fognn_forward.1} parent=1 // pred_fallthru
      _
    // Predicated region
    $region166: #{fognn_forward.1} parent=1 // pred_check
      _
    $region167: #{fognn_forward.1} parent=1 // pred_check_branch
      %443 = sbr.rel (0) target = $region169
    $region168: #{fognn_forward.1} parent=1 // pred_region
      %s445 = ssub.s32 32, 32
      %446 = vsyncadd [#allocation26], %s445
      %s448 = sshll.u32 [#allocation25], 4
      %s449 = int_to_ptr.vmem [resolvable:$true] %s448
      %451 = dma.hbm_to_vmem [thread:$0]  %s83, 32, %s449, [#allocation26]
    $region169: #{fognn_forward.1} parent=1 // pred_fallthru
      _
    // Predicated region
    $region170: #{fognn_forward.1} parent=1 // pred_check
      _
    $region171: #{fognn_forward.1} parent=1 // pred_check_branch
      %453 = sbr.rel (0) target = $region173
    $region172: #{fognn_forward.1} parent=1 // pred_region
      %s455 = ssub.s32 32, 32
      %456 = vsyncadd [#allocation26], %s455
      %s458 = sshll.u32 [#allocation27], 4
      %s459 = int_to_ptr.vmem [resolvable:$true] %s458
      %461 = dma.hbm_to_vmem [thread:$0]  %s85, 32, %s459, [#allocation26]
    $region173: #{fognn_forward.1} parent=1 // pred_fallthru
      _
    // Predicated region
    $region174: #{fognn_forward.1} parent=1 // pred_check
      _
    $region175: #{fognn_forward.1} parent=1 // pred_check_branch
      %463 = sbr.rel (0) target = $region177
    $region176: #{fognn_forward.1} parent=1 // pred_region
      %s465 = ssub.s32 32, 32
      %466 = vsyncadd [#allocation29], %s465
      %s468 = sshll.u32 [#allocation28], 4
      %s469 = int_to_ptr.vmem [resolvable:$true] %s468
      %471 = dma.hbm_to_vmem [thread:$0]  %s87, 32, %s469, [#allocation29]
    $region177: #{fognn_forward.1} parent=1 // pred_fallthru
      _
    // Predicated region
    $region178: #{fognn_forward.1} parent=1 // pred_check
      _
    $region179: #{fognn_forward.1} parent=1 // pred_check_branch
      %473 = sbr.rel (0) target = $region181
    $region180: #{fognn_forward.1} parent=1 // pred_region
      %s475 = ssub.s32 32, 32
      %476 = vsyncadd [#allocation29], %s475
      %s478 = sshll.u32 [#allocation30], 4
      %s479 = int_to_ptr.vmem [resolvable:$true] %s478
      %481 = dma.hbm_to_vmem [thread:$0]  %s89, 32, %s479, [#allocation29]
    $region181: #{fognn_forward.1} parent=1 // pred_fallthru
      _
    // Predicated region
    $region182: #{fognn_forward.1} parent=1 // pred_check
      _
    $region183: #{fognn_forward.1} parent=1 // pred_check_branch
      %483 = sbr.rel (0) target = $region185
    $region184: #{fognn_forward.1} parent=1 // pred_region
      _
    $region185: #{fognn_forward.1} parent=1 // pred_fallthru
      _
    // Predicated region
    $region186: #{fognn_forward.1} parent=1 // pred_check
      _
    $region187: #{fognn_forward.1} parent=1 // pred_check_branch
      %485 = sbr.rel (0) target = $region189
    $region188: #{fognn_forward.1} parent=1 // pred_region
      %s487 = ssub.s32 16, 16
      %488 = vsyncadd [#allocation32], %s487
      %s490 = sshll.u32 [#allocation31], 4
      %s491 = int_to_ptr.vmem [resolvable:$true] %s490
      %493 = dma.hbm_to_vmem [thread:$0]  %s93, 16, %s491, [#allocation32]
    $region189: #{fognn_forward.1} parent=1 // pred_fallthru
      _
    // Predicated region
    $region190: #{fognn_forward.1} parent=1 // pred_check
      _
    $region191: #{fognn_forward.1} parent=1 // pred_check_branch
      %495 = sbr.rel (0) target = $region193
    $region192: #{fognn_forward.1} parent=1 // pred_region
      _
    $region193: #{fognn_forward.1} parent=1 // pred_fallthru
      _
    // Predicated region
    $region194: #{fognn_forward.1} parent=1 // pred_check
      _
    $region195: #{fognn_forward.1} parent=1 // pred_check_branch
      %497 = sbr.rel (0) target = $region197
    $region196: #{fognn_forward.1} parent=1 // pred_region
      %s499 = ssub.s32 16, 16
      %500 = vsyncadd [#allocation32], %s499
      %s502 = sshll.u32 [#allocation33], 4
      %s503 = int_to_ptr.vmem [resolvable:$true] %s502
      %505 = dma.hbm_to_vmem [thread:$0]  %s97, 16, %s503, [#allocation32]
    $region197: #{fognn_forward.1} parent=1 // pred_fallthru
      _
    // Predicated region
    $region198: #{fognn_forward.1} parent=1 // pred_check
      _
    $region199: #{fognn_forward.1} parent=1 // pred_check_branch
      %507 = sbr.rel (0) target = $region201
    $region200: #{fognn_forward.1} parent=1 // pred_region
      _
    $region201: #{fognn_forward.1} parent=1 // pred_fallthru
      _
    // Predicated region
    $region202: #{fognn_forward.1} parent=1 // pred_check
      _
    $region203: #{fognn_forward.1} parent=1 // pred_check_branch
      %509 = sbr.rel (0) target = $region205
    $region204: #{fognn_forward.1} parent=1 // pred_region
      %s511 = ssub.s32 16, 16
      %512 = vsyncadd [#allocation35], %s511
      %s514 = sshll.u32 [#allocation34], 4
      %s515 = int_to_ptr.vmem [resolvable:$true] %s514
      %517 = dma.hbm_to_vmem [thread:$0]  %s101, 16, %s515, [#allocation35]
    $region205: #{fognn_forward.1} parent=1 // pred_fallthru
      _
    // Predicated region
    $region206: #{fognn_forward.1} parent=1 // pred_check
      _
    $region207: #{fognn_forward.1} parent=1 // pred_check_branch
      %519 = sbr.rel (0) target = $region209
    $region208: #{fognn_forward.1} parent=1 // pred_region
      _
    $region209: #{fognn_forward.1} parent=1 // pred_fallthru
      _
    // Predicated region
    $region210: #{fognn_forward.1} parent=1 // pred_check
      _
    $region211: #{fognn_forward.1} parent=1 // pred_check_branch
      %521 = sbr.rel (0) target = $region213
    $region212: #{fognn_forward.1} parent=1 // pred_region
      %s523 = ssub.s32 16, 16
      %524 = vsyncadd [#allocation35], %s523
      %s526 = sshll.u32 [#allocation36], 4
      %s527 = int_to_ptr.vmem [resolvable:$true] %s526
      %529 = dma.hbm_to_vmem [thread:$0]  %s105, 16, %s527, [#allocation35]
    $region213: #{fognn_forward.1} parent=1 // pred_fallthru
      _
    // Predicated region
    $region214: #{fognn_forward.1} parent=1 // pred_check
      _
    $region215: #{fognn_forward.1} parent=1 // pred_check_branch
      %531 = sbr.rel (0) target = $region217
    $region216: #{fognn_forward.1} parent=1 // pred_region
      _
    $region217: #{fognn_forward.1} parent=1 // pred_fallthru
      _
    // Predicated region
    $region218: #{fognn_forward.1} parent=1 // pred_check
      _
    $region219: #{fognn_forward.1} parent=1 // pred_check_branch
      %533 = sbr.rel (0) target = $region221
    $region220: #{fognn_forward.1} parent=1 // pred_region
      %s535 = ssub.s32 16, 16
      %536 = vsyncadd [#allocation38], %s535
      %s538 = sshll.u32 [#allocation37], 4
      %s539 = int_to_ptr.vmem [resolvable:$true] %s538
      %541 = dma.hbm_to_vmem [thread:$0]  %s109, 16, %s539, [#allocation38]
    $region221: #{fognn_forward.1} parent=1 // pred_fallthru
      _
    // Predicated region
    $region222: #{fognn_forward.1} parent=1 // pred_check
      _
    $region223: #{fognn_forward.1} parent=1 // pred_check_branch
      %543 = sbr.rel (0) target = $region225
    $region224: #{fognn_forward.1} parent=1 // pred_region
      _
    $region225: #{fognn_forward.1} parent=1 // pred_fallthru
      _
    // Predicated region
    $region226: #{fognn_forward.1} parent=1 // pred_check
      _
    $region227: #{fognn_forward.1} parent=1 // pred_check_branch
      %545 = sbr.rel (0) target = $region229
    $region228: #{fognn_forward.1} parent=1 // pred_region
      %s547 = ssub.s32 16, 16
      %548 = vsyncadd [#allocation38], %s547
      %s550 = sshll.u32 [#allocation39], 4
      %s551 = int_to_ptr.vmem [resolvable:$true] %s550
      %553 = dma.hbm_to_vmem [thread:$0]  %s113, 16, %s551, [#allocation38]
    $region229: #{fognn_forward.1} parent=1 // pred_fallthru
      _
    // Predicated region
    $region230: #{fognn_forward.1} parent=1 // pred_check
      _
    $region231: #{fognn_forward.1} parent=1 // pred_check_branch
      %555 = sbr.rel (0) target = $region233
    $region232: #{fognn_forward.1} parent=1 // pred_region
      _
    $region233: #{fognn_forward.1} parent=1 // pred_fallthru
      _
    // Predicated region
    $region234: #{fognn_forward.1} parent=1 // pred_check
      _
    $region235: #{fognn_forward.1} parent=1 // pred_check_branch
      %557 = sbr.rel (0) target = $region237
    $region236: #{fognn_forward.1} parent=1 // pred_region
      %s559 = ssub.s32 16, 16
      %560 = vsyncadd [#allocation41], %s559
      %s562 = sshll.u32 [#allocation40], 4
      %s563 = int_to_ptr.vmem [resolvable:$true] %s562
      %565 = dma.hbm_to_vmem [thread:$0]  %s117, 16, %s563, [#allocation41]
    $region237: #{fognn_forward.1} parent=1 // pred_fallthru
      _
    // Predicated region
    $region238: #{fognn_forward.1} parent=1 // pred_check
      _
    $region239: #{fognn_forward.1} parent=1 // pred_check_branch
      %567 = sbr.rel (0) target = $region241
    $region240: #{fognn_forward.1} parent=1 // pred_region
      _
    $region241: #{fognn_forward.1} parent=1 // pred_fallthru
      _
    // Predicated region
    $region242: #{fognn_forward.1} parent=1 // pred_check
      _
    $region243: #{fognn_forward.1} parent=1 // pred_check_branch
      %569 = sbr.rel (0) target = $region245
    $region244: #{fognn_forward.1} parent=1 // pred_region
      %s571 = ssub.s32 16, 16
      %572 = vsyncadd [#allocation41], %s571
      %s574 = sshll.u32 [#allocation42], 4
      %s575 = int_to_ptr.vmem [resolvable:$true] %s574
      %577 = dma.hbm_to_vmem [thread:$0]  %s121, 16, %s575, [#allocation41]
    $region245: #{fognn_forward.1} parent=1 // pred_fallthru
      _
    // Predicated region
    $region246: #{fognn_forward.1} parent=1 // pred_check
      _
    $region247: #{fognn_forward.1} parent=1 // pred_check_branch
      %579 = sbr.rel (0) target = $region249
    $region248: #{fognn_forward.1} parent=1 // pred_region
      _
    $region249: #{fognn_forward.1} parent=1 // pred_fallthru
      _
    // Predicated region
    $region250: #{fognn_forward.1} parent=1 // pred_check
      _
    $region251: #{fognn_forward.1} parent=1 // pred_check_branch
      %581 = sbr.rel (0) target = $region253
    $region252: #{fognn_forward.1} parent=1 // pred_region
      %s583 = ssub.s32 16, 16
      %584 = vsyncadd [#allocation44], %s583
      %s586 = sshll.u32 [#allocation43], 4
      %s587 = int_to_ptr.vmem [resolvable:$true] %s586
      %589 = dma.hbm_to_vmem [thread:$0]  %s125, 16, %s587, [#allocation44]
    $region253: #{fognn_forward.1} parent=1 // pred_fallthru
      _
    // Predicated region
    $region254: #{fognn_forward.1} parent=1 // pred_check
      _
    $region255: #{fognn_forward.1} parent=1 // pred_check_branch
      %591 = sbr.rel (0) target = $region257
    $region256: #{fognn_forward.1} parent=1 // pred_region
      _
    $region257: #{fognn_forward.1} parent=1 // pred_fallthru
      _
    // Predicated region
    $region258: #{fognn_forward.1} parent=1 // pred_check
      _
    $region259: #{fognn_forward.1} parent=1 // pred_check_branch
      %593 = sbr.rel (0) target = $region261
    $region260: #{fognn_forward.1} parent=1 // pred_region
      %s595 = ssub.s32 16, 16
      %596 = vsyncadd [#allocation44], %s595
      %s598 = sshll.u32 [#allocation45], 4
      %s599 = int_to_ptr.vmem [resolvable:$true] %s598
      %601 = dma.hbm_to_vmem [thread:$0]  %s129, 16, %s599, [#allocation44]
    $region261: #{fognn_forward.1} parent=1 // pred_fallthru
      _
    // Predicated region
    $region262: #{fognn_forward.1} parent=1 // pred_check
      _
    $region263: #{fognn_forward.1} parent=1 // pred_check_branch
      %603 = sbr.rel (0) target = $region265
    $region264: #{fognn_forward.1} parent=1 // pred_region
      _
    $region265: #{fognn_forward.1} parent=1 // pred_fallthru
      _
    // Predicated region
    $region266: #{fognn_forward.1} parent=1 // pred_check
      _
    $region267: #{fognn_forward.1} parent=1 // pred_check_branch
      %605 = sbr.rel (0) target = $region269
    $region268: #{fognn_forward.1} parent=1 // pred_region
      _
    $region269: #{fognn_forward.1} parent=1 // pred_fallthru
      _
    // Predicated region
    $region270: #{fognn_forward.1} parent=1 // pred_check
      _
    $region271: #{fognn_forward.1} parent=1 // pred_check_branch
      %607 = sbr.rel (0) target = $region273
    $region272: #{fognn_forward.1} parent=1 // pred_region
      %s609 = ssub.s32 32, 32
      %610 = vsyncadd [#allocation47], %s609
      %s612 = sshll.u32 [#allocation46], 4
      %s613 = int_to_ptr.vmem [resolvable:$true] %s612
      %615 = dma.hbm_to_vmem [thread:$0]  %s135, 32, %s613, [#allocation47]
    $region273: #{fognn_forward.1} parent=1 // pred_fallthru
      _
    // Predicated region
    $region274: #{fognn_forward.1} parent=1 // pred_check
      _
    $region275: #{fognn_forward.1} parent=1 // pred_check_branch
      %617 = sbr.rel (0) target = $region277
    $region276: #{fognn_forward.1} parent=1 // pred_region
      %s619 = ssub.s32 32, 32
      %620 = vsyncadd [#allocation47], %s619
      %s622 = sshll.u32 [#allocation48], 4
      %s623 = int_to_ptr.vmem [resolvable:$true] %s622
      %625 = dma.hbm_to_vmem [thread:$0]  %s137, 32, %s623, [#allocation47]
    $region277: #{fognn_forward.1} parent=1 // pred_fallthru
      _
    // Predicated region
    $region278: #{fognn_forward.1} parent=1 // pred_check
      _
    $region279: #{fognn_forward.1} parent=1 // pred_check_branch
      %627 = sbr.rel (0) target = $region281
    $region280: #{fognn_forward.1} parent=1 // pred_region
      %s629 = ssub.s32 32, 32
      %630 = vsyncadd [#allocation50], %s629
      %s632 = sshll.u32 [#allocation49], 4
      %s633 = int_to_ptr.vmem [resolvable:$true] %s632
      %635 = dma.hbm_to_vmem [thread:$0]  %s139, 32, %s633, [#allocation50]
    $region281: #{fognn_forward.1} parent=1 // pred_fallthru
      _
    // Predicated region
    $region282: #{fognn_forward.1} parent=1 // pred_check
      _
    $region283: #{fognn_forward.1} parent=1 // pred_check_branch
      %637 = sbr.rel (0) target = $region285
    $region284: #{fognn_forward.1} parent=1 // pred_region
      %s639 = ssub.s32 32, 32
      %640 = vsyncadd [#allocation50], %s639
      %s642 = sshll.u32 [#allocation51], 4
      %s643 = int_to_ptr.vmem [resolvable:$true] %s642
      %645 = dma.hbm_to_vmem [thread:$0]  %s141, 32, %s643, [#allocation50]
    $region285: #{fognn_forward.1} parent=1 // pred_fallthru
      _
    // Predicated region
    $region286: #{fognn_forward.1} parent=1 // pred_check
      _
    $region287: #{fognn_forward.1} parent=1 // pred_check_branch
      %647 = sbr.rel (0) target = $region289
    $region288: #{fognn_forward.1} parent=1 // pred_region
      _
    $region289: #{fognn_forward.1} parent=1 // pred_fallthru
      _
    // Predicated region
    $region290: #{fognn_forward.1} parent=1 // pred_check
      _
    $region291: #{fognn_forward.1} parent=1 // pred_check_branch
      %649 = sbr.rel (0) target = $region293
    $region292: #{fognn_forward.1} parent=1 // pred_region
      %s651 = ssub.s32 16, 16
      %652 = vsyncadd [#allocation53], %s651
      %s654 = sshll.u32 [#allocation52], 4
      %s655 = int_to_ptr.vmem [resolvable:$true] %s654
      %657 = dma.hbm_to_vmem [thread:$0]  %s145, 16, %s655, [#allocation53]
    $region293: #{fognn_forward.1} parent=1 // pred_fallthru
      _
    // Predicated region
    $region294: #{fognn_forward.1} parent=1 // pred_check
      _
    $region295: #{fognn_forward.1} parent=1 // pred_check_branch
      %659 = sbr.rel (0) target = $region297
    $region296: #{fognn_forward.1} parent=1 // pred_region
      _
    $region297: #{fognn_forward.1} parent=1 // pred_fallthru
      _
    // Predicated region
    $region298: #{fognn_forward.1} parent=1 // pred_check
      _
    $region299: #{fognn_forward.1} parent=1 // pred_check_branch
      %661 = sbr.rel (0) target = $region301
    $region300: #{fognn_forward.1} parent=1 // pred_region
      %s663 = ssub.s32 16, 16
      %664 = vsyncadd [#allocation53], %s663
      %s666 = sshll.u32 [#allocation54], 4
      %s667 = int_to_ptr.vmem [resolvable:$true] %s666
      %669 = dma.hbm_to_vmem [thread:$0]  %s149, 16, %s667, [#allocation53]
    $region301: #{fognn_forward.1} parent=1 // pred_fallthru
      _
    // Predicated region
    $region302: #{fognn_forward.1} parent=1 // pred_check
      _
    $region303: #{fognn_forward.1} parent=1 // pred_check_branch
      %671 = sbr.rel (0) target = $region305
    $region304: #{fognn_forward.1} parent=1 // pred_region
      _
    $region305: #{fognn_forward.1} parent=1 // pred_fallthru
      _
    // Predicated region
    $region306: #{fognn_forward.1} parent=1 // pred_check
      _
    $region307: #{fognn_forward.1} parent=1 // pred_check_branch
      %673 = sbr.rel (0) target = $region309
    $region308: #{fognn_forward.1} parent=1 // pred_region
      %s675 = ssub.s32 16, 16
      %676 = vsyncadd [#allocation56], %s675
      %s678 = sshll.u32 [#allocation55], 4
      %s679 = int_to_ptr.vmem [resolvable:$true] %s678
      %681 = dma.hbm_to_vmem [thread:$0]  %s153, 16, %s679, [#allocation56]
    $region309: #{fognn_forward.1} parent=1 // pred_fallthru
      _
    // Predicated region
    $region310: #{fognn_forward.1} parent=1 // pred_check
      _
    $region311: #{fognn_forward.1} parent=1 // pred_check_branch
      %683 = sbr.rel (0) target = $region313
    $region312: #{fognn_forward.1} parent=1 // pred_region
      _
    $region313: #{fognn_forward.1} parent=1 // pred_fallthru
      _
    // Predicated region
    $region314: #{fognn_forward.1} parent=1 // pred_check
      _
    $region315: #{fognn_forward.1} parent=1 // pred_check_branch
      %685 = sbr.rel (0) target = $region317
    $region316: #{fognn_forward.1} parent=1 // pred_region
      %s687 = ssub.s32 16, 16
      %688 = vsyncadd [#allocation56], %s687
      %s690 = sshll.u32 [#allocation57], 4
      %s691 = int_to_ptr.vmem [resolvable:$true] %s690
      %693 = dma.hbm_to_vmem [thread:$0]  %s157, 16, %s691, [#allocation56]
    $region317: #{fognn_forward.1} parent=1 // pred_fallthru
      _
    // Predicated region
    $region318: #{fognn_forward.1} parent=1 // pred_check
      _
    $region319: #{fognn_forward.1} parent=1 // pred_check_branch
      %695 = sbr.rel (0) target = $region321
    $region320: #{fognn_forward.1} parent=1 // pred_region
      _
    $region321: #{fognn_forward.1} parent=1 // pred_fallthru
      _
    // Predicated region
    $region322: #{fognn_forward.1} parent=1 // pred_check
      _
    $region323: #{fognn_forward.1} parent=1 // pred_check_branch
      %697 = sbr.rel (0) target = $region325
    $region324: #{fognn_forward.1} parent=1 // pred_region
      %s699 = ssub.s32 16, 16
      %700 = vsyncadd [#allocation59], %s699
      %s702 = sshll.u32 [#allocation58], 4
      %s703 = int_to_ptr.vmem [resolvable:$true] %s702
      %705 = dma.hbm_to_vmem [thread:$0]  %s161, 16, %s703, [#allocation59]
    $region325: #{fognn_forward.1} parent=1 // pred_fallthru
      _
    // Predicated region
    $region326: #{fognn_forward.1} parent=1 // pred_check
      _
    $region327: #{fognn_forward.1} parent=1 // pred_check_branch
      %707 = sbr.rel (0) target = $region329
    $region328: #{fognn_forward.1} parent=1 // pred_region
      _
    $region329: #{fognn_forward.1} parent=1 // pred_fallthru
      _
    // Predicated region
    $region330: #{fognn_forward.1} parent=1 // pred_check
      _
    $region331: #{fognn_forward.1} parent=1 // pred_check_branch
      %709 = sbr.rel (0) target = $region333
    $region332: #{fognn_forward.1} parent=1 // pred_region
      %s711 = ssub.s32 16, 16
      %712 = vsyncadd [#allocation59], %s711
      %s714 = sshll.u32 [#allocation60], 4
      %s715 = int_to_ptr.vmem [resolvable:$true] %s714
      %717 = dma.hbm_to_vmem [thread:$0]  %s165, 16, %s715, [#allocation59]
    $region333: #{fognn_forward.1} parent=1 // pred_fallthru
      _
    // Predicated region
    $region334: #{fognn_forward.1} parent=1 // pred_check
      _
    $region335: #{fognn_forward.1} parent=1 // pred_check_branch
      %719 = sbr.rel (0) target = $region337
    $region336: #{fognn_forward.1} parent=1 // pred_region
      _
    $region337: #{fognn_forward.1} parent=1 // pred_fallthru
      _
    // Predicated region
    $region338: #{fognn_forward.1} parent=1 // pred_check
      _
    $region339: #{fognn_forward.1} parent=1 // pred_check_branch
      %721 = sbr.rel (0) target = $region341
    $region340: #{fognn_forward.1} parent=1 // pred_region
      _
    $region341: #{fognn_forward.1} parent=1 // pred_fallthru
      _
    // Predicated region
    $region342: #{fognn_forward.1} parent=1 // pred_check
      _
    $region343: #{fognn_forward.1} parent=1 // pred_check_branch
      %723 = sbr.rel (0) target = $region345
    $region344: #{fognn_forward.1} parent=1 // pred_region
      _
    $region345: #{fognn_forward.1} parent=1 // pred_fallthru
      _
    // Predicated region
    $region346: #{fognn_forward.1} parent=1 // pred_check
      _
    $region347: #{fognn_forward.1} parent=1 // pred_check_branch
      %725 = sbr.rel (0) target = $region349
    $region348: #{fognn_forward.1} parent=1 // pred_region
      %s727 = ssub.s32 32, 32
      %728 = vsyncadd [#allocation62], %s727
      %s730 = sshll.u32 [#allocation61], 4
      %s731 = int_to_ptr.vmem [resolvable:$true] %s730
      %733 = dma.hbm_to_vmem [thread:$0]  %s173, 32, %s731, [#allocation62]
    $region349: #{fognn_forward.1} parent=1 // pred_fallthru
      _
    // Predicated region
    $region350: #{fognn_forward.1} parent=1 // pred_check
      _
    $region351: #{fognn_forward.1} parent=1 // pred_check_branch
      %735 = sbr.rel (0) target = $region353
    $region352: #{fognn_forward.1} parent=1 // pred_region
      %s737 = ssub.s32 32, 32
      %738 = vsyncadd [#allocation62], %s737
      %s740 = sshll.u32 [#allocation63], 4
      %s741 = int_to_ptr.vmem [resolvable:$true] %s740
      %743 = dma.hbm_to_vmem [thread:$0]  %s175, 32, %s741, [#allocation62]
    $region353: #{fognn_forward.1} parent=1 // pred_fallthru
      _
    // Predicated region
    $region354: #{fognn_forward.1} parent=1 // pred_check
      _
    $region355: #{fognn_forward.1} parent=1 // pred_check_branch
      %745 = sbr.rel (0) target = $region357
    $region356: #{fognn_forward.1} parent=1 // pred_region
      %s747 = ssub.s32 32, 32
      %748 = vsyncadd [#allocation65], %s747
      %s750 = sshll.u32 [#allocation64], 4
      %s751 = int_to_ptr.vmem [resolvable:$true] %s750
      %753 = dma.hbm_to_vmem [thread:$0]  %s177, 32, %s751, [#allocation65]
    $region357: #{fognn_forward.1} parent=1 // pred_fallthru
      _
    // Predicated region
    $region358: #{fognn_forward.1} parent=1 // pred_check
      _
    $region359: #{fognn_forward.1} parent=1 // pred_check_branch
      %755 = sbr.rel (0) target = $region361
    $region360: #{fognn_forward.1} parent=1 // pred_region
      %s757 = ssub.s32 32, 32
      %758 = vsyncadd [#allocation65], %s757
      %s760 = sshll.u32 [#allocation66], 4
      %s761 = int_to_ptr.vmem [resolvable:$true] %s760
      %763 = dma.hbm_to_vmem [thread:$0]  %s179, 32, %s761, [#allocation65]
    $region361: #{fognn_forward.1} parent=1 // pred_fallthru
      _
    // Predicated region
    $region362: #{fognn_forward.1} parent=1 // pred_check
      _
    $region363: #{fognn_forward.1} parent=1 // pred_check_branch
      %765 = sbr.rel (0) target = $region365
    $region364: #{fognn_forward.1} parent=1 // pred_region
      _
    $region365: #{fognn_forward.1} parent=1 // pred_fallthru
      _
    // Predicated region
    $region366: #{fognn_forward.1} parent=1 // pred_check
      _
    $region367: #{fognn_forward.1} parent=1 // pred_check_branch
      %767 = sbr.rel (0) target = $region369
    $region368: #{fognn_forward.1} parent=1 // pred_region
      %s769 = ssub.s32 16, 16
      %770 = vsyncadd [#allocation68], %s769
      %s772 = sshll.u32 [#allocation67], 4
      %s773 = int_to_ptr.vmem [resolvable:$true] %s772
      %775 = dma.hbm_to_vmem [thread:$0]  %s183, 16, %s773, [#allocation68]
    $region369: #{fognn_forward.1} parent=1 // pred_fallthru
      _
    // Predicated region
    $region370: #{fognn_forward.1} parent=1 // pred_check
      _
    $region371: #{fognn_forward.1} parent=1 // pred_check_branch
      %777 = sbr.rel (0) target = $region373
    $region372: #{fognn_forward.1} parent=1 // pred_region
      _
    $region373: #{fognn_forward.1} parent=1 // pred_fallthru
      _
    // Predicated region
    $region374: #{fognn_forward.1} parent=1 // pred_check
      _
    $region375: #{fognn_forward.1} parent=1 // pred_check_branch
      %779 = sbr.rel (0) target = $region377
    $region376: #{fognn_forward.1} parent=1 // pred_region
      %s781 = ssub.s32 16, 16
      %782 = vsyncadd [#allocation68], %s781
      %s784 = sshll.u32 [#allocation69], 4
      %s785 = int_to_ptr.vmem [resolvable:$true] %s784
      %787 = dma.hbm_to_vmem [thread:$0]  %s187, 16, %s785, [#allocation68]
    $region377: #{fognn_forward.1} parent=1 // pred_fallthru
      _
    // Predicated region
    $region378: #{fognn_forward.1} parent=1 // pred_check
      _
    $region379: #{fognn_forward.1} parent=1 // pred_check_branch
      %789 = sbr.rel (0) target = $region381
    $region380: #{fognn_forward.1} parent=1 // pred_region
      _
    $region381: #{fognn_forward.1} parent=1 // pred_fallthru
      _
    // Predicated region
    $region382: #{fognn_forward.1} parent=1 // pred_check
      _
    $region383: #{fognn_forward.1} parent=1 // pred_check_branch
      %791 = sbr.rel (0) target = $region385
    $region384: #{fognn_forward.1} parent=1 // pred_region
      %s793 = ssub.s32 16, 16
      %794 = vsyncadd [#allocation71], %s793
      %s796 = sshll.u32 [#allocation70], 4
      %s797 = int_to_ptr.vmem [resolvable:$true] %s796
      %799 = dma.hbm_to_vmem [thread:$0]  %s191, 16, %s797, [#allocation71]
    $region385: #{fognn_forward.1} parent=1 // pred_fallthru
      _
    // Predicated region
    $region386: #{fognn_forward.1} parent=1 // pred_check
      _
    $region387: #{fognn_forward.1} parent=1 // pred_check_branch
      %801 = sbr.rel (0) target = $region389
    $region388: #{fognn_forward.1} parent=1 // pred_region
      _
    $region389: #{fognn_forward.1} parent=1 // pred_fallthru
      _
    // Predicated region
    $region390: #{fognn_forward.1} parent=1 // pred_check
      _
    $region391: #{fognn_forward.1} parent=1 // pred_check_branch
      %803 = sbr.rel (0) target = $region393
    $region392: #{fognn_forward.1} parent=1 // pred_region
      %s805 = ssub.s32 16, 16
      %806 = vsyncadd [#allocation71], %s805
      %s808 = sshll.u32 [#allocation72], 4
      %s809 = int_to_ptr.vmem [resolvable:$true] %s808
      %811 = dma.hbm_to_vmem [thread:$0]  %s195, 16, %s809, [#allocation71]
    $region393: #{fognn_forward.1} parent=1 // pred_fallthru
      _
    // Predicated region
    $region394: #{fognn_forward.1} parent=1 // pred_check
      _
    $region395: #{fognn_forward.1} parent=1 // pred_check_branch
      %813 = sbr.rel (0) target = $region397
    $region396: #{fognn_forward.1} parent=1 // pred_region
      _
    $region397: #{fognn_forward.1} parent=1 // pred_fallthru
      _
    // Predicated region
    $region398: #{fognn_forward.1} parent=1 // pred_check
      _
    $region399: #{fognn_forward.1} parent=1 // pred_check_branch
      %815 = sbr.rel (0) target = $region401
    $region400: #{fognn_forward.1} parent=1 // pred_region
      %s817 = ssub.s32 16, 16
      %818 = vsyncadd [#allocation74], %s817
      %s820 = sshll.u32 [#allocation73], 4
      %s821 = int_to_ptr.vmem [resolvable:$true] %s820
      %823 = dma.hbm_to_vmem [thread:$0]  %s199, 16, %s821, [#allocation74]
    $region401: #{fognn_forward.1} parent=1 // pred_fallthru
      _
    // Predicated region
    $region402: #{fognn_forward.1} parent=1 // pred_check
      _
    $region403: #{fognn_forward.1} parent=1 // pred_check_branch
      %825 = sbr.rel (0) target = $region405
    $region404: #{fognn_forward.1} parent=1 // pred_region
      _
    $region405: #{fognn_forward.1} parent=1 // pred_fallthru
      _
    // Predicated region
    $region406: #{fognn_forward.1} parent=1 // pred_check
      _
    $region407: #{fognn_forward.1} parent=1 // pred_check_branch
      %827 = sbr.rel (0) target = $region409
    $region408: #{fognn_forward.1} parent=1 // pred_region
      %s829 = ssub.s32 16, 16
      %830 = vsyncadd [#allocation74], %s829
      %s832 = sshll.u32 [#allocation75], 4
      %s833 = int_to_ptr.vmem [resolvable:$true] %s832
      %835 = dma.hbm_to_vmem [thread:$0]  %s203, 16, %s833, [#allocation74]
    $region409: #{fognn_forward.1} parent=1 // pred_fallthru
      _
    // Predicated region
    $region410: #{fognn_forward.1} parent=1 // pred_check
      _
    $region411: #{fognn_forward.1} parent=1 // pred_check_branch
      %837 = sbr.rel (0) target = $region413
    $region412: #{fognn_forward.1} parent=1 // pred_region
      _
    $region413: #{fognn_forward.1} parent=1 // pred_fallthru
      _
    // Predicated region
    $region414: #{fognn_forward.1} parent=1 // pred_check
      _
    $region415: #{fognn_forward.1} parent=1 // pred_check_branch
      %839 = sbr.rel (0) target = $region417
    $region416: #{fognn_forward.1} parent=1 // pred_region
      %s841 = ssub.s32 16, 16
      %842 = vsyncadd [#allocation77], %s841
      %s844 = sshll.u32 [#allocation76], 4
      %s845 = int_to_ptr.vmem [resolvable:$true] %s844
      %847 = dma.hbm_to_vmem [thread:$0]  %s207, 16, %s845, [#allocation77]
    $region417: #{fognn_forward.1} parent=1 // pred_fallthru
      _
    // Predicated region
    $region418: #{fognn_forward.1} parent=1 // pred_check
      _
    $region419: #{fognn_forward.1} parent=1 // pred_check_branch
      %849 = sbr.rel (0) target = $region421
    $region420: #{fognn_forward.1} parent=1 // pred_region
      %850 = dma.done [#allocation3], 16
    $region421: #{fognn_forward.1} parent=1 // pred_fallthru
      _
    // Predicated region
    $region422: #{fognn_forward.1} parent=1 // pred_check
      _
    $region423: #{fognn_forward.1} parent=1 // pred_check_branch
      %852 = sbr.rel (0) target = $region425
    $region424: #{fognn_forward.1} parent=1 // pred_region
      %853 = dma.done [#allocation5], 16
    $region425: #{fognn_forward.1} parent=1 // pred_fallthru
      _
    // Predicated region
    $region426: #{fognn_forward.1} parent=1 // pred_check
      _
    $region427: #{fognn_forward.1} parent=1 // pred_check_branch
      %855 = sbr.rel (0) target = $region429
    $region428: #{fognn_forward.1} parent=1 // pred_region
      %856 = dma.done [#allocation5], 16
    $region429: #{fognn_forward.1} parent=1 // pred_fallthru
      _
    // Predicated region
    $region430: #{fognn_forward.1} parent=1 // pred_check
      _
    $region431: #{fognn_forward.1} parent=1 // pred_check_branch
      %858 = sbr.rel (0) target = $region433
    $region432: #{fognn_forward.1} parent=1 // pred_region
      %859 = dma.done [#allocation8], 16
    $region433: #{fognn_forward.1} parent=1 // pred_fallthru
      _
    // Predicated region
    $region434: #{fognn_forward.1} parent=1 // pred_check
      _
    $region435: #{fognn_forward.1} parent=1 // pred_check_branch
      %861 = sbr.rel (0) target = $region437
    $region436: #{fognn_forward.1} parent=1 // pred_region
      %862 = dma.done [#allocation8], 16
    $region437: #{fognn_forward.1} parent=1 // pred_fallthru
      _
    // Predicated region
    $region438: #{fognn_forward.1} parent=1 // pred_check
      _
    $region439: #{fognn_forward.1} parent=1 // pred_check_branch
      %864 = sbr.rel (0) target = $region441
    $region440: #{fognn_forward.1} parent=1 // pred_region
      %865 = dma.done [#allocation11], 16
    $region441: #{fognn_forward.1} parent=1 // pred_fallthru
      _
    // Predicated region
    $region442: #{fognn_forward.1} parent=1 // pred_check
      _
    $region443: #{fognn_forward.1} parent=1 // pred_check_branch
      %867 = sbr.rel (0) target = $region445
    $region444: #{fognn_forward.1} parent=1 // pred_region
      %868 = dma.done [#allocation11], 32
    $region445: #{fognn_forward.1} parent=1 // pred_fallthru
      _
    // Predicated region
    $region446: #{fognn_forward.1} parent=1 // pred_check
      _
    $region447: #{fognn_forward.1} parent=1 // pred_check_branch
      %870 = sbr.rel (0) target = $region449
    $region448: #{fognn_forward.1} parent=1 // pred_region
      %871 = dma.done [#allocation14], 32
    $region449: #{fognn_forward.1} parent=1 // pred_fallthru
      _
    // Predicated region
    $region450: #{fognn_forward.1} parent=1 // pred_check
      _
    $region451: #{fognn_forward.1} parent=1 // pred_check_branch
      %873 = sbr.rel (0) target = $region453
    $region452: #{fognn_forward.1} parent=1 // pred_region
      %874 = dma.done [#allocation14], 32
    $region453: #{fognn_forward.1} parent=1 // pred_fallthru
      _
    // Predicated region
    $region454: #{fognn_forward.1} parent=1 // pred_check
      _
    $region455: #{fognn_forward.1} parent=1 // pred_check_branch
      %876 = sbr.rel (0) target = $region457
    $region456: #{fognn_forward.1} parent=1 // pred_region
      %877 = dma.done [#allocation17], 16
    $region457: #{fognn_forward.1} parent=1 // pred_fallthru
      _
    // Predicated region
    $region458: #{fognn_forward.1} parent=1 // pred_check
      _
    $region459: #{fognn_forward.1} parent=1 // pred_check_branch
      %879 = sbr.rel (0) target = $region461
    $region460: #{fognn_forward.1} parent=1 // pred_region
      %880 = dma.done [#allocation17], 16
    $region461: #{fognn_forward.1} parent=1 // pred_fallthru
      _
    // Predicated region
    $region462: #{fognn_forward.1} parent=1 // pred_check
      _
    $region463: #{fognn_forward.1} parent=1 // pred_check_branch
      %882 = sbr.rel (0) target = $region465
    $region464: #{fognn_forward.1} parent=1 // pred_region
      %883 = dma.done [#allocation20], 16
    $region465: #{fognn_forward.1} parent=1 // pred_fallthru
      _
    // Predicated region
    $region466: #{fognn_forward.1} parent=1 // pred_check
      _
    $region467: #{fognn_forward.1} parent=1 // pred_check_branch
      %885 = sbr.rel (0) target = $region469
    $region468: #{fognn_forward.1} parent=1 // pred_region
      %886 = dma.done [#allocation20], 16
    $region469: #{fognn_forward.1} parent=1 // pred_fallthru
      _
    // Predicated region
    $region470: #{fognn_forward.1} parent=1 // pred_check
      _
    $region471: #{fognn_forward.1} parent=1 // pred_check_branch
      %888 = sbr.rel (0) target = $region473
    $region472: #{fognn_forward.1} parent=1 // pred_region
      %889 = dma.done [#allocation23], 16
    $region473: #{fognn_forward.1} parent=1 // pred_fallthru
      _
    // Predicated region
    $region474: #{fognn_forward.1} parent=1 // pred_check
      _
    $region475: #{fognn_forward.1} parent=1 // pred_check_branch
      %891 = sbr.rel (0) target = $region477
    $region476: #{fognn_forward.1} parent=1 // pred_region
      %892 = dma.done [#allocation23], 16
    $region477: #{fognn_forward.1} parent=1 // pred_fallthru
      _
    // Predicated region
    $region478: #{fognn_forward.1} parent=1 // pred_check
      _
    $region479: #{fognn_forward.1} parent=1 // pred_check_branch
      %894 = sbr.rel (0) target = $region481
    $region480: #{fognn_forward.1} parent=1 // pred_region
      %895 = dma.done [#allocation26], 32
    $region481: #{fognn_forward.1} parent=1 // pred_fallthru
      _
    // Predicated region
    $region482: #{fognn_forward.1} parent=1 // pred_check
      _
    $region483: #{fognn_forward.1} parent=1 // pred_check_branch
      %897 = sbr.rel (0) target = $region485
    $region484: #{fognn_forward.1} parent=1 // pred_region
      %898 = dma.done [#allocation26], 32
    $region485: #{fognn_forward.1} parent=1 // pred_fallthru
      _
    // Predicated region
    $region486: #{fognn_forward.1} parent=1 // pred_check
      _
    $region487: #{fognn_forward.1} parent=1 // pred_check_branch
      %900 = sbr.rel (0) target = $region489
    $region488: #{fognn_forward.1} parent=1 // pred_region
      %901 = dma.done [#allocation29], 32
    $region489: #{fognn_forward.1} parent=1 // pred_fallthru
      _
    // Predicated region
    $region490: #{fognn_forward.1} parent=1 // pred_check
      _
    $region491: #{fognn_forward.1} parent=1 // pred_check_branch
      %903 = sbr.rel (0) target = $region493
    $region492: #{fognn_forward.1} parent=1 // pred_region
      %904 = dma.done [#allocation29], 32
    $region493: #{fognn_forward.1} parent=1 // pred_fallthru
      _
    // Predicated region
    $region494: #{fognn_forward.1} parent=1 // pred_check
      _
    $region495: #{fognn_forward.1} parent=1 // pred_check_branch
      %906 = sbr.rel (0) target = $region497
    $region496: #{fognn_forward.1} parent=1 // pred_region
      %907 = dma.done [#allocation32], 16
    $region497: #{fognn_forward.1} parent=1 // pred_fallthru
      _
    // Predicated region
    $region498: #{fognn_forward.1} parent=1 // pred_check
      _
    $region499: #{fognn_forward.1} parent=1 // pred_check_branch
      %909 = sbr.rel (0) target = $region501
    $region500: #{fognn_forward.1} parent=1 // pred_region
      %910 = dma.done [#allocation32], 16
    $region501: #{fognn_forward.1} parent=1 // pred_fallthru
      _
    // Predicated region
    $region502: #{fognn_forward.1} parent=1 // pred_check
      _
    $region503: #{fognn_forward.1} parent=1 // pred_check_branch
      %912 = sbr.rel (0) target = $region505
    $region504: #{fognn_forward.1} parent=1 // pred_region
      %913 = dma.done [#allocation35], 16
    $region505: #{fognn_forward.1} parent=1 // pred_fallthru
      _
    // Predicated region
    $region506: #{fognn_forward.1} parent=1 // pred_check
      _
    $region507: #{fognn_forward.1} parent=1 // pred_check_branch
      %915 = sbr.rel (0) target = $region509
    $region508: #{fognn_forward.1} parent=1 // pred_region
      %916 = dma.done [#allocation35], 16
    $region509: #{fognn_forward.1} parent=1 // pred_fallthru
      _
    // Predicated region
    $region510: #{fognn_forward.1} parent=1 // pred_check
      _
    $region511: #{fognn_forward.1} parent=1 // pred_check_branch
      %918 = sbr.rel (0) target = $region513
    $region512: #{fognn_forward.1} parent=1 // pred_region
      %919 = dma.done [#allocation38], 16
    $region513: #{fognn_forward.1} parent=1 // pred_fallthru
      _
    // Predicated region
    $region514: #{fognn_forward.1} parent=1 // pred_check
      _
    $region515: #{fognn_forward.1} parent=1 // pred_check_branch
      %921 = sbr.rel (0) target = $region517
    $region516: #{fognn_forward.1} parent=1 // pred_region
      %922 = dma.done [#allocation38], 16
    $region517: #{fognn_forward.1} parent=1 // pred_fallthru
      _
    // Predicated region
    $region518: #{fognn_forward.1} parent=1 // pred_check
      _
    $region519: #{fognn_forward.1} parent=1 // pred_check_branch
      %924 = sbr.rel (0) target = $region521
    $region520: #{fognn_forward.1} parent=1 // pred_region
      %925 = dma.done [#allocation41], 16
    $region521: #{fognn_forward.1} parent=1 // pred_fallthru
      _
    // Predicated region
    $region522: #{fognn_forward.1} parent=1 // pred_check
      _
    $region523: #{fognn_forward.1} parent=1 // pred_check_branch
      %927 = sbr.rel (0) target = $region525
    $region524: #{fognn_forward.1} parent=1 // pred_region
      %928 = dma.done [#allocation41], 16
    $region525: #{fognn_forward.1} parent=1 // pred_fallthru
      _
    // Predicated region
    $region526: #{fognn_forward.1} parent=1 // pred_check
      _
    $region527: #{fognn_forward.1} parent=1 // pred_check_branch
      %930 = sbr.rel (0) target = $region529
    $region528: #{fognn_forward.1} parent=1 // pred_region
      %931 = dma.done [#allocation44], 16
    $region529: #{fognn_forward.1} parent=1 // pred_fallthru
      _
    // Predicated region
    $region530: #{fognn_forward.1} parent=1 // pred_check
      _
    $region531: #{fognn_forward.1} parent=1 // pred_check_branch
      %933 = sbr.rel (0) target = $region533
    $region532: #{fognn_forward.1} parent=1 // pred_region
      %934 = dma.done [#allocation44], 16
    $region533: #{fognn_forward.1} parent=1 // pred_fallthru
      _
    // Predicated region
    $region534: #{fognn_forward.1} parent=1 // pred_check
      _
    $region535: #{fognn_forward.1} parent=1 // pred_check_branch
      %936 = sbr.rel (0) target = $region537
    $region536: #{fognn_forward.1} parent=1 // pred_region
      %937 = dma.done [#allocation47], 32
    $region537: #{fognn_forward.1} parent=1 // pred_fallthru
      _
    // Predicated region
    $region538: #{fognn_forward.1} parent=1 // pred_check
      _
    $region539: #{fognn_forward.1} parent=1 // pred_check_branch
      %939 = sbr.rel (0) target = $region541
    $region540: #{fognn_forward.1} parent=1 // pred_region
      %940 = dma.done [#allocation47], 32
    $region541: #{fognn_forward.1} parent=1 // pred_fallthru
      _
    // Predicated region
    $region542: #{fognn_forward.1} parent=1 // pred_check
      _
    $region543: #{fognn_forward.1} parent=1 // pred_check_branch
      %942 = sbr.rel (0) target = $region545
    $region544: #{fognn_forward.1} parent=1 // pred_region
      %943 = dma.done [#allocation50], 32
    $region545: #{fognn_forward.1} parent=1 // pred_fallthru
      _
    // Predicated region
    $region546: #{fognn_forward.1} parent=1 // pred_check
      _
    $region547: #{fognn_forward.1} parent=1 // pred_check_branch
      %945 = sbr.rel (0) target = $region549
    $region548: #{fognn_forward.1} parent=1 // pred_region
      %946 = dma.done [#allocation50], 32
    $region549: #{fognn_forward.1} parent=1 // pred_fallthru
      _
    // Predicated region
    $region550: #{fognn_forward.1} parent=1 // pred_check
      _
    $region551: #{fognn_forward.1} parent=1 // pred_check_branch
      %948 = sbr.rel (0) target = $region553
    $region552: #{fognn_forward.1} parent=1 // pred_region
      %949 = dma.done [#allocation53], 16
    $region553: #{fognn_forward.1} parent=1 // pred_fallthru
      _
    // Predicated region
    $region554: #{fognn_forward.1} parent=1 // pred_check
      _
    $region555: #{fognn_forward.1} parent=1 // pred_check_branch
      %951 = sbr.rel (0) target = $region557
    $region556: #{fognn_forward.1} parent=1 // pred_region
      %952 = dma.done [#allocation53], 16
    $region557: #{fognn_forward.1} parent=1 // pred_fallthru
      _
    // Predicated region
    $region558: #{fognn_forward.1} parent=1 // pred_check
      _
    $region559: #{fognn_forward.1} parent=1 // pred_check_branch
      %954 = sbr.rel (0) target = $region561
    $region560: #{fognn_forward.1} parent=1 // pred_region
      %955 = dma.done [#allocation56], 16
    $region561: #{fognn_forward.1} parent=1 // pred_fallthru
      _
    // Predicated region
    $region562: #{fognn_forward.1} parent=1 // pred_check
      _
    $region563: #{fognn_forward.1} parent=1 // pred_check_branch
      %957 = sbr.rel (0) target = $region565
    $region564: #{fognn_forward.1} parent=1 // pred_region
      %958 = dma.done [#allocation56], 16
    $region565: #{fognn_forward.1} parent=1 // pred_fallthru
      _
    // Predicated region
    $region566: #{fognn_forward.1} parent=1 // pred_check
      _
    $region567: #{fognn_forward.1} parent=1 // pred_check_branch
      %960 = sbr.rel (0) target = $region569
    $region568: #{fognn_forward.1} parent=1 // pred_region
      %961 = dma.done [#allocation59], 16
    $region569: #{fognn_forward.1} parent=1 // pred_fallthru
      _
    // Predicated region
    $region570: #{fognn_forward.1} parent=1 // pred_check
      _
    $region571: #{fognn_forward.1} parent=1 // pred_check_branch
      %963 = sbr.rel (0) target = $region573
    $region572: #{fognn_forward.1} parent=1 // pred_region
      %964 = dma.done [#allocation59], 16
    $region573: #{fognn_forward.1} parent=1 // pred_fallthru
      _
    // Predicated region
    $region574: #{fognn_forward.1} parent=1 // pred_check
      _
    $region575: #{fognn_forward.1} parent=1 // pred_check_branch
      %966 = sbr.rel (0) target = $region577
    $region576: #{fognn_forward.1} parent=1 // pred_region
      %967 = dma.done [#allocation62], 32
    $region577: #{fognn_forward.1} parent=1 // pred_fallthru
      _
    // Predicated region
    $region578: #{fognn_forward.1} parent=1 // pred_check
      _
    $region579: #{fognn_forward.1} parent=1 // pred_check_branch
      %969 = sbr.rel (0) target = $region581
    $region580: #{fognn_forward.1} parent=1 // pred_region
      %970 = dma.done [#allocation62], 32
    $region581: #{fognn_forward.1} parent=1 // pred_fallthru
      _
    // Predicated region
    $region582: #{fognn_forward.1} parent=1 // pred_check
      _
    $region583: #{fognn_forward.1} parent=1 // pred_check_branch
      %972 = sbr.rel (0) target = $region585
    $region584: #{fognn_forward.1} parent=1 // pred_region
      %973 = dma.done [#allocation65], 32
    $region585: #{fognn_forward.1} parent=1 // pred_fallthru
      _
    // Predicated region
    $region586: #{fognn_forward.1} parent=1 // pred_check
      _
    $region587: #{fognn_forward.1} parent=1 // pred_check_branch
      %975 = sbr.rel (0) target = $region589
    $region588: #{fognn_forward.1} parent=1 // pred_region
      %976 = dma.done [#allocation65], 32
    $region589: #{fognn_forward.1} parent=1 // pred_fallthru
      _
    // Predicated region
    $region590: #{fognn_forward.1} parent=1 // pred_check
      _
    $region591: #{fognn_forward.1} parent=1 // pred_check_branch
      %978 = sbr.rel (0) target = $region593
    $region592: #{fognn_forward.1} parent=1 // pred_region
      %979 = dma.done [#allocation68], 16
    $region593: #{fognn_forward.1} parent=1 // pred_fallthru
      _
    // Predicated region
    $region594: #{fognn_forward.1} parent=1 // pred_check
      _
    $region595: #{fognn_forward.1} parent=1 // pred_check_branch
      %981 = sbr.rel (0) target = $region597
    $region596: #{fognn_forward.1} parent=1 // pred_region
      %982 = dma.done [#allocation68], 16
    $region597: #{fognn_forward.1} parent=1 // pred_fallthru
      _
    // Predicated region
    $region598: #{fognn_forward.1} parent=1 // pred_check
      _
    $region599: #{fognn_forward.1} parent=1 // pred_check_branch
      %984 = sbr.rel (0) target = $region601
    $region600: #{fognn_forward.1} parent=1 // pred_region
      %985 = dma.done [#allocation71], 16
    $region601: #{fognn_forward.1} parent=1 // pred_fallthru
      _
    // Predicated region
    $region602: #{fognn_forward.1} parent=1 // pred_check
      _
    $region603: #{fognn_forward.1} parent=1 // pred_check_branch
      %987 = sbr.rel (0) target = $region605
    $region604: #{fognn_forward.1} parent=1 // pred_region
      %988 = dma.done [#allocation71], 16
    $region605: #{fognn_forward.1} parent=1 // pred_fallthru
      _
    // Predicated region
    $region606: #{fognn_forward.1} parent=1 // pred_check
      _
    $region607: #{fognn_forward.1} parent=1 // pred_check_branch
      %990 = sbr.rel (0) target = $region609
    $region608: #{fognn_forward.1} parent=1 // pred_region
      %991 = dma.done [#allocation74], 16
    $region609: #{fognn_forward.1} parent=1 // pred_fallthru
      _
    // Predicated region
    $region610: #{fognn_forward.1} parent=1 // pred_check
      _
    $region611: #{fognn_forward.1} parent=1 // pred_check_branch
      %993 = sbr.rel (0) target = $region613
    $region612: #{fognn_forward.1} parent=1 // pred_region
      %994 = dma.done [#allocation74], 16
    $region613: #{fognn_forward.1} parent=1 // pred_fallthru
      _
    // Predicated region
    $region614: #{fognn_forward.1} parent=1 // pred_check
      _
    $region615: #{fognn_forward.1} parent=1 // pred_check_branch
      %996 = sbr.rel (0) target = $region617
    $region616: #{fognn_forward.1} parent=1 // pred_region
      %997 = dma.done [#allocation77], 16
    $region617: #{fognn_forward.1} parent=1 // pred_fallthru
      _
    %v998 = vld [vmem:[%s1] sm:$0xff]
    %v999 = vld [vmem:[%s1 + $0x8] sm:$0xff]
    %v1000 = vld [vmem:[%s3] sm:$0xff]
    %v1001 = vld [vmem:[%s3 + $0x8] sm:$0xf]
    %v1002 = vld [vmem:[%s5] sm:$0xff]
    %v1003 = vld [vmem:[%s5 + $0x8] sm:$0xff]
    %v1004 = vld [vmem:[%s5 + $0x10] sm:$0xff]
    %v1005 = vld [vmem:[%s7] sm:$0xff]
    %v1006 = vld [vmem:[%s7 + $0x8] sm:$0xff]
    %v1007 = vld [vmem:[%s7 + $0x10] sm:$0xff]
    %v1008 = vld [vmem:[%s9] sm:$0xff]
    %v1009 = vld [vmem:[%s9 + $0x8] sm:$0xff]
    %v1010 = vld [vmem:[%s9 + $0x10] sm:$0xff]
    %v1011 = vld [vmem:[%s11] sm:$0xff]
    %v1012 = vld [vmem:[%s11 + $0x8] sm:$0xff]
    %v1013 = vld [vmem:[%s13] sm:$0xff]
    %v1014 = vld [vmem:[%s13 + $0x8] sm:$0xf]
    %v1015 = vld [vmem:[%s15] sm:$0xff]
    %v1016 = vld [vmem:[%s15 + $0x8] sm:$0xff]
    %v1017 = vld [vmem:[%s17] sm:$0x3f]
    %v1018 = vld [vmem:[%s17 + $0x8] sm:$0x3f]
    %v1019 = vld [vmem:[%s19] sm:$0xff]
    %v1020 = vld [vmem:[%s19 + $0x8] sm:$0xff]
    %v1021 = vld [vmem:[%s19 + $0x10] sm:$0xff]
    %v1022 = vld [vmem:[%s19 + $0x18] sm:$0xff]
    %v1023 = vld [vmem:[%s19 + $0x20] sm:$0xff]
    %v1024 = vld [vmem:[%s19 + $0x28] sm:$0xff]
    %v1025 = vld [vmem:[%s19 + $0x30] sm:$0xff]
    %v1026 = vld [vmem:[%s19 + $0x38] sm:$0xff]
    %v1027 = vld [vmem:[%s19 + $0x40] sm:$0xff]
    %v1028 = vld [vmem:[%s19 + $0x48] sm:$0xff]
    %v1029 = vld [vmem:[%s19 + $0x50] sm:$0xff]
    %v1030 = vld [vmem:[%s19 + $0x58] sm:$0xff]
    %v1031 = vld [vmem:[%s19 + $0x60] sm:$0xff]
    %v1032 = vld [vmem:[%s19 + $0x68] sm:$0xff]
    %v1033 = vld [vmem:[%s19 + $0x70] sm:$0xff]
    %v1034 = vld [vmem:[%s19 + $0x78] sm:$0xff]
    %v1035 = vld [vmem:[%s19 + $0x80] sm:$0xff]
    %v1036 = vld [vmem:[%s19 + $0x88] sm:$0xff]
    %v1037 = vld [vmem:[%s19 + $0x90] sm:$0xff]
    %v1038 = vld [vmem:[%s19 + $0x98] sm:$0xff]
    %v1039 = vld [vmem:[%s19 + $0xa0] sm:$0xff]
    %v1040 = vld [vmem:[%s19 + $0xa8] sm:$0xff]
    %v1041 = vld [vmem:[%s19 + $0xb0] sm:$0xff]
    %v1042 = vld [vmem:[%s19 + $0xb8] sm:$0xff]
    %v1043 = vld [vmem:[%s21] sm:$0x3f]
    %v1044 = vld [vmem:[#allocation2] sm:$0x1]
    %v1045 = vld [vmem:[%s25] sm:$0xff]
    %v1046 = vld [vmem:[%s25 + $0x8] sm:$0xff]
    %v1047 = vld [vmem:[%s25 + $0x10] sm:$0xff]
    %v1048 = vld [vmem:[%s25 + $0x18] sm:$0xff]
    %v1049 = vld [vmem:[#allocation4] sm:$0x1]
    %v1051 = vlaneseq
    %v1052 = vshrl.u32 %v1051, 7
    %v1053 = vsub.s32 0, %v1052
    %v1054 = vrot.slane %v1044, %v1053
    %vm1056 = vcmask 48128
    %v1058 = vsel %vm1056, %v998, 0
    %v1061 = vsel %vm1056, %v999, 0
    %vm1063 = vcmask 1045504
    %v1065 = vsel %vm1063, %v1043, 0
    %1067 = vmatprep.subr.mxu0 0.0
    %1068 = vmatpush1.msra.mxu0 %v1065
    %1069 = vmatprep.subr.mxu0 0.0
    %1070 = vmatpush1.msra.mxu0 0.0
    %1071 = vmatprep.subr.mxu0 0.0
    %1072 = vmatpush1.msra.mxu0 0.0
    %1073 = vmatprep.subr.mxu0 0.0
    %1074 = vmatpush1.msra.mxu0 0.0
    %1075 = vmatprep.subr.mxu0 0.0
    %1076 = vmatpush1.msra.mxu0 0.0
    %1077 = vmatprep.subr.mxu0 0.0
    %1078 = vmatpush1.msra.mxu0 0.0
    %1079 = vmatprep.subr.mxu0 0.0
    %1080 = vmatpush1.msra.mxu0 0.0
    %1081 = vmatprep.subr.mxu0 0.0
    %1082 = vmatpush1.msra.mxu0 0.0
    %1083 = vmatprep.subr.mxu0 0.0
    %1084 = vmatpush1.msra.mxu0 0.0
    %1085 = vmatprep.subr.mxu0 0.0
    %1086 = vmatpush1.msra.mxu0 0.0
    %1087 = vmatprep.subr.mxu0 0.0
    %1088 = vmatpush1.msra.mxu0 0.0
    %1089 = vmatprep.subr.mxu0 0.0
    %1090 = vmatpush1.msra.mxu0 0.0
    %1091 = vmatprep.subr.mxu0 0.0
    %1092 = vmatpush1.msra.mxu0 0.0
    %1093 = vmatprep.subr.mxu0 0.0
    %1094 = vmatpush1.msra.mxu0 0.0
    %1095 = vmatprep.subr.mxu0 0.0
    %1096 = vmatpush1.msra.mxu0 0.0
    %1097 = vmatprep.subr.mxu0 0.0
    %1098 = vmatpush1.msra.mxu0 0.0
    %1099 = vmatprep.subr.mxu0 0.0
    %1100 = vmatpush1.msra.mxu0 0.0
    %1101 = vmatprep.subr.mxu0 0.0
    %1102 = vmatpush1.msra.mxu0 0.0
    %1103 = vmatprep.subr.mxu0 0.0
    %1104 = vmatpush1.msra.mxu0 0.0
    %1105 = vmatprep.subr.mxu0 0.0
    %1106 = vmatpush1.msra.mxu0 0.0
    %1107 = vmatprep.subr.mxu0 0.0
    %1108 = vmatpush1.msra.mxu0 0.0
    %1109 = vmatprep.subr.mxu0 0.0
    %1110 = vmatpush1.msra.mxu0 0.0
    %1111 = vmatprep.subr.mxu0 0.0
    %1112 = vmatpush1.msra.mxu0 0.0
    %1113 = vmatprep.subr.mxu0 0.0
    %1114 = vmatpush1.msra.mxu0 0.0
    %1115 = vmatprep.subr.mxu0 0.0
    %1116 = vmatpush1.msra.mxu0 0.0
    %1117 = vmatprep.subr.mxu0 0.0
    %1118 = vmatpush1.msra.mxu0 0.0
    %1119 = vmatprep.subr.mxu0 0.0
    %1120 = vmatpush1.msra.mxu0 0.0
    %1121 = vmatprep.subr.mxu0 0.0
    %1122 = vmatpush1.msra.mxu0 0.0
    %1123 = vmatprep.subr.mxu0 0.0
    %1124 = vmatpush1.msra.mxu0 0.0
    %1125 = vmatprep.subr.mxu0 0.0
    %1126 = vmatpush1.msra.mxu0 0.0
    %1127 = vmatprep.subr.mxu0 0.0
    %1128 = vmatpush1.msra.mxu0 0.0
    %1129 = vmatprep.subr.mxu0 0.0
    %1130 = vmatpush1.msra.mxu0 0.0
    %1131 = vmatprep.mubr.f32.mxu0 0.0
    %1132 = vmatmul.mubr.f32.gmra.mrb[0].mxu0 %v1058
    %v1133 = vpop.f32.mrb[0].mxu0
    %v1134 = vadd.f32 %v1054, %v1133
    %v1135 = vpop.f32.mrb[0].mxu0
    %1136 = vmatprep.mubr.f32.mxu0 0.0
    %1137 = vmatmul.mubr.f32.gmra.mrb[0].mxu0 %v1061
    %v1138 = vpop.f32.mrb[0].mxu0
    %v1139 = vadd.f32 %v1054, %v1138
    %v1140 = vpop.f32.mrb[0].mxu0
    %1141 = vdwg.mxu0
    %vm1142 = vcmask 261120
    %v1143 = vsel %vm1142, %v1134, 0.0
    %v1144 = vsel %vm1142, %v1139, 0.0
    %v1145 = vadd.f32 %v1143, %v1144
    %v1146 = vrot.slane %v1145, 4
    %v1147 = vadd.f32 %v1145, %v1146
    %v1148 = vrot.slane %v1147, 2
    %v1149 = vadd.f32 %v1147, %v1148
    %v1150 = vrot.slane %v1149, 1
    %v1151 = vadd.f32 %v1149, %v1150
    %v1152 = vrcp.pop 16.0
    %v1153 = vmul.f32 %v1151, %v1152
    %v1154 = vsub.f32 %v1134, %v1153
    %v1155 = vsub.f32 %v1139, %v1153
    %v1156 = vmul.f32 %v1154, %v1154
    %v1157 = vmul.f32 %v1155, %v1155
    %v1158 = vsel %vm1142, %v1156, 0.0
    %v1159 = vsel %vm1142, %v1157, 0.0
    %v1160 = vadd.f32 %v1158, %v1159
    %v1161 = vrot.slane %v1160, 4
    %v1162 = vadd.f32 %v1160, %v1161
    %v1163 = vrot.slane %v1162, 2
    %v1164 = vadd.f32 %v1162, %v1163
    %v1165 = vrot.slane %v1164, 1
    %v1166 = vadd.f32 %v1164, %v1165
    %v1167 = vmul.f32 %v1166, %v1152
    %v1168 = vadd.f32 %v1167, 1e-05
    %v1169 = vrsqrt.pop %v1168
    %v1170 = vmul.f32 %v1154, %v1169
    %v1171 = vmul.f32 %v1155, %v1169
    %v1173 = vlaneseq
    %v1174 = vshrl.u32 %v1173, 7
    %v1175 = vsub.s32 0, %v1174
    %v1176 = vrot.slane %v1049, %v1175
    %v1179 = vsel %vm1142, %v1170, 0
    %v1182 = vsel %vm1142, %v1171, 0
    %1184 = vmatprep.subr.mxu0 0.0
    %1185 = vmatpush1.msra.mxu0 %v1045
    %1186 = vmatprep.subr.mxu0 0.0
    %1187 = vmatpush1.msra.mxu0 %v1046
    %1188 = vmatprep.subr.mxu0 0.0
    %1189 = vmatpush1.msra.mxu0 %v1047
    %1190 = vmatprep.subr.mxu0 0.0
    %1191 = vmatpush1.msra.mxu0 %v1048
    %1192 = vmatprep.subr.mxu0 0.0
    %1193 = vmatpush1.msra.mxu0 0.0
    %1194 = vmatprep.subr.mxu0 0.0
    %1195 = vmatpush1.msra.mxu0 0.0
    %1196 = vmatprep.subr.mxu0 0.0
    %1197 = vmatpush1.msra.mxu0 0.0
    %1198 = vmatprep.subr.mxu0 0.0
    %1199 = vmatpush1.msra.mxu0 0.0
    %1200 = vmatprep.subr.mxu0 0.0
    %1201 = vmatpush1.msra.mxu0 0.0
    %1202 = vmatprep.subr.mxu0 0.0
    %1203 = vmatpush1.msra.mxu0 0.0
    %1204 = vmatprep.subr.mxu0 0.0
    %1205 = vmatpush1.msra.mxu0 0.0
    %1206 = vmatprep.subr.mxu0 0.0
    %1207 = vmatpush1.msra.mxu0 0.0
    %1208 = vmatprep.subr.mxu0 0.0
    %1209 = vmatpush1.msra.mxu0 0.0
    %1210 = vmatprep.subr.mxu0 0.0
    %1211 = vmatpush1.msra.mxu0 0.0
    %1212 = vmatprep.subr.mxu0 0.0
    %1213 = vmatpush1.msra.mxu0 0.0
    %1214 = vmatprep.subr.mxu0 0.0
    %1215 = vmatpush1.msra.mxu0 0.0
    %1216 = vmatprep.subr.mxu0 0.0
    %1217 = vmatpush1.msra.mxu0 0.0
    %1218 = vmatprep.subr.mxu0 0.0
    %1219 = vmatpush1.msra.mxu0 0.0
    %1220 = vmatprep.subr.mxu0 0.0
    %1221 = vmatpush1.msra.mxu0 0.0
    %1222 = vmatprep.subr.mxu0 0.0
    %1223 = vmatpush1.msra.mxu0 0.0
    %1224 = vmatprep.subr.mxu0 0.0
    %1225 = vmatpush1.msra.mxu0 0.0
    %1226 = vmatprep.subr.mxu0 0.0
    %1227 = vmatpush1.msra.mxu0 0.0
    %1228 = vmatprep.subr.mxu0 0.0
    %1229 = vmatpush1.msra.mxu0 0.0
    %1230 = vmatprep.subr.mxu0 0.0
    %1231 = vmatpush1.msra.mxu0 0.0
    %1232 = vmatprep.subr.mxu0 0.0
    %1233 = vmatpush1.msra.mxu0 0.0
    %1234 = vmatprep.subr.mxu0 0.0
    %1235 = vmatpush1.msra.mxu0 0.0
    %1236 = vmatprep.subr.mxu0 0.0
    %1237 = vmatpush1.msra.mxu0 0.0
    %1238 = vmatprep.subr.mxu0 0.0
    %1239 = vmatpush1.msra.mxu0 0.0
    %1240 = vmatprep.subr.mxu0 0.0
    %1241 = vmatpush1.msra.mxu0 0.0
    %1242 = vmatprep.subr.mxu0 0.0
    %1243 = vmatpush1.msra.mxu0 0.0
    %1244 = vmatprep.subr.mxu0 0.0
    %1245 = vmatpush1.msra.mxu0 0.0
    %1246 = vmatprep.subr.mxu0 0.0
    %1247 = vmatpush1.msra.mxu0 0.0
    %1248 = vmatprep.mubr.f32.mxu0 0.0
    %1249 = vmatmul.mubr.f32.gmra.mrb[0].mxu0 %v1179
    %v1250 = vpop.f32.mrb[0].mxu0
    %v1251 = vadd.f32 %v1176, %v1250
    %v1252 = vpop.f32.mrb[0].mxu0
    %1253 = vmatprep.mubr.f32.mxu0 0.0
    %1254 = vmatmul.mubr.f32.gmra.mrb[0].mxu0 %v1182
    %v1255 = vpop.f32.mrb[0].mxu0
    %v1256 = vadd.f32 %v1176, %v1255
    %v1257 = vpop.f32.mrb[0].mxu0
    %1258 = vdwg.mxu0
    %v1259 = vmax.f32 %v1251, 0.0
    %v1260 = vmax.f32 %v1256, 0.0
    %v1261 = vld [vmem:[%s29] sm:$0x1f]
    %v1262 = vld [vmem:[#allocation6] sm:$0x1]
    %v1263 = vld [vmem:[%s33] sm:$0xff]
    %v1264 = vld [vmem:[%s33 + $0x8] sm:$0xff]
    %v1265 = vld [vmem:[%s33 + $0x10] sm:$0xff]
    %v1266 = vld [vmem:[%s33 + $0x18] sm:$0xff]
    %v1267 = vld [vmem:[#allocation7] sm:$0x1]
    %v1269 = vlaneseq
    %v1270 = vshrl.u32 %v1269, 7
    %v1271 = vsub.s32 0, %v1270
    %v1272 = vrot.slane %v1262, %v1271
    %vm1274 = vcmask 39936
    %v1276 = vsel %vm1274, %v1000, 0
    %v1279 = vsel %vm1274, %v1001, 0
    %vm1281 = vcmask 1044480
    %v1283 = vsel %vm1281, %v1261, 0
    %1285 = vmatprep.subr.mxu0 0.0
    %1286 = vmatpush1.msra.mxu0 %v1283
    %1287 = vmatprep.subr.mxu0 0.0
    %1288 = vmatpush1.msra.mxu0 0.0
    %1289 = vmatprep.subr.mxu0 0.0
    %1290 = vmatpush1.msra.mxu0 0.0
    %1291 = vmatprep.subr.mxu0 0.0
    %1292 = vmatpush1.msra.mxu0 0.0
    %1293 = vmatprep.subr.mxu0 0.0
    %1294 = vmatpush1.msra.mxu0 0.0
    %1295 = vmatprep.subr.mxu0 0.0
    %1296 = vmatpush1.msra.mxu0 0.0
    %1297 = vmatprep.subr.mxu0 0.0
    %1298 = vmatpush1.msra.mxu0 0.0
    %1299 = vmatprep.subr.mxu0 0.0
    %1300 = vmatpush1.msra.mxu0 0.0
    %1301 = vmatprep.subr.mxu0 0.0
    %1302 = vmatpush1.msra.mxu0 0.0
    %1303 = vmatprep.subr.mxu0 0.0
    %1304 = vmatpush1.msra.mxu0 0.0
    %1305 = vmatprep.subr.mxu0 0.0
    %1306 = vmatpush1.msra.mxu0 0.0
    %1307 = vmatprep.subr.mxu0 0.0
    %1308 = vmatpush1.msra.mxu0 0.0
    %1309 = vmatprep.subr.mxu0 0.0
    %1310 = vmatpush1.msra.mxu0 0.0
    %1311 = vmatprep.subr.mxu0 0.0
    %1312 = vmatpush1.msra.mxu0 0.0
    %1313 = vmatprep.subr.mxu0 0.0
    %1314 = vmatpush1.msra.mxu0 0.0
    %1315 = vmatprep.subr.mxu0 0.0
    %1316 = vmatpush1.msra.mxu0 0.0
    %1317 = vmatprep.subr.mxu0 0.0
    %1318 = vmatpush1.msra.mxu0 0.0
    %1319 = vmatprep.subr.mxu0 0.0
    %1320 = vmatpush1.msra.mxu0 0.0
    %1321 = vmatprep.subr.mxu0 0.0
    %1322 = vmatpush1.msra.mxu0 0.0
    %1323 = vmatprep.subr.mxu0 0.0
    %1324 = vmatpush1.msra.mxu0 0.0
    %1325 = vmatprep.subr.mxu0 0.0
    %1326 = vmatpush1.msra.mxu0 0.0
    %1327 = vmatprep.subr.mxu0 0.0
    %1328 = vmatpush1.msra.mxu0 0.0
    %1329 = vmatprep.subr.mxu0 0.0
    %1330 = vmatpush1.msra.mxu0 0.0
    %1331 = vmatprep.subr.mxu0 0.0
    %1332 = vmatpush1.msra.mxu0 0.0
    %1333 = vmatprep.subr.mxu0 0.0
    %1334 = vmatpush1.msra.mxu0 0.0
    %1335 = vmatprep.subr.mxu0 0.0
    %1336 = vmatpush1.msra.mxu0 0.0
    %1337 = vmatprep.subr.mxu0 0.0
    %1338 = vmatpush1.msra.mxu0 0.0
    %1339 = vmatprep.subr.mxu0 0.0
    %1340 = vmatpush1.msra.mxu0 0.0
    %1341 = vmatprep.subr.mxu0 0.0
    %1342 = vmatpush1.msra.mxu0 0.0
    %1343 = vmatprep.subr.mxu0 0.0
    %1344 = vmatpush1.msra.mxu0 0.0
    %1345 = vmatprep.subr.mxu0 0.0
    %1346 = vmatpush1.msra.mxu0 0.0
    %1347 = vmatprep.subr.mxu0 0.0
    %1348 = vmatpush1.msra.mxu0 0.0
    %1349 = vmatprep.mubr.f32.mxu0 0.0
    %1350 = vmatmul.mubr.f32.gmra.mrb[0].mxu0 %v1276
    %v1351 = vpop.f32.mrb[0].mxu0
    %v1352 = vadd.f32 %v1272, %v1351
    %v1353 = vpop.f32.mrb[0].mxu0
    %1354 = vmatprep.mubr.f32.mxu0 0.0
    %1355 = vmatmul.mubr.f32.gmra.mrb[0].mxu0 %v1279
    %v1356 = vpop.f32.mrb[0].mxu0
    %v1357 = vadd.f32 %v1272, %v1356
    %v1358 = vpop.f32.mrb[0].mxu0
    %1359 = vdwg.mxu0
    %v1360 = vsel %vm1142, %v1352, 0.0
    %vm1361 = vcmask 257024
    %v1362 = vsel %vm1361, %v1357, 0.0
    %v1363 = vadd.f32 %v1360, %v1362
    %v1364 = vrot.slane %v1363, 4
    %v1365 = vadd.f32 %v1363, %v1364
    %v1366 = vrot.slane %v1365, 2
    %v1367 = vadd.f32 %v1365, %v1366
    %v1368 = vrot.slane %v1367, 1
    %v1369 = vadd.f32 %v1367, %v1368
    %v1370 = vrcp.pop 12.0
    %v1371 = vmul.f32 %v1369, %v1370
    %v1372 = vsub.f32 %v1352, %v1371
    %v1373 = vsub.f32 %v1357, %v1371
    %v1374 = vmul.f32 %v1372, %v1372
    %v1375 = vmul.f32 %v1373, %v1373
    %v1376 = vsel %vm1142, %v1374, 0.0
    %v1377 = vsel %vm1361, %v1375, 0.0
    %v1378 = vadd.f32 %v1376, %v1377
    %v1379 = vrot.slane %v1378, 4
    %v1380 = vadd.f32 %v1378, %v1379
    %v1381 = vrot.slane %v1380, 2
    %v1382 = vadd.f32 %v1380, %v1381
    %v1383 = vrot.slane %v1382, 1
    %v1384 = vadd.f32 %v1382, %v1383
    %v1385 = vmul.f32 %v1384, %v1370
    %v1386 = vadd.f32 %v1385, 1e-05
    %v1387 = vrsqrt.pop %v1386
    %v1388 = vmul.f32 %v1372, %v1387
    %v1389 = vmul.f32 %v1373, %v1387
    %v1391 = vlaneseq
    %v1392 = vshrl.u32 %v1391, 7
    %v1393 = vsub.s32 0, %v1392
    %v1394 = vrot.slane %v1267, %v1393
    %v1397 = vsel %vm1142, %v1388, 0
    %v1400 = vsel %vm1142, %v1389, 0
    %1402 = vmatprep.subr.mxu0 0.0
    %1403 = vmatpush1.msra.mxu0 %v1263
    %1404 = vmatprep.subr.mxu0 0.0
    %1405 = vmatpush1.msra.mxu0 %v1264
    %1406 = vmatprep.subr.mxu0 0.0
    %1407 = vmatpush1.msra.mxu0 %v1265
    %1408 = vmatprep.subr.mxu0 0.0
    %1409 = vmatpush1.msra.mxu0 %v1266
    %1410 = vmatprep.subr.mxu0 0.0
    %1411 = vmatpush1.msra.mxu0 0.0
    %1412 = vmatprep.subr.mxu0 0.0
    %1413 = vmatpush1.msra.mxu0 0.0
    %1414 = vmatprep.subr.mxu0 0.0
    %1415 = vmatpush1.msra.mxu0 0.0
    %1416 = vmatprep.subr.mxu0 0.0
    %1417 = vmatpush1.msra.mxu0 0.0
    %1418 = vmatprep.subr.mxu0 0.0
    %1419 = vmatpush1.msra.mxu0 0.0
    %1420 = vmatprep.subr.mxu0 0.0
    %1421 = vmatpush1.msra.mxu0 0.0
    %1422 = vmatprep.subr.mxu0 0.0
    %1423 = vmatpush1.msra.mxu0 0.0
    %1424 = vmatprep.subr.mxu0 0.0
    %1425 = vmatpush1.msra.mxu0 0.0
    %1426 = vmatprep.subr.mxu0 0.0
    %1427 = vmatpush1.msra.mxu0 0.0
    %1428 = vmatprep.subr.mxu0 0.0
    %1429 = vmatpush1.msra.mxu0 0.0
    %1430 = vmatprep.subr.mxu0 0.0
    %1431 = vmatpush1.msra.mxu0 0.0
    %1432 = vmatprep.subr.mxu0 0.0
    %1433 = vmatpush1.msra.mxu0 0.0
    %1434 = vmatprep.subr.mxu0 0.0
    %1435 = vmatpush1.msra.mxu0 0.0
    %1436 = vmatprep.subr.mxu0 0.0
    %1437 = vmatpush1.msra.mxu0 0.0
    %1438 = vmatprep.subr.mxu0 0.0
    %1439 = vmatpush1.msra.mxu0 0.0
    %1440 = vmatprep.subr.mxu0 0.0
    %1441 = vmatpush1.msra.mxu0 0.0
    %1442 = vmatprep.subr.mxu0 0.0
    %1443 = vmatpush1.msra.mxu0 0.0
    %1444 = vmatprep.subr.mxu0 0.0
    %1445 = vmatpush1.msra.mxu0 0.0
    %1446 = vmatprep.subr.mxu0 0.0
    %1447 = vmatpush1.msra.mxu0 0.0
    %1448 = vmatprep.subr.mxu0 0.0
    %1449 = vmatpush1.msra.mxu0 0.0
    %1450 = vmatprep.subr.mxu0 0.0
    %1451 = vmatpush1.msra.mxu0 0.0
    %1452 = vmatprep.subr.mxu0 0.0
    %1453 = vmatpush1.msra.mxu0 0.0
    %1454 = vmatprep.subr.mxu0 0.0
    %1455 = vmatpush1.msra.mxu0 0.0
    %1456 = vmatprep.subr.mxu0 0.0
    %1457 = vmatpush1.msra.mxu0 0.0
    %1458 = vmatprep.subr.mxu0 0.0
    %1459 = vmatpush1.msra.mxu0 0.0
    %1460 = vmatprep.subr.mxu0 0.0
    %1461 = vmatpush1.msra.mxu0 0.0
    %1462 = vmatprep.subr.mxu0 0.0
    %1463 = vmatpush1.msra.mxu0 0.0
    %1464 = vmatprep.subr.mxu0 0.0
    %1465 = vmatpush1.msra.mxu0 0.0
    %1466 = vmatprep.mubr.f32.mxu0 0.0
    %1467 = vmatmul.mubr.f32.gmra.mrb[0].mxu0 %v1397
    %v1468 = vpop.f32.mrb[0].mxu0
    %v1469 = vadd.f32 %v1394, %v1468
    %v1470 = vpop.f32.mrb[0].mxu0
    %1471 = vmatprep.mubr.f32.mxu0 0.0
    %1472 = vmatmul.mubr.f32.gmra.mrb[0].mxu0 %v1400
    %v1473 = vpop.f32.mrb[0].mxu0
    %v1474 = vadd.f32 %v1394, %v1473
    %v1475 = vpop.f32.mrb[0].mxu0
    %1476 = vdwg.mxu0
    %v1477 = vmax.f32 %v1469, 0.0
    %v1478 = vmax.f32 %v1474, 0.0
    %v1479 = vld [vmem:[#allocation9] sm:$0x1]
    %v1480 = vld [vmem:[#allocation10] sm:$0x1]
    %1482 = vset.pattern.permute.xlu0 0
    %1483 = vperm.xlu0 %1482, %v1002
    %v1484 = vpop.permute.xlu0 %1483
    %1487 = vset.pattern.permute.xlu0 0
    %1488 = vperm.xlu0 %1487, %v1003
    %v1489 = vpop.permute.xlu0 %1488
    %1492 = vset.pattern.permute.xlu0 0
    %1493 = vperm.xlu0 %1492, %v1004
    %v1494 = vpop.permute.xlu0 %1493
    %v1497 = vlaneseq
    %v1498 = vshrl.u32 %v1497, 7
    %v1499 = vsub.s32 0, %v1498
    %v1500 = vrot.slane %v1479, %v1499
    %v1502 = vmul.f32 %v1484, %v1500
    %v1503 = vmul.f32 %v1489, %v1500
    %v1504 = vmul.f32 %v1494, %v1500
    %v1506 = vlaneseq
    %v1507 = vshrl.u32 %v1506, 7
    %v1508 = vsub.s32 0, %v1507
    %v1509 = vrot.slane %v1480, %v1508
    %v1511 = vadd.f32 %v1502, %v1509
    %v1512 = vadd.f32 %v1503, %v1509
    %v1513 = vadd.f32 %v1504, %v1509
    %v1514 = vld [vmem:[%s41] sm:$0xff]
    %v1515 = vld [vmem:[%s41 + $0x8] sm:$0xff]
    %v1516 = vld [vmem:[%s41 + $0x10] sm:$0xff]
    %v1517 = vld [vmem:[%s41 + $0x18] sm:$0xff]
    %v1518 = vld [vmem:[%s41 + $0x20] sm:$0xff]
    %v1519 = vld [vmem:[%s41 + $0x28] sm:$0xff]
    %v1520 = vld [vmem:[%s41 + $0x30] sm:$0xff]
    %v1521 = vld [vmem:[%s41 + $0x38] sm:$0xff]
    %v1522 = vld [vmem:[%s43] sm:$0xff]
    %v1523 = vld [vmem:[%s43 + $0x8] sm:$0xff]
    %v1524 = vld [vmem:[%s43 + $0x10] sm:$0xff]
    %v1525 = vld [vmem:[%s43 + $0x18] sm:$0xff]
    %v1526 = vld [vmem:[%s43 + $0x20] sm:$0xff]
    %v1527 = vld [vmem:[%s43 + $0x28] sm:$0xff]
    %v1528 = vld [vmem:[%s43 + $0x30] sm:$0xff]
    %v1529 = vld [vmem:[%s43 + $0x38] sm:$0xff]
    %v1530 = vld [vmem:[%s45] sm:$0x3]
    %v1531 = vld [vmem:[#allocation12] sm:$0x3]
    %v1532 = vld [vmem:[#allocation13] sm:$0x3]
    %v1533 = vld [vmem:[#allocation15] sm:$0x3]
    %v1535 = vsel %vm1142, %v1477, 0
    %v1538 = vsel %vm1142, %v1478, 0
    %1540 = vmatprep.subr.mxu0 %v1515
    %1541 = vmatpush1.msra.mxu0 %v1514
    %1542 = vmatprep.subr.mxu0 %v1517
    %1543 = vmatpush1.msra.mxu0 %v1516
    %1544 = vmatprep.subr.mxu0 %v1519
    %1545 = vmatpush1.msra.mxu0 %v1518
    %1546 = vmatprep.subr.mxu0 %v1521
    %1547 = vmatpush1.msra.mxu0 %v1520
    %1548 = vmatprep.subr.mxu0 0.0
    %1549 = vmatpush1.msra.mxu0 0.0
    %1550 = vmatprep.subr.mxu0 0.0
    %1551 = vmatpush1.msra.mxu0 0.0
    %1552 = vmatprep.subr.mxu0 0.0
    %1553 = vmatpush1.msra.mxu0 0.0
    %1554 = vmatprep.subr.mxu0 0.0
    %1555 = vmatpush1.msra.mxu0 0.0
    %1556 = vmatprep.subr.mxu0 0.0
    %1557 = vmatpush1.msra.mxu0 0.0
    %1558 = vmatprep.subr.mxu0 0.0
    %1559 = vmatpush1.msra.mxu0 0.0
    %1560 = vmatprep.subr.mxu0 0.0
    %1561 = vmatpush1.msra.mxu0 0.0
    %1562 = vmatprep.subr.mxu0 0.0
    %1563 = vmatpush1.msra.mxu0 0.0
    %1564 = vmatprep.subr.mxu0 0.0
    %1565 = vmatpush1.msra.mxu0 0.0
    %1566 = vmatprep.subr.mxu0 0.0
    %1567 = vmatpush1.msra.mxu0 0.0
    %1568 = vmatprep.subr.mxu0 0.0
    %1569 = vmatpush1.msra.mxu0 0.0
    %1570 = vmatprep.subr.mxu0 0.0
    %1571 = vmatpush1.msra.mxu0 0.0
    %1572 = vmatprep.subr.mxu0 0.0
    %1573 = vmatpush1.msra.mxu0 0.0
    %1574 = vmatprep.subr.mxu0 0.0
    %1575 = vmatpush1.msra.mxu0 0.0
    %1576 = vmatprep.subr.mxu0 0.0
    %1577 = vmatpush1.msra.mxu0 0.0
    %1578 = vmatprep.subr.mxu0 0.0
    %1579 = vmatpush1.msra.mxu0 0.0
    %1580 = vmatprep.subr.mxu0 0.0
    %1581 = vmatpush1.msra.mxu0 0.0
    %1582 = vmatprep.subr.mxu0 0.0
    %1583 = vmatpush1.msra.mxu0 0.0
    %1584 = vmatprep.subr.mxu0 0.0
    %1585 = vmatpush1.msra.mxu0 0.0
    %1586 = vmatprep.subr.mxu0 0.0
    %1587 = vmatpush1.msra.mxu0 0.0
    %1588 = vmatprep.subr.mxu0 0.0
    %1589 = vmatpush1.msra.mxu0 0.0
    %1590 = vmatprep.subr.mxu0 0.0
    %1591 = vmatpush1.msra.mxu0 0.0
    %1592 = vmatprep.subr.mxu0 0.0
    %1593 = vmatpush1.msra.mxu0 0.0
    %1594 = vmatprep.subr.mxu0 0.0
    %1595 = vmatpush1.msra.mxu0 0.0
    %1596 = vmatprep.subr.mxu0 0.0
    %1597 = vmatpush1.msra.mxu0 0.0
    %1598 = vmatprep.subr.mxu0 0.0
    %1599 = vmatpush1.msra.mxu0 0.0
    %1600 = vmatprep.subr.mxu0 0.0
    %1601 = vmatpush1.msra.mxu0 0.0
    %1602 = vmatprep.subr.mxu0 0.0
    %1603 = vmatpush1.msra.mxu0 0.0
    %1604 = vmatprep.mubr.f32.mxu0 0.0
    %1605 = vmatmul.mubr.f32.gmra.mrb[0].mxu0 %v1535
    %v1606 = vpop.f32.mrb[0].mxu0
    %v1607 = vadd.f32 0.0, %v1606
    %v1608 = vpop.f32.mrb[0].mxu0
    %v1609 = vadd.f32 0.0, %v1608
    %1610 = vmatprep.mubr.f32.mxu0 0.0
    %1611 = vmatmul.mubr.f32.gmra.mrb[0].mxu0 %v1538
    %v1612 = vpop.f32.mrb[0].mxu0
    %v1613 = vadd.f32 0.0, %v1612
    %v1614 = vpop.f32.mrb[0].mxu0
    %v1615 = vadd.f32 0.0, %v1614
    %1616 = vdwg.mxu0
    %v1618 = vsel %vm1142, %v1259, 0
    %v1621 = vsel %vm1142, %v1260, 0
    %1623 = vmatprep.subr.mxu0 %v1515
    %1624 = vmatpush1.msra.mxu0 %v1514
    %1625 = vmatprep.subr.mxu0 %v1517
    %1626 = vmatpush1.msra.mxu0 %v1516
    %1627 = vmatprep.subr.mxu0 %v1519
    %1628 = vmatpush1.msra.mxu0 %v1518
    %1629 = vmatprep.subr.mxu0 %v1521
    %1630 = vmatpush1.msra.mxu0 %v1520
    %1631 = vmatprep.subr.mxu0 0.0
    %1632 = vmatpush1.msra.mxu0 0.0
    %1633 = vmatprep.subr.mxu0 0.0
    %1634 = vmatpush1.msra.mxu0 0.0
    %1635 = vmatprep.subr.mxu0 0.0
    %1636 = vmatpush1.msra.mxu0 0.0
    %1637 = vmatprep.subr.mxu0 0.0
    %1638 = vmatpush1.msra.mxu0 0.0
    %1639 = vmatprep.subr.mxu0 0.0
    %1640 = vmatpush1.msra.mxu0 0.0
    %1641 = vmatprep.subr.mxu0 0.0
    %1642 = vmatpush1.msra.mxu0 0.0
    %1643 = vmatprep.subr.mxu0 0.0
    %1644 = vmatpush1.msra.mxu0 0.0
    %1645 = vmatprep.subr.mxu0 0.0
    %1646 = vmatpush1.msra.mxu0 0.0
    %1647 = vmatprep.subr.mxu0 0.0
    %1648 = vmatpush1.msra.mxu0 0.0
    %1649 = vmatprep.subr.mxu0 0.0
    %1650 = vmatpush1.msra.mxu0 0.0
    %1651 = vmatprep.subr.mxu0 0.0
    %1652 = vmatpush1.msra.mxu0 0.0
    %1653 = vmatprep.subr.mxu0 0.0
    %1654 = vmatpush1.msra.mxu0 0.0
    %1655 = vmatprep.subr.mxu0 0.0
    %1656 = vmatpush1.msra.mxu0 0.0
    %1657 = vmatprep.subr.mxu0 0.0
    %1658 = vmatpush1.msra.mxu0 0.0
    %1659 = vmatprep.subr.mxu0 0.0
    %1660 = vmatpush1.msra.mxu0 0.0
    %1661 = vmatprep.subr.mxu0 0.0
    %1662 = vmatpush1.msra.mxu0 0.0
    %1663 = vmatprep.subr.mxu0 0.0
    %1664 = vmatpush1.msra.mxu0 0.0
    %1665 = vmatprep.subr.mxu0 0.0
    %1666 = vmatpush1.msra.mxu0 0.0
    %1667 = vmatprep.subr.mxu0 0.0
    %1668 = vmatpush1.msra.mxu0 0.0
    %1669 = vmatprep.subr.mxu0 0.0
    %1670 = vmatpush1.msra.mxu0 0.0
    %1671 = vmatprep.subr.mxu0 0.0
    %1672 = vmatpush1.msra.mxu0 0.0
    %1673 = vmatprep.subr.mxu0 0.0
    %1674 = vmatpush1.msra.mxu0 0.0
    %1675 = vmatprep.subr.mxu0 0.0
    %1676 = vmatpush1.msra.mxu0 0.0
    %1677 = vmatprep.subr.mxu0 0.0
    %1678 = vmatpush1.msra.mxu0 0.0
    %1679 = vmatprep.subr.mxu0 0.0
    %1680 = vmatpush1.msra.mxu0 0.0
    %1681 = vmatprep.subr.mxu0 0.0
    %1682 = vmatpush1.msra.mxu0 0.0
    %1683 = vmatprep.subr.mxu0 0.0
    %1684 = vmatpush1.msra.mxu0 0.0
    %1685 = vmatprep.subr.mxu0 0.0
    %1686 = vmatpush1.msra.mxu0 0.0
    %1687 = vmatprep.mubr.f32.mxu0 0.0
    %1688 = vmatmul.mubr.f32.gmra.mrb[0].mxu0 %v1618
    %v1689 = vpop.f32.mrb[0].mxu0
    %v1690 = vadd.f32 0.0, %v1689
    %v1691 = vpop.f32.mrb[0].mxu0
    %v1692 = vadd.f32 0.0, %v1691
    %1693 = vmatprep.mubr.f32.mxu0 0.0
    %1694 = vmatmul.mubr.f32.gmra.mrb[0].mxu0 %v1621
    %v1695 = vpop.f32.mrb[0].mxu0
    %v1696 = vadd.f32 0.0, %v1695
    %v1697 = vpop.f32.mrb[0].mxu0
    %v1698 = vadd.f32 0.0, %v1697
    %1699 = vdwg.mxu0
    %v1701 = vsel %vm1142, %v1511, 0
    %v1704 = vsel %vm1142, %v1512, 0
    %v1707 = vsel %vm1142, %v1513, 0
    %1709 = vmatprep.subr.mxu0 %v1523
    %1710 = vmatpush1.msra.mxu0 %v1522
    %1711 = vmatprep.subr.mxu0 %v1525
    %1712 = vmatpush1.msra.mxu0 %v1524
    %1713 = vmatprep.subr.mxu0 %v1527
    %1714 = vmatpush1.msra.mxu0 %v1526
    %1715 = vmatprep.subr.mxu0 %v1529
    %1716 = vmatpush1.msra.mxu0 %v1528
    %1717 = vmatprep.subr.mxu0 0.0
    %1718 = vmatpush1.msra.mxu0 0.0
    %1719 = vmatprep.subr.mxu0 0.0
    %1720 = vmatpush1.msra.mxu0 0.0
    %1721 = vmatprep.subr.mxu0 0.0
    %1722 = vmatpush1.msra.mxu0 0.0
    %1723 = vmatprep.subr.mxu0 0.0
    %1724 = vmatpush1.msra.mxu0 0.0
    %1725 = vmatprep.subr.mxu0 0.0
    %1726 = vmatpush1.msra.mxu0 0.0
    %1727 = vmatprep.subr.mxu0 0.0
    %1728 = vmatpush1.msra.mxu0 0.0
    %1729 = vmatprep.subr.mxu0 0.0
    %1730 = vmatpush1.msra.mxu0 0.0
    %1731 = vmatprep.subr.mxu0 0.0
    %1732 = vmatpush1.msra.mxu0 0.0
    %1733 = vmatprep.subr.mxu0 0.0
    %1734 = vmatpush1.msra.mxu0 0.0
    %1735 = vmatprep.subr.mxu0 0.0
    %1736 = vmatpush1.msra.mxu0 0.0
    %1737 = vmatprep.subr.mxu0 0.0
    %1738 = vmatpush1.msra.mxu0 0.0
    %1739 = vmatprep.subr.mxu0 0.0
    %1740 = vmatpush1.msra.mxu0 0.0
    %1741 = vmatprep.subr.mxu0 0.0
    %1742 = vmatpush1.msra.mxu0 0.0
    %1743 = vmatprep.subr.mxu0 0.0
    %1744 = vmatpush1.msra.mxu0 0.0
    %1745 = vmatprep.subr.mxu0 0.0
    %1746 = vmatpush1.msra.mxu0 0.0
    %1747 = vmatprep.subr.mxu0 0.0
    %1748 = vmatpush1.msra.mxu0 0.0
    %1749 = vmatprep.subr.mxu0 0.0
    %1750 = vmatpush1.msra.mxu0 0.0
    %1751 = vmatprep.subr.mxu0 0.0
    %1752 = vmatpush1.msra.mxu0 0.0
    %1753 = vmatprep.subr.mxu0 0.0
    %1754 = vmatpush1.msra.mxu0 0.0
    %1755 = vmatprep.subr.mxu0 0.0
    %1756 = vmatpush1.msra.mxu0 0.0
    %1757 = vmatprep.subr.mxu0 0.0
    %1758 = vmatpush1.msra.mxu0 0.0
    %1759 = vmatprep.subr.mxu0 0.0
    %1760 = vmatpush1.msra.mxu0 0.0
    %1761 = vmatprep.subr.mxu0 0.0
    %1762 = vmatpush1.msra.mxu0 0.0
    %1763 = vmatprep.subr.mxu0 0.0
    %1764 = vmatpush1.msra.mxu0 0.0
    %1765 = vmatprep.subr.mxu0 0.0
    %1766 = vmatpush1.msra.mxu0 0.0
    %1767 = vmatprep.subr.mxu0 0.0
    %1768 = vmatpush1.msra.mxu0 0.0
    %1769 = vmatprep.subr.mxu0 0.0
    %1770 = vmatpush1.msra.mxu0 0.0
    %1771 = vmatprep.subr.mxu0 0.0
    %1772 = vmatpush1.msra.mxu0 0.0
    %1773 = vmatprep.mubr.f32.mxu0 0.0
    %1774 = vmatmul.mubr.f32.gmra.mrb[0].mxu0 %v1701
    %v1775 = vpop.f32.mrb[0].mxu0
    %v1776 = vadd.f32 0.0, %v1775
    %v1777 = vpop.f32.mrb[0].mxu0
    %v1778 = vadd.f32 0.0, %v1777
    %1779 = vmatprep.mubr.f32.mxu0 0.0
    %1780 = vmatmul.mubr.f32.gmra.mrb[0].mxu0 %v1704
    %v1781 = vpop.f32.mrb[0].mxu0
    %v1782 = vadd.f32 0.0, %v1781
    %v1783 = vpop.f32.mrb[0].mxu0
    %v1784 = vadd.f32 0.0, %v1783
    %1785 = vmatprep.mubr.f32.mxu0 0.0
    %1786 = vmatmul.mubr.f32.gmra.mrb[0].mxu0 %v1707
    %v1787 = vpop.f32.mrb[0].mxu0
    %v1788 = vadd.f32 0.0, %v1787
    %v1789 = vpop.f32.mrb[0].mxu0
    %v1790 = vadd.f32 0.0, %v1789
    %1791 = vdwg.mxu0
    %v1793 = vlaneseq
    %v1794 = vshrl.u32 %v1793, 7
    %v1795 = vsub.s32 0, %v1794
    %v1796 = vrot.slane %v1530, %v1795
    %v1797 = vlaneseq
    %v1798 = vshrl.u32 %v1797, 7
    %v1799 = vsub.s32 1, %v1798
    %v1800 = vrot.slane %v1530, %v1799
    %v1803 = vmul.f32 %v1607, %v1796
    %v1804 = vmul.f32 %v1609, %v1800
    %v1805 = vmul.f32 %v1613, %v1796
    %v1806 = vmul.f32 %v1615, %v1800
    %vm1807 = vcmask 523264
    %v1809 = vsel %vm1807, %v1804, 0
    %v1812 = vsel %vm1807, %v1806, 0
    %1814 = vmatprep.subr.mxu0 0.0
    %1815 = vmatpush1.msra.mxu0 %v1019
    %1816 = vmatprep.subr.mxu0 0.0
    %1817 = vmatpush1.msra.mxu0 %v1020
    %1818 = vmatprep.subr.mxu0 0.0
    %1819 = vmatpush1.msra.mxu0 %v1021
    %1820 = vmatprep.subr.mxu0 0.0
    %1821 = vmatpush1.msra.mxu0 %v1022
    %1822 = vmatprep.subr.mxu0 0.0
    %1823 = vmatpush1.msra.mxu0 %v1023
    %1824 = vmatprep.subr.mxu0 0.0
    %1825 = vmatpush1.msra.mxu0 %v1024
    %1826 = vmatprep.subr.mxu0 0.0
    %1827 = vmatpush1.msra.mxu0 %v1025
    %1828 = vmatprep.subr.mxu0 0.0
    %1829 = vmatpush1.msra.mxu0 %v1026
    %1830 = vmatprep.subr.mxu0 0.0
    %1831 = vmatpush1.msra.mxu0 %v1027
    %1832 = vmatprep.subr.mxu0 0.0
    %1833 = vmatpush1.msra.mxu0 %v1028
    %1834 = vmatprep.subr.mxu0 0.0
    %1835 = vmatpush1.msra.mxu0 %v1029
    %1836 = vmatprep.subr.mxu0 0.0
    %1837 = vmatpush1.msra.mxu0 %v1030
    %1838 = vmatprep.subr.mxu0 0.0
    %1839 = vmatpush1.msra.mxu0 %v1031
    %1840 = vmatprep.subr.mxu0 0.0
    %1841 = vmatpush1.msra.mxu0 %v1032
    %1842 = vmatprep.subr.mxu0 0.0
    %1843 = vmatpush1.msra.mxu0 %v1033
    %1844 = vmatprep.subr.mxu0 0.0
    %1845 = vmatpush1.msra.mxu0 %v1034
    %1846 = vmatprep.subr.mxu0 0.0
    %1847 = vmatpush1.msra.mxu0 %v1035
    %1848 = vmatprep.subr.mxu0 0.0
    %1849 = vmatpush1.msra.mxu0 %v1036
    %1850 = vmatprep.subr.mxu0 0.0
    %1851 = vmatpush1.msra.mxu0 %v1037
    %1852 = vmatprep.subr.mxu0 0.0
    %1853 = vmatpush1.msra.mxu0 %v1038
    %1854 = vmatprep.subr.mxu0 0.0
    %1855 = vmatpush1.msra.mxu0 %v1039
    %1856 = vmatprep.subr.mxu0 0.0
    %1857 = vmatpush1.msra.mxu0 %v1040
    %1858 = vmatprep.subr.mxu0 0.0
    %1859 = vmatpush1.msra.mxu0 %v1041
    %1860 = vmatprep.subr.mxu0 0.0
    %1861 = vmatpush1.msra.mxu0 %v1042
    %1862 = vmatprep.subr.mxu0 0.0
    %1863 = vmatpush1.msra.mxu0 0.0
    %1864 = vmatprep.subr.mxu0 0.0
    %1865 = vmatpush1.msra.mxu0 0.0
    %1866 = vmatprep.subr.mxu0 0.0
    %1867 = vmatpush1.msra.mxu0 0.0
    %1868 = vmatprep.subr.mxu0 0.0
    %1869 = vmatpush1.msra.mxu0 0.0
    %1870 = vmatprep.subr.mxu0 0.0
    %1871 = vmatpush1.msra.mxu0 0.0
    %1872 = vmatprep.subr.mxu0 0.0
    %1873 = vmatpush1.msra.mxu0 0.0
    %1874 = vmatprep.subr.mxu0 0.0
    %1875 = vmatpush1.msra.mxu0 0.0
    %1876 = vmatprep.subr.mxu0 0.0
    %1877 = vmatpush1.msra.mxu0 0.0
    %1878 = vmatprep.mubr.f32.mxu0 %v1809
    %1879 = vmatmul.mubr.f32.gmra.mrb[0].mxu0 %v1803
    %v1880 = vpop.f32.mrb[0].mxu0
    %v1881 = vadd.f32 0.0, %v1880
    %v1882 = vpop.f32.mrb[0].mxu0
    %1883 = vmatprep.mubr.f32.mxu0 %v1812
    %1884 = vmatmul.mubr.f32.gmra.mrb[0].mxu0 %v1805
    %v1885 = vpop.f32.mrb[0].mxu0
    %v1886 = vadd.f32 0.0, %v1885
    %v1887 = vpop.f32.mrb[0].mxu0
    %1888 = vdwg.mxu0
    %v1890 = vlaneseq
    %v1891 = vshrl.u32 %v1890, 7
    %v1892 = vsub.s32 0, %v1891
    %v1893 = vrot.slane %v1531, %v1892
    %v1894 = vlaneseq
    %v1895 = vshrl.u32 %v1894, 7
    %v1896 = vsub.s32 1, %v1895
    %v1897 = vrot.slane %v1531, %v1896
    %v1900 = vmul.f32 %v1690, %v1893
    %v1901 = vmul.f32 %v1692, %v1897
    %v1902 = vmul.f32 %v1696, %v1893
    %v1903 = vmul.f32 %v1698, %v1897
    %v1905 = vsel %vm1807, %v1901, 0
    %v1908 = vsel %vm1807, %v1903, 0
    %1910 = vmatprep.subr.mxu0 0.0
    %1911 = vmatpush1.msra.mxu0 %v1019
    %1912 = vmatprep.subr.mxu0 0.0
    %1913 = vmatpush1.msra.mxu0 %v1020
    %1914 = vmatprep.subr.mxu0 0.0
    %1915 = vmatpush1.msra.mxu0 %v1021
    %1916 = vmatprep.subr.mxu0 0.0
    %1917 = vmatpush1.msra.mxu0 %v1022
    %1918 = vmatprep.subr.mxu0 0.0
    %1919 = vmatpush1.msra.mxu0 %v1023
    %1920 = vmatprep.subr.mxu0 0.0
    %1921 = vmatpush1.msra.mxu0 %v1024
    %1922 = vmatprep.subr.mxu0 0.0
    %1923 = vmatpush1.msra.mxu0 %v1025
    %1924 = vmatprep.subr.mxu0 0.0
    %1925 = vmatpush1.msra.mxu0 %v1026
    %1926 = vmatprep.subr.mxu0 0.0
    %1927 = vmatpush1.msra.mxu0 %v1027
    %1928 = vmatprep.subr.mxu0 0.0
    %1929 = vmatpush1.msra.mxu0 %v1028
    %1930 = vmatprep.subr.mxu0 0.0
    %1931 = vmatpush1.msra.mxu0 %v1029
    %1932 = vmatprep.subr.mxu0 0.0
    %1933 = vmatpush1.msra.mxu0 %v1030
    %1934 = vmatprep.subr.mxu0 0.0
    %1935 = vmatpush1.msra.mxu0 %v1031
    %1936 = vmatprep.subr.mxu0 0.0
    %1937 = vmatpush1.msra.mxu0 %v1032
    %1938 = vmatprep.subr.mxu0 0.0
    %1939 = vmatpush1.msra.mxu0 %v1033
    %1940 = vmatprep.subr.mxu0 0.0
    %1941 = vmatpush1.msra.mxu0 %v1034
    %1942 = vmatprep.subr.mxu0 0.0
    %1943 = vmatpush1.msra.mxu0 %v1035
    %1944 = vmatprep.subr.mxu0 0.0
    %1945 = vmatpush1.msra.mxu0 %v1036
    %1946 = vmatprep.subr.mxu0 0.0
    %1947 = vmatpush1.msra.mxu0 %v1037
    %1948 = vmatprep.subr.mxu0 0.0
    %1949 = vmatpush1.msra.mxu0 %v1038
    %1950 = vmatprep.subr.mxu0 0.0
    %1951 = vmatpush1.msra.mxu0 %v1039
    %1952 = vmatprep.subr.mxu0 0.0
    %1953 = vmatpush1.msra.mxu0 %v1040
    %1954 = vmatprep.subr.mxu0 0.0
    %1955 = vmatpush1.msra.mxu0 %v1041
    %1956 = vmatprep.subr.mxu0 0.0
    %1957 = vmatpush1.msra.mxu0 %v1042
    %1958 = vmatprep.subr.mxu0 0.0
    %1959 = vmatpush1.msra.mxu0 0.0
    %1960 = vmatprep.subr.mxu0 0.0
    %1961 = vmatpush1.msra.mxu0 0.0
    %1962 = vmatprep.subr.mxu0 0.0
    %1963 = vmatpush1.msra.mxu0 0.0
    %1964 = vmatprep.subr.mxu0 0.0
    %1965 = vmatpush1.msra.mxu0 0.0
    %1966 = vmatprep.subr.mxu0 0.0
    %1967 = vmatpush1.msra.mxu0 0.0
    %1968 = vmatprep.subr.mxu0 0.0
    %1969 = vmatpush1.msra.mxu0 0.0
    %1970 = vmatprep.subr.mxu0 0.0
    %1971 = vmatpush1.msra.mxu0 0.0
    %1972 = vmatprep.subr.mxu0 0.0
    %1973 = vmatpush1.msra.mxu0 0.0
    %1974 = vmatprep.mubr.f32.mxu0 %v1905
    %1975 = vmatmul.mubr.f32.gmra.mrb[0].mxu0 %v1900
    %v1976 = vpop.f32.mrb[0].mxu0
    %v1977 = vadd.f32 0.0, %v1976
    %v1978 = vpop.f32.mrb[0].mxu0
    %1979 = vmatprep.mubr.f32.mxu0 %v1908
    %1980 = vmatmul.mubr.f32.gmra.mrb[0].mxu0 %v1902
    %v1981 = vpop.f32.mrb[0].mxu0
    %v1982 = vadd.f32 0.0, %v1981
    %v1983 = vpop.f32.mrb[0].mxu0
    %1984 = vdwg.mxu0
    %v1986 = vlaneseq
    %v1987 = vshrl.u32 %v1986, 7
    %v1988 = vsub.s32 0, %v1987
    %v1989 = vrot.slane %v1532, %v1988
    %v1990 = vlaneseq
    %v1991 = vshrl.u32 %v1990, 7
    %v1992 = vsub.s32 1, %v1991
    %v1993 = vrot.slane %v1532, %v1992
    %v1996 = vmul.f32 %v1776, %v1989
    %v1997 = vmul.f32 %v1778, %v1993
    %v1998 = vmul.f32 %v1782, %v1989
    %v1999 = vmul.f32 %v1784, %v1993
    %v2000 = vmul.f32 %v1788, %v1989
    %v2001 = vmul.f32 %v1790, %v1993
    %v2003 = vsel %vm1807, %v1997, 0
    %v2006 = vsel %vm1807, %v1999, 0
    %v2009 = vsel %vm1807, %v2001, 0
    %2011 = vmatprep.subr.mxu0 0.0
    %2012 = vmatpush1.msra.mxu0 %v1019
    %2013 = vmatprep.subr.mxu0 0.0
    %2014 = vmatpush1.msra.mxu0 %v1020
    %2015 = vmatprep.subr.mxu0 0.0
    %2016 = vmatpush1.msra.mxu0 %v1021
    %2017 = vmatprep.subr.mxu0 0.0
    %2018 = vmatpush1.msra.mxu0 %v1022
    %2019 = vmatprep.subr.mxu0 0.0
    %2020 = vmatpush1.msra.mxu0 %v1023
    %2021 = vmatprep.subr.mxu0 0.0
    %2022 = vmatpush1.msra.mxu0 %v1024
    %2023 = vmatprep.subr.mxu0 0.0
    %2024 = vmatpush1.msra.mxu0 %v1025
    %2025 = vmatprep.subr.mxu0 0.0
    %2026 = vmatpush1.msra.mxu0 %v1026
    %2027 = vmatprep.subr.mxu0 0.0
    %2028 = vmatpush1.msra.mxu0 %v1027
    %2029 = vmatprep.subr.mxu0 0.0
    %2030 = vmatpush1.msra.mxu0 %v1028
    %2031 = vmatprep.subr.mxu0 0.0
    %2032 = vmatpush1.msra.mxu0 %v1029
    %2033 = vmatprep.subr.mxu0 0.0
    %2034 = vmatpush1.msra.mxu0 %v1030
    %2035 = vmatprep.subr.mxu0 0.0
    %2036 = vmatpush1.msra.mxu0 %v1031
    %2037 = vmatprep.subr.mxu0 0.0
    %2038 = vmatpush1.msra.mxu0 %v1032
    %2039 = vmatprep.subr.mxu0 0.0
    %2040 = vmatpush1.msra.mxu0 %v1033
    %2041 = vmatprep.subr.mxu0 0.0
    %2042 = vmatpush1.msra.mxu0 %v1034
    %2043 = vmatprep.subr.mxu0 0.0
    %2044 = vmatpush1.msra.mxu0 %v1035
    %2045 = vmatprep.subr.mxu0 0.0
    %2046 = vmatpush1.msra.mxu0 %v1036
    %2047 = vmatprep.subr.mxu0 0.0
    %2048 = vmatpush1.msra.mxu0 %v1037
    %2049 = vmatprep.subr.mxu0 0.0
    %2050 = vmatpush1.msra.mxu0 %v1038
    %2051 = vmatprep.subr.mxu0 0.0
    %2052 = vmatpush1.msra.mxu0 %v1039
    %2053 = vmatprep.subr.mxu0 0.0
    %2054 = vmatpush1.msra.mxu0 %v1040
    %2055 = vmatprep.subr.mxu0 0.0
    %2056 = vmatpush1.msra.mxu0 %v1041
    %2057 = vmatprep.subr.mxu0 0.0
    %2058 = vmatpush1.msra.mxu0 %v1042
    %2059 = vmatprep.subr.mxu0 0.0
    %2060 = vmatpush1.msra.mxu0 0.0
    %2061 = vmatprep.subr.mxu0 0.0
    %2062 = vmatpush1.msra.mxu0 0.0
    %2063 = vmatprep.subr.mxu0 0.0
    %2064 = vmatpush1.msra.mxu0 0.0
    %2065 = vmatprep.subr.mxu0 0.0
    %2066 = vmatpush1.msra.mxu0 0.0
    %2067 = vmatprep.subr.mxu0 0.0
    %2068 = vmatpush1.msra.mxu0 0.0
    %2069 = vmatprep.subr.mxu0 0.0
    %2070 = vmatpush1.msra.mxu0 0.0
    %2071 = vmatprep.subr.mxu0 0.0
    %2072 = vmatpush1.msra.mxu0 0.0
    %2073 = vmatprep.subr.mxu0 0.0
    %2074 = vmatpush1.msra.mxu0 0.0
    %2075 = vmatprep.mubr.f32.mxu0 %v2003
    %2076 = vmatmul.mubr.f32.gmra.mrb[0].mxu0 %v1996
    %v2077 = vpop.f32.mrb[0].mxu0
    %v2078 = vadd.f32 0.0, %v2077
    %v2079 = vpop.f32.mrb[0].mxu0
    %2080 = vmatprep.mubr.f32.mxu0 %v2006
    %2081 = vmatmul.mubr.f32.gmra.mrb[0].mxu0 %v1998
    %v2082 = vpop.f32.mrb[0].mxu0
    %v2083 = vadd.f32 0.0, %v2082
    %v2084 = vpop.f32.mrb[0].mxu0
    %2085 = vmatprep.mubr.f32.mxu0 %v2009
    %2086 = vmatmul.mubr.f32.gmra.mrb[0].mxu0 %v2000
    %v2087 = vpop.f32.mrb[0].mxu0
    %v2088 = vadd.f32 0.0, %v2087
    %v2089 = vpop.f32.mrb[0].mxu0
    %2090 = vdwg.mxu0
    %vm2091 = vcmask 130048
    %v2093 = vsel %vm2091, %v1005, 0
    %v2096 = vsel %vm2091, %v1006, 0
    %v2099 = vsel %vm2091, %v1007, 0
    %2101 = vmatprep.subr.mxu0 0.0
    %2102 = vmatpush1.msra.mxu0 %v1977
    %2103 = vmatprep.subr.mxu0 0.0
    %2104 = vmatpush1.msra.mxu0 %v1982
    %2105 = vmatprep.subr.mxu0 0.0
    %2106 = vmatpush1.msra.mxu0 0.0
    %2107 = vmatprep.subr.mxu0 0.0
    %2108 = vmatpush1.msra.mxu0 0.0
    %2109 = vmatprep.subr.mxu0 0.0
    %2110 = vmatpush1.msra.mxu0 0.0
    %2111 = vmatprep.subr.mxu0 0.0
    %2112 = vmatpush1.msra.mxu0 0.0
    %2113 = vmatprep.subr.mxu0 0.0
    %2114 = vmatpush1.msra.mxu0 0.0
    %2115 = vmatprep.subr.mxu0 0.0
    %2116 = vmatpush1.msra.mxu0 0.0
    %2117 = vmatprep.subr.mxu0 0.0
    %2118 = vmatpush1.msra.mxu0 0.0
    %2119 = vmatprep.subr.mxu0 0.0
    %2120 = vmatpush1.msra.mxu0 0.0
    %2121 = vmatprep.subr.mxu0 0.0
    %2122 = vmatpush1.msra.mxu0 0.0
    %2123 = vmatprep.subr.mxu0 0.0
    %2124 = vmatpush1.msra.mxu0 0.0
    %2125 = vmatprep.subr.mxu0 0.0
    %2126 = vmatpush1.msra.mxu0 0.0
    %2127 = vmatprep.subr.mxu0 0.0
    %2128 = vmatpush1.msra.mxu0 0.0
    %2129 = vmatprep.subr.mxu0 0.0
    %2130 = vmatpush1.msra.mxu0 0.0
    %2131 = vmatprep.subr.mxu0 0.0
    %2132 = vmatpush1.msra.mxu0 0.0
    %2133 = vmatprep.subr.mxu0 0.0
    %2134 = vmatpush1.msra.mxu0 0.0
    %2135 = vmatprep.subr.mxu0 0.0
    %2136 = vmatpush1.msra.mxu0 0.0
    %2137 = vmatprep.subr.mxu0 0.0
    %2138 = vmatpush1.msra.mxu0 0.0
    %2139 = vmatprep.subr.mxu0 0.0
    %2140 = vmatpush1.msra.mxu0 0.0
    %2141 = vmatprep.subr.mxu0 0.0
    %2142 = vmatpush1.msra.mxu0 0.0
    %2143 = vmatprep.subr.mxu0 0.0
    %2144 = vmatpush1.msra.mxu0 0.0
    %2145 = vmatprep.subr.mxu0 0.0
    %2146 = vmatpush1.msra.mxu0 0.0
    %2147 = vmatprep.subr.mxu0 0.0
    %2148 = vmatpush1.msra.mxu0 0.0
    %2149 = vmatprep.subr.mxu0 0.0
    %2150 = vmatpush1.msra.mxu0 0.0
    %2151 = vmatprep.subr.mxu0 0.0
    %2152 = vmatpush1.msra.mxu0 0.0
    %2153 = vmatprep.subr.mxu0 0.0
    %2154 = vmatpush1.msra.mxu0 0.0
    %2155 = vmatprep.subr.mxu0 0.0
    %2156 = vmatpush1.msra.mxu0 0.0
    %2157 = vmatprep.subr.mxu0 0.0
    %2158 = vmatpush1.msra.mxu0 0.0
    %2159 = vmatprep.subr.mxu0 0.0
    %2160 = vmatpush1.msra.mxu0 0.0
    %2161 = vmatprep.subr.mxu0 0.0
    %2162 = vmatpush1.msra.mxu0 0.0
    %2163 = vmatprep.subr.mxu0 0.0
    %2164 = vmatpush1.msra.mxu0 0.0
    %2165 = vmatprep.mubr.f32.mxu0 0.0
    %2166 = vmatmul.mubr.f32.gmra.mrb[0].mxu0 %v2093
    %v2167 = vpop.f32.mrb[0].mxu0
    %v2168 = vadd.f32 0.0, %v2167
    %v2169 = vpop.f32.mrb[0].mxu0
    %2170 = vmatprep.mubr.f32.mxu0 0.0
    %2171 = vmatmul.mubr.f32.gmra.mrb[0].mxu0 %v2096
    %v2172 = vpop.f32.mrb[0].mxu0
    %v2173 = vadd.f32 0.0, %v2172
    %v2174 = vpop.f32.mrb[0].mxu0
    %2175 = vmatprep.mubr.f32.mxu0 0.0
    %2176 = vmatmul.mubr.f32.gmra.mrb[0].mxu0 %v2099
    %v2177 = vpop.f32.mrb[0].mxu0
    %v2178 = vadd.f32 0.0, %v2177
    %v2179 = vpop.f32.mrb[0].mxu0
    %2180 = vdwg.mxu0
    %vm2181 = vcmask 97280
    %v2183 = vsel %vm2181, %v1008, 0
    %v2186 = vsel %vm2181, %v1009, 0
    %v2189 = vsel %vm2181, %v1010, 0
    %vm2191 = vcmask 1043456
    %v2193 = vsel %vm2191, %v1886, 0
    %2195 = vmatprep.subr.mxu0 0.0
    %2196 = vmatpush1.msra.mxu0 %v1881
    %2197 = vmatprep.subr.mxu0 0.0
    %2198 = vmatpush1.msra.mxu0 %v2193
    %2199 = vmatprep.subr.mxu0 0.0
    %2200 = vmatpush1.msra.mxu0 0.0
    %2201 = vmatprep.subr.mxu0 0.0
    %2202 = vmatpush1.msra.mxu0 0.0
    %2203 = vmatprep.subr.mxu0 0.0
    %2204 = vmatpush1.msra.mxu0 0.0
    %2205 = vmatprep.subr.mxu0 0.0
    %2206 = vmatpush1.msra.mxu0 0.0
    %2207 = vmatprep.subr.mxu0 0.0
    %2208 = vmatpush1.msra.mxu0 0.0
    %2209 = vmatprep.subr.mxu0 0.0
    %2210 = vmatpush1.msra.mxu0 0.0
    %2211 = vmatprep.subr.mxu0 0.0
    %2212 = vmatpush1.msra.mxu0 0.0
    %2213 = vmatprep.subr.mxu0 0.0
    %2214 = vmatpush1.msra.mxu0 0.0
    %2215 = vmatprep.subr.mxu0 0.0
    %2216 = vmatpush1.msra.mxu0 0.0
    %2217 = vmatprep.subr.mxu0 0.0
    %2218 = vmatpush1.msra.mxu0 0.0
    %2219 = vmatprep.subr.mxu0 0.0
    %2220 = vmatpush1.msra.mxu0 0.0
    %2221 = vmatprep.subr.mxu0 0.0
    %2222 = vmatpush1.msra.mxu0 0.0
    %2223 = vmatprep.subr.mxu0 0.0
    %2224 = vmatpush1.msra.mxu0 0.0
    %2225 = vmatprep.subr.mxu0 0.0
    %2226 = vmatpush1.msra.mxu0 0.0
    %2227 = vmatprep.subr.mxu0 0.0
    %2228 = vmatpush1.msra.mxu0 0.0
    %2229 = vmatprep.subr.mxu0 0.0
    %2230 = vmatpush1.msra.mxu0 0.0
    %2231 = vmatprep.subr.mxu0 0.0
    %2232 = vmatpush1.msra.mxu0 0.0
    %2233 = vmatprep.subr.mxu0 0.0
    %2234 = vmatpush1.msra.mxu0 0.0
    %2235 = vmatprep.subr.mxu0 0.0
    %2236 = vmatpush1.msra.mxu0 0.0
    %2237 = vmatprep.subr.mxu0 0.0
    %2238 = vmatpush1.msra.mxu0 0.0
    %2239 = vmatprep.subr.mxu0 0.0
    %2240 = vmatpush1.msra.mxu0 0.0
    %2241 = vmatprep.subr.mxu0 0.0
    %2242 = vmatpush1.msra.mxu0 0.0
    %2243 = vmatprep.subr.mxu0 0.0
    %2244 = vmatpush1.msra.mxu0 0.0
    %2245 = vmatprep.subr.mxu0 0.0
    %2246 = vmatpush1.msra.mxu0 0.0
    %2247 = vmatprep.subr.mxu0 0.0
    %2248 = vmatpush1.msra.mxu0 0.0
    %2249 = vmatprep.subr.mxu0 0.0
    %2250 = vmatpush1.msra.mxu0 0.0
    %2251 = vmatprep.subr.mxu0 0.0
    %2252 = vmatpush1.msra.mxu0 0.0
    %2253 = vmatprep.subr.mxu0 0.0
    %2254 = vmatpush1.msra.mxu0 0.0
    %2255 = vmatprep.subr.mxu0 0.0
    %2256 = vmatpush1.msra.mxu0 0.0
    %2257 = vmatprep.subr.mxu0 0.0
    %2258 = vmatpush1.msra.mxu0 0.0
    %2259 = vmatprep.mubr.f32.mxu0 0.0
    %2260 = vmatmul.mubr.f32.gmra.mrb[0].mxu0 %v2183
    %v2261 = vpop.f32.mrb[0].mxu0
    %v2262 = vadd.f32 %v2168, %v2261
    %v2263 = vpop.f32.mrb[0].mxu0
    %2264 = vmatprep.mubr.f32.mxu0 0.0
    %2265 = vmatmul.mubr.f32.gmra.mrb[0].mxu0 %v2186
    %v2266 = vpop.f32.mrb[0].mxu0
    %v2267 = vadd.f32 %v2173, %v2266
    %v2268 = vpop.f32.mrb[0].mxu0
    %2269 = vmatprep.mubr.f32.mxu0 0.0
    %2270 = vmatmul.mubr.f32.gmra.mrb[0].mxu0 %v2189
    %v2271 = vpop.f32.mrb[0].mxu0
    %v2272 = vadd.f32 %v2178, %v2271
    %v2273 = vpop.f32.mrb[0].mxu0
    %2274 = vdwg.mxu0
    %v2275 = vadd.f32 %v2262, %v2078
    %v2276 = vadd.f32 %v2267, %v2083
    %v2277 = vadd.f32 %v2272, %v2088
    %vm2278 = vcmp.gt.f32.partialorder %v2275, 0.0
    %vm2279 = vcmp.gt.f32.partialorder %v2276, 0.0
    %vm2280 = vcmp.gt.f32.partialorder %v2277, 0.0
    %v2281 = vmul.f32 %v2275, 0.2
    %v2282 = vmul.f32 %v2276, 0.2
    %v2283 = vmul.f32 %v2277, 0.2
    %v2284 = vsel %vm2278, %v2275, %v2281
    %v2285 = vsel %vm2279, %v2276, %v2282
    %v2286 = vsel %vm2280, %v2277, %v2283
    %v2287 = vsel %vm1056, %v2284, -inf
    %v2288 = vsel %vm1056, %v2285, -inf
    %v2289 = vsel %vm1056, %v2286, -inf
    %v2290 = vmax.f32 %v2287, %v2288
    %v2291 = vmax.f32 %v2290, %v2289
    %v2292 = vrot.slane %v2291, 4
    %v2293 = vmax.f32 %v2291, %v2292
    %v2294 = vrot.slane %v2293, 2
    %v2295 = vmax.f32 %v2293, %v2294
    %v2296 = vrot.slane %v2295, 1
    %v2297 = vmax.f32 %v2295, %v2296
    %v2298 = vsub.f32 %v2284, %v2297
    %v2299 = vsub.f32 %v2285, %v2297
    %v2300 = vsub.f32 %v2286, %v2297
    %v2301 = vmul.f32 %v2298, 1.442695
    %v2302 = vpow.pop %v2301
    %v2303 = vmul.f32 %v2299, 1.442695
    %v2304 = vpow.pop %v2303
    %v2305 = vmul.f32 %v2300, 1.442695
    %v2306 = vpow.pop %v2305
    %vm2307 = vcmask 195584
    %v2309 = vsel %vm2307, %v1011, 0
    %v2312 = vsel %vm2307, %v1012, 0
    %2314 = vmatprep.subr.mxu0 0.0
    %2315 = vmatpush1.msra.mxu0 %v2302
    %2316 = vmatprep.subr.mxu0 0.0
    %2317 = vmatpush1.msra.mxu0 %v2304
    %2318 = vmatprep.subr.mxu0 0.0
    %2319 = vmatpush1.msra.mxu0 %v2306
    %2320 = vmatprep.subr.mxu0 0.0
    %2321 = vmatpush1.msra.mxu0 0.0
    %2322 = vmatprep.subr.mxu0 0.0
    %2323 = vmatpush1.msra.mxu0 0.0
    %2324 = vmatprep.subr.mxu0 0.0
    %2325 = vmatpush1.msra.mxu0 0.0
    %2326 = vmatprep.subr.mxu0 0.0
    %2327 = vmatpush1.msra.mxu0 0.0
    %2328 = vmatprep.subr.mxu0 0.0
    %2329 = vmatpush1.msra.mxu0 0.0
    %2330 = vmatprep.subr.mxu0 0.0
    %2331 = vmatpush1.msra.mxu0 0.0
    %2332 = vmatprep.subr.mxu0 0.0
    %2333 = vmatpush1.msra.mxu0 0.0
    %2334 = vmatprep.subr.mxu0 0.0
    %2335 = vmatpush1.msra.mxu0 0.0
    %2336 = vmatprep.subr.mxu0 0.0
    %2337 = vmatpush1.msra.mxu0 0.0
    %2338 = vmatprep.subr.mxu0 0.0
    %2339 = vmatpush1.msra.mxu0 0.0
    %2340 = vmatprep.subr.mxu0 0.0
    %2341 = vmatpush1.msra.mxu0 0.0
    %2342 = vmatprep.subr.mxu0 0.0
    %2343 = vmatpush1.msra.mxu0 0.0
    %2344 = vmatprep.subr.mxu0 0.0
    %2345 = vmatpush1.msra.mxu0 0.0
    %2346 = vmatprep.subr.mxu0 0.0
    %2347 = vmatpush1.msra.mxu0 0.0
    %2348 = vmatprep.subr.mxu0 0.0
    %2349 = vmatpush1.msra.mxu0 0.0
    %2350 = vmatprep.subr.mxu0 0.0
    %2351 = vmatpush1.msra.mxu0 0.0
    %2352 = vmatprep.subr.mxu0 0.0
    %2353 = vmatpush1.msra.mxu0 0.0
    %2354 = vmatprep.subr.mxu0 0.0
    %2355 = vmatpush1.msra.mxu0 0.0
    %2356 = vmatprep.subr.mxu0 0.0
    %2357 = vmatpush1.msra.mxu0 0.0
    %2358 = vmatprep.subr.mxu0 0.0
    %2359 = vmatpush1.msra.mxu0 0.0
    %2360 = vmatprep.subr.mxu0 0.0
    %2361 = vmatpush1.msra.mxu0 0.0
    %2362 = vmatprep.subr.mxu0 0.0
    %2363 = vmatpush1.msra.mxu0 0.0
    %2364 = vmatprep.subr.mxu0 0.0
    %2365 = vmatpush1.msra.mxu0 0.0
    %2366 = vmatprep.subr.mxu0 0.0
    %2367 = vmatpush1.msra.mxu0 0.0
    %2368 = vmatprep.subr.mxu0 0.0
    %2369 = vmatpush1.msra.mxu0 0.0
    %2370 = vmatprep.subr.mxu0 0.0
    %2371 = vmatpush1.msra.mxu0 0.0
    %2372 = vmatprep.subr.mxu0 0.0
    %2373 = vmatpush1.msra.mxu0 0.0
    %2374 = vmatprep.subr.mxu0 0.0
    %2375 = vmatpush1.msra.mxu0 0.0
    %2376 = vmatprep.subr.mxu0 0.0
    %2377 = vmatpush1.msra.mxu0 0.0
    %2378 = vmatprep.mubr.f32.mxu0 0.0
    %2379 = vmatmul.mubr.f32.gmra.mrb[0].mxu0 %v2309
    %v2380 = vpop.f32.mrb[0].mxu0
    %v2381 = vadd.f32 0.0, %v2380
    %v2382 = vpop.f32.mrb[0].mxu0
    %2383 = vmatprep.mubr.f32.mxu0 0.0
    %2384 = vmatmul.mubr.f32.gmra.mrb[0].mxu0 %v2312
    %v2385 = vpop.f32.mrb[0].mxu0
    %v2386 = vadd.f32 0.0, %v2385
    %v2387 = vpop.f32.mrb[0].mxu0
    %2388 = vdwg.mxu0
    %2389 = vmatprep.subr.mxu0 0.0
    %2390 = vmatpush1.msra.mxu0 %v2381
    %2391 = vmatprep.subr.mxu0 0.0
    %2392 = vmatpush1.msra.mxu0 %v2386
    %2393 = vmatprep.subr.mxu0 0.0
    %2394 = vmatpush1.msra.mxu0 0.0
    %2395 = vmatprep.subr.mxu0 0.0
    %2396 = vmatpush1.msra.mxu0 0.0
    %2397 = vmatprep.subr.mxu0 0.0
    %2398 = vmatpush1.msra.mxu0 0.0
    %2399 = vmatprep.subr.mxu0 0.0
    %2400 = vmatpush1.msra.mxu0 0.0
    %2401 = vmatprep.subr.mxu0 0.0
    %2402 = vmatpush1.msra.mxu0 0.0
    %2403 = vmatprep.subr.mxu0 0.0
    %2404 = vmatpush1.msra.mxu0 0.0
    %2405 = vmatprep.subr.mxu0 0.0
    %2406 = vmatpush1.msra.mxu0 0.0
    %2407 = vmatprep.subr.mxu0 0.0
    %2408 = vmatpush1.msra.mxu0 0.0
    %2409 = vmatprep.subr.mxu0 0.0
    %2410 = vmatpush1.msra.mxu0 0.0
    %2411 = vmatprep.subr.mxu0 0.0
    %2412 = vmatpush1.msra.mxu0 0.0
    %2413 = vmatprep.subr.mxu0 0.0
    %2414 = vmatpush1.msra.mxu0 0.0
    %2415 = vmatprep.subr.mxu0 0.0
    %2416 = vmatpush1.msra.mxu0 0.0
    %2417 = vmatprep.subr.mxu0 0.0
    %2418 = vmatpush1.msra.mxu0 0.0
    %2419 = vmatprep.subr.mxu0 0.0
    %2420 = vmatpush1.msra.mxu0 0.0
    %2421 = vmatprep.subr.mxu0 0.0
    %2422 = vmatpush1.msra.mxu0 0.0
    %2423 = vmatprep.subr.mxu0 0.0
    %2424 = vmatpush1.msra.mxu0 0.0
    %2425 = vmatprep.subr.mxu0 0.0
    %2426 = vmatpush1.msra.mxu0 0.0
    %2427 = vmatprep.subr.mxu0 0.0
    %2428 = vmatpush1.msra.mxu0 0.0
    %2429 = vmatprep.subr.mxu0 0.0
    %2430 = vmatpush1.msra.mxu0 0.0
    %2431 = vmatprep.subr.mxu0 0.0
    %2432 = vmatpush1.msra.mxu0 0.0
    %2433 = vmatprep.subr.mxu0 0.0
    %2434 = vmatpush1.msra.mxu0 0.0
    %2435 = vmatprep.subr.mxu0 0.0
    %2436 = vmatpush1.msra.mxu0 0.0
    %2437 = vmatprep.subr.mxu0 0.0
    %2438 = vmatpush1.msra.mxu0 0.0
    %2439 = vmatprep.subr.mxu0 0.0
    %2440 = vmatpush1.msra.mxu0 0.0
    %2441 = vmatprep.subr.mxu0 0.0
    %2442 = vmatpush1.msra.mxu0 0.0
    %2443 = vmatprep.subr.mxu0 0.0
    %2444 = vmatpush1.msra.mxu0 0.0
    %2445 = vmatprep.subr.mxu0 0.0
    %2446 = vmatpush1.msra.mxu0 0.0
    %2447 = vmatprep.subr.mxu0 0.0
    %2448 = vmatpush1.msra.mxu0 0.0
    %2449 = vmatprep.subr.mxu0 0.0
    %2450 = vmatpush1.msra.mxu0 0.0
    %2451 = vmatprep.subr.mxu0 0.0
    %2452 = vmatpush1.msra.mxu0 0.0
    %2453 = vmatprep.mubr.f32.mxu0 0.0
    %2454 = vmatmul.mubr.f32.gmra.mrb[0].mxu0 %v2093
    %v2455 = vpop.f32.mrb[0].mxu0
    %v2456 = vadd.f32 0.0, %v2455
    %v2457 = vpop.f32.mrb[0].mxu0
    %2458 = vmatprep.mubr.f32.mxu0 0.0
    %2459 = vmatmul.mubr.f32.gmra.mrb[0].mxu0 %v2096
    %v2460 = vpop.f32.mrb[0].mxu0
    %v2461 = vadd.f32 0.0, %v2460
    %v2462 = vpop.f32.mrb[0].mxu0
    %2463 = vmatprep.mubr.f32.mxu0 0.0
    %2464 = vmatmul.mubr.f32.gmra.mrb[0].mxu0 %v2099
    %v2465 = vpop.f32.mrb[0].mxu0
    %v2466 = vadd.f32 0.0, %v2465
    %v2467 = vpop.f32.mrb[0].mxu0
    %2468 = vdwg.mxu0
    %v2469 = vrcp.pop %v2456
    %v2470 = vmul.f32 %v2302, %v2469
    %v2471 = vrcp.pop %v2461
    %v2472 = vmul.f32 %v2304, %v2471
    %v2473 = vrcp.pop %v2466
    %v2474 = vmul.f32 %v2306, %v2473
    %v2476 = vsel %vm2191, %v1613, 0
    %v2479 = vsel %vm2191, %v1615, 0
    %2481 = vmatprep.subr.mxu0 %v1609
    %2482 = vmatpush1.msra.mxu0 %v1607
    %2483 = vmatprep.subr.mxu0 %v2479
    %2484 = vmatpush1.msra.mxu0 %v2476
    %2485 = vmatprep.subr.mxu0 0.0
    %2486 = vmatpush1.msra.mxu0 0.0
    %2487 = vmatprep.subr.mxu0 0.0
    %2488 = vmatpush1.msra.mxu0 0.0
    %2489 = vmatprep.subr.mxu0 0.0
    %2490 = vmatpush1.msra.mxu0 0.0
    %2491 = vmatprep.subr.mxu0 0.0
    %2492 = vmatpush1.msra.mxu0 0.0
    %2493 = vmatprep.subr.mxu0 0.0
    %2494 = vmatpush1.msra.mxu0 0.0
    %2495 = vmatprep.subr.mxu0 0.0
    %2496 = vmatpush1.msra.mxu0 0.0
    %2497 = vmatprep.subr.mxu0 0.0
    %2498 = vmatpush1.msra.mxu0 0.0
    %2499 = vmatprep.subr.mxu0 0.0
    %2500 = vmatpush1.msra.mxu0 0.0
    %2501 = vmatprep.subr.mxu0 0.0
    %2502 = vmatpush1.msra.mxu0 0.0
    %2503 = vmatprep.subr.mxu0 0.0
    %2504 = vmatpush1.msra.mxu0 0.0
    %2505 = vmatprep.subr.mxu0 0.0
    %2506 = vmatpush1.msra.mxu0 0.0
    %2507 = vmatprep.subr.mxu0 0.0
    %2508 = vmatpush1.msra.mxu0 0.0
    %2509 = vmatprep.subr.mxu0 0.0
    %2510 = vmatpush1.msra.mxu0 0.0
    %2511 = vmatprep.subr.mxu0 0.0
    %2512 = vmatpush1.msra.mxu0 0.0
    %2513 = vmatprep.subr.mxu0 0.0
    %2514 = vmatpush1.msra.mxu0 0.0
    %2515 = vmatprep.subr.mxu0 0.0
    %2516 = vmatpush1.msra.mxu0 0.0
    %2517 = vmatprep.subr.mxu0 0.0
    %2518 = vmatpush1.msra.mxu0 0.0
    %2519 = vmatprep.subr.mxu0 0.0
    %2520 = vmatpush1.msra.mxu0 0.0
    %2521 = vmatprep.subr.mxu0 0.0
    %2522 = vmatpush1.msra.mxu0 0.0
    %2523 = vmatprep.subr.mxu0 0.0
    %2524 = vmatpush1.msra.mxu0 0.0
    %2525 = vmatprep.subr.mxu0 0.0
    %2526 = vmatpush1.msra.mxu0 0.0
    %2527 = vmatprep.subr.mxu0 0.0
    %2528 = vmatpush1.msra.mxu0 0.0
    %2529 = vmatprep.subr.mxu0 0.0
    %2530 = vmatpush1.msra.mxu0 0.0
    %2531 = vmatprep.subr.mxu0 0.0
    %2532 = vmatpush1.msra.mxu0 0.0
    %2533 = vmatprep.subr.mxu0 0.0
    %2534 = vmatpush1.msra.mxu0 0.0
    %2535 = vmatprep.subr.mxu0 0.0
    %2536 = vmatpush1.msra.mxu0 0.0
    %2537 = vmatprep.subr.mxu0 0.0
    %2538 = vmatpush1.msra.mxu0 0.0
    %2539 = vmatprep.subr.mxu0 0.0
    %2540 = vmatpush1.msra.mxu0 0.0
    %2541 = vmatprep.subr.mxu0 0.0
    %2542 = vmatpush1.msra.mxu0 0.0
    %2543 = vmatprep.subr.mxu0 0.0
    %2544 = vmatpush1.msra.mxu0 0.0
    %2545 = vmatprep.mubr.f32.mxu0 0.0
    %2546 = vmatmul.mubr.f32.gmra.mrb[0].mxu0 %v2183
    %v2547 = vpop.f32.mrb[0].mxu0
    %v2548 = vadd.f32 0.0, %v2547
    %v2549 = vpop.f32.mrb[0].mxu0
    %v2550 = vadd.f32 0.0, %v2549
    %2551 = vmatprep.mubr.f32.mxu0 0.0
    %2552 = vmatmul.mubr.f32.gmra.mrb[0].mxu0 %v2186
    %v2553 = vpop.f32.mrb[0].mxu0
    %v2554 = vadd.f32 0.0, %v2553
    %v2555 = vpop.f32.mrb[0].mxu0
    %v2556 = vadd.f32 0.0, %v2555
    %2557 = vmatprep.mubr.f32.mxu0 0.0
    %2558 = vmatmul.mubr.f32.gmra.mrb[0].mxu0 %v2189
    %v2559 = vpop.f32.mrb[0].mxu0
    %v2560 = vadd.f32 0.0, %v2559
    %v2561 = vpop.f32.mrb[0].mxu0
    %v2562 = vadd.f32 0.0, %v2561
    %2563 = vdwg.mxu0
    %v2565 = vsel %vm1056, %v2470, 0
    %v2568 = vsel %vm1056, %v2472, 0
    %v2571 = vsel %vm1056, %v2474, 0
    %v2574 = vsel %vm1063, %v1017, 0
    %v2577 = vsel %vm1063, %v1018, 0
    %2579 = vmatprep.subr.mxu0 %v2577
    %2580 = vmatpush1.msra.mxu0 %v2574
    %2581 = vmatprep.subr.mxu0 0.0
    %2582 = vmatpush1.msra.mxu0 0.0
    %2583 = vmatprep.subr.mxu0 0.0
    %2584 = vmatpush1.msra.mxu0 0.0
    %2585 = vmatprep.subr.mxu0 0.0
    %2586 = vmatpush1.msra.mxu0 0.0
    %2587 = vmatprep.subr.mxu0 0.0
    %2588 = vmatpush1.msra.mxu0 0.0
    %2589 = vmatprep.subr.mxu0 0.0
    %2590 = vmatpush1.msra.mxu0 0.0
    %2591 = vmatprep.subr.mxu0 0.0
    %2592 = vmatpush1.msra.mxu0 0.0
    %2593 = vmatprep.subr.mxu0 0.0
    %2594 = vmatpush1.msra.mxu0 0.0
    %2595 = vmatprep.subr.mxu0 0.0
    %2596 = vmatpush1.msra.mxu0 0.0
    %2597 = vmatprep.subr.mxu0 0.0
    %2598 = vmatpush1.msra.mxu0 0.0
    %2599 = vmatprep.subr.mxu0 0.0
    %2600 = vmatpush1.msra.mxu0 0.0
    %2601 = vmatprep.subr.mxu0 0.0
    %2602 = vmatpush1.msra.mxu0 0.0
    %2603 = vmatprep.subr.mxu0 0.0
    %2604 = vmatpush1.msra.mxu0 0.0
    %2605 = vmatprep.subr.mxu0 0.0
    %2606 = vmatpush1.msra.mxu0 0.0
    %2607 = vmatprep.subr.mxu0 0.0
    %2608 = vmatpush1.msra.mxu0 0.0
    %2609 = vmatprep.subr.mxu0 0.0
    %2610 = vmatpush1.msra.mxu0 0.0
    %2611 = vmatprep.subr.mxu0 0.0
    %2612 = vmatpush1.msra.mxu0 0.0
    %2613 = vmatprep.subr.mxu0 0.0
    %2614 = vmatpush1.msra.mxu0 0.0
    %2615 = vmatprep.subr.mxu0 0.0
    %2616 = vmatpush1.msra.mxu0 0.0
    %2617 = vmatprep.subr.mxu0 0.0
    %2618 = vmatpush1.msra.mxu0 0.0
    %2619 = vmatprep.subr.mxu0 0.0
    %2620 = vmatpush1.msra.mxu0 0.0
    %2621 = vmatprep.subr.mxu0 0.0
    %2622 = vmatpush1.msra.mxu0 0.0
    %2623 = vmatprep.subr.mxu0 0.0
    %2624 = vmatpush1.msra.mxu0 0.0
    %2625 = vmatprep.subr.mxu0 0.0
    %2626 = vmatpush1.msra.mxu0 0.0
    %2627 = vmatprep.subr.mxu0 0.0
    %2628 = vmatpush1.msra.mxu0 0.0
    %2629 = vmatprep.subr.mxu0 0.0
    %2630 = vmatpush1.msra.mxu0 0.0
    %2631 = vmatprep.subr.mxu0 0.0
    %2632 = vmatpush1.msra.mxu0 0.0
    %2633 = vmatprep.subr.mxu0 0.0
    %2634 = vmatpush1.msra.mxu0 0.0
    %2635 = vmatprep.subr.mxu0 0.0
    %2636 = vmatpush1.msra.mxu0 0.0
    %2637 = vmatprep.subr.mxu0 0.0
    %2638 = vmatpush1.msra.mxu0 0.0
    %2639 = vmatprep.subr.mxu0 0.0
    %2640 = vmatpush1.msra.mxu0 0.0
    %2641 = vmatprep.subr.mxu0 0.0
    %2642 = vmatpush1.msra.mxu0 0.0
    %2643 = vmatprep.mubr.f32.mxu0 0.0
    %2644 = vmatmul.mubr.f32.gmra.mrb[0].mxu0 %v2565
    %v2645 = vpop.f32.mrb[0].mxu0
    %v2646 = vadd.f32 0.0, %v2645
    %v2647 = vpop.f32.mrb[0].mxu0
    %v2648 = vadd.f32 0.0, %v2647
    %2649 = vmatprep.mubr.f32.mxu0 0.0
    %2650 = vmatmul.mubr.f32.gmra.mrb[0].mxu0 %v2568
    %v2651 = vpop.f32.mrb[0].mxu0
    %v2652 = vadd.f32 0.0, %v2651
    %v2653 = vpop.f32.mrb[0].mxu0
    %v2654 = vadd.f32 0.0, %v2653
    %2655 = vmatprep.mubr.f32.mxu0 0.0
    %2656 = vmatmul.mubr.f32.gmra.mrb[0].mxu0 %v2571
    %v2657 = vpop.f32.mrb[0].mxu0
    %v2658 = vadd.f32 0.0, %v2657
    %v2659 = vpop.f32.mrb[0].mxu0
    %v2660 = vadd.f32 0.0, %v2659
    %2661 = vdwg.mxu0
    %v2662 = vmul.f32 %v2646, %v2548
    %v2663 = vmul.f32 %v2648, %v2550
    %v2664 = vmul.f32 %v2652, %v2554
    %v2665 = vmul.f32 %v2654, %v2556
    %v2666 = vmul.f32 %v2658, %v2560
    %v2667 = vmul.f32 %v2660, %v2562
    %v2669 = vlaneseq
    %v2670 = vshrl.u32 %v2669, 7
    %v2671 = vsub.s32 0, %v2670
    %v2672 = vrot.slane %v1533, %v2671
    %v2673 = vlaneseq
    %v2674 = vshrl.u32 %v2673, 7
    %v2675 = vsub.s32 1, %v2674
    %v2676 = vrot.slane %v1533, %v2675
    %2679 = vmatprep.subr.mxu0 %v2663
    %2680 = vmatpush1.msra.mxu0 %v2662
    %2681 = vmatprep.subr.mxu0 %v2665
    %2682 = vmatpush1.msra.mxu0 %v2664
    %2683 = vmatprep.subr.mxu0 %v2667
    %2684 = vmatpush1.msra.mxu0 %v2666
    %2685 = vmatprep.subr.mxu0 0.0
    %2686 = vmatpush1.msra.mxu0 0.0
    %2687 = vmatprep.subr.mxu0 0.0
    %2688 = vmatpush1.msra.mxu0 0.0
    %2689 = vmatprep.subr.mxu0 0.0
    %2690 = vmatpush1.msra.mxu0 0.0
    %2691 = vmatprep.subr.mxu0 0.0
    %2692 = vmatpush1.msra.mxu0 0.0
    %2693 = vmatprep.subr.mxu0 0.0
    %2694 = vmatpush1.msra.mxu0 0.0
    %2695 = vmatprep.subr.mxu0 0.0
    %2696 = vmatpush1.msra.mxu0 0.0
    %2697 = vmatprep.subr.mxu0 0.0
    %2698 = vmatpush1.msra.mxu0 0.0
    %2699 = vmatprep.subr.mxu0 0.0
    %2700 = vmatpush1.msra.mxu0 0.0
    %2701 = vmatprep.subr.mxu0 0.0
    %2702 = vmatpush1.msra.mxu0 0.0
    %2703 = vmatprep.subr.mxu0 0.0
    %2704 = vmatpush1.msra.mxu0 0.0
    %2705 = vmatprep.subr.mxu0 0.0
    %2706 = vmatpush1.msra.mxu0 0.0
    %2707 = vmatprep.subr.mxu0 0.0
    %2708 = vmatpush1.msra.mxu0 0.0
    %2709 = vmatprep.subr.mxu0 0.0
    %2710 = vmatpush1.msra.mxu0 0.0
    %2711 = vmatprep.subr.mxu0 0.0
    %2712 = vmatpush1.msra.mxu0 0.0
    %2713 = vmatprep.subr.mxu0 0.0
    %2714 = vmatpush1.msra.mxu0 0.0
    %2715 = vmatprep.subr.mxu0 0.0
    %2716 = vmatpush1.msra.mxu0 0.0
    %2717 = vmatprep.subr.mxu0 0.0
    %2718 = vmatpush1.msra.mxu0 0.0
    %2719 = vmatprep.subr.mxu0 0.0
    %2720 = vmatpush1.msra.mxu0 0.0
    %2721 = vmatprep.subr.mxu0 0.0
    %2722 = vmatpush1.msra.mxu0 0.0
    %2723 = vmatprep.subr.mxu0 0.0
    %2724 = vmatpush1.msra.mxu0 0.0
    %2725 = vmatprep.subr.mxu0 0.0
    %2726 = vmatpush1.msra.mxu0 0.0
    %2727 = vmatprep.subr.mxu0 0.0
    %2728 = vmatpush1.msra.mxu0 0.0
    %2729 = vmatprep.subr.mxu0 0.0
    %2730 = vmatpush1.msra.mxu0 0.0
    %2731 = vmatprep.subr.mxu0 0.0
    %2732 = vmatpush1.msra.mxu0 0.0
    %2733 = vmatprep.subr.mxu0 0.0
    %2734 = vmatpush1.msra.mxu0 0.0
    %2735 = vmatprep.subr.mxu0 0.0
    %2736 = vmatpush1.msra.mxu0 0.0
    %2737 = vmatprep.subr.mxu0 0.0
    %2738 = vmatpush1.msra.mxu0 0.0
    %2739 = vmatprep.subr.mxu0 0.0
    %2740 = vmatpush1.msra.mxu0 0.0
    %2741 = vmatprep.subr.mxu0 0.0
    %2742 = vmatpush1.msra.mxu0 0.0
    %2743 = vmatprep.mubr.f32.mxu0 0.0
    %2744 = vmatmul.mubr.f32.gmra.mrb[0].mxu0 %v2309
    %v2745 = vpop.f32.mrb[0].mxu0
    %v2746 = vadd.f32 %v2672, %v2745
    %v2747 = vpop.f32.mrb[0].mxu0
    %v2748 = vadd.f32 %v2676, %v2747
    %2749 = vmatprep.mubr.f32.mxu0 0.0
    %2750 = vmatmul.mubr.f32.gmra.mrb[0].mxu0 %v2312
    %v2751 = vpop.f32.mrb[0].mxu0
    %v2752 = vadd.f32 %v2672, %v2751
    %v2753 = vpop.f32.mrb[0].mxu0
    %v2754 = vadd.f32 %v2676, %v2753
    %2755 = vdwg.mxu0
    %v2756 = vld [vmem:[%s53] sm:$0xff]
    %v2757 = vld [vmem:[%s53 + $0x8] sm:$0xff]
    %v2758 = vld [vmem:[%s53 + $0x10] sm:$0xff]
    %v2759 = vld [vmem:[%s53 + $0x18] sm:$0xff]
    %v2760 = vld [vmem:[%s53 + $0x20] sm:$0xff]
    %v2761 = vld [vmem:[%s53 + $0x28] sm:$0xff]
    %v2762 = vld [vmem:[%s53 + $0x30] sm:$0xff]
    %v2763 = vld [vmem:[%s53 + $0x38] sm:$0xff]
    %v2764 = vld [vmem:[%s53 + $0x40] sm:$0xff]
    %v2765 = vld [vmem:[%s53 + $0x48] sm:$0xff]
    %v2766 = vld [vmem:[%s53 + $0x50] sm:$0xff]
    %v2767 = vld [vmem:[%s53 + $0x58] sm:$0xff]
    %v2768 = vld [vmem:[%s53 + $0x60] sm:$0xff]
    %v2769 = vld [vmem:[%s53 + $0x68] sm:$0xff]
    %v2770 = vld [vmem:[%s53 + $0x70] sm:$0xff]
    %v2771 = vld [vmem:[%s53 + $0x78] sm:$0xff]
    %v2772 = vld [vmem:[%s53 + $0x80] sm:$0xff]
    %v2773 = vld [vmem:[%s53 + $0x88] sm:$0xff]
    %v2774 = vld [vmem:[%s53 + $0x90] sm:$0xff]
    %v2775 = vld [vmem:[%s53 + $0x98] sm:$0xff]
    %v2776 = vld [vmem:[%s53 + $0xa0] sm:$0xff]
    %v2777 = vld [vmem:[%s53 + $0xa8] sm:$0xff]
    %v2778 = vld [vmem:[%s53 + $0xb0] sm:$0xff]
    %v2779 = vld [vmem:[%s53 + $0xb8] sm:$0xff]
    %v2780 = vld [vmem:[#allocation16] sm:$0x1]
    %v2781 = vld [vmem:[%s57] sm:$0xff]
    %v2782 = vld [vmem:[%s57 + $0x8] sm:$0xff]
    %v2783 = vld [vmem:[%s57 + $0x10] sm:$0xff]
    %v2784 = vld [vmem:[%s57 + $0x18] sm:$0xff]
    %v2785 = vld [vmem:[#allocation18] sm:$0x1]
    %v2787 = vlaneseq
    %v2788 = vshrl.u32 %v2787, 7
    %v2789 = vsub.s32 0, %v2788
    %v2790 = vrot.slane %v2780, %v2789
    %v2793 = vsel %vm1807, %v2748, 0
    %v2796 = vsel %vm1807, %v2754, 0
    %2798 = vmatprep.subr.mxu0 0.0
    %2799 = vmatpush1.msra.mxu0 %v2756
    %2800 = vmatprep.subr.mxu0 0.0
    %2801 = vmatpush1.msra.mxu0 %v2757
    %2802 = vmatprep.subr.mxu0 0.0
    %2803 = vmatpush1.msra.mxu0 %v2758
    %2804 = vmatprep.subr.mxu0 0.0
    %2805 = vmatpush1.msra.mxu0 %v2759
    %2806 = vmatprep.subr.mxu0 0.0
    %2807 = vmatpush1.msra.mxu0 %v2760
    %2808 = vmatprep.subr.mxu0 0.0
    %2809 = vmatpush1.msra.mxu0 %v2761
    %2810 = vmatprep.subr.mxu0 0.0
    %2811 = vmatpush1.msra.mxu0 %v2762
    %2812 = vmatprep.subr.mxu0 0.0
    %2813 = vmatpush1.msra.mxu0 %v2763
    %2814 = vmatprep.subr.mxu0 0.0
    %2815 = vmatpush1.msra.mxu0 %v2764
    %2816 = vmatprep.subr.mxu0 0.0
    %2817 = vmatpush1.msra.mxu0 %v2765
    %2818 = vmatprep.subr.mxu0 0.0
    %2819 = vmatpush1.msra.mxu0 %v2766
    %2820 = vmatprep.subr.mxu0 0.0
    %2821 = vmatpush1.msra.mxu0 %v2767
    %2822 = vmatprep.subr.mxu0 0.0
    %2823 = vmatpush1.msra.mxu0 %v2768
    %2824 = vmatprep.subr.mxu0 0.0
    %2825 = vmatpush1.msra.mxu0 %v2769
    %2826 = vmatprep.subr.mxu0 0.0
    %2827 = vmatpush1.msra.mxu0 %v2770
    %2828 = vmatprep.subr.mxu0 0.0
    %2829 = vmatpush1.msra.mxu0 %v2771
    %2830 = vmatprep.subr.mxu0 0.0
    %2831 = vmatpush1.msra.mxu0 %v2772
    %2832 = vmatprep.subr.mxu0 0.0
    %2833 = vmatpush1.msra.mxu0 %v2773
    %2834 = vmatprep.subr.mxu0 0.0
    %2835 = vmatpush1.msra.mxu0 %v2774
    %2836 = vmatprep.subr.mxu0 0.0
    %2837 = vmatpush1.msra.mxu0 %v2775
    %2838 = vmatprep.subr.mxu0 0.0
    %2839 = vmatpush1.msra.mxu0 %v2776
    %2840 = vmatprep.subr.mxu0 0.0
    %2841 = vmatpush1.msra.mxu0 %v2777
    %2842 = vmatprep.subr.mxu0 0.0
    %2843 = vmatpush1.msra.mxu0 %v2778
    %2844 = vmatprep.subr.mxu0 0.0
    %2845 = vmatpush1.msra.mxu0 %v2779
    %2846 = vmatprep.subr.mxu0 0.0
    %2847 = vmatpush1.msra.mxu0 0.0
    %2848 = vmatprep.subr.mxu0 0.0
    %2849 = vmatpush1.msra.mxu0 0.0
    %2850 = vmatprep.subr.mxu0 0.0
    %2851 = vmatpush1.msra.mxu0 0.0
    %2852 = vmatprep.subr.mxu0 0.0
    %2853 = vmatpush1.msra.mxu0 0.0
    %2854 = vmatprep.subr.mxu0 0.0
    %2855 = vmatpush1.msra.mxu0 0.0
    %2856 = vmatprep.subr.mxu0 0.0
    %2857 = vmatpush1.msra.mxu0 0.0
    %2858 = vmatprep.subr.mxu0 0.0
    %2859 = vmatpush1.msra.mxu0 0.0
    %2860 = vmatprep.subr.mxu0 0.0
    %2861 = vmatpush1.msra.mxu0 0.0
    %2862 = vmatprep.mubr.f32.mxu0 %v2793
    %2863 = vmatmul.mubr.f32.gmra.mrb[0].mxu0 %v2746
    %v2864 = vpop.f32.mrb[0].mxu0
    %v2865 = vadd.f32 %v2790, %v2864
    %v2866 = vpop.f32.mrb[0].mxu0
    %2867 = vmatprep.mubr.f32.mxu0 %v2796
    %2868 = vmatmul.mubr.f32.gmra.mrb[0].mxu0 %v2752
    %v2869 = vpop.f32.mrb[0].mxu0
    %v2870 = vadd.f32 %v2790, %v2869
    %v2871 = vpop.f32.mrb[0].mxu0
    %2872 = vdwg.mxu0
    %v2873 = vsel %vm1142, %v2865, 0.0
    %v2874 = vsel %vm1142, %v2870, 0.0
    %v2875 = vadd.f32 %v2873, %v2874
    %v2876 = vrot.slane %v2875, 4
    %v2877 = vadd.f32 %v2875, %v2876
    %v2878 = vrot.slane %v2877, 2
    %v2879 = vadd.f32 %v2877, %v2878
    %v2880 = vrot.slane %v2879, 1
    %v2881 = vadd.f32 %v2879, %v2880
    %v2882 = vmul.f32 %v2881, %v1152
    %v2883 = vsub.f32 %v2865, %v2882
    %v2884 = vsub.f32 %v2870, %v2882
    %v2885 = vmul.f32 %v2883, %v2883
    %v2886 = vmul.f32 %v2884, %v2884
    %v2887 = vsel %vm1142, %v2885, 0.0
    %v2888 = vsel %vm1142, %v2886, 0.0
    %v2889 = vadd.f32 %v2887, %v2888
    %v2890 = vrot.slane %v2889, 4
    %v2891 = vadd.f32 %v2889, %v2890
    %v2892 = vrot.slane %v2891, 2
    %v2893 = vadd.f32 %v2891, %v2892
    %v2894 = vrot.slane %v2893, 1
    %v2895 = vadd.f32 %v2893, %v2894
    %v2896 = vmul.f32 %v2895, %v1152
    %v2897 = vadd.f32 %v2896, 1e-05
    %v2898 = vrsqrt.pop %v2897
    %v2899 = vmul.f32 %v2883, %v2898
    %v2900 = vmul.f32 %v2884, %v2898
    %v2902 = vlaneseq
    %v2903 = vshrl.u32 %v2902, 7
    %v2904 = vsub.s32 0, %v2903
    %v2905 = vrot.slane %v2785, %v2904
    %v2908 = vsel %vm1142, %v2899, 0
    %v2911 = vsel %vm1142, %v2900, 0
    %2913 = vmatprep.subr.mxu0 0.0
    %2914 = vmatpush1.msra.mxu0 %v2781
    %2915 = vmatprep.subr.mxu0 0.0
    %2916 = vmatpush1.msra.mxu0 %v2782
    %2917 = vmatprep.subr.mxu0 0.0
    %2918 = vmatpush1.msra.mxu0 %v2783
    %2919 = vmatprep.subr.mxu0 0.0
    %2920 = vmatpush1.msra.mxu0 %v2784
    %2921 = vmatprep.subr.mxu0 0.0
    %2922 = vmatpush1.msra.mxu0 0.0
    %2923 = vmatprep.subr.mxu0 0.0
    %2924 = vmatpush1.msra.mxu0 0.0
    %2925 = vmatprep.subr.mxu0 0.0
    %2926 = vmatpush1.msra.mxu0 0.0
    %2927 = vmatprep.subr.mxu0 0.0
    %2928 = vmatpush1.msra.mxu0 0.0
    %2929 = vmatprep.subr.mxu0 0.0
    %2930 = vmatpush1.msra.mxu0 0.0
    %2931 = vmatprep.subr.mxu0 0.0
    %2932 = vmatpush1.msra.mxu0 0.0
    %2933 = vmatprep.subr.mxu0 0.0
    %2934 = vmatpush1.msra.mxu0 0.0
    %2935 = vmatprep.subr.mxu0 0.0
    %2936 = vmatpush1.msra.mxu0 0.0
    %2937 = vmatprep.subr.mxu0 0.0
    %2938 = vmatpush1.msra.mxu0 0.0
    %2939 = vmatprep.subr.mxu0 0.0
    %2940 = vmatpush1.msra.mxu0 0.0
    %2941 = vmatprep.subr.mxu0 0.0
    %2942 = vmatpush1.msra.mxu0 0.0
    %2943 = vmatprep.subr.mxu0 0.0
    %2944 = vmatpush1.msra.mxu0 0.0
    %2945 = vmatprep.subr.mxu0 0.0
    %2946 = vmatpush1.msra.mxu0 0.0
    %2947 = vmatprep.subr.mxu0 0.0
    %2948 = vmatpush1.msra.mxu0 0.0
    %2949 = vmatprep.subr.mxu0 0.0
    %2950 = vmatpush1.msra.mxu0 0.0
    %2951 = vmatprep.subr.mxu0 0.0
    %2952 = vmatpush1.msra.mxu0 0.0
    %2953 = vmatprep.subr.mxu0 0.0
    %2954 = vmatpush1.msra.mxu0 0.0
    %2955 = vmatprep.subr.mxu0 0.0
    %2956 = vmatpush1.msra.mxu0 0.0
    %2957 = vmatprep.subr.mxu0 0.0
    %2958 = vmatpush1.msra.mxu0 0.0
    %2959 = vmatprep.subr.mxu0 0.0
    %2960 = vmatpush1.msra.mxu0 0.0
    %2961 = vmatprep.subr.mxu0 0.0
    %2962 = vmatpush1.msra.mxu0 0.0
    %2963 = vmatprep.subr.mxu0 0.0
    %2964 = vmatpush1.msra.mxu0 0.0
    %2965 = vmatprep.subr.mxu0 0.0
    %2966 = vmatpush1.msra.mxu0 0.0
    %2967 = vmatprep.subr.mxu0 0.0
    %2968 = vmatpush1.msra.mxu0 0.0
    %2969 = vmatprep.subr.mxu0 0.0
    %2970 = vmatpush1.msra.mxu0 0.0
    %2971 = vmatprep.subr.mxu0 0.0
    %2972 = vmatpush1.msra.mxu0 0.0
    %2973 = vmatprep.subr.mxu0 0.0
    %2974 = vmatpush1.msra.mxu0 0.0
    %2975 = vmatprep.subr.mxu0 0.0
    %2976 = vmatpush1.msra.mxu0 0.0
    %2977 = vmatprep.mubr.f32.mxu0 0.0
    %2978 = vmatmul.mubr.f32.gmra.mrb[0].mxu0 %v2908
    %v2979 = vpop.f32.mrb[0].mxu0
    %v2980 = vadd.f32 %v2905, %v2979
    %v2981 = vpop.f32.mrb[0].mxu0
    %2982 = vmatprep.mubr.f32.mxu0 0.0
    %2983 = vmatmul.mubr.f32.gmra.mrb[0].mxu0 %v2911
    %v2984 = vpop.f32.mrb[0].mxu0
    %v2985 = vadd.f32 %v2905, %v2984
    %v2986 = vpop.f32.mrb[0].mxu0
    %2987 = vdwg.mxu0
    %v2988 = vmax.f32 %v2980, 0.0
    %v2989 = vmax.f32 %v2985, 0.0
    %v2990 = vld [vmem:[%s61] sm:$0xff]
    %v2991 = vld [vmem:[%s61 + $0x8] sm:$0xff]
    %v2992 = vld [vmem:[%s61 + $0x10] sm:$0xff]
    %v2993 = vld [vmem:[%s61 + $0x18] sm:$0xff]
    %v2994 = vld [vmem:[%s61 + $0x20] sm:$0xff]
    %v2995 = vld [vmem:[%s61 + $0x28] sm:$0xff]
    %v2996 = vld [vmem:[%s61 + $0x30] sm:$0xff]
    %v2997 = vld [vmem:[%s61 + $0x38] sm:$0xff]
    %v2998 = vld [vmem:[#allocation19] sm:$0x1]
    %v3000 = vsel %vm1142, %v2988, 0
    %v3003 = vsel %vm1142, %v2989, 0
    %3005 = vmatprep.subr.mxu0 0.0
    %3006 = vmatpush1.msra.mxu0 %v2994
    %3007 = vmatprep.subr.mxu0 0.0
    %3008 = vmatpush1.msra.mxu0 %v2995
    %3009 = vmatprep.subr.mxu0 0.0
    %3010 = vmatpush1.msra.mxu0 %v2996
    %3011 = vmatprep.subr.mxu0 0.0
    %3012 = vmatpush1.msra.mxu0 %v2997
    %3013 = vmatprep.subr.mxu0 0.0
    %3014 = vmatpush1.msra.mxu0 0.0
    %3015 = vmatprep.subr.mxu0 0.0
    %3016 = vmatpush1.msra.mxu0 0.0
    %3017 = vmatprep.subr.mxu0 0.0
    %3018 = vmatpush1.msra.mxu0 0.0
    %3019 = vmatprep.subr.mxu0 0.0
    %3020 = vmatpush1.msra.mxu0 0.0
    %3021 = vmatprep.subr.mxu0 0.0
    %3022 = vmatpush1.msra.mxu0 0.0
    %3023 = vmatprep.subr.mxu0 0.0
    %3024 = vmatpush1.msra.mxu0 0.0
    %3025 = vmatprep.subr.mxu0 0.0
    %3026 = vmatpush1.msra.mxu0 0.0
    %3027 = vmatprep.subr.mxu0 0.0
    %3028 = vmatpush1.msra.mxu0 0.0
    %3029 = vmatprep.subr.mxu0 0.0
    %3030 = vmatpush1.msra.mxu0 0.0
    %3031 = vmatprep.subr.mxu0 0.0
    %3032 = vmatpush1.msra.mxu0 0.0
    %3033 = vmatprep.subr.mxu0 0.0
    %3034 = vmatpush1.msra.mxu0 0.0
    %3035 = vmatprep.subr.mxu0 0.0
    %3036 = vmatpush1.msra.mxu0 0.0
    %3037 = vmatprep.subr.mxu0 0.0
    %3038 = vmatpush1.msra.mxu0 0.0
    %3039 = vmatprep.subr.mxu0 0.0
    %3040 = vmatpush1.msra.mxu0 0.0
    %3041 = vmatprep.subr.mxu0 0.0
    %3042 = vmatpush1.msra.mxu0 0.0
    %3043 = vmatprep.subr.mxu0 0.0
    %3044 = vmatpush1.msra.mxu0 0.0
    %3045 = vmatprep.subr.mxu0 0.0
    %3046 = vmatpush1.msra.mxu0 0.0
    %3047 = vmatprep.subr.mxu0 0.0
    %3048 = vmatpush1.msra.mxu0 0.0
    %3049 = vmatprep.subr.mxu0 0.0
    %3050 = vmatpush1.msra.mxu0 0.0
    %3051 = vmatprep.subr.mxu0 0.0
    %3052 = vmatpush1.msra.mxu0 0.0
    %3053 = vmatprep.subr.mxu0 0.0
    %3054 = vmatpush1.msra.mxu0 0.0
    %3055 = vmatprep.subr.mxu0 0.0
    %3056 = vmatpush1.msra.mxu0 0.0
    %3057 = vmatprep.subr.mxu0 0.0
    %3058 = vmatpush1.msra.mxu0 0.0
    %3059 = vmatprep.subr.mxu0 0.0
    %3060 = vmatpush1.msra.mxu0 0.0
    %3061 = vmatprep.subr.mxu0 0.0
    %3062 = vmatpush1.msra.mxu0 0.0
    %3063 = vmatprep.subr.mxu0 0.0
    %3064 = vmatpush1.msra.mxu0 0.0
    %3065 = vmatprep.subr.mxu0 0.0
    %3066 = vmatpush1.msra.mxu0 0.0
    %3067 = vmatprep.subr.mxu0 0.0
    %3068 = vmatpush1.msra.mxu0 0.0
    %3069 = vmatprep.mubr.f32.mxu0 0.0
    %3070 = vmatmul.mubr.f32.gmra.mrb[0].mxu0 %v3000
    %v3071 = vpop.f32.mrb[0].mxu0
    %v3072 = vadd.f32 0.0, %v3071
    %v3073 = vpop.f32.mrb[0].mxu0
    %3074 = vmatprep.mubr.f32.mxu0 0.0
    %3075 = vmatmul.mubr.f32.gmra.mrb[0].mxu0 %v3003
    %v3076 = vpop.f32.mrb[0].mxu0
    %v3077 = vadd.f32 0.0, %v3076
    %v3078 = vpop.f32.mrb[0].mxu0
    %3079 = vdwg.mxu0
    %3080 = vmatprep.subr.mxu0 0.0
    %3081 = vmatpush1.msra.mxu0 %v2990
    %3082 = vmatprep.subr.mxu0 0.0
    %3083 = vmatpush1.msra.mxu0 %v2991
    %3084 = vmatprep.subr.mxu0 0.0
    %3085 = vmatpush1.msra.mxu0 %v2992
    %3086 = vmatprep.subr.mxu0 0.0
    %3087 = vmatpush1.msra.mxu0 %v2993
    %3088 = vmatprep.subr.mxu0 0.0
    %3089 = vmatpush1.msra.mxu0 0.0
    %3090 = vmatprep.subr.mxu0 0.0
    %3091 = vmatpush1.msra.mxu0 0.0
    %3092 = vmatprep.subr.mxu0 0.0
    %3093 = vmatpush1.msra.mxu0 0.0
    %3094 = vmatprep.subr.mxu0 0.0
    %3095 = vmatpush1.msra.mxu0 0.0
    %3096 = vmatprep.subr.mxu0 0.0
    %3097 = vmatpush1.msra.mxu0 0.0
    %3098 = vmatprep.subr.mxu0 0.0
    %3099 = vmatpush1.msra.mxu0 0.0
    %3100 = vmatprep.subr.mxu0 0.0
    %3101 = vmatpush1.msra.mxu0 0.0
    %3102 = vmatprep.subr.mxu0 0.0
    %3103 = vmatpush1.msra.mxu0 0.0
    %3104 = vmatprep.subr.mxu0 0.0
    %3105 = vmatpush1.msra.mxu0 0.0
    %3106 = vmatprep.subr.mxu0 0.0
    %3107 = vmatpush1.msra.mxu0 0.0
    %3108 = vmatprep.subr.mxu0 0.0
    %3109 = vmatpush1.msra.mxu0 0.0
    %3110 = vmatprep.subr.mxu0 0.0
    %3111 = vmatpush1.msra.mxu0 0.0
    %3112 = vmatprep.subr.mxu0 0.0
    %3113 = vmatpush1.msra.mxu0 0.0
    %3114 = vmatprep.subr.mxu0 0.0
    %3115 = vmatpush1.msra.mxu0 0.0
    %3116 = vmatprep.subr.mxu0 0.0
    %3117 = vmatpush1.msra.mxu0 0.0
    %3118 = vmatprep.subr.mxu0 0.0
    %3119 = vmatpush1.msra.mxu0 0.0
    %3120 = vmatprep.subr.mxu0 0.0
    %3121 = vmatpush1.msra.mxu0 0.0
    %3122 = vmatprep.subr.mxu0 0.0
    %3123 = vmatpush1.msra.mxu0 0.0
    %3124 = vmatprep.subr.mxu0 0.0
    %3125 = vmatpush1.msra.mxu0 0.0
    %3126 = vmatprep.subr.mxu0 0.0
    %3127 = vmatpush1.msra.mxu0 0.0
    %3128 = vmatprep.subr.mxu0 0.0
    %3129 = vmatpush1.msra.mxu0 0.0
    %3130 = vmatprep.subr.mxu0 0.0
    %3131 = vmatpush1.msra.mxu0 0.0
    %3132 = vmatprep.subr.mxu0 0.0
    %3133 = vmatpush1.msra.mxu0 0.0
    %3134 = vmatprep.subr.mxu0 0.0
    %3135 = vmatpush1.msra.mxu0 0.0
    %3136 = vmatprep.subr.mxu0 0.0
    %3137 = vmatpush1.msra.mxu0 0.0
    %3138 = vmatprep.subr.mxu0 0.0
    %3139 = vmatpush1.msra.mxu0 0.0
    %3140 = vmatprep.subr.mxu0 0.0
    %3141 = vmatpush1.msra.mxu0 0.0
    %3142 = vmatprep.subr.mxu0 0.0
    %3143 = vmatpush1.msra.mxu0 0.0
    %3144 = vmatprep.mubr.f32.mxu0 0.0
    %3145 = vmatmul.mubr.f32.gmra.mrb[0].mxu0 %v1618
    %v3146 = vpop.f32.mrb[0].mxu0
    %v3147 = vadd.f32 %v3072, %v3146
    %v3148 = vpop.f32.mrb[0].mxu0
    %3149 = vmatprep.mubr.f32.mxu0 0.0
    %3150 = vmatmul.mubr.f32.gmra.mrb[0].mxu0 %v1621
    %v3151 = vpop.f32.mrb[0].mxu0
    %v3152 = vadd.f32 %v3077, %v3151
    %v3153 = vpop.f32.mrb[0].mxu0
    %3154 = vdwg.mxu0
    %v3156 = vlaneseq
    %v3157 = vshrl.u32 %v3156, 7
    %v3158 = vsub.s32 0, %v3157
    %v3159 = vrot.slane %v2998, %v3158
    %v3161 = vadd.f32 %v3147, %v3159
    %v3162 = vadd.f32 %v3152, %v3159
    %v3163 = vld [vmem:[%s65] sm:$0xff]
    %v3164 = vld [vmem:[%s65 + $0x8] sm:$0xff]
    %v3165 = vld [vmem:[%s65 + $0x10] sm:$0xff]
    %v3166 = vld [vmem:[%s65 + $0x18] sm:$0xff]
    %v3167 = vld [vmem:[#allocation21] sm:$0x1]
    %v3168 = vld [vmem:[%s69] sm:$0xff]
    %v3169 = vld [vmem:[%s69 + $0x8] sm:$0xff]
    %v3170 = vld [vmem:[%s69 + $0x10] sm:$0xff]
    %v3171 = vld [vmem:[%s69 + $0x18] sm:$0xff]
    %v3172 = vld [vmem:[#allocation22] sm:$0x1]
    %v3174 = vlaneseq
    %v3175 = vshrl.u32 %v3174, 7
    %v3176 = vsub.s32 0, %v3175
    %v3177 = vrot.slane %v3167, %v3176
    %v3180 = vsel %vm1142, %v3161, 0
    %v3183 = vsel %vm1142, %v3162, 0
    %3185 = vmatprep.subr.mxu0 0.0
    %3186 = vmatpush1.msra.mxu0 %v3163
    %3187 = vmatprep.subr.mxu0 0.0
    %3188 = vmatpush1.msra.mxu0 %v3164
    %3189 = vmatprep.subr.mxu0 0.0
    %3190 = vmatpush1.msra.mxu0 %v3165
    %3191 = vmatprep.subr.mxu0 0.0
    %3192 = vmatpush1.msra.mxu0 %v3166
    %3193 = vmatprep.subr.mxu0 0.0
    %3194 = vmatpush1.msra.mxu0 0.0
    %3195 = vmatprep.subr.mxu0 0.0
    %3196 = vmatpush1.msra.mxu0 0.0
    %3197 = vmatprep.subr.mxu0 0.0
    %3198 = vmatpush1.msra.mxu0 0.0
    %3199 = vmatprep.subr.mxu0 0.0
    %3200 = vmatpush1.msra.mxu0 0.0
    %3201 = vmatprep.subr.mxu0 0.0
    %3202 = vmatpush1.msra.mxu0 0.0
    %3203 = vmatprep.subr.mxu0 0.0
    %3204 = vmatpush1.msra.mxu0 0.0
    %3205 = vmatprep.subr.mxu0 0.0
    %3206 = vmatpush1.msra.mxu0 0.0
    %3207 = vmatprep.subr.mxu0 0.0
    %3208 = vmatpush1.msra.mxu0 0.0
    %3209 = vmatprep.subr.mxu0 0.0
    %3210 = vmatpush1.msra.mxu0 0.0
    %3211 = vmatprep.subr.mxu0 0.0
    %3212 = vmatpush1.msra.mxu0 0.0
    %3213 = vmatprep.subr.mxu0 0.0
    %3214 = vmatpush1.msra.mxu0 0.0
    %3215 = vmatprep.subr.mxu0 0.0
    %3216 = vmatpush1.msra.mxu0 0.0
    %3217 = vmatprep.subr.mxu0 0.0
    %3218 = vmatpush1.msra.mxu0 0.0
    %3219 = vmatprep.subr.mxu0 0.0
    %3220 = vmatpush1.msra.mxu0 0.0
    %3221 = vmatprep.subr.mxu0 0.0
    %3222 = vmatpush1.msra.mxu0 0.0
    %3223 = vmatprep.subr.mxu0 0.0
    %3224 = vmatpush1.msra.mxu0 0.0
    %3225 = vmatprep.subr.mxu0 0.0
    %3226 = vmatpush1.msra.mxu0 0.0
    %3227 = vmatprep.subr.mxu0 0.0
    %3228 = vmatpush1.msra.mxu0 0.0
    %3229 = vmatprep.subr.mxu0 0.0
    %3230 = vmatpush1.msra.mxu0 0.0
    %3231 = vmatprep.subr.mxu0 0.0
    %3232 = vmatpush1.msra.mxu0 0.0
    %3233 = vmatprep.subr.mxu0 0.0
    %3234 = vmatpush1.msra.mxu0 0.0
    %3235 = vmatprep.subr.mxu0 0.0
    %3236 = vmatpush1.msra.mxu0 0.0
    %3237 = vmatprep.subr.mxu0 0.0
    %3238 = vmatpush1.msra.mxu0 0.0
    %3239 = vmatprep.subr.mxu0 0.0
    %3240 = vmatpush1.msra.mxu0 0.0
    %3241 = vmatprep.subr.mxu0 0.0
    %3242 = vmatpush1.msra.mxu0 0.0
    %3243 = vmatprep.subr.mxu0 0.0
    %3244 = vmatpush1.msra.mxu0 0.0
    %3245 = vmatprep.subr.mxu0 0.0
    %3246 = vmatpush1.msra.mxu0 0.0
    %3247 = vmatprep.subr.mxu0 0.0
    %3248 = vmatpush1.msra.mxu0 0.0
    %3249 = vmatprep.mubr.f32.mxu0 0.0
    %3250 = vmatmul.mubr.f32.gmra.mrb[0].mxu0 %v3180
    %v3251 = vpop.f32.mrb[0].mxu0
    %v3252 = vadd.f32 %v3177, %v3251
    %v3253 = vpop.f32.mrb[0].mxu0
    %3254 = vmatprep.mubr.f32.mxu0 0.0
    %3255 = vmatmul.mubr.f32.gmra.mrb[0].mxu0 %v3183
    %v3256 = vpop.f32.mrb[0].mxu0
    %v3257 = vadd.f32 %v3177, %v3256
    %v3258 = vpop.f32.mrb[0].mxu0
    %3259 = vdwg.mxu0
    %v3260 = vsel %vm1142, %v3252, 0.0
    %v3261 = vsel %vm1142, %v3257, 0.0
    %v3262 = vadd.f32 %v3260, %v3261
    %v3263 = vrot.slane %v3262, 4
    %v3264 = vadd.f32 %v3262, %v3263
    %v3265 = vrot.slane %v3264, 2
    %v3266 = vadd.f32 %v3264, %v3265
    %v3267 = vrot.slane %v3266, 1
    %v3268 = vadd.f32 %v3266, %v3267
    %v3269 = vmul.f32 %v3268, %v1152
    %v3270 = vsub.f32 %v3252, %v3269
    %v3271 = vsub.f32 %v3257, %v3269
    %v3272 = vmul.f32 %v3270, %v3270
    %v3273 = vmul.f32 %v3271, %v3271
    %v3274 = vsel %vm1142, %v3272, 0.0
    %v3275 = vsel %vm1142, %v3273, 0.0
    %v3276 = vadd.f32 %v3274, %v3275
    %v3277 = vrot.slane %v3276, 4
    %v3278 = vadd.f32 %v3276, %v3277
    %v3279 = vrot.slane %v3278, 2
    %v3280 = vadd.f32 %v3278, %v3279
    %v3281 = vrot.slane %v3280, 1
    %v3282 = vadd.f32 %v3280, %v3281
    %v3283 = vmul.f32 %v3282, %v1152
    %v3284 = vadd.f32 %v3283, 1e-05
    %v3285 = vrsqrt.pop %v3284
    %v3286 = vmul.f32 %v3270, %v3285
    %v3287 = vmul.f32 %v3271, %v3285
    %v3289 = vlaneseq
    %v3290 = vshrl.u32 %v3289, 7
    %v3291 = vsub.s32 0, %v3290
    %v3292 = vrot.slane %v3172, %v3291
    %v3295 = vsel %vm1142, %v3286, 0
    %v3298 = vsel %vm1142, %v3287, 0
    %3300 = vmatprep.subr.mxu0 0.0
    %3301 = vmatpush1.msra.mxu0 %v3168
    %3302 = vmatprep.subr.mxu0 0.0
    %3303 = vmatpush1.msra.mxu0 %v3169
    %3304 = vmatprep.subr.mxu0 0.0
    %3305 = vmatpush1.msra.mxu0 %v3170
    %3306 = vmatprep.subr.mxu0 0.0
    %3307 = vmatpush1.msra.mxu0 %v3171
    %3308 = vmatprep.subr.mxu0 0.0
    %3309 = vmatpush1.msra.mxu0 0.0
    %3310 = vmatprep.subr.mxu0 0.0
    %3311 = vmatpush1.msra.mxu0 0.0
    %3312 = vmatprep.subr.mxu0 0.0
    %3313 = vmatpush1.msra.mxu0 0.0
    %3314 = vmatprep.subr.mxu0 0.0
    %3315 = vmatpush1.msra.mxu0 0.0
    %3316 = vmatprep.subr.mxu0 0.0
    %3317 = vmatpush1.msra.mxu0 0.0
    %3318 = vmatprep.subr.mxu0 0.0
    %3319 = vmatpush1.msra.mxu0 0.0
    %3320 = vmatprep.subr.mxu0 0.0
    %3321 = vmatpush1.msra.mxu0 0.0
    %3322 = vmatprep.subr.mxu0 0.0
    %3323 = vmatpush1.msra.mxu0 0.0
    %3324 = vmatprep.subr.mxu0 0.0
    %3325 = vmatpush1.msra.mxu0 0.0
    %3326 = vmatprep.subr.mxu0 0.0
    %3327 = vmatpush1.msra.mxu0 0.0
    %3328 = vmatprep.subr.mxu0 0.0
    %3329 = vmatpush1.msra.mxu0 0.0
    %3330 = vmatprep.subr.mxu0 0.0
    %3331 = vmatpush1.msra.mxu0 0.0
    %3332 = vmatprep.subr.mxu0 0.0
    %3333 = vmatpush1.msra.mxu0 0.0
    %3334 = vmatprep.subr.mxu0 0.0
    %3335 = vmatpush1.msra.mxu0 0.0
    %3336 = vmatprep.subr.mxu0 0.0
    %3337 = vmatpush1.msra.mxu0 0.0
    %3338 = vmatprep.subr.mxu0 0.0
    %3339 = vmatpush1.msra.mxu0 0.0
    %3340 = vmatprep.subr.mxu0 0.0
    %3341 = vmatpush1.msra.mxu0 0.0
    %3342 = vmatprep.subr.mxu0 0.0
    %3343 = vmatpush1.msra.mxu0 0.0
    %3344 = vmatprep.subr.mxu0 0.0
    %3345 = vmatpush1.msra.mxu0 0.0
    %3346 = vmatprep.subr.mxu0 0.0
    %3347 = vmatpush1.msra.mxu0 0.0
    %3348 = vmatprep.subr.mxu0 0.0
    %3349 = vmatpush1.msra.mxu0 0.0
    %3350 = vmatprep.subr.mxu0 0.0
    %3351 = vmatpush1.msra.mxu0 0.0
    %3352 = vmatprep.subr.mxu0 0.0
    %3353 = vmatpush1.msra.mxu0 0.0
    %3354 = vmatprep.subr.mxu0 0.0
    %3355 = vmatpush1.msra.mxu0 0.0
    %3356 = vmatprep.subr.mxu0 0.0
    %3357 = vmatpush1.msra.mxu0 0.0
    %3358 = vmatprep.subr.mxu0 0.0
    %3359 = vmatpush1.msra.mxu0 0.0
    %3360 = vmatprep.subr.mxu0 0.0
    %3361 = vmatpush1.msra.mxu0 0.0
    %3362 = vmatprep.subr.mxu0 0.0
    %3363 = vmatpush1.msra.mxu0 0.0
    %3364 = vmatprep.mubr.f32.mxu0 0.0
    %3365 = vmatmul.mubr.f32.gmra.mrb[0].mxu0 %v3295
    %v3366 = vpop.f32.mrb[0].mxu0
    %v3367 = vadd.f32 %v3292, %v3366
    %v3368 = vpop.f32.mrb[0].mxu0
    %3369 = vmatprep.mubr.f32.mxu0 0.0
    %3370 = vmatmul.mubr.f32.gmra.mrb[0].mxu0 %v3298
    %v3371 = vpop.f32.mrb[0].mxu0
    %v3372 = vadd.f32 %v3292, %v3371
    %v3373 = vpop.f32.mrb[0].mxu0
    %3374 = vdwg.mxu0
    %v3375 = vmax.f32 %v3367, 0.0
    %v3376 = vmax.f32 %v3372, 0.0
    %v3377 = vld [vmem:[%s73] sm:$0xff]
    %v3378 = vld [vmem:[%s73 + $0x8] sm:$0xff]
    %v3379 = vld [vmem:[%s73 + $0x10] sm:$0xff]
    %v3380 = vld [vmem:[%s73 + $0x18] sm:$0xff]
    %v3381 = vld [vmem:[#allocation24] sm:$0x1]
    %v3382 = vld [vmem:[%s77] sm:$0xff]
    %v3383 = vld [vmem:[%s77 + $0x8] sm:$0xff]
    %v3384 = vld [vmem:[%s77 + $0x10] sm:$0xff]
    %v3385 = vld [vmem:[%s77 + $0x18] sm:$0xff]
    %v3387 = vsel %vm2091, %v1015, 0
    %v3390 = vsel %vm2091, %v1016, 0
    %3392 = vmatprep.subr.mxu0 0.0
    %3393 = vmatpush1.msra.mxu0 %v3375
    %3394 = vmatprep.subr.mxu0 0.0
    %3395 = vmatpush1.msra.mxu0 %v3376
    %3396 = vmatprep.subr.mxu0 0.0
    %3397 = vmatpush1.msra.mxu0 0.0
    %3398 = vmatprep.subr.mxu0 0.0
    %3399 = vmatpush1.msra.mxu0 0.0
    %3400 = vmatprep.subr.mxu0 0.0
    %3401 = vmatpush1.msra.mxu0 0.0
    %3402 = vmatprep.subr.mxu0 0.0
    %3403 = vmatpush1.msra.mxu0 0.0
    %3404 = vmatprep.subr.mxu0 0.0
    %3405 = vmatpush1.msra.mxu0 0.0
    %3406 = vmatprep.subr.mxu0 0.0
    %3407 = vmatpush1.msra.mxu0 0.0
    %3408 = vmatprep.subr.mxu0 0.0
    %3409 = vmatpush1.msra.mxu0 0.0
    %3410 = vmatprep.subr.mxu0 0.0
    %3411 = vmatpush1.msra.mxu0 0.0
    %3412 = vmatprep.subr.mxu0 0.0
    %3413 = vmatpush1.msra.mxu0 0.0
    %3414 = vmatprep.subr.mxu0 0.0
    %3415 = vmatpush1.msra.mxu0 0.0
    %3416 = vmatprep.subr.mxu0 0.0
    %3417 = vmatpush1.msra.mxu0 0.0
    %3418 = vmatprep.subr.mxu0 0.0
    %3419 = vmatpush1.msra.mxu0 0.0
    %3420 = vmatprep.subr.mxu0 0.0
    %3421 = vmatpush1.msra.mxu0 0.0
    %3422 = vmatprep.subr.mxu0 0.0
    %3423 = vmatpush1.msra.mxu0 0.0
    %3424 = vmatprep.subr.mxu0 0.0
    %3425 = vmatpush1.msra.mxu0 0.0
    %3426 = vmatprep.subr.mxu0 0.0
    %3427 = vmatpush1.msra.mxu0 0.0
    %3428 = vmatprep.subr.mxu0 0.0
    %3429 = vmatpush1.msra.mxu0 0.0
    %3430 = vmatprep.subr.mxu0 0.0
    %3431 = vmatpush1.msra.mxu0 0.0
    %3432 = vmatprep.subr.mxu0 0.0
    %3433 = vmatpush1.msra.mxu0 0.0
    %3434 = vmatprep.subr.mxu0 0.0
    %3435 = vmatpush1.msra.mxu0 0.0
    %3436 = vmatprep.subr.mxu0 0.0
    %3437 = vmatpush1.msra.mxu0 0.0
    %3438 = vmatprep.subr.mxu0 0.0
    %3439 = vmatpush1.msra.mxu0 0.0
    %3440 = vmatprep.subr.mxu0 0.0
    %3441 = vmatpush1.msra.mxu0 0.0
    %3442 = vmatprep.subr.mxu0 0.0
    %3443 = vmatpush1.msra.mxu0 0.0
    %3444 = vmatprep.subr.mxu0 0.0
    %3445 = vmatpush1.msra.mxu0 0.0
    %3446 = vmatprep.subr.mxu0 0.0
    %3447 = vmatpush1.msra.mxu0 0.0
    %3448 = vmatprep.subr.mxu0 0.0
    %3449 = vmatpush1.msra.mxu0 0.0
    %3450 = vmatprep.subr.mxu0 0.0
    %3451 = vmatpush1.msra.mxu0 0.0
    %3452 = vmatprep.subr.mxu0 0.0
    %3453 = vmatpush1.msra.mxu0 0.0
    %3454 = vmatprep.subr.mxu0 0.0
    %3455 = vmatpush1.msra.mxu0 0.0
    %3456 = vmatprep.mubr.f32.mxu0 0.0
    %3457 = vmatmul.mubr.f32.gmra.mrb[0].mxu0 %v3387
    %v3458 = vpop.f32.mrb[0].mxu0
    %v3459 = vadd.f32 0.0, %v3458
    %v3460 = vpop.f32.mrb[0].mxu0
    %3461 = vmatprep.mubr.f32.mxu0 0.0
    %3462 = vmatmul.mubr.f32.gmra.mrb[0].mxu0 %v3390
    %v3463 = vpop.f32.mrb[0].mxu0
    %v3464 = vadd.f32 0.0, %v3463
    %v3465 = vpop.f32.mrb[0].mxu0
    %3466 = vdwg.mxu0
    %v3468 = vlaneseq
    %v3469 = vshrl.u32 %v3468, 7
    %v3470 = vsub.s32 0, %v3469
    %v3471 = vrot.slane %v3381, %v3470
    %v3474 = vsel %vm1142, %v3459, 0
    %v3477 = vsel %vm1142, %v3464, 0
    %3479 = vmatprep.subr.mxu0 0.0
    %3480 = vmatpush1.msra.mxu0 %v3377
    %3481 = vmatprep.subr.mxu0 0.0
    %3482 = vmatpush1.msra.mxu0 %v3378
    %3483 = vmatprep.subr.mxu0 0.0
    %3484 = vmatpush1.msra.mxu0 %v3379
    %3485 = vmatprep.subr.mxu0 0.0
    %3486 = vmatpush1.msra.mxu0 %v3380
    %3487 = vmatprep.subr.mxu0 0.0
    %3488 = vmatpush1.msra.mxu0 0.0
    %3489 = vmatprep.subr.mxu0 0.0
    %3490 = vmatpush1.msra.mxu0 0.0
    %3491 = vmatprep.subr.mxu0 0.0
    %3492 = vmatpush1.msra.mxu0 0.0
    %3493 = vmatprep.subr.mxu0 0.0
    %3494 = vmatpush1.msra.mxu0 0.0
    %3495 = vmatprep.subr.mxu0 0.0
    %3496 = vmatpush1.msra.mxu0 0.0
    %3497 = vmatprep.subr.mxu0 0.0
    %3498 = vmatpush1.msra.mxu0 0.0
    %3499 = vmatprep.subr.mxu0 0.0
    %3500 = vmatpush1.msra.mxu0 0.0
    %3501 = vmatprep.subr.mxu0 0.0
    %3502 = vmatpush1.msra.mxu0 0.0
    %3503 = vmatprep.subr.mxu0 0.0
    %3504 = vmatpush1.msra.mxu0 0.0
    %3505 = vmatprep.subr.mxu0 0.0
    %3506 = vmatpush1.msra.mxu0 0.0
    %3507 = vmatprep.subr.mxu0 0.0
    %3508 = vmatpush1.msra.mxu0 0.0
    %3509 = vmatprep.subr.mxu0 0.0
    %3510 = vmatpush1.msra.mxu0 0.0
    %3511 = vmatprep.subr.mxu0 0.0
    %3512 = vmatpush1.msra.mxu0 0.0
    %3513 = vmatprep.subr.mxu0 0.0
    %3514 = vmatpush1.msra.mxu0 0.0
    %3515 = vmatprep.subr.mxu0 0.0
    %3516 = vmatpush1.msra.mxu0 0.0
    %3517 = vmatprep.subr.mxu0 0.0
    %3518 = vmatpush1.msra.mxu0 0.0
    %3519 = vmatprep.subr.mxu0 0.0
    %3520 = vmatpush1.msra.mxu0 0.0
    %3521 = vmatprep.subr.mxu0 0.0
    %3522 = vmatpush1.msra.mxu0 0.0
    %3523 = vmatprep.subr.mxu0 0.0
    %3524 = vmatpush1.msra.mxu0 0.0
    %3525 = vmatprep.subr.mxu0 0.0
    %3526 = vmatpush1.msra.mxu0 0.0
    %3527 = vmatprep.subr.mxu0 0.0
    %3528 = vmatpush1.msra.mxu0 0.0
    %3529 = vmatprep.subr.mxu0 0.0
    %3530 = vmatpush1.msra.mxu0 0.0
    %3531 = vmatprep.subr.mxu0 0.0
    %3532 = vmatpush1.msra.mxu0 0.0
    %3533 = vmatprep.subr.mxu0 0.0
    %3534 = vmatpush1.msra.mxu0 0.0
    %3535 = vmatprep.subr.mxu0 0.0
    %3536 = vmatpush1.msra.mxu0 0.0
    %3537 = vmatprep.subr.mxu0 0.0
    %3538 = vmatpush1.msra.mxu0 0.0
    %3539 = vmatprep.subr.mxu0 0.0
    %3540 = vmatpush1.msra.mxu0 0.0
    %3541 = vmatprep.subr.mxu0 0.0
    %3542 = vmatpush1.msra.mxu0 0.0
    %3543 = vmatprep.mubr.f32.mxu0 0.0
    %3544 = vmatmul.mubr.f32.gmra.mrb[0].mxu0 %v3474
    %v3545 = vpop.f32.mrb[0].mxu0
    %v3546 = vadd.f32 %v3471, %v3545
    %v3547 = vpop.f32.mrb[0].mxu0
    %3548 = vmatprep.mubr.f32.mxu0 0.0
    %3549 = vmatmul.mubr.f32.gmra.mrb[0].mxu0 %v3477
    %v3550 = vpop.f32.mrb[0].mxu0
    %v3551 = vadd.f32 %v3471, %v3550
    %v3552 = vpop.f32.mrb[0].mxu0
    %3553 = vdwg.mxu0
    %v3555 = vsel %vm1142, %v3375, 0
    %v3558 = vsel %vm1142, %v3376, 0
    %3560 = vmatprep.subr.mxu0 0.0
    %3561 = vmatpush1.msra.mxu0 %v3382
    %3562 = vmatprep.subr.mxu0 0.0
    %3563 = vmatpush1.msra.mxu0 %v3383
    %3564 = vmatprep.subr.mxu0 0.0
    %3565 = vmatpush1.msra.mxu0 %v3384
    %3566 = vmatprep.subr.mxu0 0.0
    %3567 = vmatpush1.msra.mxu0 %v3385
    %3568 = vmatprep.subr.mxu0 0.0
    %3569 = vmatpush1.msra.mxu0 0.0
    %3570 = vmatprep.subr.mxu0 0.0
    %3571 = vmatpush1.msra.mxu0 0.0
    %3572 = vmatprep.subr.mxu0 0.0
    %3573 = vmatpush1.msra.mxu0 0.0
    %3574 = vmatprep.subr.mxu0 0.0
    %3575 = vmatpush1.msra.mxu0 0.0
    %3576 = vmatprep.subr.mxu0 0.0
    %3577 = vmatpush1.msra.mxu0 0.0
    %3578 = vmatprep.subr.mxu0 0.0
    %3579 = vmatpush1.msra.mxu0 0.0
    %3580 = vmatprep.subr.mxu0 0.0
    %3581 = vmatpush1.msra.mxu0 0.0
    %3582 = vmatprep.subr.mxu0 0.0
    %3583 = vmatpush1.msra.mxu0 0.0
    %3584 = vmatprep.subr.mxu0 0.0
    %3585 = vmatpush1.msra.mxu0 0.0
    %3586 = vmatprep.subr.mxu0 0.0
    %3587 = vmatpush1.msra.mxu0 0.0
    %3588 = vmatprep.subr.mxu0 0.0
    %3589 = vmatpush1.msra.mxu0 0.0
    %3590 = vmatprep.subr.mxu0 0.0
    %3591 = vmatpush1.msra.mxu0 0.0
    %3592 = vmatprep.subr.mxu0 0.0
    %3593 = vmatpush1.msra.mxu0 0.0
    %3594 = vmatprep.subr.mxu0 0.0
    %3595 = vmatpush1.msra.mxu0 0.0
    %3596 = vmatprep.subr.mxu0 0.0
    %3597 = vmatpush1.msra.mxu0 0.0
    %3598 = vmatprep.subr.mxu0 0.0
    %3599 = vmatpush1.msra.mxu0 0.0
    %3600 = vmatprep.subr.mxu0 0.0
    %3601 = vmatpush1.msra.mxu0 0.0
    %3602 = vmatprep.subr.mxu0 0.0
    %3603 = vmatpush1.msra.mxu0 0.0
    %3604 = vmatprep.subr.mxu0 0.0
    %3605 = vmatpush1.msra.mxu0 0.0
    %3606 = vmatprep.subr.mxu0 0.0
    %3607 = vmatpush1.msra.mxu0 0.0
    %3608 = vmatprep.subr.mxu0 0.0
    %3609 = vmatpush1.msra.mxu0 0.0
    %3610 = vmatprep.subr.mxu0 0.0
    %3611 = vmatpush1.msra.mxu0 0.0
    %3612 = vmatprep.subr.mxu0 0.0
    %3613 = vmatpush1.msra.mxu0 0.0
    %3614 = vmatprep.subr.mxu0 0.0
    %3615 = vmatpush1.msra.mxu0 0.0
    %3616 = vmatprep.subr.mxu0 0.0
    %3617 = vmatpush1.msra.mxu0 0.0
    %3618 = vmatprep.subr.mxu0 0.0
    %3619 = vmatpush1.msra.mxu0 0.0
    %3620 = vmatprep.subr.mxu0 0.0
    %3621 = vmatpush1.msra.mxu0 0.0
    %3622 = vmatprep.subr.mxu0 0.0
    %3623 = vmatpush1.msra.mxu0 0.0
    %3624 = vmatprep.mubr.f32.mxu0 0.0
    %3625 = vmatmul.mubr.f32.gmra.mrb[0].mxu0 %v3555
    %v3626 = vpop.f32.mrb[0].mxu0
    %v3627 = vadd.f32 0.0, %v3626
    %v3628 = vpop.f32.mrb[0].mxu0
    %3629 = vmatprep.mubr.f32.mxu0 0.0
    %3630 = vmatmul.mubr.f32.gmra.mrb[0].mxu0 %v3558
    %v3631 = vpop.f32.mrb[0].mxu0
    %v3632 = vadd.f32 0.0, %v3631
    %v3633 = vpop.f32.mrb[0].mxu0
    %3634 = vdwg.mxu0
    %v3635 = vadd.f32 %v3546, %v3627
    %v3636 = vadd.f32 %v3551, %v3632
    %vm3637 = vcmp.gt.f32.partialorder %v3635, 0.0
    %vm3638 = vcmp.gt.f32.partialorder %v3636, 0.0
    %v3639 = vmin.f32 %v3635, 0.0
    %v3640 = vmin.f32 %v3636, 0.0
    %v3641 = vmul.f32 %v3639, 1.442695
    %v3642 = vpow.pop %v3641
    %v3643 = vmul.f32 %v3640, 1.442695
    %v3644 = vpow.pop %v3643
    %v3645 = vsub.f32 %v3642, 1.0
    %v3646 = vsub.f32 %v3644, 1.0
    %v3647 = vsel %vm3637, %v3635, %v3645
    %v3648 = vsel %vm3638, %v3636, %v3646
    %v3649 = vld [vmem:[%s79] sm:$0xff]
    %v3650 = vld [vmem:[%s79 + $0x8] sm:$0xff]
    %v3651 = vld [vmem:[%s79 + $0x10] sm:$0xff]
    %v3652 = vld [vmem:[%s79 + $0x18] sm:$0xff]
    %v3653 = vld [vmem:[%s79 + $0x20] sm:$0xff]
    %v3654 = vld [vmem:[%s79 + $0x28] sm:$0xff]
    %v3655 = vld [vmem:[%s79 + $0x30] sm:$0xff]
    %v3656 = vld [vmem:[%s79 + $0x38] sm:$0xff]
    %v3657 = vld [vmem:[%s81] sm:$0xff]
    %v3658 = vld [vmem:[%s81 + $0x8] sm:$0xff]
    %v3659 = vld [vmem:[%s81 + $0x10] sm:$0xff]
    %v3660 = vld [vmem:[%s81 + $0x18] sm:$0xff]
    %v3661 = vld [vmem:[%s81 + $0x20] sm:$0xff]
    %v3662 = vld [vmem:[%s81 + $0x28] sm:$0xff]
    %v3663 = vld [vmem:[%s81 + $0x30] sm:$0xff]
    %v3664 = vld [vmem:[%s81 + $0x38] sm:$0xff]
    %v3665 = vld [vmem:[#allocation25] sm:$0x3]
    %v3666 = vld [vmem:[#allocation27] sm:$0x3]
    %v3667 = vld [vmem:[#allocation28] sm:$0x3]
    %v3668 = vld [vmem:[#allocation30] sm:$0x3]
    %v3670 = vsel %vm1142, %v3647, 0
    %v3673 = vsel %vm1142, %v3648, 0
    %3675 = vmatprep.subr.mxu0 %v3650
    %3676 = vmatpush1.msra.mxu0 %v3649
    %3677 = vmatprep.subr.mxu0 %v3652
    %3678 = vmatpush1.msra.mxu0 %v3651
    %3679 = vmatprep.subr.mxu0 %v3654
    %3680 = vmatpush1.msra.mxu0 %v3653
    %3681 = vmatprep.subr.mxu0 %v3656
    %3682 = vmatpush1.msra.mxu0 %v3655
    %3683 = vmatprep.subr.mxu0 0.0
    %3684 = vmatpush1.msra.mxu0 0.0
    %3685 = vmatprep.subr.mxu0 0.0
    %3686 = vmatpush1.msra.mxu0 0.0
    %3687 = vmatprep.subr.mxu0 0.0
    %3688 = vmatpush1.msra.mxu0 0.0
    %3689 = vmatprep.subr.mxu0 0.0
    %3690 = vmatpush1.msra.mxu0 0.0
    %3691 = vmatprep.subr.mxu0 0.0
    %3692 = vmatpush1.msra.mxu0 0.0
    %3693 = vmatprep.subr.mxu0 0.0
    %3694 = vmatpush1.msra.mxu0 0.0
    %3695 = vmatprep.subr.mxu0 0.0
    %3696 = vmatpush1.msra.mxu0 0.0
    %3697 = vmatprep.subr.mxu0 0.0
    %3698 = vmatpush1.msra.mxu0 0.0
    %3699 = vmatprep.subr.mxu0 0.0
    %3700 = vmatpush1.msra.mxu0 0.0
    %3701 = vmatprep.subr.mxu0 0.0
    %3702 = vmatpush1.msra.mxu0 0.0
    %3703 = vmatprep.subr.mxu0 0.0
    %3704 = vmatpush1.msra.mxu0 0.0
    %3705 = vmatprep.subr.mxu0 0.0
    %3706 = vmatpush1.msra.mxu0 0.0
    %3707 = vmatprep.subr.mxu0 0.0
    %3708 = vmatpush1.msra.mxu0 0.0
    %3709 = vmatprep.subr.mxu0 0.0
    %3710 = vmatpush1.msra.mxu0 0.0
    %3711 = vmatprep.subr.mxu0 0.0
    %3712 = vmatpush1.msra.mxu0 0.0
    %3713 = vmatprep.subr.mxu0 0.0
    %3714 = vmatpush1.msra.mxu0 0.0
    %3715 = vmatprep.subr.mxu0 0.0
    %3716 = vmatpush1.msra.mxu0 0.0
    %3717 = vmatprep.subr.mxu0 0.0
    %3718 = vmatpush1.msra.mxu0 0.0
    %3719 = vmatprep.subr.mxu0 0.0
    %3720 = vmatpush1.msra.mxu0 0.0
    %3721 = vmatprep.subr.mxu0 0.0
    %3722 = vmatpush1.msra.mxu0 0.0
    %3723 = vmatprep.subr.mxu0 0.0
    %3724 = vmatpush1.msra.mxu0 0.0
    %3725 = vmatprep.subr.mxu0 0.0
    %3726 = vmatpush1.msra.mxu0 0.0
    %3727 = vmatprep.subr.mxu0 0.0
    %3728 = vmatpush1.msra.mxu0 0.0
    %3729 = vmatprep.subr.mxu0 0.0
    %3730 = vmatpush1.msra.mxu0 0.0
    %3731 = vmatprep.subr.mxu0 0.0
    %3732 = vmatpush1.msra.mxu0 0.0
    %3733 = vmatprep.subr.mxu0 0.0
    %3734 = vmatpush1.msra.mxu0 0.0
    %3735 = vmatprep.subr.mxu0 0.0
    %3736 = vmatpush1.msra.mxu0 0.0
    %3737 = vmatprep.subr.mxu0 0.0
    %3738 = vmatpush1.msra.mxu0 0.0
    %3739 = vmatprep.mubr.f32.mxu0 0.0
    %3740 = vmatmul.mubr.f32.gmra.mrb[0].mxu0 %v3670
    %v3741 = vpop.f32.mrb[0].mxu0
    %v3742 = vadd.f32 0.0, %v3741
    %v3743 = vpop.f32.mrb[0].mxu0
    %v3744 = vadd.f32 0.0, %v3743
    %3745 = vmatprep.mubr.f32.mxu0 0.0
    %3746 = vmatmul.mubr.f32.gmra.mrb[0].mxu0 %v3673
    %v3747 = vpop.f32.mrb[0].mxu0
    %v3748 = vadd.f32 0.0, %v3747
    %v3749 = vpop.f32.mrb[0].mxu0
    %v3750 = vadd.f32 0.0, %v3749
    %3751 = vdwg.mxu0
    %3752 = vmatprep.subr.mxu0 %v3650
    %3753 = vmatpush1.msra.mxu0 %v3649
    %3754 = vmatprep.subr.mxu0 %v3652
    %3755 = vmatpush1.msra.mxu0 %v3651
    %3756 = vmatprep.subr.mxu0 %v3654
    %3757 = vmatpush1.msra.mxu0 %v3653
    %3758 = vmatprep.subr.mxu0 %v3656
    %3759 = vmatpush1.msra.mxu0 %v3655
    %3760 = vmatprep.subr.mxu0 0.0
    %3761 = vmatpush1.msra.mxu0 0.0
    %3762 = vmatprep.subr.mxu0 0.0
    %3763 = vmatpush1.msra.mxu0 0.0
    %3764 = vmatprep.subr.mxu0 0.0
    %3765 = vmatpush1.msra.mxu0 0.0
    %3766 = vmatprep.subr.mxu0 0.0
    %3767 = vmatpush1.msra.mxu0 0.0
    %3768 = vmatprep.subr.mxu0 0.0
    %3769 = vmatpush1.msra.mxu0 0.0
    %3770 = vmatprep.subr.mxu0 0.0
    %3771 = vmatpush1.msra.mxu0 0.0
    %3772 = vmatprep.subr.mxu0 0.0
    %3773 = vmatpush1.msra.mxu0 0.0
    %3774 = vmatprep.subr.mxu0 0.0
    %3775 = vmatpush1.msra.mxu0 0.0
    %3776 = vmatprep.subr.mxu0 0.0
    %3777 = vmatpush1.msra.mxu0 0.0
    %3778 = vmatprep.subr.mxu0 0.0
    %3779 = vmatpush1.msra.mxu0 0.0
    %3780 = vmatprep.subr.mxu0 0.0
    %3781 = vmatpush1.msra.mxu0 0.0
    %3782 = vmatprep.subr.mxu0 0.0
    %3783 = vmatpush1.msra.mxu0 0.0
    %3784 = vmatprep.subr.mxu0 0.0
    %3785 = vmatpush1.msra.mxu0 0.0
    %3786 = vmatprep.subr.mxu0 0.0
    %3787 = vmatpush1.msra.mxu0 0.0
    %3788 = vmatprep.subr.mxu0 0.0
    %3789 = vmatpush1.msra.mxu0 0.0
    %3790 = vmatprep.subr.mxu0 0.0
    %3791 = vmatpush1.msra.mxu0 0.0
    %3792 = vmatprep.subr.mxu0 0.0
    %3793 = vmatpush1.msra.mxu0 0.0
    %3794 = vmatprep.subr.mxu0 0.0
    %3795 = vmatpush1.msra.mxu0 0.0
    %3796 = vmatprep.subr.mxu0 0.0
    %3797 = vmatpush1.msra.mxu0 0.0
    %3798 = vmatprep.subr.mxu0 0.0
    %3799 = vmatpush1.msra.mxu0 0.0
    %3800 = vmatprep.subr.mxu0 0.0
    %3801 = vmatpush1.msra.mxu0 0.0
    %3802 = vmatprep.subr.mxu0 0.0
    %3803 = vmatpush1.msra.mxu0 0.0
    %3804 = vmatprep.subr.mxu0 0.0
    %3805 = vmatpush1.msra.mxu0 0.0
    %3806 = vmatprep.subr.mxu0 0.0
    %3807 = vmatpush1.msra.mxu0 0.0
    %3808 = vmatprep.subr.mxu0 0.0
    %3809 = vmatpush1.msra.mxu0 0.0
    %3810 = vmatprep.subr.mxu0 0.0
    %3811 = vmatpush1.msra.mxu0 0.0
    %3812 = vmatprep.subr.mxu0 0.0
    %3813 = vmatpush1.msra.mxu0 0.0
    %3814 = vmatprep.subr.mxu0 0.0
    %3815 = vmatpush1.msra.mxu0 0.0
    %3816 = vmatprep.mubr.f32.mxu0 0.0
    %3817 = vmatmul.mubr.f32.gmra.mrb[0].mxu0 %v1535
    %v3818 = vpop.f32.mrb[0].mxu0
    %v3819 = vadd.f32 0.0, %v3818
    %v3820 = vpop.f32.mrb[0].mxu0
    %v3821 = vadd.f32 0.0, %v3820
    %3822 = vmatprep.mubr.f32.mxu0 0.0
    %3823 = vmatmul.mubr.f32.gmra.mrb[0].mxu0 %v1538
    %v3824 = vpop.f32.mrb[0].mxu0
    %v3825 = vadd.f32 0.0, %v3824
    %v3826 = vpop.f32.mrb[0].mxu0
    %v3827 = vadd.f32 0.0, %v3826
    %3828 = vdwg.mxu0
    %3829 = vmatprep.subr.mxu0 %v3658
    %3830 = vmatpush1.msra.mxu0 %v3657
    %3831 = vmatprep.subr.mxu0 %v3660
    %3832 = vmatpush1.msra.mxu0 %v3659
    %3833 = vmatprep.subr.mxu0 %v3662
    %3834 = vmatpush1.msra.mxu0 %v3661
    %3835 = vmatprep.subr.mxu0 %v3664
    %3836 = vmatpush1.msra.mxu0 %v3663
    %3837 = vmatprep.subr.mxu0 0.0
    %3838 = vmatpush1.msra.mxu0 0.0
    %3839 = vmatprep.subr.mxu0 0.0
    %3840 = vmatpush1.msra.mxu0 0.0
    %3841 = vmatprep.subr.mxu0 0.0
    %3842 = vmatpush1.msra.mxu0 0.0
    %3843 = vmatprep.subr.mxu0 0.0
    %3844 = vmatpush1.msra.mxu0 0.0
    %3845 = vmatprep.subr.mxu0 0.0
    %3846 = vmatpush1.msra.mxu0 0.0
    %3847 = vmatprep.subr.mxu0 0.0
    %3848 = vmatpush1.msra.mxu0 0.0
    %3849 = vmatprep.subr.mxu0 0.0
    %3850 = vmatpush1.msra.mxu0 0.0
    %3851 = vmatprep.subr.mxu0 0.0
    %3852 = vmatpush1.msra.mxu0 0.0
    %3853 = vmatprep.subr.mxu0 0.0
    %3854 = vmatpush1.msra.mxu0 0.0
    %3855 = vmatprep.subr.mxu0 0.0
    %3856 = vmatpush1.msra.mxu0 0.0
    %3857 = vmatprep.subr.mxu0 0.0
    %3858 = vmatpush1.msra.mxu0 0.0
    %3859 = vmatprep.subr.mxu0 0.0
    %3860 = vmatpush1.msra.mxu0 0.0
    %3861 = vmatprep.subr.mxu0 0.0
    %3862 = vmatpush1.msra.mxu0 0.0
    %3863 = vmatprep.subr.mxu0 0.0
    %3864 = vmatpush1.msra.mxu0 0.0
    %3865 = vmatprep.subr.mxu0 0.0
    %3866 = vmatpush1.msra.mxu0 0.0
    %3867 = vmatprep.subr.mxu0 0.0
    %3868 = vmatpush1.msra.mxu0 0.0
    %3869 = vmatprep.subr.mxu0 0.0
    %3870 = vmatpush1.msra.mxu0 0.0
    %3871 = vmatprep.subr.mxu0 0.0
    %3872 = vmatpush1.msra.mxu0 0.0
    %3873 = vmatprep.subr.mxu0 0.0
    %3874 = vmatpush1.msra.mxu0 0.0
    %3875 = vmatprep.subr.mxu0 0.0
    %3876 = vmatpush1.msra.mxu0 0.0
    %3877 = vmatprep.subr.mxu0 0.0
    %3878 = vmatpush1.msra.mxu0 0.0
    %3879 = vmatprep.subr.mxu0 0.0
    %3880 = vmatpush1.msra.mxu0 0.0
    %3881 = vmatprep.subr.mxu0 0.0
    %3882 = vmatpush1.msra.mxu0 0.0
    %3883 = vmatprep.subr.mxu0 0.0
    %3884 = vmatpush1.msra.mxu0 0.0
    %3885 = vmatprep.subr.mxu0 0.0
    %3886 = vmatpush1.msra.mxu0 0.0
    %3887 = vmatprep.subr.mxu0 0.0
    %3888 = vmatpush1.msra.mxu0 0.0
    %3889 = vmatprep.subr.mxu0 0.0
    %3890 = vmatpush1.msra.mxu0 0.0
    %3891 = vmatprep.subr.mxu0 0.0
    %3892 = vmatpush1.msra.mxu0 0.0
    %3893 = vmatprep.mubr.f32.mxu0 0.0
    %3894 = vmatmul.mubr.f32.gmra.mrb[0].mxu0 %v1701
    %v3895 = vpop.f32.mrb[0].mxu0
    %v3896 = vadd.f32 0.0, %v3895
    %v3897 = vpop.f32.mrb[0].mxu0
    %v3898 = vadd.f32 0.0, %v3897
    %3899 = vmatprep.mubr.f32.mxu0 0.0
    %3900 = vmatmul.mubr.f32.gmra.mrb[0].mxu0 %v1704
    %v3901 = vpop.f32.mrb[0].mxu0
    %v3902 = vadd.f32 0.0, %v3901
    %v3903 = vpop.f32.mrb[0].mxu0
    %v3904 = vadd.f32 0.0, %v3903
    %3905 = vmatprep.mubr.f32.mxu0 0.0
    %3906 = vmatmul.mubr.f32.gmra.mrb[0].mxu0 %v1707
    %v3907 = vpop.f32.mrb[0].mxu0
    %v3908 = vadd.f32 0.0, %v3907
    %v3909 = vpop.f32.mrb[0].mxu0
    %v3910 = vadd.f32 0.0, %v3909
    %3911 = vdwg.mxu0
    %v3913 = vlaneseq
    %v3914 = vshrl.u32 %v3913, 7
    %v3915 = vsub.s32 0, %v3914
    %v3916 = vrot.slane %v3665, %v3915
    %v3917 = vlaneseq
    %v3918 = vshrl.u32 %v3917, 7
    %v3919 = vsub.s32 1, %v3918
    %v3920 = vrot.slane %v3665, %v3919
    %v3923 = vmul.f32 %v3742, %v3916
    %v3924 = vmul.f32 %v3744, %v3920
    %v3925 = vmul.f32 %v3748, %v3916
    %v3926 = vmul.f32 %v3750, %v3920
    %v3928 = vsel %vm1807, %v3924, 0
    %v3931 = vsel %vm1807, %v3926, 0
    %3933 = vmatprep.subr.mxu0 0.0
    %3934 = vmatpush1.msra.mxu0 %v1019
    %3935 = vmatprep.subr.mxu0 0.0
    %3936 = vmatpush1.msra.mxu0 %v1020
    %3937 = vmatprep.subr.mxu0 0.0
    %3938 = vmatpush1.msra.mxu0 %v1021
    %3939 = vmatprep.subr.mxu0 0.0
    %3940 = vmatpush1.msra.mxu0 %v1022
    %3941 = vmatprep.subr.mxu0 0.0
    %3942 = vmatpush1.msra.mxu0 %v1023
    %3943 = vmatprep.subr.mxu0 0.0
    %3944 = vmatpush1.msra.mxu0 %v1024
    %3945 = vmatprep.subr.mxu0 0.0
    %3946 = vmatpush1.msra.mxu0 %v1025
    %3947 = vmatprep.subr.mxu0 0.0
    %3948 = vmatpush1.msra.mxu0 %v1026
    %3949 = vmatprep.subr.mxu0 0.0
    %3950 = vmatpush1.msra.mxu0 %v1027
    %3951 = vmatprep.subr.mxu0 0.0
    %3952 = vmatpush1.msra.mxu0 %v1028
    %3953 = vmatprep.subr.mxu0 0.0
    %3954 = vmatpush1.msra.mxu0 %v1029
    %3955 = vmatprep.subr.mxu0 0.0
    %3956 = vmatpush1.msra.mxu0 %v1030
    %3957 = vmatprep.subr.mxu0 0.0
    %3958 = vmatpush1.msra.mxu0 %v1031
    %3959 = vmatprep.subr.mxu0 0.0
    %3960 = vmatpush1.msra.mxu0 %v1032
    %3961 = vmatprep.subr.mxu0 0.0
    %3962 = vmatpush1.msra.mxu0 %v1033
    %3963 = vmatprep.subr.mxu0 0.0
    %3964 = vmatpush1.msra.mxu0 %v1034
    %3965 = vmatprep.subr.mxu0 0.0
    %3966 = vmatpush1.msra.mxu0 %v1035
    %3967 = vmatprep.subr.mxu0 0.0
    %3968 = vmatpush1.msra.mxu0 %v1036
    %3969 = vmatprep.subr.mxu0 0.0
    %3970 = vmatpush1.msra.mxu0 %v1037
    %3971 = vmatprep.subr.mxu0 0.0
    %3972 = vmatpush1.msra.mxu0 %v1038
    %3973 = vmatprep.subr.mxu0 0.0
    %3974 = vmatpush1.msra.mxu0 %v1039
    %3975 = vmatprep.subr.mxu0 0.0
    %3976 = vmatpush1.msra.mxu0 %v1040
    %3977 = vmatprep.subr.mxu0 0.0
    %3978 = vmatpush1.msra.mxu0 %v1041
    %3979 = vmatprep.subr.mxu0 0.0
    %3980 = vmatpush1.msra.mxu0 %v1042
    %3981 = vmatprep.subr.mxu0 0.0
    %3982 = vmatpush1.msra.mxu0 0.0
    %3983 = vmatprep.subr.mxu0 0.0
    %3984 = vmatpush1.msra.mxu0 0.0
    %3985 = vmatprep.subr.mxu0 0.0
    %3986 = vmatpush1.msra.mxu0 0.0
    %3987 = vmatprep.subr.mxu0 0.0
    %3988 = vmatpush1.msra.mxu0 0.0
    %3989 = vmatprep.subr.mxu0 0.0
    %3990 = vmatpush1.msra.mxu0 0.0
    %3991 = vmatprep.subr.mxu0 0.0
    %3992 = vmatpush1.msra.mxu0 0.0
    %3993 = vmatprep.subr.mxu0 0.0
    %3994 = vmatpush1.msra.mxu0 0.0
    %3995 = vmatprep.subr.mxu0 0.0
    %3996 = vmatpush1.msra.mxu0 0.0
    %3997 = vmatprep.mubr.f32.mxu0 %v3928
    %3998 = vmatmul.mubr.f32.gmra.mrb[0].mxu0 %v3923
    %v3999 = vpop.f32.mrb[0].mxu0
    %v4000 = vadd.f32 0.0, %v3999
    %v4001 = vpop.f32.mrb[0].mxu0
    %4002 = vmatprep.mubr.f32.mxu0 %v3931
    %4003 = vmatmul.mubr.f32.gmra.mrb[0].mxu0 %v3925
    %v4004 = vpop.f32.mrb[0].mxu0
    %v4005 = vadd.f32 0.0, %v4004
    %v4006 = vpop.f32.mrb[0].mxu0
    %4007 = vdwg.mxu0
    %v4009 = vlaneseq
    %v4010 = vshrl.u32 %v4009, 7
    %v4011 = vsub.s32 0, %v4010
    %v4012 = vrot.slane %v3666, %v4011
    %v4013 = vlaneseq
    %v4014 = vshrl.u32 %v4013, 7
    %v4015 = vsub.s32 1, %v4014
    %v4016 = vrot.slane %v3666, %v4015
    %v4019 = vmul.f32 %v3819, %v4012
    %v4020 = vmul.f32 %v3821, %v4016
    %v4021 = vmul.f32 %v3825, %v4012
    %v4022 = vmul.f32 %v3827, %v4016
    %v4024 = vsel %vm1807, %v4020, 0
    %v4027 = vsel %vm1807, %v4022, 0
    %4029 = vmatprep.subr.mxu0 0.0
    %4030 = vmatpush1.msra.mxu0 %v1019
    %4031 = vmatprep.subr.mxu0 0.0
    %4032 = vmatpush1.msra.mxu0 %v1020
    %4033 = vmatprep.subr.mxu0 0.0
    %4034 = vmatpush1.msra.mxu0 %v1021
    %4035 = vmatprep.subr.mxu0 0.0
    %4036 = vmatpush1.msra.mxu0 %v1022
    %4037 = vmatprep.subr.mxu0 0.0
    %4038 = vmatpush1.msra.mxu0 %v1023
    %4039 = vmatprep.subr.mxu0 0.0
    %4040 = vmatpush1.msra.mxu0 %v1024
    %4041 = vmatprep.subr.mxu0 0.0
    %4042 = vmatpush1.msra.mxu0 %v1025
    %4043 = vmatprep.subr.mxu0 0.0
    %4044 = vmatpush1.msra.mxu0 %v1026
    %4045 = vmatprep.subr.mxu0 0.0
    %4046 = vmatpush1.msra.mxu0 %v1027
    %4047 = vmatprep.subr.mxu0 0.0
    %4048 = vmatpush1.msra.mxu0 %v1028
    %4049 = vmatprep.subr.mxu0 0.0
    %4050 = vmatpush1.msra.mxu0 %v1029
    %4051 = vmatprep.subr.mxu0 0.0
    %4052 = vmatpush1.msra.mxu0 %v1030
    %4053 = vmatprep.subr.mxu0 0.0
    %4054 = vmatpush1.msra.mxu0 %v1031
    %4055 = vmatprep.subr.mxu0 0.0
    %4056 = vmatpush1.msra.mxu0 %v1032
    %4057 = vmatprep.subr.mxu0 0.0
    %4058 = vmatpush1.msra.mxu0 %v1033
    %4059 = vmatprep.subr.mxu0 0.0
    %4060 = vmatpush1.msra.mxu0 %v1034
    %4061 = vmatprep.subr.mxu0 0.0
    %4062 = vmatpush1.msra.mxu0 %v1035
    %4063 = vmatprep.subr.mxu0 0.0
    %4064 = vmatpush1.msra.mxu0 %v1036
    %4065 = vmatprep.subr.mxu0 0.0
    %4066 = vmatpush1.msra.mxu0 %v1037
    %4067 = vmatprep.subr.mxu0 0.0
    %4068 = vmatpush1.msra.mxu0 %v1038
    %4069 = vmatprep.subr.mxu0 0.0
    %4070 = vmatpush1.msra.mxu0 %v1039
    %4071 = vmatprep.subr.mxu0 0.0
    %4072 = vmatpush1.msra.mxu0 %v1040
    %4073 = vmatprep.subr.mxu0 0.0
    %4074 = vmatpush1.msra.mxu0 %v1041
    %4075 = vmatprep.subr.mxu0 0.0
    %4076 = vmatpush1.msra.mxu0 %v1042
    %4077 = vmatprep.subr.mxu0 0.0
    %4078 = vmatpush1.msra.mxu0 0.0
    %4079 = vmatprep.subr.mxu0 0.0
    %4080 = vmatpush1.msra.mxu0 0.0
    %4081 = vmatprep.subr.mxu0 0.0
    %4082 = vmatpush1.msra.mxu0 0.0
    %4083 = vmatprep.subr.mxu0 0.0
    %4084 = vmatpush1.msra.mxu0 0.0
    %4085 = vmatprep.subr.mxu0 0.0
    %4086 = vmatpush1.msra.mxu0 0.0
    %4087 = vmatprep.subr.mxu0 0.0
    %4088 = vmatpush1.msra.mxu0 0.0
    %4089 = vmatprep.subr.mxu0 0.0
    %4090 = vmatpush1.msra.mxu0 0.0
    %4091 = vmatprep.subr.mxu0 0.0
    %4092 = vmatpush1.msra.mxu0 0.0
    %4093 = vmatprep.mubr.f32.mxu0 %v4024
    %4094 = vmatmul.mubr.f32.gmra.mrb[0].mxu0 %v4019
    %v4095 = vpop.f32.mrb[0].mxu0
    %v4096 = vadd.f32 0.0, %v4095
    %v4097 = vpop.f32.mrb[0].mxu0
    %4098 = vmatprep.mubr.f32.mxu0 %v4027
    %4099 = vmatmul.mubr.f32.gmra.mrb[0].mxu0 %v4021
    %v4100 = vpop.f32.mrb[0].mxu0
    %v4101 = vadd.f32 0.0, %v4100
    %v4102 = vpop.f32.mrb[0].mxu0
    %4103 = vdwg.mxu0
    %v4105 = vlaneseq
    %v4106 = vshrl.u32 %v4105, 7
    %v4107 = vsub.s32 0, %v4106
    %v4108 = vrot.slane %v3667, %v4107
    %v4109 = vlaneseq
    %v4110 = vshrl.u32 %v4109, 7
    %v4111 = vsub.s32 1, %v4110
    %v4112 = vrot.slane %v3667, %v4111
    %v4115 = vmul.f32 %v3896, %v4108
    %v4116 = vmul.f32 %v3898, %v4112
    %v4117 = vmul.f32 %v3902, %v4108
    %v4118 = vmul.f32 %v3904, %v4112
    %v4119 = vmul.f32 %v3908, %v4108
    %v4120 = vmul.f32 %v3910, %v4112
    %v4122 = vsel %vm1807, %v4116, 0
    %v4125 = vsel %vm1807, %v4118, 0
    %v4128 = vsel %vm1807, %v4120, 0
    %4130 = vmatprep.subr.mxu0 0.0
    %4131 = vmatpush1.msra.mxu0 %v1019
    %4132 = vmatprep.subr.mxu0 0.0
    %4133 = vmatpush1.msra.mxu0 %v1020
    %4134 = vmatprep.subr.mxu0 0.0
    %4135 = vmatpush1.msra.mxu0 %v1021
    %4136 = vmatprep.subr.mxu0 0.0
    %4137 = vmatpush1.msra.mxu0 %v1022
    %4138 = vmatprep.subr.mxu0 0.0
    %4139 = vmatpush1.msra.mxu0 %v1023
    %4140 = vmatprep.subr.mxu0 0.0
    %4141 = vmatpush1.msra.mxu0 %v1024
    %4142 = vmatprep.subr.mxu0 0.0
    %4143 = vmatpush1.msra.mxu0 %v1025
    %4144 = vmatprep.subr.mxu0 0.0
    %4145 = vmatpush1.msra.mxu0 %v1026
    %4146 = vmatprep.subr.mxu0 0.0
    %4147 = vmatpush1.msra.mxu0 %v1027
    %4148 = vmatprep.subr.mxu0 0.0
    %4149 = vmatpush1.msra.mxu0 %v1028
    %4150 = vmatprep.subr.mxu0 0.0
    %4151 = vmatpush1.msra.mxu0 %v1029
    %4152 = vmatprep.subr.mxu0 0.0
    %4153 = vmatpush1.msra.mxu0 %v1030
    %4154 = vmatprep.subr.mxu0 0.0
    %4155 = vmatpush1.msra.mxu0 %v1031
    %4156 = vmatprep.subr.mxu0 0.0
    %4157 = vmatpush1.msra.mxu0 %v1032
    %4158 = vmatprep.subr.mxu0 0.0
    %4159 = vmatpush1.msra.mxu0 %v1033
    %4160 = vmatprep.subr.mxu0 0.0
    %4161 = vmatpush1.msra.mxu0 %v1034
    %4162 = vmatprep.subr.mxu0 0.0
    %4163 = vmatpush1.msra.mxu0 %v1035
    %4164 = vmatprep.subr.mxu0 0.0
    %4165 = vmatpush1.msra.mxu0 %v1036
    %4166 = vmatprep.subr.mxu0 0.0
    %4167 = vmatpush1.msra.mxu0 %v1037
    %4168 = vmatprep.subr.mxu0 0.0
    %4169 = vmatpush1.msra.mxu0 %v1038
    %4170 = vmatprep.subr.mxu0 0.0
    %4171 = vmatpush1.msra.mxu0 %v1039
    %4172 = vmatprep.subr.mxu0 0.0
    %4173 = vmatpush1.msra.mxu0 %v1040
    %4174 = vmatprep.subr.mxu0 0.0
    %4175 = vmatpush1.msra.mxu0 %v1041
    %4176 = vmatprep.subr.mxu0 0.0
    %4177 = vmatpush1.msra.mxu0 %v1042
    %4178 = vmatprep.subr.mxu0 0.0
    %4179 = vmatpush1.msra.mxu0 0.0
    %4180 = vmatprep.subr.mxu0 0.0
    %4181 = vmatpush1.msra.mxu0 0.0
    %4182 = vmatprep.subr.mxu0 0.0
    %4183 = vmatpush1.msra.mxu0 0.0
    %4184 = vmatprep.subr.mxu0 0.0
    %4185 = vmatpush1.msra.mxu0 0.0
    %4186 = vmatprep.subr.mxu0 0.0
    %4187 = vmatpush1.msra.mxu0 0.0
    %4188 = vmatprep.subr.mxu0 0.0
    %4189 = vmatpush1.msra.mxu0 0.0
    %4190 = vmatprep.subr.mxu0 0.0
    %4191 = vmatpush1.msra.mxu0 0.0
    %4192 = vmatprep.subr.mxu0 0.0
    %4193 = vmatpush1.msra.mxu0 0.0
    %4194 = vmatprep.mubr.f32.mxu0 %v4122
    %4195 = vmatmul.mubr.f32.gmra.mrb[0].mxu0 %v4115
    %v4196 = vpop.f32.mrb[0].mxu0
    %v4197 = vadd.f32 0.0, %v4196
    %v4198 = vpop.f32.mrb[0].mxu0
    %4199 = vmatprep.mubr.f32.mxu0 %v4125
    %4200 = vmatmul.mubr.f32.gmra.mrb[0].mxu0 %v4117
    %v4201 = vpop.f32.mrb[0].mxu0
    %v4202 = vadd.f32 0.0, %v4201
    %v4203 = vpop.f32.mrb[0].mxu0
    %4204 = vmatprep.mubr.f32.mxu0 %v4128
    %4205 = vmatmul.mubr.f32.gmra.mrb[0].mxu0 %v4119
    %v4206 = vpop.f32.mrb[0].mxu0
    %v4207 = vadd.f32 0.0, %v4206
    %v4208 = vpop.f32.mrb[0].mxu0
    %4209 = vdwg.mxu0
    %v4211 = vsel %vm2191, %v4101, 0
    %4213 = vmatprep.subr.mxu0 0.0
    %4214 = vmatpush1.msra.mxu0 %v4096
    %4215 = vmatprep.subr.mxu0 0.0
    %4216 = vmatpush1.msra.mxu0 %v4211
    %4217 = vmatprep.subr.mxu0 0.0
    %4218 = vmatpush1.msra.mxu0 0.0
    %4219 = vmatprep.subr.mxu0 0.0
    %4220 = vmatpush1.msra.mxu0 0.0
    %4221 = vmatprep.subr.mxu0 0.0
    %4222 = vmatpush1.msra.mxu0 0.0
    %4223 = vmatprep.subr.mxu0 0.0
    %4224 = vmatpush1.msra.mxu0 0.0
    %4225 = vmatprep.subr.mxu0 0.0
    %4226 = vmatpush1.msra.mxu0 0.0
    %4227 = vmatprep.subr.mxu0 0.0
    %4228 = vmatpush1.msra.mxu0 0.0
    %4229 = vmatprep.subr.mxu0 0.0
    %4230 = vmatpush1.msra.mxu0 0.0
    %4231 = vmatprep.subr.mxu0 0.0
    %4232 = vmatpush1.msra.mxu0 0.0
    %4233 = vmatprep.subr.mxu0 0.0
    %4234 = vmatpush1.msra.mxu0 0.0
    %4235 = vmatprep.subr.mxu0 0.0
    %4236 = vmatpush1.msra.mxu0 0.0
    %4237 = vmatprep.subr.mxu0 0.0
    %4238 = vmatpush1.msra.mxu0 0.0
    %4239 = vmatprep.subr.mxu0 0.0
    %4240 = vmatpush1.msra.mxu0 0.0
    %4241 = vmatprep.subr.mxu0 0.0
    %4242 = vmatpush1.msra.mxu0 0.0
    %4243 = vmatprep.subr.mxu0 0.0
    %4244 = vmatpush1.msra.mxu0 0.0
    %4245 = vmatprep.subr.mxu0 0.0
    %4246 = vmatpush1.msra.mxu0 0.0
    %4247 = vmatprep.subr.mxu0 0.0
    %4248 = vmatpush1.msra.mxu0 0.0
    %4249 = vmatprep.subr.mxu0 0.0
    %4250 = vmatpush1.msra.mxu0 0.0
    %4251 = vmatprep.subr.mxu0 0.0
    %4252 = vmatpush1.msra.mxu0 0.0
    %4253 = vmatprep.subr.mxu0 0.0
    %4254 = vmatpush1.msra.mxu0 0.0
    %4255 = vmatprep.subr.mxu0 0.0
    %4256 = vmatpush1.msra.mxu0 0.0
    %4257 = vmatprep.subr.mxu0 0.0
    %4258 = vmatpush1.msra.mxu0 0.0
    %4259 = vmatprep.subr.mxu0 0.0
    %4260 = vmatpush1.msra.mxu0 0.0
    %4261 = vmatprep.subr.mxu0 0.0
    %4262 = vmatpush1.msra.mxu0 0.0
    %4263 = vmatprep.subr.mxu0 0.0
    %4264 = vmatpush1.msra.mxu0 0.0
    %4265 = vmatprep.subr.mxu0 0.0
    %4266 = vmatpush1.msra.mxu0 0.0
    %4267 = vmatprep.subr.mxu0 0.0
    %4268 = vmatpush1.msra.mxu0 0.0
    %4269 = vmatprep.subr.mxu0 0.0
    %4270 = vmatpush1.msra.mxu0 0.0
    %4271 = vmatprep.subr.mxu0 0.0
    %4272 = vmatpush1.msra.mxu0 0.0
    %4273 = vmatprep.subr.mxu0 0.0
    %4274 = vmatpush1.msra.mxu0 0.0
    %4275 = vmatprep.subr.mxu0 0.0
    %4276 = vmatpush1.msra.mxu0 0.0
    %4277 = vmatprep.mubr.f32.mxu0 0.0
    %4278 = vmatmul.mubr.f32.gmra.mrb[0].mxu0 %v2183
    %v4279 = vpop.f32.mrb[0].mxu0
    %v4280 = vadd.f32 0.0, %v4279
    %v4281 = vpop.f32.mrb[0].mxu0
    %4282 = vmatprep.mubr.f32.mxu0 0.0
    %4283 = vmatmul.mubr.f32.gmra.mrb[0].mxu0 %v2186
    %v4284 = vpop.f32.mrb[0].mxu0
    %v4285 = vadd.f32 0.0, %v4284
    %v4286 = vpop.f32.mrb[0].mxu0
    %4287 = vmatprep.mubr.f32.mxu0 0.0
    %4288 = vmatmul.mubr.f32.gmra.mrb[0].mxu0 %v2189
    %v4289 = vpop.f32.mrb[0].mxu0
    %v4290 = vadd.f32 0.0, %v4289
    %v4291 = vpop.f32.mrb[0].mxu0
    %4292 = vdwg.mxu0
    %4293 = vmatprep.subr.mxu0 0.0
    %4294 = vmatpush1.msra.mxu0 %v4000
    %4295 = vmatprep.subr.mxu0 0.0
    %4296 = vmatpush1.msra.mxu0 %v4005
    %4297 = vmatprep.subr.mxu0 0.0
    %4298 = vmatpush1.msra.mxu0 0.0
    %4299 = vmatprep.subr.mxu0 0.0
    %4300 = vmatpush1.msra.mxu0 0.0
    %4301 = vmatprep.subr.mxu0 0.0
    %4302 = vmatpush1.msra.mxu0 0.0
    %4303 = vmatprep.subr.mxu0 0.0
    %4304 = vmatpush1.msra.mxu0 0.0
    %4305 = vmatprep.subr.mxu0 0.0
    %4306 = vmatpush1.msra.mxu0 0.0
    %4307 = vmatprep.subr.mxu0 0.0
    %4308 = vmatpush1.msra.mxu0 0.0
    %4309 = vmatprep.subr.mxu0 0.0
    %4310 = vmatpush1.msra.mxu0 0.0
    %4311 = vmatprep.subr.mxu0 0.0
    %4312 = vmatpush1.msra.mxu0 0.0
    %4313 = vmatprep.subr.mxu0 0.0
    %4314 = vmatpush1.msra.mxu0 0.0
    %4315 = vmatprep.subr.mxu0 0.0
    %4316 = vmatpush1.msra.mxu0 0.0
    %4317 = vmatprep.subr.mxu0 0.0
    %4318 = vmatpush1.msra.mxu0 0.0
    %4319 = vmatprep.subr.mxu0 0.0
    %4320 = vmatpush1.msra.mxu0 0.0
    %4321 = vmatprep.subr.mxu0 0.0
    %4322 = vmatpush1.msra.mxu0 0.0
    %4323 = vmatprep.subr.mxu0 0.0
    %4324 = vmatpush1.msra.mxu0 0.0
    %4325 = vmatprep.subr.mxu0 0.0
    %4326 = vmatpush1.msra.mxu0 0.0
    %4327 = vmatprep.subr.mxu0 0.0
    %4328 = vmatpush1.msra.mxu0 0.0
    %4329 = vmatprep.subr.mxu0 0.0
    %4330 = vmatpush1.msra.mxu0 0.0
    %4331 = vmatprep.subr.mxu0 0.0
    %4332 = vmatpush1.msra.mxu0 0.0
    %4333 = vmatprep.subr.mxu0 0.0
    %4334 = vmatpush1.msra.mxu0 0.0
    %4335 = vmatprep.subr.mxu0 0.0
    %4336 = vmatpush1.msra.mxu0 0.0
    %4337 = vmatprep.subr.mxu0 0.0
    %4338 = vmatpush1.msra.mxu0 0.0
    %4339 = vmatprep.subr.mxu0 0.0
    %4340 = vmatpush1.msra.mxu0 0.0
    %4341 = vmatprep.subr.mxu0 0.0
    %4342 = vmatpush1.msra.mxu0 0.0
    %4343 = vmatprep.subr.mxu0 0.0
    %4344 = vmatpush1.msra.mxu0 0.0
    %4345 = vmatprep.subr.mxu0 0.0
    %4346 = vmatpush1.msra.mxu0 0.0
    %4347 = vmatprep.subr.mxu0 0.0
    %4348 = vmatpush1.msra.mxu0 0.0
    %4349 = vmatprep.subr.mxu0 0.0
    %4350 = vmatpush1.msra.mxu0 0.0
    %4351 = vmatprep.subr.mxu0 0.0
    %4352 = vmatpush1.msra.mxu0 0.0
    %4353 = vmatprep.subr.mxu0 0.0
    %4354 = vmatpush1.msra.mxu0 0.0
    %4355 = vmatprep.subr.mxu0 0.0
    %4356 = vmatpush1.msra.mxu0 0.0
    %4357 = vmatprep.mubr.f32.mxu0 0.0
    %4358 = vmatmul.mubr.f32.gmra.mrb[0].mxu0 %v2093
    %v4359 = vpop.f32.mrb[0].mxu0
    %v4360 = vadd.f32 %v4280, %v4359
    %v4361 = vpop.f32.mrb[0].mxu0
    %4362 = vmatprep.mubr.f32.mxu0 0.0
    %4363 = vmatmul.mubr.f32.gmra.mrb[0].mxu0 %v2096
    %v4364 = vpop.f32.mrb[0].mxu0
    %v4365 = vadd.f32 %v4285, %v4364
    %v4366 = vpop.f32.mrb[0].mxu0
    %4367 = vmatprep.mubr.f32.mxu0 0.0
    %4368 = vmatmul.mubr.f32.gmra.mrb[0].mxu0 %v2099
    %v4369 = vpop.f32.mrb[0].mxu0
    %v4370 = vadd.f32 %v4290, %v4369
    %v4371 = vpop.f32.mrb[0].mxu0
    %4372 = vdwg.mxu0
    %v4373 = vadd.f32 %v4360, %v4197
    %v4374 = vadd.f32 %v4365, %v4202
    %v4375 = vadd.f32 %v4370, %v4207
    %vm4376 = vcmp.gt.f32.partialorder %v4373, 0.0
    %vm4377 = vcmp.gt.f32.partialorder %v4374, 0.0
    %vm4378 = vcmp.gt.f32.partialorder %v4375, 0.0
    %v4379 = vmul.f32 %v4373, 0.2
    %v4380 = vmul.f32 %v4374, 0.2
    %v4381 = vmul.f32 %v4375, 0.2
    %v4382 = vsel %vm4376, %v4373, %v4379
    %v4383 = vsel %vm4377, %v4374, %v4380
    %v4384 = vsel %vm4378, %v4375, %v4381
    %v4385 = vsel %vm1056, %v4382, -inf
    %v4386 = vsel %vm1056, %v4383, -inf
    %v4387 = vsel %vm1056, %v4384, -inf
    %v4388 = vmax.f32 %v4385, %v4386
    %v4389 = vmax.f32 %v4388, %v4387
    %v4390 = vrot.slane %v4389, 4
    %v4391 = vmax.f32 %v4389, %v4390
    %v4392 = vrot.slane %v4391, 2
    %v4393 = vmax.f32 %v4391, %v4392
    %v4394 = vrot.slane %v4393, 1
    %v4395 = vmax.f32 %v4393, %v4394
    %v4396 = vsub.f32 %v4382, %v4395
    %v4397 = vsub.f32 %v4383, %v4395
    %v4398 = vsub.f32 %v4384, %v4395
    %v4399 = vmul.f32 %v4396, 1.442695
    %v4400 = vpow.pop %v4399
    %v4401 = vmul.f32 %v4397, 1.442695
    %v4402 = vpow.pop %v4401
    %v4403 = vmul.f32 %v4398, 1.442695
    %v4404 = vpow.pop %v4403
    %v4406 = vsel %vm2307, %v1013, 0
    %v4409 = vsel %vm2307, %v1014, 0
    %4411 = vmatprep.subr.mxu0 0.0
    %4412 = vmatpush1.msra.mxu0 %v4400
    %4413 = vmatprep.subr.mxu0 0.0
    %4414 = vmatpush1.msra.mxu0 %v4402
    %4415 = vmatprep.subr.mxu0 0.0
    %4416 = vmatpush1.msra.mxu0 %v4404
    %4417 = vmatprep.subr.mxu0 0.0
    %4418 = vmatpush1.msra.mxu0 0.0
    %4419 = vmatprep.subr.mxu0 0.0
    %4420 = vmatpush1.msra.mxu0 0.0
    %4421 = vmatprep.subr.mxu0 0.0
    %4422 = vmatpush1.msra.mxu0 0.0
    %4423 = vmatprep.subr.mxu0 0.0
    %4424 = vmatpush1.msra.mxu0 0.0
    %4425 = vmatprep.subr.mxu0 0.0
    %4426 = vmatpush1.msra.mxu0 0.0
    %4427 = vmatprep.subr.mxu0 0.0
    %4428 = vmatpush1.msra.mxu0 0.0
    %4429 = vmatprep.subr.mxu0 0.0
    %4430 = vmatpush1.msra.mxu0 0.0
    %4431 = vmatprep.subr.mxu0 0.0
    %4432 = vmatpush1.msra.mxu0 0.0
    %4433 = vmatprep.subr.mxu0 0.0
    %4434 = vmatpush1.msra.mxu0 0.0
    %4435 = vmatprep.subr.mxu0 0.0
    %4436 = vmatpush1.msra.mxu0 0.0
    %4437 = vmatprep.subr.mxu0 0.0
    %4438 = vmatpush1.msra.mxu0 0.0
    %4439 = vmatprep.subr.mxu0 0.0
    %4440 = vmatpush1.msra.mxu0 0.0
    %4441 = vmatprep.subr.mxu0 0.0
    %4442 = vmatpush1.msra.mxu0 0.0
    %4443 = vmatprep.subr.mxu0 0.0
    %4444 = vmatpush1.msra.mxu0 0.0
    %4445 = vmatprep.subr.mxu0 0.0
    %4446 = vmatpush1.msra.mxu0 0.0
    %4447 = vmatprep.subr.mxu0 0.0
    %4448 = vmatpush1.msra.mxu0 0.0
    %4449 = vmatprep.subr.mxu0 0.0
    %4450 = vmatpush1.msra.mxu0 0.0
    %4451 = vmatprep.subr.mxu0 0.0
    %4452 = vmatpush1.msra.mxu0 0.0
    %4453 = vmatprep.subr.mxu0 0.0
    %4454 = vmatpush1.msra.mxu0 0.0
    %4455 = vmatprep.subr.mxu0 0.0
    %4456 = vmatpush1.msra.mxu0 0.0
    %4457 = vmatprep.subr.mxu0 0.0
    %4458 = vmatpush1.msra.mxu0 0.0
    %4459 = vmatprep.subr.mxu0 0.0
    %4460 = vmatpush1.msra.mxu0 0.0
    %4461 = vmatprep.subr.mxu0 0.0
    %4462 = vmatpush1.msra.mxu0 0.0
    %4463 = vmatprep.subr.mxu0 0.0
    %4464 = vmatpush1.msra.mxu0 0.0
    %4465 = vmatprep.subr.mxu0 0.0
    %4466 = vmatpush1.msra.mxu0 0.0
    %4467 = vmatprep.subr.mxu0 0.0
    %4468 = vmatpush1.msra.mxu0 0.0
    %4469 = vmatprep.subr.mxu0 0.0
    %4470 = vmatpush1.msra.mxu0 0.0
    %4471 = vmatprep.subr.mxu0 0.0
    %4472 = vmatpush1.msra.mxu0 0.0
    %4473 = vmatprep.subr.mxu0 0.0
    %4474 = vmatpush1.msra.mxu0 0.0
    %4475 = vmatprep.mubr.f32.mxu0 0.0
    %4476 = vmatmul.mubr.f32.gmra.mrb[0].mxu0 %v4406
    %v4477 = vpop.f32.mrb[0].mxu0
    %v4478 = vadd.f32 0.0, %v4477
    %v4479 = vpop.f32.mrb[0].mxu0
    %4480 = vmatprep.mubr.f32.mxu0 0.0
    %4481 = vmatmul.mubr.f32.gmra.mrb[0].mxu0 %v4409
    %v4482 = vpop.f32.mrb[0].mxu0
    %v4483 = vadd.f32 0.0, %v4482
    %v4484 = vpop.f32.mrb[0].mxu0
    %4485 = vdwg.mxu0
    %v4487 = vsel %vm2191, %v4483, 0
    %4489 = vmatprep.subr.mxu0 0.0
    %4490 = vmatpush1.msra.mxu0 %v4478
    %4491 = vmatprep.subr.mxu0 0.0
    %4492 = vmatpush1.msra.mxu0 %v4487
    %4493 = vmatprep.subr.mxu0 0.0
    %4494 = vmatpush1.msra.mxu0 0.0
    %4495 = vmatprep.subr.mxu0 0.0
    %4496 = vmatpush1.msra.mxu0 0.0
    %4497 = vmatprep.subr.mxu0 0.0
    %4498 = vmatpush1.msra.mxu0 0.0
    %4499 = vmatprep.subr.mxu0 0.0
    %4500 = vmatpush1.msra.mxu0 0.0
    %4501 = vmatprep.subr.mxu0 0.0
    %4502 = vmatpush1.msra.mxu0 0.0
    %4503 = vmatprep.subr.mxu0 0.0
    %4504 = vmatpush1.msra.mxu0 0.0
    %4505 = vmatprep.subr.mxu0 0.0
    %4506 = vmatpush1.msra.mxu0 0.0
    %4507 = vmatprep.subr.mxu0 0.0
    %4508 = vmatpush1.msra.mxu0 0.0
    %4509 = vmatprep.subr.mxu0 0.0
    %4510 = vmatpush1.msra.mxu0 0.0
    %4511 = vmatprep.subr.mxu0 0.0
    %4512 = vmatpush1.msra.mxu0 0.0
    %4513 = vmatprep.subr.mxu0 0.0
    %4514 = vmatpush1.msra.mxu0 0.0
    %4515 = vmatprep.subr.mxu0 0.0
    %4516 = vmatpush1.msra.mxu0 0.0
    %4517 = vmatprep.subr.mxu0 0.0
    %4518 = vmatpush1.msra.mxu0 0.0
    %4519 = vmatprep.subr.mxu0 0.0
    %4520 = vmatpush1.msra.mxu0 0.0
    %4521 = vmatprep.subr.mxu0 0.0
    %4522 = vmatpush1.msra.mxu0 0.0
    %4523 = vmatprep.subr.mxu0 0.0
    %4524 = vmatpush1.msra.mxu0 0.0
    %4525 = vmatprep.subr.mxu0 0.0
    %4526 = vmatpush1.msra.mxu0 0.0
    %4527 = vmatprep.subr.mxu0 0.0
    %4528 = vmatpush1.msra.mxu0 0.0
    %4529 = vmatprep.subr.mxu0 0.0
    %4530 = vmatpush1.msra.mxu0 0.0
    %4531 = vmatprep.subr.mxu0 0.0
    %4532 = vmatpush1.msra.mxu0 0.0
    %4533 = vmatprep.subr.mxu0 0.0
    %4534 = vmatpush1.msra.mxu0 0.0
    %4535 = vmatprep.subr.mxu0 0.0
    %4536 = vmatpush1.msra.mxu0 0.0
    %4537 = vmatprep.subr.mxu0 0.0
    %4538 = vmatpush1.msra.mxu0 0.0
    %4539 = vmatprep.subr.mxu0 0.0
    %4540 = vmatpush1.msra.mxu0 0.0
    %4541 = vmatprep.subr.mxu0 0.0
    %4542 = vmatpush1.msra.mxu0 0.0
    %4543 = vmatprep.subr.mxu0 0.0
    %4544 = vmatpush1.msra.mxu0 0.0
    %4545 = vmatprep.subr.mxu0 0.0
    %4546 = vmatpush1.msra.mxu0 0.0
    %4547 = vmatprep.subr.mxu0 0.0
    %4548 = vmatpush1.msra.mxu0 0.0
    %4549 = vmatprep.subr.mxu0 0.0
    %4550 = vmatpush1.msra.mxu0 0.0
    %4551 = vmatprep.subr.mxu0 0.0
    %4552 = vmatpush1.msra.mxu0 0.0
    %4553 = vmatprep.mubr.f32.mxu0 0.0
    %4554 = vmatmul.mubr.f32.gmra.mrb[0].mxu0 %v2183
    %v4555 = vpop.f32.mrb[0].mxu0
    %v4556 = vadd.f32 0.0, %v4555
    %v4557 = vpop.f32.mrb[0].mxu0
    %4558 = vmatprep.mubr.f32.mxu0 0.0
    %4559 = vmatmul.mubr.f32.gmra.mrb[0].mxu0 %v2186
    %v4560 = vpop.f32.mrb[0].mxu0
    %v4561 = vadd.f32 0.0, %v4560
    %v4562 = vpop.f32.mrb[0].mxu0
    %4563 = vmatprep.mubr.f32.mxu0 0.0
    %4564 = vmatmul.mubr.f32.gmra.mrb[0].mxu0 %v2189
    %v4565 = vpop.f32.mrb[0].mxu0
    %v4566 = vadd.f32 0.0, %v4565
    %v4567 = vpop.f32.mrb[0].mxu0
    %4568 = vdwg.mxu0
    %v4569 = vrcp.pop %v4556
    %v4570 = vmul.f32 %v4400, %v4569
    %v4571 = vrcp.pop %v4561
    %v4572 = vmul.f32 %v4402, %v4571
    %v4573 = vrcp.pop %v4566
    %v4574 = vmul.f32 %v4404, %v4573
    %4575 = vmatprep.subr.mxu0 %v3744
    %4576 = vmatpush1.msra.mxu0 %v3742
    %4577 = vmatprep.subr.mxu0 %v3750
    %4578 = vmatpush1.msra.mxu0 %v3748
    %4579 = vmatprep.subr.mxu0 0.0
    %4580 = vmatpush1.msra.mxu0 0.0
    %4581 = vmatprep.subr.mxu0 0.0
    %4582 = vmatpush1.msra.mxu0 0.0
    %4583 = vmatprep.subr.mxu0 0.0
    %4584 = vmatpush1.msra.mxu0 0.0
    %4585 = vmatprep.subr.mxu0 0.0
    %4586 = vmatpush1.msra.mxu0 0.0
    %4587 = vmatprep.subr.mxu0 0.0
    %4588 = vmatpush1.msra.mxu0 0.0
    %4589 = vmatprep.subr.mxu0 0.0
    %4590 = vmatpush1.msra.mxu0 0.0
    %4591 = vmatprep.subr.mxu0 0.0
    %4592 = vmatpush1.msra.mxu0 0.0
    %4593 = vmatprep.subr.mxu0 0.0
    %4594 = vmatpush1.msra.mxu0 0.0
    %4595 = vmatprep.subr.mxu0 0.0
    %4596 = vmatpush1.msra.mxu0 0.0
    %4597 = vmatprep.subr.mxu0 0.0
    %4598 = vmatpush1.msra.mxu0 0.0
    %4599 = vmatprep.subr.mxu0 0.0
    %4600 = vmatpush1.msra.mxu0 0.0
    %4601 = vmatprep.subr.mxu0 0.0
    %4602 = vmatpush1.msra.mxu0 0.0
    %4603 = vmatprep.subr.mxu0 0.0
    %4604 = vmatpush1.msra.mxu0 0.0
    %4605 = vmatprep.subr.mxu0 0.0
    %4606 = vmatpush1.msra.mxu0 0.0
    %4607 = vmatprep.subr.mxu0 0.0
    %4608 = vmatpush1.msra.mxu0 0.0
    %4609 = vmatprep.subr.mxu0 0.0
    %4610 = vmatpush1.msra.mxu0 0.0
    %4611 = vmatprep.subr.mxu0 0.0
    %4612 = vmatpush1.msra.mxu0 0.0
    %4613 = vmatprep.subr.mxu0 0.0
    %4614 = vmatpush1.msra.mxu0 0.0
    %4615 = vmatprep.subr.mxu0 0.0
    %4616 = vmatpush1.msra.mxu0 0.0
    %4617 = vmatprep.subr.mxu0 0.0
    %4618 = vmatpush1.msra.mxu0 0.0
    %4619 = vmatprep.subr.mxu0 0.0
    %4620 = vmatpush1.msra.mxu0 0.0
    %4621 = vmatprep.subr.mxu0 0.0
    %4622 = vmatpush1.msra.mxu0 0.0
    %4623 = vmatprep.subr.mxu0 0.0
    %4624 = vmatpush1.msra.mxu0 0.0
    %4625 = vmatprep.subr.mxu0 0.0
    %4626 = vmatpush1.msra.mxu0 0.0
    %4627 = vmatprep.subr.mxu0 0.0
    %4628 = vmatpush1.msra.mxu0 0.0
    %4629 = vmatprep.subr.mxu0 0.0
    %4630 = vmatpush1.msra.mxu0 0.0
    %4631 = vmatprep.subr.mxu0 0.0
    %4632 = vmatpush1.msra.mxu0 0.0
    %4633 = vmatprep.subr.mxu0 0.0
    %4634 = vmatpush1.msra.mxu0 0.0
    %4635 = vmatprep.subr.mxu0 0.0
    %4636 = vmatpush1.msra.mxu0 0.0
    %4637 = vmatprep.subr.mxu0 0.0
    %4638 = vmatpush1.msra.mxu0 0.0
    %4639 = vmatprep.mubr.f32.mxu0 0.0
    %4640 = vmatmul.mubr.f32.gmra.mrb[0].mxu0 %v2093
    %v4641 = vpop.f32.mrb[0].mxu0
    %v4642 = vadd.f32 0.0, %v4641
    %v4643 = vpop.f32.mrb[0].mxu0
    %v4644 = vadd.f32 0.0, %v4643
    %4645 = vmatprep.mubr.f32.mxu0 0.0
    %4646 = vmatmul.mubr.f32.gmra.mrb[0].mxu0 %v2096
    %v4647 = vpop.f32.mrb[0].mxu0
    %v4648 = vadd.f32 0.0, %v4647
    %v4649 = vpop.f32.mrb[0].mxu0
    %v4650 = vadd.f32 0.0, %v4649
    %4651 = vmatprep.mubr.f32.mxu0 0.0
    %4652 = vmatmul.mubr.f32.gmra.mrb[0].mxu0 %v2099
    %v4653 = vpop.f32.mrb[0].mxu0
    %v4654 = vadd.f32 0.0, %v4653
    %v4655 = vpop.f32.mrb[0].mxu0
    %v4656 = vadd.f32 0.0, %v4655
    %4657 = vdwg.mxu0
    %v4659 = vsel %vm1056, %v4570, 0
    %v4662 = vsel %vm1056, %v4572, 0
    %v4665 = vsel %vm1056, %v4574, 0
    %4667 = vmatprep.subr.mxu0 %v2577
    %4668 = vmatpush1.msra.mxu0 %v2574
    %4669 = vmatprep.subr.mxu0 0.0
    %4670 = vmatpush1.msra.mxu0 0.0
    %4671 = vmatprep.subr.mxu0 0.0
    %4672 = vmatpush1.msra.mxu0 0.0
    %4673 = vmatprep.subr.mxu0 0.0
    %4674 = vmatpush1.msra.mxu0 0.0
    %4675 = vmatprep.subr.mxu0 0.0
    %4676 = vmatpush1.msra.mxu0 0.0
    %4677 = vmatprep.subr.mxu0 0.0
    %4678 = vmatpush1.msra.mxu0 0.0
    %4679 = vmatprep.subr.mxu0 0.0
    %4680 = vmatpush1.msra.mxu0 0.0
    %4681 = vmatprep.subr.mxu0 0.0
    %4682 = vmatpush1.msra.mxu0 0.0
    %4683 = vmatprep.subr.mxu0 0.0
    %4684 = vmatpush1.msra.mxu0 0.0
    %4685 = vmatprep.subr.mxu0 0.0
    %4686 = vmatpush1.msra.mxu0 0.0
    %4687 = vmatprep.subr.mxu0 0.0
    %4688 = vmatpush1.msra.mxu0 0.0
    %4689 = vmatprep.subr.mxu0 0.0
    %4690 = vmatpush1.msra.mxu0 0.0
    %4691 = vmatprep.subr.mxu0 0.0
    %4692 = vmatpush1.msra.mxu0 0.0
    %4693 = vmatprep.subr.mxu0 0.0
    %4694 = vmatpush1.msra.mxu0 0.0
    %4695 = vmatprep.subr.mxu0 0.0
    %4696 = vmatpush1.msra.mxu0 0.0
    %4697 = vmatprep.subr.mxu0 0.0
    %4698 = vmatpush1.msra.mxu0 0.0
    %4699 = vmatprep.subr.mxu0 0.0
    %4700 = vmatpush1.msra.mxu0 0.0
    %4701 = vmatprep.subr.mxu0 0.0
    %4702 = vmatpush1.msra.mxu0 0.0
    %4703 = vmatprep.subr.mxu0 0.0
    %4704 = vmatpush1.msra.mxu0 0.0
    %4705 = vmatprep.subr.mxu0 0.0
    %4706 = vmatpush1.msra.mxu0 0.0
    %4707 = vmatprep.subr.mxu0 0.0
    %4708 = vmatpush1.msra.mxu0 0.0
    %4709 = vmatprep.subr.mxu0 0.0
    %4710 = vmatpush1.msra.mxu0 0.0
    %4711 = vmatprep.subr.mxu0 0.0
    %4712 = vmatpush1.msra.mxu0 0.0
    %4713 = vmatprep.subr.mxu0 0.0
    %4714 = vmatpush1.msra.mxu0 0.0
    %4715 = vmatprep.subr.mxu0 0.0
    %4716 = vmatpush1.msra.mxu0 0.0
    %4717 = vmatprep.subr.mxu0 0.0
    %4718 = vmatpush1.msra.mxu0 0.0
    %4719 = vmatprep.subr.mxu0 0.0
    %4720 = vmatpush1.msra.mxu0 0.0
    %4721 = vmatprep.subr.mxu0 0.0
    %4722 = vmatpush1.msra.mxu0 0.0
    %4723 = vmatprep.subr.mxu0 0.0
    %4724 = vmatpush1.msra.mxu0 0.0
    %4725 = vmatprep.subr.mxu0 0.0
    %4726 = vmatpush1.msra.mxu0 0.0
    %4727 = vmatprep.subr.mxu0 0.0
    %4728 = vmatpush1.msra.mxu0 0.0
    %4729 = vmatprep.subr.mxu0 0.0
    %4730 = vmatpush1.msra.mxu0 0.0
    %4731 = vmatprep.mubr.f32.mxu0 0.0
    %4732 = vmatmul.mubr.f32.gmra.mrb[0].mxu0 %v4659
    %v4733 = vpop.f32.mrb[0].mxu0
    %v4734 = vadd.f32 0.0, %v4733
    %v4735 = vpop.f32.mrb[0].mxu0
    %v4736 = vadd.f32 0.0, %v4735
    %4737 = vmatprep.mubr.f32.mxu0 0.0
    %4738 = vmatmul.mubr.f32.gmra.mrb[0].mxu0 %v4662
    %v4739 = vpop.f32.mrb[0].mxu0
    %v4740 = vadd.f32 0.0, %v4739
    %v4741 = vpop.f32.mrb[0].mxu0
    %v4742 = vadd.f32 0.0, %v4741
    %4743 = vmatprep.mubr.f32.mxu0 0.0
    %4744 = vmatmul.mubr.f32.gmra.mrb[0].mxu0 %v4665
    %v4745 = vpop.f32.mrb[0].mxu0
    %v4746 = vadd.f32 0.0, %v4745
    %v4747 = vpop.f32.mrb[0].mxu0
    %v4748 = vadd.f32 0.0, %v4747
    %4749 = vdwg.mxu0
    %v4750 = vmul.f32 %v4734, %v4642
    %v4751 = vmul.f32 %v4736, %v4644
    %v4752 = vmul.f32 %v4740, %v4648
    %v4753 = vmul.f32 %v4742, %v4650
    %v4754 = vmul.f32 %v4746, %v4654
    %v4755 = vmul.f32 %v4748, %v4656
    %v4757 = vlaneseq
    %v4758 = vshrl.u32 %v4757, 7
    %v4759 = vsub.s32 0, %v4758
    %v4760 = vrot.slane %v3668, %v4759
    %v4761 = vlaneseq
    %v4762 = vshrl.u32 %v4761, 7
    %v4763 = vsub.s32 1, %v4762
    %v4764 = vrot.slane %v3668, %v4763
    %4767 = vmatprep.subr.mxu0 %v4751
    %4768 = vmatpush1.msra.mxu0 %v4750
    %4769 = vmatprep.subr.mxu0 %v4753
    %4770 = vmatpush1.msra.mxu0 %v4752
    %4771 = vmatprep.subr.mxu0 %v4755
    %4772 = vmatpush1.msra.mxu0 %v4754
    %4773 = vmatprep.subr.mxu0 0.0
    %4774 = vmatpush1.msra.mxu0 0.0
    %4775 = vmatprep.subr.mxu0 0.0
    %4776 = vmatpush1.msra.mxu0 0.0
    %4777 = vmatprep.subr.mxu0 0.0
    %4778 = vmatpush1.msra.mxu0 0.0
    %4779 = vmatprep.subr.mxu0 0.0
    %4780 = vmatpush1.msra.mxu0 0.0
    %4781 = vmatprep.subr.mxu0 0.0
    %4782 = vmatpush1.msra.mxu0 0.0
    %4783 = vmatprep.subr.mxu0 0.0
    %4784 = vmatpush1.msra.mxu0 0.0
    %4785 = vmatprep.subr.mxu0 0.0
    %4786 = vmatpush1.msra.mxu0 0.0
    %4787 = vmatprep.subr.mxu0 0.0
    %4788 = vmatpush1.msra.mxu0 0.0
    %4789 = vmatprep.subr.mxu0 0.0
    %4790 = vmatpush1.msra.mxu0 0.0
    %4791 = vmatprep.subr.mxu0 0.0
    %4792 = vmatpush1.msra.mxu0 0.0
    %4793 = vmatprep.subr.mxu0 0.0
    %4794 = vmatpush1.msra.mxu0 0.0
    %4795 = vmatprep.subr.mxu0 0.0
    %4796 = vmatpush1.msra.mxu0 0.0
    %4797 = vmatprep.subr.mxu0 0.0
    %4798 = vmatpush1.msra.mxu0 0.0
    %4799 = vmatprep.subr.mxu0 0.0
    %4800 = vmatpush1.msra.mxu0 0.0
    %4801 = vmatprep.subr.mxu0 0.0
    %4802 = vmatpush1.msra.mxu0 0.0
    %4803 = vmatprep.subr.mxu0 0.0
    %4804 = vmatpush1.msra.mxu0 0.0
    %4805 = vmatprep.subr.mxu0 0.0
    %4806 = vmatpush1.msra.mxu0 0.0
    %4807 = vmatprep.subr.mxu0 0.0
    %4808 = vmatpush1.msra.mxu0 0.0
    %4809 = vmatprep.subr.mxu0 0.0
    %4810 = vmatpush1.msra.mxu0 0.0
    %4811 = vmatprep.subr.mxu0 0.0
    %4812 = vmatpush1.msra.mxu0 0.0
    %4813 = vmatprep.subr.mxu0 0.0
    %4814 = vmatpush1.msra.mxu0 0.0
    %4815 = vmatprep.subr.mxu0 0.0
    %4816 = vmatpush1.msra.mxu0 0.0
    %4817 = vmatprep.subr.mxu0 0.0
    %4818 = vmatpush1.msra.mxu0 0.0
    %4819 = vmatprep.subr.mxu0 0.0
    %4820 = vmatpush1.msra.mxu0 0.0
    %4821 = vmatprep.subr.mxu0 0.0
    %4822 = vmatpush1.msra.mxu0 0.0
    %4823 = vmatprep.subr.mxu0 0.0
    %4824 = vmatpush1.msra.mxu0 0.0
    %4825 = vmatprep.subr.mxu0 0.0
    %4826 = vmatpush1.msra.mxu0 0.0
    %4827 = vmatprep.subr.mxu0 0.0
    %4828 = vmatpush1.msra.mxu0 0.0
    %4829 = vmatprep.subr.mxu0 0.0
    %4830 = vmatpush1.msra.mxu0 0.0
    %4831 = vmatprep.mubr.f32.mxu0 0.0
    %4832 = vmatmul.mubr.f32.gmra.mrb[0].mxu0 %v4406
    %v4833 = vpop.f32.mrb[0].mxu0
    %v4834 = vadd.f32 %v4760, %v4833
    %v4835 = vpop.f32.mrb[0].mxu0
    %v4836 = vadd.f32 %v4764, %v4835
    %4837 = vmatprep.mubr.f32.mxu0 0.0
    %4838 = vmatmul.mubr.f32.gmra.mrb[0].mxu0 %v4409
    %v4839 = vpop.f32.mrb[0].mxu0
    %v4840 = vadd.f32 %v4760, %v4839
    %v4841 = vpop.f32.mrb[0].mxu0
    %v4842 = vadd.f32 %v4764, %v4841
    %4843 = vdwg.mxu0
    %v4844 = vld [vmem:[%s91] sm:$0xff]
    %v4845 = vld [vmem:[%s91 + $0x8] sm:$0xff]
    %v4846 = vld [vmem:[%s91 + $0x10] sm:$0xff]
    %v4847 = vld [vmem:[%s91 + $0x18] sm:$0xff]
    %v4848 = vld [vmem:[%s91 + $0x20] sm:$0xff]
    %v4849 = vld [vmem:[%s91 + $0x28] sm:$0xff]
    %v4850 = vld [vmem:[%s91 + $0x30] sm:$0xff]
    %v4851 = vld [vmem:[%s91 + $0x38] sm:$0xff]
    %v4852 = vld [vmem:[%s91 + $0x40] sm:$0xff]
    %v4853 = vld [vmem:[%s91 + $0x48] sm:$0xff]
    %v4854 = vld [vmem:[%s91 + $0x50] sm:$0xff]
    %v4855 = vld [vmem:[%s91 + $0x58] sm:$0xff]
    %v4856 = vld [vmem:[%s91 + $0x60] sm:$0xff]
    %v4857 = vld [vmem:[%s91 + $0x68] sm:$0xff]
    %v4858 = vld [vmem:[%s91 + $0x70] sm:$0xff]
    %v4859 = vld [vmem:[%s91 + $0x78] sm:$0xff]
    %v4860 = vld [vmem:[%s91 + $0x80] sm:$0xff]
    %v4861 = vld [vmem:[%s91 + $0x88] sm:$0xff]
    %v4862 = vld [vmem:[%s91 + $0x90] sm:$0xff]
    %v4863 = vld [vmem:[%s91 + $0x98] sm:$0xff]
    %v4864 = vld [vmem:[%s91 + $0xa0] sm:$0xff]
    %v4865 = vld [vmem:[%s91 + $0xa8] sm:$0xff]
    %v4866 = vld [vmem:[%s91 + $0xb0] sm:$0xff]
    %v4867 = vld [vmem:[%s91 + $0xb8] sm:$0xff]
    %v4868 = vld [vmem:[#allocation31] sm:$0x1]
    %v4869 = vld [vmem:[%s95] sm:$0xff]
    %v4870 = vld [vmem:[%s95 + $0x8] sm:$0xff]
    %v4871 = vld [vmem:[%s95 + $0x10] sm:$0xff]
    %v4872 = vld [vmem:[%s95 + $0x18] sm:$0xff]
    %v4873 = vld [vmem:[#allocation33] sm:$0x1]
    %v4875 = vlaneseq
    %v4876 = vshrl.u32 %v4875, 7
    %v4877 = vsub.s32 0, %v4876
    %v4878 = vrot.slane %v4868, %v4877
    %v4881 = vsel %vm1807, %v4836, 0
    %v4884 = vsel %vm1807, %v4842, 0
    %4886 = vmatprep.subr.mxu0 0.0
    %4887 = vmatpush1.msra.mxu0 %v4844
    %4888 = vmatprep.subr.mxu0 0.0
    %4889 = vmatpush1.msra.mxu0 %v4845
    %4890 = vmatprep.subr.mxu0 0.0
    %4891 = vmatpush1.msra.mxu0 %v4846
    %4892 = vmatprep.subr.mxu0 0.0
    %4893 = vmatpush1.msra.mxu0 %v4847
    %4894 = vmatprep.subr.mxu0 0.0
    %4895 = vmatpush1.msra.mxu0 %v4848
    %4896 = vmatprep.subr.mxu0 0.0
    %4897 = vmatpush1.msra.mxu0 %v4849
    %4898 = vmatprep.subr.mxu0 0.0
    %4899 = vmatpush1.msra.mxu0 %v4850
    %4900 = vmatprep.subr.mxu0 0.0
    %4901 = vmatpush1.msra.mxu0 %v4851
    %4902 = vmatprep.subr.mxu0 0.0
    %4903 = vmatpush1.msra.mxu0 %v4852
    %4904 = vmatprep.subr.mxu0 0.0
    %4905 = vmatpush1.msra.mxu0 %v4853
    %4906 = vmatprep.subr.mxu0 0.0
    %4907 = vmatpush1.msra.mxu0 %v4854
    %4908 = vmatprep.subr.mxu0 0.0
    %4909 = vmatpush1.msra.mxu0 %v4855
    %4910 = vmatprep.subr.mxu0 0.0
    %4911 = vmatpush1.msra.mxu0 %v4856
    %4912 = vmatprep.subr.mxu0 0.0
    %4913 = vmatpush1.msra.mxu0 %v4857
    %4914 = vmatprep.subr.mxu0 0.0
    %4915 = vmatpush1.msra.mxu0 %v4858
    %4916 = vmatprep.subr.mxu0 0.0
    %4917 = vmatpush1.msra.mxu0 %v4859
    %4918 = vmatprep.subr.mxu0 0.0
    %4919 = vmatpush1.msra.mxu0 %v4860
    %4920 = vmatprep.subr.mxu0 0.0
    %4921 = vmatpush1.msra.mxu0 %v4861
    %4922 = vmatprep.subr.mxu0 0.0
    %4923 = vmatpush1.msra.mxu0 %v4862
    %4924 = vmatprep.subr.mxu0 0.0
    %4925 = vmatpush1.msra.mxu0 %v4863
    %4926 = vmatprep.subr.mxu0 0.0
    %4927 = vmatpush1.msra.mxu0 %v4864
    %4928 = vmatprep.subr.mxu0 0.0
    %4929 = vmatpush1.msra.mxu0 %v4865
    %4930 = vmatprep.subr.mxu0 0.0
    %4931 = vmatpush1.msra.mxu0 %v4866
    %4932 = vmatprep.subr.mxu0 0.0
    %4933 = vmatpush1.msra.mxu0 %v4867
    %4934 = vmatprep.subr.mxu0 0.0
    %4935 = vmatpush1.msra.mxu0 0.0
    %4936 = vmatprep.subr.mxu0 0.0
    %4937 = vmatpush1.msra.mxu0 0.0
    %4938 = vmatprep.subr.mxu0 0.0
    %4939 = vmatpush1.msra.mxu0 0.0
    %4940 = vmatprep.subr.mxu0 0.0
    %4941 = vmatpush1.msra.mxu0 0.0
    %4942 = vmatprep.subr.mxu0 0.0
    %4943 = vmatpush1.msra.mxu0 0.0
    %4944 = vmatprep.subr.mxu0 0.0
    %4945 = vmatpush1.msra.mxu0 0.0
    %4946 = vmatprep.subr.mxu0 0.0
    %4947 = vmatpush1.msra.mxu0 0.0
    %4948 = vmatprep.subr.mxu0 0.0
    %4949 = vmatpush1.msra.mxu0 0.0
    %4950 = vmatprep.mubr.f32.mxu0 %v4881
    %4951 = vmatmul.mubr.f32.gmra.mrb[0].mxu0 %v4834
    %v4952 = vpop.f32.mrb[0].mxu0
    %v4953 = vadd.f32 %v4878, %v4952
    %v4954 = vpop.f32.mrb[0].mxu0
    %4955 = vmatprep.mubr.f32.mxu0 %v4884
    %4956 = vmatmul.mubr.f32.gmra.mrb[0].mxu0 %v4840
    %v4957 = vpop.f32.mrb[0].mxu0
    %v4958 = vadd.f32 %v4878, %v4957
    %v4959 = vpop.f32.mrb[0].mxu0
    %4960 = vdwg.mxu0
    %v4961 = vsel %vm1142, %v4953, 0.0
    %v4962 = vsel %vm1361, %v4958, 0.0
    %v4963 = vadd.f32 %v4961, %v4962
    %v4964 = vrot.slane %v4963, 4
    %v4965 = vadd.f32 %v4963, %v4964
    %v4966 = vrot.slane %v4965, 2
    %v4967 = vadd.f32 %v4965, %v4966
    %v4968 = vrot.slane %v4967, 1
    %v4969 = vadd.f32 %v4967, %v4968
    %v4970 = vmul.f32 %v4969, %v1370
    %v4971 = vsub.f32 %v4953, %v4970
    %v4972 = vsub.f32 %v4958, %v4970
    %v4973 = vmul.f32 %v4971, %v4971
    %v4974 = vmul.f32 %v4972, %v4972
    %v4975 = vsel %vm1142, %v4973, 0.0
    %v4976 = vsel %vm1361, %v4974, 0.0
    %v4977 = vadd.f32 %v4975, %v4976
    %v4978 = vrot.slane %v4977, 4
    %v4979 = vadd.f32 %v4977, %v4978
    %v4980 = vrot.slane %v4979, 2
    %v4981 = vadd.f32 %v4979, %v4980
    %v4982 = vrot.slane %v4981, 1
    %v4983 = vadd.f32 %v4981, %v4982
    %v4984 = vmul.f32 %v4983, %v1370
    %v4985 = vadd.f32 %v4984, 1e-05
    %v4986 = vrsqrt.pop %v4985
    %v4987 = vmul.f32 %v4971, %v4986
    %v4988 = vmul.f32 %v4972, %v4986
    %v4990 = vlaneseq
    %v4991 = vshrl.u32 %v4990, 7
    %v4992 = vsub.s32 0, %v4991
    %v4993 = vrot.slane %v4873, %v4992
    %v4996 = vsel %vm1142, %v4987, 0
    %v4999 = vsel %vm1142, %v4988, 0
    %5001 = vmatprep.subr.mxu0 0.0
    %5002 = vmatpush1.msra.mxu0 %v4869
    %5003 = vmatprep.subr.mxu0 0.0
    %5004 = vmatpush1.msra.mxu0 %v4870
    %5005 = vmatprep.subr.mxu0 0.0
    %5006 = vmatpush1.msra.mxu0 %v4871
    %5007 = vmatprep.subr.mxu0 0.0
    %5008 = vmatpush1.msra.mxu0 %v4872
    %5009 = vmatprep.subr.mxu0 0.0
    %5010 = vmatpush1.msra.mxu0 0.0
    %5011 = vmatprep.subr.mxu0 0.0
    %5012 = vmatpush1.msra.mxu0 0.0
    %5013 = vmatprep.subr.mxu0 0.0
    %5014 = vmatpush1.msra.mxu0 0.0
    %5015 = vmatprep.subr.mxu0 0.0
    %5016 = vmatpush1.msra.mxu0 0.0
    %5017 = vmatprep.subr.mxu0 0.0
    %5018 = vmatpush1.msra.mxu0 0.0
    %5019 = vmatprep.subr.mxu0 0.0
    %5020 = vmatpush1.msra.mxu0 0.0
    %5021 = vmatprep.subr.mxu0 0.0
    %5022 = vmatpush1.msra.mxu0 0.0
    %5023 = vmatprep.subr.mxu0 0.0
    %5024 = vmatpush1.msra.mxu0 0.0
    %5025 = vmatprep.subr.mxu0 0.0
    %5026 = vmatpush1.msra.mxu0 0.0
    %5027 = vmatprep.subr.mxu0 0.0
    %5028 = vmatpush1.msra.mxu0 0.0
    %5029 = vmatprep.subr.mxu0 0.0
    %5030 = vmatpush1.msra.mxu0 0.0
    %5031 = vmatprep.subr.mxu0 0.0
    %5032 = vmatpush1.msra.mxu0 0.0
    %5033 = vmatprep.subr.mxu0 0.0
    %5034 = vmatpush1.msra.mxu0 0.0
    %5035 = vmatprep.subr.mxu0 0.0
    %5036 = vmatpush1.msra.mxu0 0.0
    %5037 = vmatprep.subr.mxu0 0.0
    %5038 = vmatpush1.msra.mxu0 0.0
    %5039 = vmatprep.subr.mxu0 0.0
    %5040 = vmatpush1.msra.mxu0 0.0
    %5041 = vmatprep.subr.mxu0 0.0
    %5042 = vmatpush1.msra.mxu0 0.0
    %5043 = vmatprep.subr.mxu0 0.0
    %5044 = vmatpush1.msra.mxu0 0.0
    %5045 = vmatprep.subr.mxu0 0.0
    %5046 = vmatpush1.msra.mxu0 0.0
    %5047 = vmatprep.subr.mxu0 0.0
    %5048 = vmatpush1.msra.mxu0 0.0
    %5049 = vmatprep.subr.mxu0 0.0
    %5050 = vmatpush1.msra.mxu0 0.0
    %5051 = vmatprep.subr.mxu0 0.0
    %5052 = vmatpush1.msra.mxu0 0.0
    %5053 = vmatprep.subr.mxu0 0.0
    %5054 = vmatpush1.msra.mxu0 0.0
    %5055 = vmatprep.subr.mxu0 0.0
    %5056 = vmatpush1.msra.mxu0 0.0
    %5057 = vmatprep.subr.mxu0 0.0
    %5058 = vmatpush1.msra.mxu0 0.0
    %5059 = vmatprep.subr.mxu0 0.0
    %5060 = vmatpush1.msra.mxu0 0.0
    %5061 = vmatprep.subr.mxu0 0.0
    %5062 = vmatpush1.msra.mxu0 0.0
    %5063 = vmatprep.subr.mxu0 0.0
    %5064 = vmatpush1.msra.mxu0 0.0
    %5065 = vmatprep.mubr.f32.mxu0 0.0
    %5066 = vmatmul.mubr.f32.gmra.mrb[0].mxu0 %v4996
    %v5067 = vpop.f32.mrb[0].mxu0
    %v5068 = vadd.f32 %v4993, %v5067
    %v5069 = vpop.f32.mrb[0].mxu0
    %5070 = vmatprep.mubr.f32.mxu0 0.0
    %5071 = vmatmul.mubr.f32.gmra.mrb[0].mxu0 %v4999
    %v5072 = vpop.f32.mrb[0].mxu0
    %v5073 = vadd.f32 %v4993, %v5072
    %v5074 = vpop.f32.mrb[0].mxu0
    %5075 = vdwg.mxu0
    %v5076 = vmax.f32 %v5068, 0.0
    %v5077 = vmax.f32 %v5073, 0.0
    %v5078 = vld [vmem:[%s99] sm:$0xff]
    %v5079 = vld [vmem:[%s99 + $0x8] sm:$0xff]
    %v5080 = vld [vmem:[%s99 + $0x10] sm:$0xff]
    %v5081 = vld [vmem:[%s99 + $0x18] sm:$0xff]
    %v5082 = vld [vmem:[%s99 + $0x20] sm:$0xff]
    %v5083 = vld [vmem:[%s99 + $0x28] sm:$0xff]
    %v5084 = vld [vmem:[%s99 + $0x30] sm:$0xff]
    %v5085 = vld [vmem:[%s99 + $0x38] sm:$0xff]
    %v5086 = vld [vmem:[#allocation34] sm:$0x1]
    %v5088 = vsel %vm1142, %v5076, 0
    %v5091 = vsel %vm1142, %v5077, 0
    %5093 = vmatprep.subr.mxu0 0.0
    %5094 = vmatpush1.msra.mxu0 %v5082
    %5095 = vmatprep.subr.mxu0 0.0
    %5096 = vmatpush1.msra.mxu0 %v5083
    %5097 = vmatprep.subr.mxu0 0.0
    %5098 = vmatpush1.msra.mxu0 %v5084
    %5099 = vmatprep.subr.mxu0 0.0
    %5100 = vmatpush1.msra.mxu0 %v5085
    %5101 = vmatprep.subr.mxu0 0.0
    %5102 = vmatpush1.msra.mxu0 0.0
    %5103 = vmatprep.subr.mxu0 0.0
    %5104 = vmatpush1.msra.mxu0 0.0
    %5105 = vmatprep.subr.mxu0 0.0
    %5106 = vmatpush1.msra.mxu0 0.0
    %5107 = vmatprep.subr.mxu0 0.0
    %5108 = vmatpush1.msra.mxu0 0.0
    %5109 = vmatprep.subr.mxu0 0.0
    %5110 = vmatpush1.msra.mxu0 0.0
    %5111 = vmatprep.subr.mxu0 0.0
    %5112 = vmatpush1.msra.mxu0 0.0
    %5113 = vmatprep.subr.mxu0 0.0
    %5114 = vmatpush1.msra.mxu0 0.0
    %5115 = vmatprep.subr.mxu0 0.0
    %5116 = vmatpush1.msra.mxu0 0.0
    %5117 = vmatprep.subr.mxu0 0.0
    %5118 = vmatpush1.msra.mxu0 0.0
    %5119 = vmatprep.subr.mxu0 0.0
    %5120 = vmatpush1.msra.mxu0 0.0
    %5121 = vmatprep.subr.mxu0 0.0
    %5122 = vmatpush1.msra.mxu0 0.0
    %5123 = vmatprep.subr.mxu0 0.0
    %5124 = vmatpush1.msra.mxu0 0.0
    %5125 = vmatprep.subr.mxu0 0.0
    %5126 = vmatpush1.msra.mxu0 0.0
    %5127 = vmatprep.subr.mxu0 0.0
    %5128 = vmatpush1.msra.mxu0 0.0
    %5129 = vmatprep.subr.mxu0 0.0
    %5130 = vmatpush1.msra.mxu0 0.0
    %5131 = vmatprep.subr.mxu0 0.0
    %5132 = vmatpush1.msra.mxu0 0.0
    %5133 = vmatprep.subr.mxu0 0.0
    %5134 = vmatpush1.msra.mxu0 0.0
    %5135 = vmatprep.subr.mxu0 0.0
    %5136 = vmatpush1.msra.mxu0 0.0
    %5137 = vmatprep.subr.mxu0 0.0
    %5138 = vmatpush1.msra.mxu0 0.0
    %5139 = vmatprep.subr.mxu0 0.0
    %5140 = vmatpush1.msra.mxu0 0.0
    %5141 = vmatprep.subr.mxu0 0.0
    %5142 = vmatpush1.msra.mxu0 0.0
    %5143 = vmatprep.subr.mxu0 0.0
    %5144 = vmatpush1.msra.mxu0 0.0
    %5145 = vmatprep.subr.mxu0 0.0
    %5146 = vmatpush1.msra.mxu0 0.0
    %5147 = vmatprep.subr.mxu0 0.0
    %5148 = vmatpush1.msra.mxu0 0.0
    %5149 = vmatprep.subr.mxu0 0.0
    %5150 = vmatpush1.msra.mxu0 0.0
    %5151 = vmatprep.subr.mxu0 0.0
    %5152 = vmatpush1.msra.mxu0 0.0
    %5153 = vmatprep.subr.mxu0 0.0
    %5154 = vmatpush1.msra.mxu0 0.0
    %5155 = vmatprep.subr.mxu0 0.0
    %5156 = vmatpush1.msra.mxu0 0.0
    %5157 = vmatprep.mubr.f32.mxu0 0.0
    %5158 = vmatmul.mubr.f32.gmra.mrb[0].mxu0 %v5088
    %v5159 = vpop.f32.mrb[0].mxu0
    %v5160 = vadd.f32 0.0, %v5159
    %v5161 = vpop.f32.mrb[0].mxu0
    %5162 = vmatprep.mubr.f32.mxu0 0.0
    %5163 = vmatmul.mubr.f32.gmra.mrb[0].mxu0 %v5091
    %v5164 = vpop.f32.mrb[0].mxu0
    %v5165 = vadd.f32 0.0, %v5164
    %v5166 = vpop.f32.mrb[0].mxu0
    %5167 = vdwg.mxu0
    %5168 = vmatprep.subr.mxu0 0.0
    %5169 = vmatpush1.msra.mxu0 %v5078
    %5170 = vmatprep.subr.mxu0 0.0
    %5171 = vmatpush1.msra.mxu0 %v5079
    %5172 = vmatprep.subr.mxu0 0.0
    %5173 = vmatpush1.msra.mxu0 %v5080
    %5174 = vmatprep.subr.mxu0 0.0
    %5175 = vmatpush1.msra.mxu0 %v5081
    %5176 = vmatprep.subr.mxu0 0.0
    %5177 = vmatpush1.msra.mxu0 0.0
    %5178 = vmatprep.subr.mxu0 0.0
    %5179 = vmatpush1.msra.mxu0 0.0
    %5180 = vmatprep.subr.mxu0 0.0
    %5181 = vmatpush1.msra.mxu0 0.0
    %5182 = vmatprep.subr.mxu0 0.0
    %5183 = vmatpush1.msra.mxu0 0.0
    %5184 = vmatprep.subr.mxu0 0.0
    %5185 = vmatpush1.msra.mxu0 0.0
    %5186 = vmatprep.subr.mxu0 0.0
    %5187 = vmatpush1.msra.mxu0 0.0
    %5188 = vmatprep.subr.mxu0 0.0
    %5189 = vmatpush1.msra.mxu0 0.0
    %5190 = vmatprep.subr.mxu0 0.0
    %5191 = vmatpush1.msra.mxu0 0.0
    %5192 = vmatprep.subr.mxu0 0.0
    %5193 = vmatpush1.msra.mxu0 0.0
    %5194 = vmatprep.subr.mxu0 0.0
    %5195 = vmatpush1.msra.mxu0 0.0
    %5196 = vmatprep.subr.mxu0 0.0
    %5197 = vmatpush1.msra.mxu0 0.0
    %5198 = vmatprep.subr.mxu0 0.0
    %5199 = vmatpush1.msra.mxu0 0.0
    %5200 = vmatprep.subr.mxu0 0.0
    %5201 = vmatpush1.msra.mxu0 0.0
    %5202 = vmatprep.subr.mxu0 0.0
    %5203 = vmatpush1.msra.mxu0 0.0
    %5204 = vmatprep.subr.mxu0 0.0
    %5205 = vmatpush1.msra.mxu0 0.0
    %5206 = vmatprep.subr.mxu0 0.0
    %5207 = vmatpush1.msra.mxu0 0.0
    %5208 = vmatprep.subr.mxu0 0.0
    %5209 = vmatpush1.msra.mxu0 0.0
    %5210 = vmatprep.subr.mxu0 0.0
    %5211 = vmatpush1.msra.mxu0 0.0
    %5212 = vmatprep.subr.mxu0 0.0
    %5213 = vmatpush1.msra.mxu0 0.0
    %5214 = vmatprep.subr.mxu0 0.0
    %5215 = vmatpush1.msra.mxu0 0.0
    %5216 = vmatprep.subr.mxu0 0.0
    %5217 = vmatpush1.msra.mxu0 0.0
    %5218 = vmatprep.subr.mxu0 0.0
    %5219 = vmatpush1.msra.mxu0 0.0
    %5220 = vmatprep.subr.mxu0 0.0
    %5221 = vmatpush1.msra.mxu0 0.0
    %5222 = vmatprep.subr.mxu0 0.0
    %5223 = vmatpush1.msra.mxu0 0.0
    %5224 = vmatprep.subr.mxu0 0.0
    %5225 = vmatpush1.msra.mxu0 0.0
    %5226 = vmatprep.subr.mxu0 0.0
    %5227 = vmatpush1.msra.mxu0 0.0
    %5228 = vmatprep.subr.mxu0 0.0
    %5229 = vmatpush1.msra.mxu0 0.0
    %5230 = vmatprep.subr.mxu0 0.0
    %5231 = vmatpush1.msra.mxu0 0.0
    %5232 = vmatprep.mubr.f32.mxu0 0.0
    %5233 = vmatmul.mubr.f32.gmra.mrb[0].mxu0 %v1535
    %v5234 = vpop.f32.mrb[0].mxu0
    %v5235 = vadd.f32 %v5160, %v5234
    %v5236 = vpop.f32.mrb[0].mxu0
    %5237 = vmatprep.mubr.f32.mxu0 0.0
    %5238 = vmatmul.mubr.f32.gmra.mrb[0].mxu0 %v1538
    %v5239 = vpop.f32.mrb[0].mxu0
    %v5240 = vadd.f32 %v5165, %v5239
    %v5241 = vpop.f32.mrb[0].mxu0
    %5242 = vdwg.mxu0
    %v5244 = vlaneseq
    %v5245 = vshrl.u32 %v5244, 7
    %v5246 = vsub.s32 0, %v5245
    %v5247 = vrot.slane %v5086, %v5246
    %v5249 = vadd.f32 %v5235, %v5247
    %v5250 = vadd.f32 %v5240, %v5247
    %5251 = vmatprep.subr.mxu0 0.0
    %5252 = vmatpush1.msra.mxu0 %v3647
    %5253 = vmatprep.subr.mxu0 0.0
    %5254 = vmatpush1.msra.mxu0 %v3648
    %5255 = vmatprep.subr.mxu0 0.0
    %5256 = vmatpush1.msra.mxu0 0.0
    %5257 = vmatprep.subr.mxu0 0.0
    %5258 = vmatpush1.msra.mxu0 0.0
    %5259 = vmatprep.subr.mxu0 0.0
    %5260 = vmatpush1.msra.mxu0 0.0
    %5261 = vmatprep.subr.mxu0 0.0
    %5262 = vmatpush1.msra.mxu0 0.0
    %5263 = vmatprep.subr.mxu0 0.0
    %5264 = vmatpush1.msra.mxu0 0.0
    %5265 = vmatprep.subr.mxu0 0.0
    %5266 = vmatpush1.msra.mxu0 0.0
    %5267 = vmatprep.subr.mxu0 0.0
    %5268 = vmatpush1.msra.mxu0 0.0
    %5269 = vmatprep.subr.mxu0 0.0
    %5270 = vmatpush1.msra.mxu0 0.0
    %5271 = vmatprep.subr.mxu0 0.0
    %5272 = vmatpush1.msra.mxu0 0.0
    %5273 = vmatprep.subr.mxu0 0.0
    %5274 = vmatpush1.msra.mxu0 0.0
    %5275 = vmatprep.subr.mxu0 0.0
    %5276 = vmatpush1.msra.mxu0 0.0
    %5277 = vmatprep.subr.mxu0 0.0
    %5278 = vmatpush1.msra.mxu0 0.0
    %5279 = vmatprep.subr.mxu0 0.0
    %5280 = vmatpush1.msra.mxu0 0.0
    %5281 = vmatprep.subr.mxu0 0.0
    %5282 = vmatpush1.msra.mxu0 0.0
    %5283 = vmatprep.subr.mxu0 0.0
    %5284 = vmatpush1.msra.mxu0 0.0
    %5285 = vmatprep.subr.mxu0 0.0
    %5286 = vmatpush1.msra.mxu0 0.0
    %5287 = vmatprep.subr.mxu0 0.0
    %5288 = vmatpush1.msra.mxu0 0.0
    %5289 = vmatprep.subr.mxu0 0.0
    %5290 = vmatpush1.msra.mxu0 0.0
    %5291 = vmatprep.subr.mxu0 0.0
    %5292 = vmatpush1.msra.mxu0 0.0
    %5293 = vmatprep.subr.mxu0 0.0
    %5294 = vmatpush1.msra.mxu0 0.0
    %5295 = vmatprep.subr.mxu0 0.0
    %5296 = vmatpush1.msra.mxu0 0.0
    %5297 = vmatprep.subr.mxu0 0.0
    %5298 = vmatpush1.msra.mxu0 0.0
    %5299 = vmatprep.subr.mxu0 0.0
    %5300 = vmatpush1.msra.mxu0 0.0
    %5301 = vmatprep.subr.mxu0 0.0
    %5302 = vmatpush1.msra.mxu0 0.0
    %5303 = vmatprep.subr.mxu0 0.0
    %5304 = vmatpush1.msra.mxu0 0.0
    %5305 = vmatprep.subr.mxu0 0.0
    %5306 = vmatpush1.msra.mxu0 0.0
    %5307 = vmatprep.subr.mxu0 0.0
    %5308 = vmatpush1.msra.mxu0 0.0
    %5309 = vmatprep.subr.mxu0 0.0
    %5310 = vmatpush1.msra.mxu0 0.0
    %5311 = vmatprep.subr.mxu0 0.0
    %5312 = vmatpush1.msra.mxu0 0.0
    %5313 = vmatprep.subr.mxu0 0.0
    %5314 = vmatpush1.msra.mxu0 0.0
    %5315 = vmatprep.mubr.f32.mxu0 0.0
    %5316 = vmatmul.mubr.f32.gmra.mrb[0].mxu0 %v2093
    %v5317 = vpop.f32.mrb[0].mxu0
    %v5318 = vadd.f32 0.0, %v5317
    %v5319 = vpop.f32.mrb[0].mxu0
    %5320 = vmatprep.mubr.f32.mxu0 0.0
    %5321 = vmatmul.mubr.f32.gmra.mrb[0].mxu0 %v2096
    %v5322 = vpop.f32.mrb[0].mxu0
    %v5323 = vadd.f32 0.0, %v5322
    %v5324 = vpop.f32.mrb[0].mxu0
    %5325 = vmatprep.mubr.f32.mxu0 0.0
    %5326 = vmatmul.mubr.f32.gmra.mrb[0].mxu0 %v2099
    %v5327 = vpop.f32.mrb[0].mxu0
    %v5328 = vadd.f32 0.0, %v5327
    %v5329 = vpop.f32.mrb[0].mxu0
    %5330 = vdwg.mxu0
    %v5332 = vsel %vm2191, %v5250, 0
    %5334 = vmatprep.subr.mxu0 0.0
    %5335 = vmatpush1.msra.mxu0 %v5249
    %5336 = vmatprep.subr.mxu0 0.0
    %5337 = vmatpush1.msra.mxu0 %v5332
    %5338 = vmatprep.subr.mxu0 0.0
    %5339 = vmatpush1.msra.mxu0 0.0
    %5340 = vmatprep.subr.mxu0 0.0
    %5341 = vmatpush1.msra.mxu0 0.0
    %5342 = vmatprep.subr.mxu0 0.0
    %5343 = vmatpush1.msra.mxu0 0.0
    %5344 = vmatprep.subr.mxu0 0.0
    %5345 = vmatpush1.msra.mxu0 0.0
    %5346 = vmatprep.subr.mxu0 0.0
    %5347 = vmatpush1.msra.mxu0 0.0
    %5348 = vmatprep.subr.mxu0 0.0
    %5349 = vmatpush1.msra.mxu0 0.0
    %5350 = vmatprep.subr.mxu0 0.0
    %5351 = vmatpush1.msra.mxu0 0.0
    %5352 = vmatprep.subr.mxu0 0.0
    %5353 = vmatpush1.msra.mxu0 0.0
    %5354 = vmatprep.subr.mxu0 0.0
    %5355 = vmatpush1.msra.mxu0 0.0
    %5356 = vmatprep.subr.mxu0 0.0
    %5357 = vmatpush1.msra.mxu0 0.0
    %5358 = vmatprep.subr.mxu0 0.0
    %5359 = vmatpush1.msra.mxu0 0.0
    %5360 = vmatprep.subr.mxu0 0.0
    %5361 = vmatpush1.msra.mxu0 0.0
    %5362 = vmatprep.subr.mxu0 0.0
    %5363 = vmatpush1.msra.mxu0 0.0
    %5364 = vmatprep.subr.mxu0 0.0
    %5365 = vmatpush1.msra.mxu0 0.0
    %5366 = vmatprep.subr.mxu0 0.0
    %5367 = vmatpush1.msra.mxu0 0.0
    %5368 = vmatprep.subr.mxu0 0.0
    %5369 = vmatpush1.msra.mxu0 0.0
    %5370 = vmatprep.subr.mxu0 0.0
    %5371 = vmatpush1.msra.mxu0 0.0
    %5372 = vmatprep.subr.mxu0 0.0
    %5373 = vmatpush1.msra.mxu0 0.0
    %5374 = vmatprep.subr.mxu0 0.0
    %5375 = vmatpush1.msra.mxu0 0.0
    %5376 = vmatprep.subr.mxu0 0.0
    %5377 = vmatpush1.msra.mxu0 0.0
    %5378 = vmatprep.subr.mxu0 0.0
    %5379 = vmatpush1.msra.mxu0 0.0
    %5380 = vmatprep.subr.mxu0 0.0
    %5381 = vmatpush1.msra.mxu0 0.0
    %5382 = vmatprep.subr.mxu0 0.0
    %5383 = vmatpush1.msra.mxu0 0.0
    %5384 = vmatprep.subr.mxu0 0.0
    %5385 = vmatpush1.msra.mxu0 0.0
    %5386 = vmatprep.subr.mxu0 0.0
    %5387 = vmatpush1.msra.mxu0 0.0
    %5388 = vmatprep.subr.mxu0 0.0
    %5389 = vmatpush1.msra.mxu0 0.0
    %5390 = vmatprep.subr.mxu0 0.0
    %5391 = vmatpush1.msra.mxu0 0.0
    %5392 = vmatprep.subr.mxu0 0.0
    %5393 = vmatpush1.msra.mxu0 0.0
    %5394 = vmatprep.subr.mxu0 0.0
    %5395 = vmatpush1.msra.mxu0 0.0
    %5396 = vmatprep.subr.mxu0 0.0
    %5397 = vmatpush1.msra.mxu0 0.0
    %5398 = vmatprep.mubr.f32.mxu0 0.0
    %5399 = vmatmul.mubr.f32.gmra.mrb[0].mxu0 %v2183
    %v5400 = vpop.f32.mrb[0].mxu0
    %v5401 = vadd.f32 0.0, %v5400
    %v5402 = vpop.f32.mrb[0].mxu0
    %5403 = vmatprep.mubr.f32.mxu0 0.0
    %5404 = vmatmul.mubr.f32.gmra.mrb[0].mxu0 %v2186
    %v5405 = vpop.f32.mrb[0].mxu0
    %v5406 = vadd.f32 0.0, %v5405
    %v5407 = vpop.f32.mrb[0].mxu0
    %5408 = vmatprep.mubr.f32.mxu0 0.0
    %5409 = vmatmul.mubr.f32.gmra.mrb[0].mxu0 %v2189
    %v5410 = vpop.f32.mrb[0].mxu0
    %v5411 = vadd.f32 0.0, %v5410
    %v5412 = vpop.f32.mrb[0].mxu0
    %5413 = vdwg.mxu0
    %v5414 = vld [vmem:[%s103] sm:$0xff]
    %v5415 = vld [vmem:[%s103 + $0x8] sm:$0xff]
    %v5416 = vld [vmem:[%s103 + $0x10] sm:$0xff]
    %v5417 = vld [vmem:[%s103 + $0x18] sm:$0xff]
    %v5418 = vld [vmem:[%s103 + $0x20] sm:$0xff]
    %v5419 = vld [vmem:[%s103 + $0x28] sm:$0xff]
    %v5420 = vld [vmem:[%s103 + $0x30] sm:$0xff]
    %v5421 = vld [vmem:[%s103 + $0x38] sm:$0xff]
    %v5422 = vld [vmem:[%s103 + $0x40] sm:$0xff]
    %v5423 = vld [vmem:[%s103 + $0x48] sm:$0xff]
    %v5424 = vld [vmem:[%s103 + $0x50] sm:$0xff]
    %v5425 = vld [vmem:[%s103 + $0x58] sm:$0xff]
    %v5426 = vld [vmem:[#allocation36] sm:$0x1]
    %v5427 = vld [vmem:[%s107] sm:$0xff]
    %v5428 = vld [vmem:[%s107 + $0x8] sm:$0xff]
    %v5429 = vld [vmem:[%s107 + $0x10] sm:$0xff]
    %v5430 = vld [vmem:[%s107 + $0x18] sm:$0xff]
    %v5431 = vld [vmem:[#allocation37] sm:$0x1]
    %v5433 = vsel %vm1142, %v5318, 0
    %v5436 = vsel %vm1142, %v5323, 0
    %v5439 = vsel %vm1142, %v5328, 0
    %5441 = vmatprep.subr.mxu0 0.0
    %5442 = vmatpush1.msra.mxu0 %v5418
    %5443 = vmatprep.subr.mxu0 0.0
    %5444 = vmatpush1.msra.mxu0 %v5419
    %5445 = vmatprep.subr.mxu0 0.0
    %5446 = vmatpush1.msra.mxu0 %v5420
    %5447 = vmatprep.subr.mxu0 0.0
    %5448 = vmatpush1.msra.mxu0 %v5421
    %5449 = vmatprep.subr.mxu0 0.0
    %5450 = vmatpush1.msra.mxu0 0.0
    %5451 = vmatprep.subr.mxu0 0.0
    %5452 = vmatpush1.msra.mxu0 0.0
    %5453 = vmatprep.subr.mxu0 0.0
    %5454 = vmatpush1.msra.mxu0 0.0
    %5455 = vmatprep.subr.mxu0 0.0
    %5456 = vmatpush1.msra.mxu0 0.0
    %5457 = vmatprep.subr.mxu0 0.0
    %5458 = vmatpush1.msra.mxu0 0.0
    %5459 = vmatprep.subr.mxu0 0.0
    %5460 = vmatpush1.msra.mxu0 0.0
    %5461 = vmatprep.subr.mxu0 0.0
    %5462 = vmatpush1.msra.mxu0 0.0
    %5463 = vmatprep.subr.mxu0 0.0
    %5464 = vmatpush1.msra.mxu0 0.0
    %5465 = vmatprep.subr.mxu0 0.0
    %5466 = vmatpush1.msra.mxu0 0.0
    %5467 = vmatprep.subr.mxu0 0.0
    %5468 = vmatpush1.msra.mxu0 0.0
    %5469 = vmatprep.subr.mxu0 0.0
    %5470 = vmatpush1.msra.mxu0 0.0
    %5471 = vmatprep.subr.mxu0 0.0
    %5472 = vmatpush1.msra.mxu0 0.0
    %5473 = vmatprep.subr.mxu0 0.0
    %5474 = vmatpush1.msra.mxu0 0.0
    %5475 = vmatprep.subr.mxu0 0.0
    %5476 = vmatpush1.msra.mxu0 0.0
    %5477 = vmatprep.subr.mxu0 0.0
    %5478 = vmatpush1.msra.mxu0 0.0
    %5479 = vmatprep.subr.mxu0 0.0
    %5480 = vmatpush1.msra.mxu0 0.0
    %5481 = vmatprep.subr.mxu0 0.0
    %5482 = vmatpush1.msra.mxu0 0.0
    %5483 = vmatprep.subr.mxu0 0.0
    %5484 = vmatpush1.msra.mxu0 0.0
    %5485 = vmatprep.subr.mxu0 0.0
    %5486 = vmatpush1.msra.mxu0 0.0
    %5487 = vmatprep.subr.mxu0 0.0
    %5488 = vmatpush1.msra.mxu0 0.0
    %5489 = vmatprep.subr.mxu0 0.0
    %5490 = vmatpush1.msra.mxu0 0.0
    %5491 = vmatprep.subr.mxu0 0.0
    %5492 = vmatpush1.msra.mxu0 0.0
    %5493 = vmatprep.subr.mxu0 0.0
    %5494 = vmatpush1.msra.mxu0 0.0
    %5495 = vmatprep.subr.mxu0 0.0
    %5496 = vmatpush1.msra.mxu0 0.0
    %5497 = vmatprep.subr.mxu0 0.0
    %5498 = vmatpush1.msra.mxu0 0.0
    %5499 = vmatprep.subr.mxu0 0.0
    %5500 = vmatpush1.msra.mxu0 0.0
    %5501 = vmatprep.subr.mxu0 0.0
    %5502 = vmatpush1.msra.mxu0 0.0
    %5503 = vmatprep.subr.mxu0 0.0
    %5504 = vmatpush1.msra.mxu0 0.0
    %5505 = vmatprep.mubr.f32.mxu0 0.0
    %5506 = vmatmul.mubr.f32.gmra.mrb[0].mxu0 %v5433
    %v5507 = vpop.f32.mrb[0].mxu0
    %v5508 = vadd.f32 0.0, %v5507
    %v5509 = vpop.f32.mrb[0].mxu0
    %5510 = vmatprep.mubr.f32.mxu0 0.0
    %5511 = vmatmul.mubr.f32.gmra.mrb[0].mxu0 %v5436
    %v5512 = vpop.f32.mrb[0].mxu0
    %v5513 = vadd.f32 0.0, %v5512
    %v5514 = vpop.f32.mrb[0].mxu0
    %5515 = vmatprep.mubr.f32.mxu0 0.0
    %5516 = vmatmul.mubr.f32.gmra.mrb[0].mxu0 %v5439
    %v5517 = vpop.f32.mrb[0].mxu0
    %v5518 = vadd.f32 0.0, %v5517
    %v5519 = vpop.f32.mrb[0].mxu0
    %5520 = vdwg.mxu0
    %5521 = vmatprep.subr.mxu0 0.0
    %5522 = vmatpush1.msra.mxu0 %v5414
    %5523 = vmatprep.subr.mxu0 0.0
    %5524 = vmatpush1.msra.mxu0 %v5415
    %5525 = vmatprep.subr.mxu0 0.0
    %5526 = vmatpush1.msra.mxu0 %v5416
    %5527 = vmatprep.subr.mxu0 0.0
    %5528 = vmatpush1.msra.mxu0 %v5417
    %5529 = vmatprep.subr.mxu0 0.0
    %5530 = vmatpush1.msra.mxu0 0.0
    %5531 = vmatprep.subr.mxu0 0.0
    %5532 = vmatpush1.msra.mxu0 0.0
    %5533 = vmatprep.subr.mxu0 0.0
    %5534 = vmatpush1.msra.mxu0 0.0
    %5535 = vmatprep.subr.mxu0 0.0
    %5536 = vmatpush1.msra.mxu0 0.0
    %5537 = vmatprep.subr.mxu0 0.0
    %5538 = vmatpush1.msra.mxu0 0.0
    %5539 = vmatprep.subr.mxu0 0.0
    %5540 = vmatpush1.msra.mxu0 0.0
    %5541 = vmatprep.subr.mxu0 0.0
    %5542 = vmatpush1.msra.mxu0 0.0
    %5543 = vmatprep.subr.mxu0 0.0
    %5544 = vmatpush1.msra.mxu0 0.0
    %5545 = vmatprep.subr.mxu0 0.0
    %5546 = vmatpush1.msra.mxu0 0.0
    %5547 = vmatprep.subr.mxu0 0.0
    %5548 = vmatpush1.msra.mxu0 0.0
    %5549 = vmatprep.subr.mxu0 0.0
    %5550 = vmatpush1.msra.mxu0 0.0
    %5551 = vmatprep.subr.mxu0 0.0
    %5552 = vmatpush1.msra.mxu0 0.0
    %5553 = vmatprep.subr.mxu0 0.0
    %5554 = vmatpush1.msra.mxu0 0.0
    %5555 = vmatprep.subr.mxu0 0.0
    %5556 = vmatpush1.msra.mxu0 0.0
    %5557 = vmatprep.subr.mxu0 0.0
    %5558 = vmatpush1.msra.mxu0 0.0
    %5559 = vmatprep.subr.mxu0 0.0
    %5560 = vmatpush1.msra.mxu0 0.0
    %5561 = vmatprep.subr.mxu0 0.0
    %5562 = vmatpush1.msra.mxu0 0.0
    %5563 = vmatprep.subr.mxu0 0.0
    %5564 = vmatpush1.msra.mxu0 0.0
    %5565 = vmatprep.subr.mxu0 0.0
    %5566 = vmatpush1.msra.mxu0 0.0
    %5567 = vmatprep.subr.mxu0 0.0
    %5568 = vmatpush1.msra.mxu0 0.0
    %5569 = vmatprep.subr.mxu0 0.0
    %5570 = vmatpush1.msra.mxu0 0.0
    %5571 = vmatprep.subr.mxu0 0.0
    %5572 = vmatpush1.msra.mxu0 0.0
    %5573 = vmatprep.subr.mxu0 0.0
    %5574 = vmatpush1.msra.mxu0 0.0
    %5575 = vmatprep.subr.mxu0 0.0
    %5576 = vmatpush1.msra.mxu0 0.0
    %5577 = vmatprep.subr.mxu0 0.0
    %5578 = vmatpush1.msra.mxu0 0.0
    %5579 = vmatprep.subr.mxu0 0.0
    %5580 = vmatpush1.msra.mxu0 0.0
    %5581 = vmatprep.subr.mxu0 0.0
    %5582 = vmatpush1.msra.mxu0 0.0
    %5583 = vmatprep.subr.mxu0 0.0
    %5584 = vmatpush1.msra.mxu0 0.0
    %5585 = vmatprep.mubr.f32.mxu0 0.0
    %5586 = vmatmul.mubr.f32.gmra.mrb[0].mxu0 %v1701
    %v5587 = vpop.f32.mrb[0].mxu0
    %v5588 = vadd.f32 %v5508, %v5587
    %v5589 = vpop.f32.mrb[0].mxu0
    %5590 = vmatprep.mubr.f32.mxu0 0.0
    %5591 = vmatmul.mubr.f32.gmra.mrb[0].mxu0 %v1704
    %v5592 = vpop.f32.mrb[0].mxu0
    %v5593 = vadd.f32 %v5513, %v5592
    %v5594 = vpop.f32.mrb[0].mxu0
    %5595 = vmatprep.mubr.f32.mxu0 0.0
    %5596 = vmatmul.mubr.f32.gmra.mrb[0].mxu0 %v1707
    %v5597 = vpop.f32.mrb[0].mxu0
    %v5598 = vadd.f32 %v5518, %v5597
    %v5599 = vpop.f32.mrb[0].mxu0
    %5600 = vdwg.mxu0
    %v5602 = vsel %vm1142, %v5401, 0
    %v5605 = vsel %vm1142, %v5406, 0
    %v5608 = vsel %vm1142, %v5411, 0
    %5610 = vmatprep.subr.mxu0 0.0
    %5611 = vmatpush1.msra.mxu0 %v5422
    %5612 = vmatprep.subr.mxu0 0.0
    %5613 = vmatpush1.msra.mxu0 %v5423
    %5614 = vmatprep.subr.mxu0 0.0
    %5615 = vmatpush1.msra.mxu0 %v5424
    %5616 = vmatprep.subr.mxu0 0.0
    %5617 = vmatpush1.msra.mxu0 %v5425
    %5618 = vmatprep.subr.mxu0 0.0
    %5619 = vmatpush1.msra.mxu0 0.0
    %5620 = vmatprep.subr.mxu0 0.0
    %5621 = vmatpush1.msra.mxu0 0.0
    %5622 = vmatprep.subr.mxu0 0.0
    %5623 = vmatpush1.msra.mxu0 0.0
    %5624 = vmatprep.subr.mxu0 0.0
    %5625 = vmatpush1.msra.mxu0 0.0
    %5626 = vmatprep.subr.mxu0 0.0
    %5627 = vmatpush1.msra.mxu0 0.0
    %5628 = vmatprep.subr.mxu0 0.0
    %5629 = vmatpush1.msra.mxu0 0.0
    %5630 = vmatprep.subr.mxu0 0.0
    %5631 = vmatpush1.msra.mxu0 0.0
    %5632 = vmatprep.subr.mxu0 0.0
    %5633 = vmatpush1.msra.mxu0 0.0
    %5634 = vmatprep.subr.mxu0 0.0
    %5635 = vmatpush1.msra.mxu0 0.0
    %5636 = vmatprep.subr.mxu0 0.0
    %5637 = vmatpush1.msra.mxu0 0.0
    %5638 = vmatprep.subr.mxu0 0.0
    %5639 = vmatpush1.msra.mxu0 0.0
    %5640 = vmatprep.subr.mxu0 0.0
    %5641 = vmatpush1.msra.mxu0 0.0
    %5642 = vmatprep.subr.mxu0 0.0
    %5643 = vmatpush1.msra.mxu0 0.0
    %5644 = vmatprep.subr.mxu0 0.0
    %5645 = vmatpush1.msra.mxu0 0.0
    %5646 = vmatprep.subr.mxu0 0.0
    %5647 = vmatpush1.msra.mxu0 0.0
    %5648 = vmatprep.subr.mxu0 0.0
    %5649 = vmatpush1.msra.mxu0 0.0
    %5650 = vmatprep.subr.mxu0 0.0
    %5651 = vmatpush1.msra.mxu0 0.0
    %5652 = vmatprep.subr.mxu0 0.0
    %5653 = vmatpush1.msra.mxu0 0.0
    %5654 = vmatprep.subr.mxu0 0.0
    %5655 = vmatpush1.msra.mxu0 0.0
    %5656 = vmatprep.subr.mxu0 0.0
    %5657 = vmatpush1.msra.mxu0 0.0
    %5658 = vmatprep.subr.mxu0 0.0
    %5659 = vmatpush1.msra.mxu0 0.0
    %5660 = vmatprep.subr.mxu0 0.0
    %5661 = vmatpush1.msra.mxu0 0.0
    %5662 = vmatprep.subr.mxu0 0.0
    %5663 = vmatpush1.msra.mxu0 0.0
    %5664 = vmatprep.subr.mxu0 0.0
    %5665 = vmatpush1.msra.mxu0 0.0
    %5666 = vmatprep.subr.mxu0 0.0
    %5667 = vmatpush1.msra.mxu0 0.0
    %5668 = vmatprep.subr.mxu0 0.0
    %5669 = vmatpush1.msra.mxu0 0.0
    %5670 = vmatprep.subr.mxu0 0.0
    %5671 = vmatpush1.msra.mxu0 0.0
    %5672 = vmatprep.subr.mxu0 0.0
    %5673 = vmatpush1.msra.mxu0 0.0
    %5674 = vmatprep.mubr.f32.mxu0 0.0
    %5675 = vmatmul.mubr.f32.gmra.mrb[0].mxu0 %v5602
    %v5676 = vpop.f32.mrb[0].mxu0
    %v5677 = vadd.f32 0.0, %v5676
    %v5678 = vpop.f32.mrb[0].mxu0
    %5679 = vmatprep.mubr.f32.mxu0 0.0
    %5680 = vmatmul.mubr.f32.gmra.mrb[0].mxu0 %v5605
    %v5681 = vpop.f32.mrb[0].mxu0
    %v5682 = vadd.f32 0.0, %v5681
    %v5683 = vpop.f32.mrb[0].mxu0
    %5684 = vmatprep.mubr.f32.mxu0 0.0
    %5685 = vmatmul.mubr.f32.gmra.mrb[0].mxu0 %v5608
    %v5686 = vpop.f32.mrb[0].mxu0
    %v5687 = vadd.f32 0.0, %v5686
    %v5688 = vpop.f32.mrb[0].mxu0
    %5689 = vdwg.mxu0
    %v5690 = vadd.f32 %v5588, %v5677
    %v5691 = vadd.f32 %v5593, %v5682
    %v5692 = vadd.f32 %v5598, %v5687
    %v5694 = vlaneseq
    %v5695 = vshrl.u32 %v5694, 7
    %v5696 = vsub.s32 0, %v5695
    %v5697 = vrot.slane %v5426, %v5696
    %v5699 = vadd.f32 %v5690, %v5697
    %v5700 = vadd.f32 %v5691, %v5697
    %v5701 = vadd.f32 %v5692, %v5697
    %v5702 = vsel %vm1142, %v5699, 0.0
    %v5703 = vsel %vm1142, %v5700, 0.0
    %v5704 = vadd.f32 %v5702, %v5703
    %v5705 = vsel %vm1142, %v5701, 0.0
    %v5706 = vadd.f32 %v5704, %v5705
    %v5707 = vrot.slane %v5706, 4
    %v5708 = vadd.f32 %v5706, %v5707
    %v5709 = vrot.slane %v5708, 2
    %v5710 = vadd.f32 %v5708, %v5709
    %v5711 = vrot.slane %v5710, 1
    %v5712 = vadd.f32 %v5710, %v5711
    %v5713 = vrcp.pop 24.0
    %v5714 = vmul.f32 %v5712, %v5713
    %v5715 = vsub.f32 %v5699, %v5714
    %v5716 = vsub.f32 %v5700, %v5714
    %v5717 = vsub.f32 %v5701, %v5714
    %v5718 = vmul.f32 %v5715, %v5715
    %v5719 = vmul.f32 %v5716, %v5716
    %v5720 = vmul.f32 %v5717, %v5717
    %v5721 = vsel %vm1142, %v5718, 0.0
    %v5722 = vsel %vm1142, %v5719, 0.0
    %v5723 = vadd.f32 %v5721, %v5722
    %v5724 = vsel %vm1142, %v5720, 0.0
    %v5725 = vadd.f32 %v5723, %v5724
    %v5726 = vrot.slane %v5725, 4
    %v5727 = vadd.f32 %v5725, %v5726
    %v5728 = vrot.slane %v5727, 2
    %v5729 = vadd.f32 %v5727, %v5728
    %v5730 = vrot.slane %v5729, 1
    %v5731 = vadd.f32 %v5729, %v5730
    %v5732 = vmul.f32 %v5731, %v5713
    %v5733 = vadd.f32 %v5732, 1e-05
    %v5734 = vrsqrt.pop %v5733
    %v5735 = vmul.f32 %v5715, %v5734
    %v5736 = vmul.f32 %v5716, %v5734
    %v5737 = vmul.f32 %v5717, %v5734
    %v5739 = vlaneseq
    %v5740 = vshrl.u32 %v5739, 7
    %v5741 = vsub.s32 0, %v5740
    %v5742 = vrot.slane %v5431, %v5741
    %v5745 = vsel %vm1142, %v5735, 0
    %v5748 = vsel %vm1142, %v5736, 0
    %v5751 = vsel %vm1142, %v5737, 0
    %5753 = vmatprep.subr.mxu0 0.0
    %5754 = vmatpush1.msra.mxu0 %v5427
    %5755 = vmatprep.subr.mxu0 0.0
    %5756 = vmatpush1.msra.mxu0 %v5428
    %5757 = vmatprep.subr.mxu0 0.0
    %5758 = vmatpush1.msra.mxu0 %v5429
    %5759 = vmatprep.subr.mxu0 0.0
    %5760 = vmatpush1.msra.mxu0 %v5430
    %5761 = vmatprep.subr.mxu0 0.0
    %5762 = vmatpush1.msra.mxu0 0.0
    %5763 = vmatprep.subr.mxu0 0.0
    %5764 = vmatpush1.msra.mxu0 0.0
    %5765 = vmatprep.subr.mxu0 0.0
    %5766 = vmatpush1.msra.mxu0 0.0
    %5767 = vmatprep.subr.mxu0 0.0
    %5768 = vmatpush1.msra.mxu0 0.0
    %5769 = vmatprep.subr.mxu0 0.0
    %5770 = vmatpush1.msra.mxu0 0.0
    %5771 = vmatprep.subr.mxu0 0.0
    %5772 = vmatpush1.msra.mxu0 0.0
    %5773 = vmatprep.subr.mxu0 0.0
    %5774 = vmatpush1.msra.mxu0 0.0
    %5775 = vmatprep.subr.mxu0 0.0
    %5776 = vmatpush1.msra.mxu0 0.0
    %5777 = vmatprep.subr.mxu0 0.0
    %5778 = vmatpush1.msra.mxu0 0.0
    %5779 = vmatprep.subr.mxu0 0.0
    %5780 = vmatpush1.msra.mxu0 0.0
    %5781 = vmatprep.subr.mxu0 0.0
    %5782 = vmatpush1.msra.mxu0 0.0
    %5783 = vmatprep.subr.mxu0 0.0
    %5784 = vmatpush1.msra.mxu0 0.0
    %5785 = vmatprep.subr.mxu0 0.0
    %5786 = vmatpush1.msra.mxu0 0.0
    %5787 = vmatprep.subr.mxu0 0.0
    %5788 = vmatpush1.msra.mxu0 0.0
    %5789 = vmatprep.subr.mxu0 0.0
    %5790 = vmatpush1.msra.mxu0 0.0
    %5791 = vmatprep.subr.mxu0 0.0
    %5792 = vmatpush1.msra.mxu0 0.0
    %5793 = vmatprep.subr.mxu0 0.0
    %5794 = vmatpush1.msra.mxu0 0.0
    %5795 = vmatprep.subr.mxu0 0.0
    %5796 = vmatpush1.msra.mxu0 0.0
    %5797 = vmatprep.subr.mxu0 0.0
    %5798 = vmatpush1.msra.mxu0 0.0
    %5799 = vmatprep.subr.mxu0 0.0
    %5800 = vmatpush1.msra.mxu0 0.0
    %5801 = vmatprep.subr.mxu0 0.0
    %5802 = vmatpush1.msra.mxu0 0.0
    %5803 = vmatprep.subr.mxu0 0.0
    %5804 = vmatpush1.msra.mxu0 0.0
    %5805 = vmatprep.subr.mxu0 0.0
    %5806 = vmatpush1.msra.mxu0 0.0
    %5807 = vmatprep.subr.mxu0 0.0
    %5808 = vmatpush1.msra.mxu0 0.0
    %5809 = vmatprep.subr.mxu0 0.0
    %5810 = vmatpush1.msra.mxu0 0.0
    %5811 = vmatprep.subr.mxu0 0.0
    %5812 = vmatpush1.msra.mxu0 0.0
    %5813 = vmatprep.subr.mxu0 0.0
    %5814 = vmatpush1.msra.mxu0 0.0
    %5815 = vmatprep.subr.mxu0 0.0
    %5816 = vmatpush1.msra.mxu0 0.0
    %5817 = vmatprep.mubr.f32.mxu0 0.0
    %5818 = vmatmul.mubr.f32.gmra.mrb[0].mxu0 %v5745
    %v5819 = vpop.f32.mrb[0].mxu0
    %v5820 = vadd.f32 %v5742, %v5819
    %v5821 = vpop.f32.mrb[0].mxu0
    %5822 = vmatprep.mubr.f32.mxu0 0.0
    %5823 = vmatmul.mubr.f32.gmra.mrb[0].mxu0 %v5748
    %v5824 = vpop.f32.mrb[0].mxu0
    %v5825 = vadd.f32 %v5742, %v5824
    %v5826 = vpop.f32.mrb[0].mxu0
    %5827 = vmatprep.mubr.f32.mxu0 0.0
    %5828 = vmatmul.mubr.f32.gmra.mrb[0].mxu0 %v5751
    %v5829 = vpop.f32.mrb[0].mxu0
    %v5830 = vadd.f32 %v5742, %v5829
    %v5831 = vpop.f32.mrb[0].mxu0
    %5832 = vdwg.mxu0
    %v5833 = vmax.f32 %v5820, 0.0
    %v5834 = vmax.f32 %v5825, 0.0
    %v5835 = vmax.f32 %v5830, 0.0
    %v5836 = vld [vmem:[%s111] sm:$0xff]
    %v5837 = vld [vmem:[%s111 + $0x8] sm:$0xff]
    %v5838 = vld [vmem:[%s111 + $0x10] sm:$0xff]
    %v5839 = vld [vmem:[%s111 + $0x18] sm:$0xff]
    %v5840 = vld [vmem:[#allocation39] sm:$0x1]
    %v5841 = vld [vmem:[%s115] sm:$0xff]
    %v5842 = vld [vmem:[%s115 + $0x8] sm:$0xff]
    %v5843 = vld [vmem:[%s115 + $0x10] sm:$0xff]
    %v5844 = vld [vmem:[%s115 + $0x18] sm:$0xff]
    %v5845 = vld [vmem:[#allocation40] sm:$0x1]
    %v5847 = vlaneseq
    %v5848 = vshrl.u32 %v5847, 7
    %v5849 = vsub.s32 0, %v5848
    %v5850 = vrot.slane %v5840, %v5849
    %5852 = vmatprep.subr.mxu0 0.0
    %5853 = vmatpush1.msra.mxu0 %v5836
    %5854 = vmatprep.subr.mxu0 0.0
    %5855 = vmatpush1.msra.mxu0 %v5837
    %5856 = vmatprep.subr.mxu0 0.0
    %5857 = vmatpush1.msra.mxu0 %v5838
    %5858 = vmatprep.subr.mxu0 0.0
    %5859 = vmatpush1.msra.mxu0 %v5839
    %5860 = vmatprep.subr.mxu0 0.0
    %5861 = vmatpush1.msra.mxu0 0.0
    %5862 = vmatprep.subr.mxu0 0.0
    %5863 = vmatpush1.msra.mxu0 0.0
    %5864 = vmatprep.subr.mxu0 0.0
    %5865 = vmatpush1.msra.mxu0 0.0
    %5866 = vmatprep.subr.mxu0 0.0
    %5867 = vmatpush1.msra.mxu0 0.0
    %5868 = vmatprep.subr.mxu0 0.0
    %5869 = vmatpush1.msra.mxu0 0.0
    %5870 = vmatprep.subr.mxu0 0.0
    %5871 = vmatpush1.msra.mxu0 0.0
    %5872 = vmatprep.subr.mxu0 0.0
    %5873 = vmatpush1.msra.mxu0 0.0
    %5874 = vmatprep.subr.mxu0 0.0
    %5875 = vmatpush1.msra.mxu0 0.0
    %5876 = vmatprep.subr.mxu0 0.0
    %5877 = vmatpush1.msra.mxu0 0.0
    %5878 = vmatprep.subr.mxu0 0.0
    %5879 = vmatpush1.msra.mxu0 0.0
    %5880 = vmatprep.subr.mxu0 0.0
    %5881 = vmatpush1.msra.mxu0 0.0
    %5882 = vmatprep.subr.mxu0 0.0
    %5883 = vmatpush1.msra.mxu0 0.0
    %5884 = vmatprep.subr.mxu0 0.0
    %5885 = vmatpush1.msra.mxu0 0.0
    %5886 = vmatprep.subr.mxu0 0.0
    %5887 = vmatpush1.msra.mxu0 0.0
    %5888 = vmatprep.subr.mxu0 0.0
    %5889 = vmatpush1.msra.mxu0 0.0
    %5890 = vmatprep.subr.mxu0 0.0
    %5891 = vmatpush1.msra.mxu0 0.0
    %5892 = vmatprep.subr.mxu0 0.0
    %5893 = vmatpush1.msra.mxu0 0.0
    %5894 = vmatprep.subr.mxu0 0.0
    %5895 = vmatpush1.msra.mxu0 0.0
    %5896 = vmatprep.subr.mxu0 0.0
    %5897 = vmatpush1.msra.mxu0 0.0
    %5898 = vmatprep.subr.mxu0 0.0
    %5899 = vmatpush1.msra.mxu0 0.0
    %5900 = vmatprep.subr.mxu0 0.0
    %5901 = vmatpush1.msra.mxu0 0.0
    %5902 = vmatprep.subr.mxu0 0.0
    %5903 = vmatpush1.msra.mxu0 0.0
    %5904 = vmatprep.subr.mxu0 0.0
    %5905 = vmatpush1.msra.mxu0 0.0
    %5906 = vmatprep.subr.mxu0 0.0
    %5907 = vmatpush1.msra.mxu0 0.0
    %5908 = vmatprep.subr.mxu0 0.0
    %5909 = vmatpush1.msra.mxu0 0.0
    %5910 = vmatprep.subr.mxu0 0.0
    %5911 = vmatpush1.msra.mxu0 0.0
    %5912 = vmatprep.subr.mxu0 0.0
    %5913 = vmatpush1.msra.mxu0 0.0
    %5914 = vmatprep.subr.mxu0 0.0
    %5915 = vmatpush1.msra.mxu0 0.0
    %5916 = vmatprep.mubr.f32.mxu0 0.0
    %5917 = vmatmul.mubr.f32.gmra.mrb[0].mxu0 %v3670
    %v5918 = vpop.f32.mrb[0].mxu0
    %v5919 = vadd.f32 %v5850, %v5918
    %v5920 = vpop.f32.mrb[0].mxu0
    %5921 = vmatprep.mubr.f32.mxu0 0.0
    %5922 = vmatmul.mubr.f32.gmra.mrb[0].mxu0 %v3673
    %v5923 = vpop.f32.mrb[0].mxu0
    %v5924 = vadd.f32 %v5850, %v5923
    %v5925 = vpop.f32.mrb[0].mxu0
    %5926 = vdwg.mxu0
    %v5927 = vsel %vm1142, %v5919, 0.0
    %v5928 = vsel %vm1142, %v5924, 0.0
    %v5929 = vadd.f32 %v5927, %v5928
    %v5930 = vrot.slane %v5929, 4
    %v5931 = vadd.f32 %v5929, %v5930
    %v5932 = vrot.slane %v5931, 2
    %v5933 = vadd.f32 %v5931, %v5932
    %v5934 = vrot.slane %v5933, 1
    %v5935 = vadd.f32 %v5933, %v5934
    %v5936 = vmul.f32 %v5935, %v1152
    %v5937 = vsub.f32 %v5919, %v5936
    %v5938 = vsub.f32 %v5924, %v5936
    %v5939 = vmul.f32 %v5937, %v5937
    %v5940 = vmul.f32 %v5938, %v5938
    %v5941 = vsel %vm1142, %v5939, 0.0
    %v5942 = vsel %vm1142, %v5940, 0.0
    %v5943 = vadd.f32 %v5941, %v5942
    %v5944 = vrot.slane %v5943, 4
    %v5945 = vadd.f32 %v5943, %v5944
    %v5946 = vrot.slane %v5945, 2
    %v5947 = vadd.f32 %v5945, %v5946
    %v5948 = vrot.slane %v5947, 1
    %v5949 = vadd.f32 %v5947, %v5948
    %v5950 = vmul.f32 %v5949, %v1152
    %v5951 = vadd.f32 %v5950, 1e-05
    %v5952 = vrsqrt.pop %v5951
    %v5953 = vmul.f32 %v5937, %v5952
    %v5954 = vmul.f32 %v5938, %v5952
    %v5956 = vlaneseq
    %v5957 = vshrl.u32 %v5956, 7
    %v5958 = vsub.s32 0, %v5957
    %v5959 = vrot.slane %v5845, %v5958
    %v5962 = vsel %vm1142, %v5953, 0
    %v5965 = vsel %vm1142, %v5954, 0
    %5967 = vmatprep.subr.mxu0 0.0
    %5968 = vmatpush1.msra.mxu0 %v5841
    %5969 = vmatprep.subr.mxu0 0.0
    %5970 = vmatpush1.msra.mxu0 %v5842
    %5971 = vmatprep.subr.mxu0 0.0
    %5972 = vmatpush1.msra.mxu0 %v5843
    %5973 = vmatprep.subr.mxu0 0.0
    %5974 = vmatpush1.msra.mxu0 %v5844
    %5975 = vmatprep.subr.mxu0 0.0
    %5976 = vmatpush1.msra.mxu0 0.0
    %5977 = vmatprep.subr.mxu0 0.0
    %5978 = vmatpush1.msra.mxu0 0.0
    %5979 = vmatprep.subr.mxu0 0.0
    %5980 = vmatpush1.msra.mxu0 0.0
    %5981 = vmatprep.subr.mxu0 0.0
    %5982 = vmatpush1.msra.mxu0 0.0
    %5983 = vmatprep.subr.mxu0 0.0
    %5984 = vmatpush1.msra.mxu0 0.0
    %5985 = vmatprep.subr.mxu0 0.0
    %5986 = vmatpush1.msra.mxu0 0.0
    %5987 = vmatprep.subr.mxu0 0.0
    %5988 = vmatpush1.msra.mxu0 0.0
    %5989 = vmatprep.subr.mxu0 0.0
    %5990 = vmatpush1.msra.mxu0 0.0
    %5991 = vmatprep.subr.mxu0 0.0
    %5992 = vmatpush1.msra.mxu0 0.0
    %5993 = vmatprep.subr.mxu0 0.0
    %5994 = vmatpush1.msra.mxu0 0.0
    %5995 = vmatprep.subr.mxu0 0.0
    %5996 = vmatpush1.msra.mxu0 0.0
    %5997 = vmatprep.subr.mxu0 0.0
    %5998 = vmatpush1.msra.mxu0 0.0
    %5999 = vmatprep.subr.mxu0 0.0
    %6000 = vmatpush1.msra.mxu0 0.0
    %6001 = vmatprep.subr.mxu0 0.0
    %6002 = vmatpush1.msra.mxu0 0.0
    %6003 = vmatprep.subr.mxu0 0.0
    %6004 = vmatpush1.msra.mxu0 0.0
    %6005 = vmatprep.subr.mxu0 0.0
    %6006 = vmatpush1.msra.mxu0 0.0
    %6007 = vmatprep.subr.mxu0 0.0
    %6008 = vmatpush1.msra.mxu0 0.0
    %6009 = vmatprep.subr.mxu0 0.0
    %6010 = vmatpush1.msra.mxu0 0.0
    %6011 = vmatprep.subr.mxu0 0.0
    %6012 = vmatpush1.msra.mxu0 0.0
    %6013 = vmatprep.subr.mxu0 0.0
    %6014 = vmatpush1.msra.mxu0 0.0
    %6015 = vmatprep.subr.mxu0 0.0
    %6016 = vmatpush1.msra.mxu0 0.0
    %6017 = vmatprep.subr.mxu0 0.0
    %6018 = vmatpush1.msra.mxu0 0.0
    %6019 = vmatprep.subr.mxu0 0.0
    %6020 = vmatpush1.msra.mxu0 0.0
    %6021 = vmatprep.subr.mxu0 0.0
    %6022 = vmatpush1.msra.mxu0 0.0
    %6023 = vmatprep.subr.mxu0 0.0
    %6024 = vmatpush1.msra.mxu0 0.0
    %6025 = vmatprep.subr.mxu0 0.0
    %6026 = vmatpush1.msra.mxu0 0.0
    %6027 = vmatprep.subr.mxu0 0.0
    %6028 = vmatpush1.msra.mxu0 0.0
    %6029 = vmatprep.subr.mxu0 0.0
    %6030 = vmatpush1.msra.mxu0 0.0
    %6031 = vmatprep.mubr.f32.mxu0 0.0
    %6032 = vmatmul.mubr.f32.gmra.mrb[0].mxu0 %v5962
    %v6033 = vpop.f32.mrb[0].mxu0
    %v6034 = vadd.f32 %v5959, %v6033
    %v6035 = vpop.f32.mrb[0].mxu0
    %6036 = vmatprep.mubr.f32.mxu0 0.0
    %6037 = vmatmul.mubr.f32.gmra.mrb[0].mxu0 %v5965
    %v6038 = vpop.f32.mrb[0].mxu0
    %v6039 = vadd.f32 %v5959, %v6038
    %v6040 = vpop.f32.mrb[0].mxu0
    %6041 = vdwg.mxu0
    %v6042 = vmax.f32 %v6034, 0.0
    %v6043 = vmax.f32 %v6039, 0.0
    %v6044 = vld [vmem:[%s119] sm:$0xff]
    %v6045 = vld [vmem:[%s119 + $0x8] sm:$0xff]
    %v6046 = vld [vmem:[%s119 + $0x10] sm:$0xff]
    %v6047 = vld [vmem:[%s119 + $0x18] sm:$0xff]
    %v6048 = vld [vmem:[#allocation42] sm:$0x1]
    %v6049 = vld [vmem:[%s123] sm:$0xff]
    %v6050 = vld [vmem:[%s123 + $0x8] sm:$0xff]
    %v6051 = vld [vmem:[%s123 + $0x10] sm:$0xff]
    %v6052 = vld [vmem:[%s123 + $0x18] sm:$0xff]
    %v6053 = vld [vmem:[#allocation43] sm:$0x1]
    %v6055 = vlaneseq
    %v6056 = vshrl.u32 %v6055, 7
    %v6057 = vsub.s32 0, %v6056
    %v6058 = vrot.slane %v6048, %v6057
    %v6061 = vsel %vm1142, %v5249, 0
    %v6063 = vsel %vm1142, %v5250, 0
    %6065 = vmatprep.subr.mxu0 0.0
    %6066 = vmatpush1.msra.mxu0 %v6044
    %6067 = vmatprep.subr.mxu0 0.0
    %6068 = vmatpush1.msra.mxu0 %v6045
    %6069 = vmatprep.subr.mxu0 0.0
    %6070 = vmatpush1.msra.mxu0 %v6046
    %6071 = vmatprep.subr.mxu0 0.0
    %6072 = vmatpush1.msra.mxu0 %v6047
    %6073 = vmatprep.subr.mxu0 0.0
    %6074 = vmatpush1.msra.mxu0 0.0
    %6075 = vmatprep.subr.mxu0 0.0
    %6076 = vmatpush1.msra.mxu0 0.0
    %6077 = vmatprep.subr.mxu0 0.0
    %6078 = vmatpush1.msra.mxu0 0.0
    %6079 = vmatprep.subr.mxu0 0.0
    %6080 = vmatpush1.msra.mxu0 0.0
    %6081 = vmatprep.subr.mxu0 0.0
    %6082 = vmatpush1.msra.mxu0 0.0
    %6083 = vmatprep.subr.mxu0 0.0
    %6084 = vmatpush1.msra.mxu0 0.0
    %6085 = vmatprep.subr.mxu0 0.0
    %6086 = vmatpush1.msra.mxu0 0.0
    %6087 = vmatprep.subr.mxu0 0.0
    %6088 = vmatpush1.msra.mxu0 0.0
    %6089 = vmatprep.subr.mxu0 0.0
    %6090 = vmatpush1.msra.mxu0 0.0
    %6091 = vmatprep.subr.mxu0 0.0
    %6092 = vmatpush1.msra.mxu0 0.0
    %6093 = vmatprep.subr.mxu0 0.0
    %6094 = vmatpush1.msra.mxu0 0.0
    %6095 = vmatprep.subr.mxu0 0.0
    %6096 = vmatpush1.msra.mxu0 0.0
    %6097 = vmatprep.subr.mxu0 0.0
    %6098 = vmatpush1.msra.mxu0 0.0
    %6099 = vmatprep.subr.mxu0 0.0
    %6100 = vmatpush1.msra.mxu0 0.0
    %6101 = vmatprep.subr.mxu0 0.0
    %6102 = vmatpush1.msra.mxu0 0.0
    %6103 = vmatprep.subr.mxu0 0.0
    %6104 = vmatpush1.msra.mxu0 0.0
    %6105 = vmatprep.subr.mxu0 0.0
    %6106 = vmatpush1.msra.mxu0 0.0
    %6107 = vmatprep.subr.mxu0 0.0
    %6108 = vmatpush1.msra.mxu0 0.0
    %6109 = vmatprep.subr.mxu0 0.0
    %6110 = vmatpush1.msra.mxu0 0.0
    %6111 = vmatprep.subr.mxu0 0.0
    %6112 = vmatpush1.msra.mxu0 0.0
    %6113 = vmatprep.subr.mxu0 0.0
    %6114 = vmatpush1.msra.mxu0 0.0
    %6115 = vmatprep.subr.mxu0 0.0
    %6116 = vmatpush1.msra.mxu0 0.0
    %6117 = vmatprep.subr.mxu0 0.0
    %6118 = vmatpush1.msra.mxu0 0.0
    %6119 = vmatprep.subr.mxu0 0.0
    %6120 = vmatpush1.msra.mxu0 0.0
    %6121 = vmatprep.subr.mxu0 0.0
    %6122 = vmatpush1.msra.mxu0 0.0
    %6123 = vmatprep.subr.mxu0 0.0
    %6124 = vmatpush1.msra.mxu0 0.0
    %6125 = vmatprep.subr.mxu0 0.0
    %6126 = vmatpush1.msra.mxu0 0.0
    %6127 = vmatprep.subr.mxu0 0.0
    %6128 = vmatpush1.msra.mxu0 0.0
    %6129 = vmatprep.mubr.f32.mxu0 0.0
    %6130 = vmatmul.mubr.f32.gmra.mrb[0].mxu0 %v6061
    %v6131 = vpop.f32.mrb[0].mxu0
    %v6132 = vadd.f32 %v6058, %v6131
    %v6133 = vpop.f32.mrb[0].mxu0
    %6134 = vmatprep.mubr.f32.mxu0 0.0
    %6135 = vmatmul.mubr.f32.gmra.mrb[0].mxu0 %v6063
    %v6136 = vpop.f32.mrb[0].mxu0
    %v6137 = vadd.f32 %v6058, %v6136
    %v6138 = vpop.f32.mrb[0].mxu0
    %6139 = vdwg.mxu0
    %v6140 = vsel %vm1142, %v6132, 0.0
    %v6141 = vsel %vm1361, %v6137, 0.0
    %v6142 = vadd.f32 %v6140, %v6141
    %v6143 = vrot.slane %v6142, 4
    %v6144 = vadd.f32 %v6142, %v6143
    %v6145 = vrot.slane %v6144, 2
    %v6146 = vadd.f32 %v6144, %v6145
    %v6147 = vrot.slane %v6146, 1
    %v6148 = vadd.f32 %v6146, %v6147
    %v6149 = vmul.f32 %v6148, %v1370
    %v6150 = vsub.f32 %v6132, %v6149
    %v6151 = vsub.f32 %v6137, %v6149
    %v6152 = vmul.f32 %v6150, %v6150
    %v6153 = vmul.f32 %v6151, %v6151
    %v6154 = vsel %vm1142, %v6152, 0.0
    %v6155 = vsel %vm1361, %v6153, 0.0
    %v6156 = vadd.f32 %v6154, %v6155
    %v6157 = vrot.slane %v6156, 4
    %v6158 = vadd.f32 %v6156, %v6157
    %v6159 = vrot.slane %v6158, 2
    %v6160 = vadd.f32 %v6158, %v6159
    %v6161 = vrot.slane %v6160, 1
    %v6162 = vadd.f32 %v6160, %v6161
    %v6163 = vmul.f32 %v6162, %v1370
    %v6164 = vadd.f32 %v6163, 1e-05
    %v6165 = vrsqrt.pop %v6164
    %v6166 = vmul.f32 %v6150, %v6165
    %v6167 = vmul.f32 %v6151, %v6165
    %v6169 = vlaneseq
    %v6170 = vshrl.u32 %v6169, 7
    %v6171 = vsub.s32 0, %v6170
    %v6172 = vrot.slane %v6053, %v6171
    %v6175 = vsel %vm1142, %v6166, 0
    %v6178 = vsel %vm1142, %v6167, 0
    %6180 = vmatprep.subr.mxu0 0.0
    %6181 = vmatpush1.msra.mxu0 %v6049
    %6182 = vmatprep.subr.mxu0 0.0
    %6183 = vmatpush1.msra.mxu0 %v6050
    %6184 = vmatprep.subr.mxu0 0.0
    %6185 = vmatpush1.msra.mxu0 %v6051
    %6186 = vmatprep.subr.mxu0 0.0
    %6187 = vmatpush1.msra.mxu0 %v6052
    %6188 = vmatprep.subr.mxu0 0.0
    %6189 = vmatpush1.msra.mxu0 0.0
    %6190 = vmatprep.subr.mxu0 0.0
    %6191 = vmatpush1.msra.mxu0 0.0
    %6192 = vmatprep.subr.mxu0 0.0
    %6193 = vmatpush1.msra.mxu0 0.0
    %6194 = vmatprep.subr.mxu0 0.0
    %6195 = vmatpush1.msra.mxu0 0.0
    %6196 = vmatprep.subr.mxu0 0.0
    %6197 = vmatpush1.msra.mxu0 0.0
    %6198 = vmatprep.subr.mxu0 0.0
    %6199 = vmatpush1.msra.mxu0 0.0
    %6200 = vmatprep.subr.mxu0 0.0
    %6201 = vmatpush1.msra.mxu0 0.0
    %6202 = vmatprep.subr.mxu0 0.0
    %6203 = vmatpush1.msra.mxu0 0.0
    %6204 = vmatprep.subr.mxu0 0.0
    %6205 = vmatpush1.msra.mxu0 0.0
    %6206 = vmatprep.subr.mxu0 0.0
    %6207 = vmatpush1.msra.mxu0 0.0
    %6208 = vmatprep.subr.mxu0 0.0
    %6209 = vmatpush1.msra.mxu0 0.0
    %6210 = vmatprep.subr.mxu0 0.0
    %6211 = vmatpush1.msra.mxu0 0.0
    %6212 = vmatprep.subr.mxu0 0.0
    %6213 = vmatpush1.msra.mxu0 0.0
    %6214 = vmatprep.subr.mxu0 0.0
    %6215 = vmatpush1.msra.mxu0 0.0
    %6216 = vmatprep.subr.mxu0 0.0
    %6217 = vmatpush1.msra.mxu0 0.0
    %6218 = vmatprep.subr.mxu0 0.0
    %6219 = vmatpush1.msra.mxu0 0.0
    %6220 = vmatprep.subr.mxu0 0.0
    %6221 = vmatpush1.msra.mxu0 0.0
    %6222 = vmatprep.subr.mxu0 0.0
    %6223 = vmatpush1.msra.mxu0 0.0
    %6224 = vmatprep.subr.mxu0 0.0
    %6225 = vmatpush1.msra.mxu0 0.0
    %6226 = vmatprep.subr.mxu0 0.0
    %6227 = vmatpush1.msra.mxu0 0.0
    %6228 = vmatprep.subr.mxu0 0.0
    %6229 = vmatpush1.msra.mxu0 0.0
    %6230 = vmatprep.subr.mxu0 0.0
    %6231 = vmatpush1.msra.mxu0 0.0
    %6232 = vmatprep.subr.mxu0 0.0
    %6233 = vmatpush1.msra.mxu0 0.0
    %6234 = vmatprep.subr.mxu0 0.0
    %6235 = vmatpush1.msra.mxu0 0.0
    %6236 = vmatprep.subr.mxu0 0.0
    %6237 = vmatpush1.msra.mxu0 0.0
    %6238 = vmatprep.subr.mxu0 0.0
    %6239 = vmatpush1.msra.mxu0 0.0
    %6240 = vmatprep.subr.mxu0 0.0
    %6241 = vmatpush1.msra.mxu0 0.0
    %6242 = vmatprep.subr.mxu0 0.0
    %6243 = vmatpush1.msra.mxu0 0.0
    %6244 = vmatprep.mubr.f32.mxu0 0.0
    %6245 = vmatmul.mubr.f32.gmra.mrb[0].mxu0 %v6175
    %v6246 = vpop.f32.mrb[0].mxu0
    %v6247 = vadd.f32 %v6172, %v6246
    %v6248 = vpop.f32.mrb[0].mxu0
    %6249 = vmatprep.mubr.f32.mxu0 0.0
    %6250 = vmatmul.mubr.f32.gmra.mrb[0].mxu0 %v6178
    %v6251 = vpop.f32.mrb[0].mxu0
    %v6252 = vadd.f32 %v6172, %v6251
    %v6253 = vpop.f32.mrb[0].mxu0
    %6254 = vdwg.mxu0
    %v6255 = vmax.f32 %v6247, 0.0
    %v6256 = vmax.f32 %v6252, 0.0
    %v6257 = vld [vmem:[%s127] sm:$0xff]
    %v6258 = vld [vmem:[%s127 + $0x8] sm:$0xff]
    %v6259 = vld [vmem:[%s127 + $0x10] sm:$0xff]
    %v6260 = vld [vmem:[%s127 + $0x18] sm:$0xff]
    %v6261 = vld [vmem:[#allocation45] sm:$0x1]
    %v6263 = vlaneseq
    %v6264 = vshrl.u32 %v6263, 7
    %v6265 = vsub.s32 0, %v6264
    %v6266 = vrot.slane %v6261, %v6265
    %v6269 = vsel %vm1142, %v5833, 0
    %v6272 = vsel %vm1142, %v5834, 0
    %v6275 = vsel %vm1142, %v5835, 0
    %6277 = vmatprep.subr.mxu0 0.0
    %6278 = vmatpush1.msra.mxu0 %v6257
    %6279 = vmatprep.subr.mxu0 0.0
    %6280 = vmatpush1.msra.mxu0 %v6258
    %6281 = vmatprep.subr.mxu0 0.0
    %6282 = vmatpush1.msra.mxu0 %v6259
    %6283 = vmatprep.subr.mxu0 0.0
    %6284 = vmatpush1.msra.mxu0 %v6260
    %6285 = vmatprep.subr.mxu0 0.0
    %6286 = vmatpush1.msra.mxu0 0.0
    %6287 = vmatprep.subr.mxu0 0.0
    %6288 = vmatpush1.msra.mxu0 0.0
    %6289 = vmatprep.subr.mxu0 0.0
    %6290 = vmatpush1.msra.mxu0 0.0
    %6291 = vmatprep.subr.mxu0 0.0
    %6292 = vmatpush1.msra.mxu0 0.0
    %6293 = vmatprep.subr.mxu0 0.0
    %6294 = vmatpush1.msra.mxu0 0.0
    %6295 = vmatprep.subr.mxu0 0.0
    %6296 = vmatpush1.msra.mxu0 0.0
    %6297 = vmatprep.subr.mxu0 0.0
    %6298 = vmatpush1.msra.mxu0 0.0
    %6299 = vmatprep.subr.mxu0 0.0
    %6300 = vmatpush1.msra.mxu0 0.0
    %6301 = vmatprep.subr.mxu0 0.0
    %6302 = vmatpush1.msra.mxu0 0.0
    %6303 = vmatprep.subr.mxu0 0.0
    %6304 = vmatpush1.msra.mxu0 0.0
    %6305 = vmatprep.subr.mxu0 0.0
    %6306 = vmatpush1.msra.mxu0 0.0
    %6307 = vmatprep.subr.mxu0 0.0
    %6308 = vmatpush1.msra.mxu0 0.0
    %6309 = vmatprep.subr.mxu0 0.0
    %6310 = vmatpush1.msra.mxu0 0.0
    %6311 = vmatprep.subr.mxu0 0.0
    %6312 = vmatpush1.msra.mxu0 0.0
    %6313 = vmatprep.subr.mxu0 0.0
    %6314 = vmatpush1.msra.mxu0 0.0
    %6315 = vmatprep.subr.mxu0 0.0
    %6316 = vmatpush1.msra.mxu0 0.0
    %6317 = vmatprep.subr.mxu0 0.0
    %6318 = vmatpush1.msra.mxu0 0.0
    %6319 = vmatprep.subr.mxu0 0.0
    %6320 = vmatpush1.msra.mxu0 0.0
    %6321 = vmatprep.subr.mxu0 0.0
    %6322 = vmatpush1.msra.mxu0 0.0
    %6323 = vmatprep.subr.mxu0 0.0
    %6324 = vmatpush1.msra.mxu0 0.0
    %6325 = vmatprep.subr.mxu0 0.0
    %6326 = vmatpush1.msra.mxu0 0.0
    %6327 = vmatprep.subr.mxu0 0.0
    %6328 = vmatpush1.msra.mxu0 0.0
    %6329 = vmatprep.subr.mxu0 0.0
    %6330 = vmatpush1.msra.mxu0 0.0
    %6331 = vmatprep.subr.mxu0 0.0
    %6332 = vmatpush1.msra.mxu0 0.0
    %6333 = vmatprep.subr.mxu0 0.0
    %6334 = vmatpush1.msra.mxu0 0.0
    %6335 = vmatprep.subr.mxu0 0.0
    %6336 = vmatpush1.msra.mxu0 0.0
    %6337 = vmatprep.subr.mxu0 0.0
    %6338 = vmatpush1.msra.mxu0 0.0
    %6339 = vmatprep.subr.mxu0 0.0
    %6340 = vmatpush1.msra.mxu0 0.0
    %6341 = vmatprep.mubr.f32.mxu0 0.0
    %6342 = vmatmul.mubr.f32.gmra.mrb[0].mxu0 %v6269
    %v6343 = vpop.f32.mrb[0].mxu0
    %v6344 = vadd.f32 %v6266, %v6343
    %v6345 = vpop.f32.mrb[0].mxu0
    %6346 = vmatprep.mubr.f32.mxu0 0.0
    %6347 = vmatmul.mubr.f32.gmra.mrb[0].mxu0 %v6272
    %v6348 = vpop.f32.mrb[0].mxu0
    %v6349 = vadd.f32 %v6266, %v6348
    %v6350 = vpop.f32.mrb[0].mxu0
    %6351 = vmatprep.mubr.f32.mxu0 0.0
    %6352 = vmatmul.mubr.f32.gmra.mrb[0].mxu0 %v6275
    %v6353 = vpop.f32.mrb[0].mxu0
    %v6354 = vadd.f32 %v6266, %v6353
    %v6355 = vpop.f32.mrb[0].mxu0
    %6356 = vdwg.mxu0
    %v6357 = vld [vmem:[%s131] sm:$0xff]
    %v6358 = vld [vmem:[%s131 + $0x8] sm:$0xff]
    %v6359 = vld [vmem:[%s131 + $0x10] sm:$0xff]
    %v6360 = vld [vmem:[%s131 + $0x18] sm:$0xff]
    %v6361 = vld [vmem:[%s131 + $0x20] sm:$0xff]
    %v6362 = vld [vmem:[%s131 + $0x28] sm:$0xff]
    %v6363 = vld [vmem:[%s131 + $0x30] sm:$0xff]
    %v6364 = vld [vmem:[%s131 + $0x38] sm:$0xff]
    %v6365 = vld [vmem:[%s133] sm:$0xff]
    %v6366 = vld [vmem:[%s133 + $0x8] sm:$0xff]
    %v6367 = vld [vmem:[%s133 + $0x10] sm:$0xff]
    %v6368 = vld [vmem:[%s133 + $0x18] sm:$0xff]
    %v6369 = vld [vmem:[%s133 + $0x20] sm:$0xff]
    %v6370 = vld [vmem:[%s133 + $0x28] sm:$0xff]
    %v6371 = vld [vmem:[%s133 + $0x30] sm:$0xff]
    %v6372 = vld [vmem:[%s133 + $0x38] sm:$0xff]
    %v6373 = vld [vmem:[#allocation46] sm:$0x3]
    %v6374 = vld [vmem:[#allocation48] sm:$0x3]
    %v6375 = vld [vmem:[#allocation49] sm:$0x3]
    %v6376 = vld [vmem:[#allocation51] sm:$0x3]
    %v6378 = vsel %vm1142, %v6255, 0
    %v6381 = vsel %vm1142, %v6256, 0
    %6383 = vmatprep.subr.mxu0 %v6358
    %6384 = vmatpush1.msra.mxu0 %v6357
    %6385 = vmatprep.subr.mxu0 %v6360
    %6386 = vmatpush1.msra.mxu0 %v6359
    %6387 = vmatprep.subr.mxu0 %v6362
    %6388 = vmatpush1.msra.mxu0 %v6361
    %6389 = vmatprep.subr.mxu0 %v6364
    %6390 = vmatpush1.msra.mxu0 %v6363
    %6391 = vmatprep.subr.mxu0 0.0
    %6392 = vmatpush1.msra.mxu0 0.0
    %6393 = vmatprep.subr.mxu0 0.0
    %6394 = vmatpush1.msra.mxu0 0.0
    %6395 = vmatprep.subr.mxu0 0.0
    %6396 = vmatpush1.msra.mxu0 0.0
    %6397 = vmatprep.subr.mxu0 0.0
    %6398 = vmatpush1.msra.mxu0 0.0
    %6399 = vmatprep.subr.mxu0 0.0
    %6400 = vmatpush1.msra.mxu0 0.0
    %6401 = vmatprep.subr.mxu0 0.0
    %6402 = vmatpush1.msra.mxu0 0.0
    %6403 = vmatprep.subr.mxu0 0.0
    %6404 = vmatpush1.msra.mxu0 0.0
    %6405 = vmatprep.subr.mxu0 0.0
    %6406 = vmatpush1.msra.mxu0 0.0
    %6407 = vmatprep.subr.mxu0 0.0
    %6408 = vmatpush1.msra.mxu0 0.0
    %6409 = vmatprep.subr.mxu0 0.0
    %6410 = vmatpush1.msra.mxu0 0.0
    %6411 = vmatprep.subr.mxu0 0.0
    %6412 = vmatpush1.msra.mxu0 0.0
    %6413 = vmatprep.subr.mxu0 0.0
    %6414 = vmatpush1.msra.mxu0 0.0
    %6415 = vmatprep.subr.mxu0 0.0
    %6416 = vmatpush1.msra.mxu0 0.0
    %6417 = vmatprep.subr.mxu0 0.0
    %6418 = vmatpush1.msra.mxu0 0.0
    %6419 = vmatprep.subr.mxu0 0.0
    %6420 = vmatpush1.msra.mxu0 0.0
    %6421 = vmatprep.subr.mxu0 0.0
    %6422 = vmatpush1.msra.mxu0 0.0
    %6423 = vmatprep.subr.mxu0 0.0
    %6424 = vmatpush1.msra.mxu0 0.0
    %6425 = vmatprep.subr.mxu0 0.0
    %6426 = vmatpush1.msra.mxu0 0.0
    %6427 = vmatprep.subr.mxu0 0.0
    %6428 = vmatpush1.msra.mxu0 0.0
    %6429 = vmatprep.subr.mxu0 0.0
    %6430 = vmatpush1.msra.mxu0 0.0
    %6431 = vmatprep.subr.mxu0 0.0
    %6432 = vmatpush1.msra.mxu0 0.0
    %6433 = vmatprep.subr.mxu0 0.0
    %6434 = vmatpush1.msra.mxu0 0.0
    %6435 = vmatprep.subr.mxu0 0.0
    %6436 = vmatpush1.msra.mxu0 0.0
    %6437 = vmatprep.subr.mxu0 0.0
    %6438 = vmatpush1.msra.mxu0 0.0
    %6439 = vmatprep.subr.mxu0 0.0
    %6440 = vmatpush1.msra.mxu0 0.0
    %6441 = vmatprep.subr.mxu0 0.0
    %6442 = vmatpush1.msra.mxu0 0.0
    %6443 = vmatprep.subr.mxu0 0.0
    %6444 = vmatpush1.msra.mxu0 0.0
    %6445 = vmatprep.subr.mxu0 0.0
    %6446 = vmatpush1.msra.mxu0 0.0
    %6447 = vmatprep.mubr.f32.mxu0 0.0
    %6448 = vmatmul.mubr.f32.gmra.mrb[0].mxu0 %v6378
    %v6449 = vpop.f32.mrb[0].mxu0
    %v6450 = vadd.f32 0.0, %v6449
    %v6451 = vpop.f32.mrb[0].mxu0
    %v6452 = vadd.f32 0.0, %v6451
    %6453 = vmatprep.mubr.f32.mxu0 0.0
    %6454 = vmatmul.mubr.f32.gmra.mrb[0].mxu0 %v6381
    %v6455 = vpop.f32.mrb[0].mxu0
    %v6456 = vadd.f32 0.0, %v6455
    %v6457 = vpop.f32.mrb[0].mxu0
    %v6458 = vadd.f32 0.0, %v6457
    %6459 = vdwg.mxu0
    %v6461 = vsel %vm1142, %v6042, 0
    %v6464 = vsel %vm1142, %v6043, 0
    %6466 = vmatprep.subr.mxu0 %v6358
    %6467 = vmatpush1.msra.mxu0 %v6357
    %6468 = vmatprep.subr.mxu0 %v6360
    %6469 = vmatpush1.msra.mxu0 %v6359
    %6470 = vmatprep.subr.mxu0 %v6362
    %6471 = vmatpush1.msra.mxu0 %v6361
    %6472 = vmatprep.subr.mxu0 %v6364
    %6473 = vmatpush1.msra.mxu0 %v6363
    %6474 = vmatprep.subr.mxu0 0.0
    %6475 = vmatpush1.msra.mxu0 0.0
    %6476 = vmatprep.subr.mxu0 0.0
    %6477 = vmatpush1.msra.mxu0 0.0
    %6478 = vmatprep.subr.mxu0 0.0
    %6479 = vmatpush1.msra.mxu0 0.0
    %6480 = vmatprep.subr.mxu0 0.0
    %6481 = vmatpush1.msra.mxu0 0.0
    %6482 = vmatprep.subr.mxu0 0.0
    %6483 = vmatpush1.msra.mxu0 0.0
    %6484 = vmatprep.subr.mxu0 0.0
    %6485 = vmatpush1.msra.mxu0 0.0
    %6486 = vmatprep.subr.mxu0 0.0
    %6487 = vmatpush1.msra.mxu0 0.0
    %6488 = vmatprep.subr.mxu0 0.0
    %6489 = vmatpush1.msra.mxu0 0.0
    %6490 = vmatprep.subr.mxu0 0.0
    %6491 = vmatpush1.msra.mxu0 0.0
    %6492 = vmatprep.subr.mxu0 0.0
    %6493 = vmatpush1.msra.mxu0 0.0
    %6494 = vmatprep.subr.mxu0 0.0
    %6495 = vmatpush1.msra.mxu0 0.0
    %6496 = vmatprep.subr.mxu0 0.0
    %6497 = vmatpush1.msra.mxu0 0.0
    %6498 = vmatprep.subr.mxu0 0.0
    %6499 = vmatpush1.msra.mxu0 0.0
    %6500 = vmatprep.subr.mxu0 0.0
    %6501 = vmatpush1.msra.mxu0 0.0
    %6502 = vmatprep.subr.mxu0 0.0
    %6503 = vmatpush1.msra.mxu0 0.0
    %6504 = vmatprep.subr.mxu0 0.0
    %6505 = vmatpush1.msra.mxu0 0.0
    %6506 = vmatprep.subr.mxu0 0.0
    %6507 = vmatpush1.msra.mxu0 0.0
    %6508 = vmatprep.subr.mxu0 0.0
    %6509 = vmatpush1.msra.mxu0 0.0
    %6510 = vmatprep.subr.mxu0 0.0
    %6511 = vmatpush1.msra.mxu0 0.0
    %6512 = vmatprep.subr.mxu0 0.0
    %6513 = vmatpush1.msra.mxu0 0.0
    %6514 = vmatprep.subr.mxu0 0.0
    %6515 = vmatpush1.msra.mxu0 0.0
    %6516 = vmatprep.subr.mxu0 0.0
    %6517 = vmatpush1.msra.mxu0 0.0
    %6518 = vmatprep.subr.mxu0 0.0
    %6519 = vmatpush1.msra.mxu0 0.0
    %6520 = vmatprep.subr.mxu0 0.0
    %6521 = vmatpush1.msra.mxu0 0.0
    %6522 = vmatprep.subr.mxu0 0.0
    %6523 = vmatpush1.msra.mxu0 0.0
    %6524 = vmatprep.subr.mxu0 0.0
    %6525 = vmatpush1.msra.mxu0 0.0
    %6526 = vmatprep.subr.mxu0 0.0
    %6527 = vmatpush1.msra.mxu0 0.0
    %6528 = vmatprep.subr.mxu0 0.0
    %6529 = vmatpush1.msra.mxu0 0.0
    %6530 = vmatprep.mubr.f32.mxu0 0.0
    %6531 = vmatmul.mubr.f32.gmra.mrb[0].mxu0 %v6461
    %v6532 = vpop.f32.mrb[0].mxu0
    %v6533 = vadd.f32 0.0, %v6532
    %v6534 = vpop.f32.mrb[0].mxu0
    %v6535 = vadd.f32 0.0, %v6534
    %6536 = vmatprep.mubr.f32.mxu0 0.0
    %6537 = vmatmul.mubr.f32.gmra.mrb[0].mxu0 %v6464
    %v6538 = vpop.f32.mrb[0].mxu0
    %v6539 = vadd.f32 0.0, %v6538
    %v6540 = vpop.f32.mrb[0].mxu0
    %v6541 = vadd.f32 0.0, %v6540
    %6542 = vdwg.mxu0
    %v6544 = vsel %vm1142, %v6344, 0
    %v6547 = vsel %vm1142, %v6349, 0
    %v6550 = vsel %vm1142, %v6354, 0
    %6552 = vmatprep.subr.mxu0 %v6366
    %6553 = vmatpush1.msra.mxu0 %v6365
    %6554 = vmatprep.subr.mxu0 %v6368
    %6555 = vmatpush1.msra.mxu0 %v6367
    %6556 = vmatprep.subr.mxu0 %v6370
    %6557 = vmatpush1.msra.mxu0 %v6369
    %6558 = vmatprep.subr.mxu0 %v6372
    %6559 = vmatpush1.msra.mxu0 %v6371
    %6560 = vmatprep.subr.mxu0 0.0
    %6561 = vmatpush1.msra.mxu0 0.0
    %6562 = vmatprep.subr.mxu0 0.0
    %6563 = vmatpush1.msra.mxu0 0.0
    %6564 = vmatprep.subr.mxu0 0.0
    %6565 = vmatpush1.msra.mxu0 0.0
    %6566 = vmatprep.subr.mxu0 0.0
    %6567 = vmatpush1.msra.mxu0 0.0
    %6568 = vmatprep.subr.mxu0 0.0
    %6569 = vmatpush1.msra.mxu0 0.0
    %6570 = vmatprep.subr.mxu0 0.0
    %6571 = vmatpush1.msra.mxu0 0.0
    %6572 = vmatprep.subr.mxu0 0.0
    %6573 = vmatpush1.msra.mxu0 0.0
    %6574 = vmatprep.subr.mxu0 0.0
    %6575 = vmatpush1.msra.mxu0 0.0
    %6576 = vmatprep.subr.mxu0 0.0
    %6577 = vmatpush1.msra.mxu0 0.0
    %6578 = vmatprep.subr.mxu0 0.0
    %6579 = vmatpush1.msra.mxu0 0.0
    %6580 = vmatprep.subr.mxu0 0.0
    %6581 = vmatpush1.msra.mxu0 0.0
    %6582 = vmatprep.subr.mxu0 0.0
    %6583 = vmatpush1.msra.mxu0 0.0
    %6584 = vmatprep.subr.mxu0 0.0
    %6585 = vmatpush1.msra.mxu0 0.0
    %6586 = vmatprep.subr.mxu0 0.0
    %6587 = vmatpush1.msra.mxu0 0.0
    %6588 = vmatprep.subr.mxu0 0.0
    %6589 = vmatpush1.msra.mxu0 0.0
    %6590 = vmatprep.subr.mxu0 0.0
    %6591 = vmatpush1.msra.mxu0 0.0
    %6592 = vmatprep.subr.mxu0 0.0
    %6593 = vmatpush1.msra.mxu0 0.0
    %6594 = vmatprep.subr.mxu0 0.0
    %6595 = vmatpush1.msra.mxu0 0.0
    %6596 = vmatprep.subr.mxu0 0.0
    %6597 = vmatpush1.msra.mxu0 0.0
    %6598 = vmatprep.subr.mxu0 0.0
    %6599 = vmatpush1.msra.mxu0 0.0
    %6600 = vmatprep.subr.mxu0 0.0
    %6601 = vmatpush1.msra.mxu0 0.0
    %6602 = vmatprep.subr.mxu0 0.0
    %6603 = vmatpush1.msra.mxu0 0.0
    %6604 = vmatprep.subr.mxu0 0.0
    %6605 = vmatpush1.msra.mxu0 0.0
    %6606 = vmatprep.subr.mxu0 0.0
    %6607 = vmatpush1.msra.mxu0 0.0
    %6608 = vmatprep.subr.mxu0 0.0
    %6609 = vmatpush1.msra.mxu0 0.0
    %6610 = vmatprep.subr.mxu0 0.0
    %6611 = vmatpush1.msra.mxu0 0.0
    %6612 = vmatprep.subr.mxu0 0.0
    %6613 = vmatpush1.msra.mxu0 0.0
    %6614 = vmatprep.subr.mxu0 0.0
    %6615 = vmatpush1.msra.mxu0 0.0
    %6616 = vmatprep.mubr.f32.mxu0 0.0
    %6617 = vmatmul.mubr.f32.gmra.mrb[0].mxu0 %v6544
    %v6618 = vpop.f32.mrb[0].mxu0
    %v6619 = vadd.f32 0.0, %v6618
    %v6620 = vpop.f32.mrb[0].mxu0
    %v6621 = vadd.f32 0.0, %v6620
    %6622 = vmatprep.mubr.f32.mxu0 0.0
    %6623 = vmatmul.mubr.f32.gmra.mrb[0].mxu0 %v6547
    %v6624 = vpop.f32.mrb[0].mxu0
    %v6625 = vadd.f32 0.0, %v6624
    %v6626 = vpop.f32.mrb[0].mxu0
    %v6627 = vadd.f32 0.0, %v6626
    %6628 = vmatprep.mubr.f32.mxu0 0.0
    %6629 = vmatmul.mubr.f32.gmra.mrb[0].mxu0 %v6550
    %v6630 = vpop.f32.mrb[0].mxu0
    %v6631 = vadd.f32 0.0, %v6630
    %v6632 = vpop.f32.mrb[0].mxu0
    %v6633 = vadd.f32 0.0, %v6632
    %6634 = vdwg.mxu0
    %v6636 = vlaneseq
    %v6637 = vshrl.u32 %v6636, 7
    %v6638 = vsub.s32 0, %v6637
    %v6639 = vrot.slane %v6373, %v6638
    %v6640 = vlaneseq
    %v6641 = vshrl.u32 %v6640, 7
    %v6642 = vsub.s32 1, %v6641
    %v6643 = vrot.slane %v6373, %v6642
    %v6646 = vmul.f32 %v6450, %v6639
    %v6647 = vmul.f32 %v6452, %v6643
    %v6648 = vmul.f32 %v6456, %v6639
    %v6649 = vmul.f32 %v6458, %v6643
    %v6651 = vsel %vm1807, %v6647, 0
    %v6654 = vsel %vm1807, %v6649, 0
    %6656 = vmatprep.subr.mxu0 0.0
    %6657 = vmatpush1.msra.mxu0 %v1019
    %6658 = vmatprep.subr.mxu0 0.0
    %6659 = vmatpush1.msra.mxu0 %v1020
    %6660 = vmatprep.subr.mxu0 0.0
    %6661 = vmatpush1.msra.mxu0 %v1021
    %6662 = vmatprep.subr.mxu0 0.0
    %6663 = vmatpush1.msra.mxu0 %v1022
    %6664 = vmatprep.subr.mxu0 0.0
    %6665 = vmatpush1.msra.mxu0 %v1023
    %6666 = vmatprep.subr.mxu0 0.0
    %6667 = vmatpush1.msra.mxu0 %v1024
    %6668 = vmatprep.subr.mxu0 0.0
    %6669 = vmatpush1.msra.mxu0 %v1025
    %6670 = vmatprep.subr.mxu0 0.0
    %6671 = vmatpush1.msra.mxu0 %v1026
    %6672 = vmatprep.subr.mxu0 0.0
    %6673 = vmatpush1.msra.mxu0 %v1027
    %6674 = vmatprep.subr.mxu0 0.0
    %6675 = vmatpush1.msra.mxu0 %v1028
    %6676 = vmatprep.subr.mxu0 0.0
    %6677 = vmatpush1.msra.mxu0 %v1029
    %6678 = vmatprep.subr.mxu0 0.0
    %6679 = vmatpush1.msra.mxu0 %v1030
    %6680 = vmatprep.subr.mxu0 0.0
    %6681 = vmatpush1.msra.mxu0 %v1031
    %6682 = vmatprep.subr.mxu0 0.0
    %6683 = vmatpush1.msra.mxu0 %v1032
    %6684 = vmatprep.subr.mxu0 0.0
    %6685 = vmatpush1.msra.mxu0 %v1033
    %6686 = vmatprep.subr.mxu0 0.0
    %6687 = vmatpush1.msra.mxu0 %v1034
    %6688 = vmatprep.subr.mxu0 0.0
    %6689 = vmatpush1.msra.mxu0 %v1035
    %6690 = vmatprep.subr.mxu0 0.0
    %6691 = vmatpush1.msra.mxu0 %v1036
    %6692 = vmatprep.subr.mxu0 0.0
    %6693 = vmatpush1.msra.mxu0 %v1037
    %6694 = vmatprep.subr.mxu0 0.0
    %6695 = vmatpush1.msra.mxu0 %v1038
    %6696 = vmatprep.subr.mxu0 0.0
    %6697 = vmatpush1.msra.mxu0 %v1039
    %6698 = vmatprep.subr.mxu0 0.0
    %6699 = vmatpush1.msra.mxu0 %v1040
    %6700 = vmatprep.subr.mxu0 0.0
    %6701 = vmatpush1.msra.mxu0 %v1041
    %6702 = vmatprep.subr.mxu0 0.0
    %6703 = vmatpush1.msra.mxu0 %v1042
    %6704 = vmatprep.subr.mxu0 0.0
    %6705 = vmatpush1.msra.mxu0 0.0
    %6706 = vmatprep.subr.mxu0 0.0
    %6707 = vmatpush1.msra.mxu0 0.0
    %6708 = vmatprep.subr.mxu0 0.0
    %6709 = vmatpush1.msra.mxu0 0.0
    %6710 = vmatprep.subr.mxu0 0.0
    %6711 = vmatpush1.msra.mxu0 0.0
    %6712 = vmatprep.subr.mxu0 0.0
    %6713 = vmatpush1.msra.mxu0 0.0
    %6714 = vmatprep.subr.mxu0 0.0
    %6715 = vmatpush1.msra.mxu0 0.0
    %6716 = vmatprep.subr.mxu0 0.0
    %6717 = vmatpush1.msra.mxu0 0.0
    %6718 = vmatprep.subr.mxu0 0.0
    %6719 = vmatpush1.msra.mxu0 0.0
    %6720 = vmatprep.mubr.f32.mxu0 %v6651
    %6721 = vmatmul.mubr.f32.gmra.mrb[0].mxu0 %v6646
    %v6722 = vpop.f32.mrb[0].mxu0
    %v6723 = vadd.f32 0.0, %v6722
    %v6724 = vpop.f32.mrb[0].mxu0
    %6725 = vmatprep.mubr.f32.mxu0 %v6654
    %6726 = vmatmul.mubr.f32.gmra.mrb[0].mxu0 %v6648
    %v6727 = vpop.f32.mrb[0].mxu0
    %v6728 = vadd.f32 0.0, %v6727
    %v6729 = vpop.f32.mrb[0].mxu0
    %6730 = vdwg.mxu0
    %v6732 = vlaneseq
    %v6733 = vshrl.u32 %v6732, 7
    %v6734 = vsub.s32 0, %v6733
    %v6735 = vrot.slane %v6374, %v6734
    %v6736 = vlaneseq
    %v6737 = vshrl.u32 %v6736, 7
    %v6738 = vsub.s32 1, %v6737
    %v6739 = vrot.slane %v6374, %v6738
    %v6742 = vmul.f32 %v6533, %v6735
    %v6743 = vmul.f32 %v6535, %v6739
    %v6744 = vmul.f32 %v6539, %v6735
    %v6745 = vmul.f32 %v6541, %v6739
    %v6747 = vsel %vm1807, %v6743, 0
    %v6750 = vsel %vm1807, %v6745, 0
    %6752 = vmatprep.subr.mxu0 0.0
    %6753 = vmatpush1.msra.mxu0 %v1019
    %6754 = vmatprep.subr.mxu0 0.0
    %6755 = vmatpush1.msra.mxu0 %v1020
    %6756 = vmatprep.subr.mxu0 0.0
    %6757 = vmatpush1.msra.mxu0 %v1021
    %6758 = vmatprep.subr.mxu0 0.0
    %6759 = vmatpush1.msra.mxu0 %v1022
    %6760 = vmatprep.subr.mxu0 0.0
    %6761 = vmatpush1.msra.mxu0 %v1023
    %6762 = vmatprep.subr.mxu0 0.0
    %6763 = vmatpush1.msra.mxu0 %v1024
    %6764 = vmatprep.subr.mxu0 0.0
    %6765 = vmatpush1.msra.mxu0 %v1025
    %6766 = vmatprep.subr.mxu0 0.0
    %6767 = vmatpush1.msra.mxu0 %v1026
    %6768 = vmatprep.subr.mxu0 0.0
    %6769 = vmatpush1.msra.mxu0 %v1027
    %6770 = vmatprep.subr.mxu0 0.0
    %6771 = vmatpush1.msra.mxu0 %v1028
    %6772 = vmatprep.subr.mxu0 0.0
    %6773 = vmatpush1.msra.mxu0 %v1029
    %6774 = vmatprep.subr.mxu0 0.0
    %6775 = vmatpush1.msra.mxu0 %v1030
    %6776 = vmatprep.subr.mxu0 0.0
    %6777 = vmatpush1.msra.mxu0 %v1031
    %6778 = vmatprep.subr.mxu0 0.0
    %6779 = vmatpush1.msra.mxu0 %v1032
    %6780 = vmatprep.subr.mxu0 0.0
    %6781 = vmatpush1.msra.mxu0 %v1033
    %6782 = vmatprep.subr.mxu0 0.0
    %6783 = vmatpush1.msra.mxu0 %v1034
    %6784 = vmatprep.subr.mxu0 0.0
    %6785 = vmatpush1.msra.mxu0 %v1035
    %6786 = vmatprep.subr.mxu0 0.0
    %6787 = vmatpush1.msra.mxu0 %v1036
    %6788 = vmatprep.subr.mxu0 0.0
    %6789 = vmatpush1.msra.mxu0 %v1037
    %6790 = vmatprep.subr.mxu0 0.0
    %6791 = vmatpush1.msra.mxu0 %v1038
    %6792 = vmatprep.subr.mxu0 0.0
    %6793 = vmatpush1.msra.mxu0 %v1039
    %6794 = vmatprep.subr.mxu0 0.0
    %6795 = vmatpush1.msra.mxu0 %v1040
    %6796 = vmatprep.subr.mxu0 0.0
    %6797 = vmatpush1.msra.mxu0 %v1041
    %6798 = vmatprep.subr.mxu0 0.0
    %6799 = vmatpush1.msra.mxu0 %v1042
    %6800 = vmatprep.subr.mxu0 0.0
    %6801 = vmatpush1.msra.mxu0 0.0
    %6802 = vmatprep.subr.mxu0 0.0
    %6803 = vmatpush1.msra.mxu0 0.0
    %6804 = vmatprep.subr.mxu0 0.0
    %6805 = vmatpush1.msra.mxu0 0.0
    %6806 = vmatprep.subr.mxu0 0.0
    %6807 = vmatpush1.msra.mxu0 0.0
    %6808 = vmatprep.subr.mxu0 0.0
    %6809 = vmatpush1.msra.mxu0 0.0
    %6810 = vmatprep.subr.mxu0 0.0
    %6811 = vmatpush1.msra.mxu0 0.0
    %6812 = vmatprep.subr.mxu0 0.0
    %6813 = vmatpush1.msra.mxu0 0.0
    %6814 = vmatprep.subr.mxu0 0.0
    %6815 = vmatpush1.msra.mxu0 0.0
    %6816 = vmatprep.mubr.f32.mxu0 %v6747
    %6817 = vmatmul.mubr.f32.gmra.mrb[0].mxu0 %v6742
    %v6818 = vpop.f32.mrb[0].mxu0
    %v6819 = vadd.f32 0.0, %v6818
    %v6820 = vpop.f32.mrb[0].mxu0
    %6821 = vmatprep.mubr.f32.mxu0 %v6750
    %6822 = vmatmul.mubr.f32.gmra.mrb[0].mxu0 %v6744
    %v6823 = vpop.f32.mrb[0].mxu0
    %v6824 = vadd.f32 0.0, %v6823
    %v6825 = vpop.f32.mrb[0].mxu0
    %6826 = vdwg.mxu0
    %v6828 = vlaneseq
    %v6829 = vshrl.u32 %v6828, 7
    %v6830 = vsub.s32 0, %v6829
    %v6831 = vrot.slane %v6375, %v6830
    %v6832 = vlaneseq
    %v6833 = vshrl.u32 %v6832, 7
    %v6834 = vsub.s32 1, %v6833
    %v6835 = vrot.slane %v6375, %v6834
    %v6838 = vmul.f32 %v6619, %v6831
    %v6839 = vmul.f32 %v6621, %v6835
    %v6840 = vmul.f32 %v6625, %v6831
    %v6841 = vmul.f32 %v6627, %v6835
    %v6842 = vmul.f32 %v6631, %v6831
    %v6843 = vmul.f32 %v6633, %v6835
    %v6845 = vsel %vm1807, %v6839, 0
    %v6848 = vsel %vm1807, %v6841, 0
    %v6851 = vsel %vm1807, %v6843, 0
    %6853 = vmatprep.subr.mxu0 0.0
    %6854 = vmatpush1.msra.mxu0 %v1019
    %6855 = vmatprep.subr.mxu0 0.0
    %6856 = vmatpush1.msra.mxu0 %v1020
    %6857 = vmatprep.subr.mxu0 0.0
    %6858 = vmatpush1.msra.mxu0 %v1021
    %6859 = vmatprep.subr.mxu0 0.0
    %6860 = vmatpush1.msra.mxu0 %v1022
    %6861 = vmatprep.subr.mxu0 0.0
    %6862 = vmatpush1.msra.mxu0 %v1023
    %6863 = vmatprep.subr.mxu0 0.0
    %6864 = vmatpush1.msra.mxu0 %v1024
    %6865 = vmatprep.subr.mxu0 0.0
    %6866 = vmatpush1.msra.mxu0 %v1025
    %6867 = vmatprep.subr.mxu0 0.0
    %6868 = vmatpush1.msra.mxu0 %v1026
    %6869 = vmatprep.subr.mxu0 0.0
    %6870 = vmatpush1.msra.mxu0 %v1027
    %6871 = vmatprep.subr.mxu0 0.0
    %6872 = vmatpush1.msra.mxu0 %v1028
    %6873 = vmatprep.subr.mxu0 0.0
    %6874 = vmatpush1.msra.mxu0 %v1029
    %6875 = vmatprep.subr.mxu0 0.0
    %6876 = vmatpush1.msra.mxu0 %v1030
    %6877 = vmatprep.subr.mxu0 0.0
    %6878 = vmatpush1.msra.mxu0 %v1031
    %6879 = vmatprep.subr.mxu0 0.0
    %6880 = vmatpush1.msra.mxu0 %v1032
    %6881 = vmatprep.subr.mxu0 0.0
    %6882 = vmatpush1.msra.mxu0 %v1033
    %6883 = vmatprep.subr.mxu0 0.0
    %6884 = vmatpush1.msra.mxu0 %v1034
    %6885 = vmatprep.subr.mxu0 0.0
    %6886 = vmatpush1.msra.mxu0 %v1035
    %6887 = vmatprep.subr.mxu0 0.0
    %6888 = vmatpush1.msra.mxu0 %v1036
    %6889 = vmatprep.subr.mxu0 0.0
    %6890 = vmatpush1.msra.mxu0 %v1037
    %6891 = vmatprep.subr.mxu0 0.0
    %6892 = vmatpush1.msra.mxu0 %v1038
    %6893 = vmatprep.subr.mxu0 0.0
    %6894 = vmatpush1.msra.mxu0 %v1039
    %6895 = vmatprep.subr.mxu0 0.0
    %6896 = vmatpush1.msra.mxu0 %v1040
    %6897 = vmatprep.subr.mxu0 0.0
    %6898 = vmatpush1.msra.mxu0 %v1041
    %6899 = vmatprep.subr.mxu0 0.0
    %6900 = vmatpush1.msra.mxu0 %v1042
    %6901 = vmatprep.subr.mxu0 0.0
    %6902 = vmatpush1.msra.mxu0 0.0
    %6903 = vmatprep.subr.mxu0 0.0
    %6904 = vmatpush1.msra.mxu0 0.0
    %6905 = vmatprep.subr.mxu0 0.0
    %6906 = vmatpush1.msra.mxu0 0.0
    %6907 = vmatprep.subr.mxu0 0.0
    %6908 = vmatpush1.msra.mxu0 0.0
    %6909 = vmatprep.subr.mxu0 0.0
    %6910 = vmatpush1.msra.mxu0 0.0
    %6911 = vmatprep.subr.mxu0 0.0
    %6912 = vmatpush1.msra.mxu0 0.0
    %6913 = vmatprep.subr.mxu0 0.0
    %6914 = vmatpush1.msra.mxu0 0.0
    %6915 = vmatprep.subr.mxu0 0.0
    %6916 = vmatpush1.msra.mxu0 0.0
    %6917 = vmatprep.mubr.f32.mxu0 %v6845
    %6918 = vmatmul.mubr.f32.gmra.mrb[0].mxu0 %v6838
    %v6919 = vpop.f32.mrb[0].mxu0
    %v6920 = vadd.f32 0.0, %v6919
    %v6921 = vpop.f32.mrb[0].mxu0
    %6922 = vmatprep.mubr.f32.mxu0 %v6848
    %6923 = vmatmul.mubr.f32.gmra.mrb[0].mxu0 %v6840
    %v6924 = vpop.f32.mrb[0].mxu0
    %v6925 = vadd.f32 0.0, %v6924
    %v6926 = vpop.f32.mrb[0].mxu0
    %6927 = vmatprep.mubr.f32.mxu0 %v6851
    %6928 = vmatmul.mubr.f32.gmra.mrb[0].mxu0 %v6842
    %v6929 = vpop.f32.mrb[0].mxu0
    %v6930 = vadd.f32 0.0, %v6929
    %v6931 = vpop.f32.mrb[0].mxu0
    %6932 = vdwg.mxu0
    %6933 = vmatprep.subr.mxu0 0.0
    %6934 = vmatpush1.msra.mxu0 %v6819
    %6935 = vmatprep.subr.mxu0 0.0
    %6936 = vmatpush1.msra.mxu0 %v6824
    %6937 = vmatprep.subr.mxu0 0.0
    %6938 = vmatpush1.msra.mxu0 0.0
    %6939 = vmatprep.subr.mxu0 0.0
    %6940 = vmatpush1.msra.mxu0 0.0
    %6941 = vmatprep.subr.mxu0 0.0
    %6942 = vmatpush1.msra.mxu0 0.0
    %6943 = vmatprep.subr.mxu0 0.0
    %6944 = vmatpush1.msra.mxu0 0.0
    %6945 = vmatprep.subr.mxu0 0.0
    %6946 = vmatpush1.msra.mxu0 0.0
    %6947 = vmatprep.subr.mxu0 0.0
    %6948 = vmatpush1.msra.mxu0 0.0
    %6949 = vmatprep.subr.mxu0 0.0
    %6950 = vmatpush1.msra.mxu0 0.0
    %6951 = vmatprep.subr.mxu0 0.0
    %6952 = vmatpush1.msra.mxu0 0.0
    %6953 = vmatprep.subr.mxu0 0.0
    %6954 = vmatpush1.msra.mxu0 0.0
    %6955 = vmatprep.subr.mxu0 0.0
    %6956 = vmatpush1.msra.mxu0 0.0
    %6957 = vmatprep.subr.mxu0 0.0
    %6958 = vmatpush1.msra.mxu0 0.0
    %6959 = vmatprep.subr.mxu0 0.0
    %6960 = vmatpush1.msra.mxu0 0.0
    %6961 = vmatprep.subr.mxu0 0.0
    %6962 = vmatpush1.msra.mxu0 0.0
    %6963 = vmatprep.subr.mxu0 0.0
    %6964 = vmatpush1.msra.mxu0 0.0
    %6965 = vmatprep.subr.mxu0 0.0
    %6966 = vmatpush1.msra.mxu0 0.0
    %6967 = vmatprep.subr.mxu0 0.0
    %6968 = vmatpush1.msra.mxu0 0.0
    %6969 = vmatprep.subr.mxu0 0.0
    %6970 = vmatpush1.msra.mxu0 0.0
    %6971 = vmatprep.subr.mxu0 0.0
    %6972 = vmatpush1.msra.mxu0 0.0
    %6973 = vmatprep.subr.mxu0 0.0
    %6974 = vmatpush1.msra.mxu0 0.0
    %6975 = vmatprep.subr.mxu0 0.0
    %6976 = vmatpush1.msra.mxu0 0.0
    %6977 = vmatprep.subr.mxu0 0.0
    %6978 = vmatpush1.msra.mxu0 0.0
    %6979 = vmatprep.subr.mxu0 0.0
    %6980 = vmatpush1.msra.mxu0 0.0
    %6981 = vmatprep.subr.mxu0 0.0
    %6982 = vmatpush1.msra.mxu0 0.0
    %6983 = vmatprep.subr.mxu0 0.0
    %6984 = vmatpush1.msra.mxu0 0.0
    %6985 = vmatprep.subr.mxu0 0.0
    %6986 = vmatpush1.msra.mxu0 0.0
    %6987 = vmatprep.subr.mxu0 0.0
    %6988 = vmatpush1.msra.mxu0 0.0
    %6989 = vmatprep.subr.mxu0 0.0
    %6990 = vmatpush1.msra.mxu0 0.0
    %6991 = vmatprep.subr.mxu0 0.0
    %6992 = vmatpush1.msra.mxu0 0.0
    %6993 = vmatprep.subr.mxu0 0.0
    %6994 = vmatpush1.msra.mxu0 0.0
    %6995 = vmatprep.subr.mxu0 0.0
    %6996 = vmatpush1.msra.mxu0 0.0
    %6997 = vmatprep.mubr.f32.mxu0 0.0
    %6998 = vmatmul.mubr.f32.gmra.mrb[0].mxu0 %v2093
    %v6999 = vpop.f32.mrb[0].mxu0
    %v7000 = vadd.f32 0.0, %v6999
    %v7001 = vpop.f32.mrb[0].mxu0
    %7002 = vmatprep.mubr.f32.mxu0 0.0
    %7003 = vmatmul.mubr.f32.gmra.mrb[0].mxu0 %v2096
    %v7004 = vpop.f32.mrb[0].mxu0
    %v7005 = vadd.f32 0.0, %v7004
    %v7006 = vpop.f32.mrb[0].mxu0
    %7007 = vmatprep.mubr.f32.mxu0 0.0
    %7008 = vmatmul.mubr.f32.gmra.mrb[0].mxu0 %v2099
    %v7009 = vpop.f32.mrb[0].mxu0
    %v7010 = vadd.f32 0.0, %v7009
    %v7011 = vpop.f32.mrb[0].mxu0
    %7012 = vdwg.mxu0
    %v7014 = vsel %vm2191, %v6728, 0
    %7016 = vmatprep.subr.mxu0 0.0
    %7017 = vmatpush1.msra.mxu0 %v6723
    %7018 = vmatprep.subr.mxu0 0.0
    %7019 = vmatpush1.msra.mxu0 %v7014
    %7020 = vmatprep.subr.mxu0 0.0
    %7021 = vmatpush1.msra.mxu0 0.0
    %7022 = vmatprep.subr.mxu0 0.0
    %7023 = vmatpush1.msra.mxu0 0.0
    %7024 = vmatprep.subr.mxu0 0.0
    %7025 = vmatpush1.msra.mxu0 0.0
    %7026 = vmatprep.subr.mxu0 0.0
    %7027 = vmatpush1.msra.mxu0 0.0
    %7028 = vmatprep.subr.mxu0 0.0
    %7029 = vmatpush1.msra.mxu0 0.0
    %7030 = vmatprep.subr.mxu0 0.0
    %7031 = vmatpush1.msra.mxu0 0.0
    %7032 = vmatprep.subr.mxu0 0.0
    %7033 = vmatpush1.msra.mxu0 0.0
    %7034 = vmatprep.subr.mxu0 0.0
    %7035 = vmatpush1.msra.mxu0 0.0
    %7036 = vmatprep.subr.mxu0 0.0
    %7037 = vmatpush1.msra.mxu0 0.0
    %7038 = vmatprep.subr.mxu0 0.0
    %7039 = vmatpush1.msra.mxu0 0.0
    %7040 = vmatprep.subr.mxu0 0.0
    %7041 = vmatpush1.msra.mxu0 0.0
    %7042 = vmatprep.subr.mxu0 0.0
    %7043 = vmatpush1.msra.mxu0 0.0
    %7044 = vmatprep.subr.mxu0 0.0
    %7045 = vmatpush1.msra.mxu0 0.0
    %7046 = vmatprep.subr.mxu0 0.0
    %7047 = vmatpush1.msra.mxu0 0.0
    %7048 = vmatprep.subr.mxu0 0.0
    %7049 = vmatpush1.msra.mxu0 0.0
    %7050 = vmatprep.subr.mxu0 0.0
    %7051 = vmatpush1.msra.mxu0 0.0
    %7052 = vmatprep.subr.mxu0 0.0
    %7053 = vmatpush1.msra.mxu0 0.0
    %7054 = vmatprep.subr.mxu0 0.0
    %7055 = vmatpush1.msra.mxu0 0.0
    %7056 = vmatprep.subr.mxu0 0.0
    %7057 = vmatpush1.msra.mxu0 0.0
    %7058 = vmatprep.subr.mxu0 0.0
    %7059 = vmatpush1.msra.mxu0 0.0
    %7060 = vmatprep.subr.mxu0 0.0
    %7061 = vmatpush1.msra.mxu0 0.0
    %7062 = vmatprep.subr.mxu0 0.0
    %7063 = vmatpush1.msra.mxu0 0.0
    %7064 = vmatprep.subr.mxu0 0.0
    %7065 = vmatpush1.msra.mxu0 0.0
    %7066 = vmatprep.subr.mxu0 0.0
    %7067 = vmatpush1.msra.mxu0 0.0
    %7068 = vmatprep.subr.mxu0 0.0
    %7069 = vmatpush1.msra.mxu0 0.0
    %7070 = vmatprep.subr.mxu0 0.0
    %7071 = vmatpush1.msra.mxu0 0.0
    %7072 = vmatprep.subr.mxu0 0.0
    %7073 = vmatpush1.msra.mxu0 0.0
    %7074 = vmatprep.subr.mxu0 0.0
    %7075 = vmatpush1.msra.mxu0 0.0
    %7076 = vmatprep.subr.mxu0 0.0
    %7077 = vmatpush1.msra.mxu0 0.0
    %7078 = vmatprep.subr.mxu0 0.0
    %7079 = vmatpush1.msra.mxu0 0.0
    %7080 = vmatprep.mubr.f32.mxu0 0.0
    %7081 = vmatmul.mubr.f32.gmra.mrb[0].mxu0 %v2183
    %v7082 = vpop.f32.mrb[0].mxu0
    %v7083 = vadd.f32 %v7000, %v7082
    %v7084 = vpop.f32.mrb[0].mxu0
    %7085 = vmatprep.mubr.f32.mxu0 0.0
    %7086 = vmatmul.mubr.f32.gmra.mrb[0].mxu0 %v2186
    %v7087 = vpop.f32.mrb[0].mxu0
    %v7088 = vadd.f32 %v7005, %v7087
    %v7089 = vpop.f32.mrb[0].mxu0
    %7090 = vmatprep.mubr.f32.mxu0 0.0
    %7091 = vmatmul.mubr.f32.gmra.mrb[0].mxu0 %v2189
    %v7092 = vpop.f32.mrb[0].mxu0
    %v7093 = vadd.f32 %v7010, %v7092
    %v7094 = vpop.f32.mrb[0].mxu0
    %7095 = vdwg.mxu0
    %v7096 = vadd.f32 %v7083, %v6920
    %v7097 = vadd.f32 %v7088, %v6925
    %v7098 = vadd.f32 %v7093, %v6930
    %vm7099 = vcmp.gt.f32.partialorder %v7096, 0.0
    %vm7100 = vcmp.gt.f32.partialorder %v7097, 0.0
    %vm7101 = vcmp.gt.f32.partialorder %v7098, 0.0
    %v7102 = vmul.f32 %v7096, 0.2
    %v7103 = vmul.f32 %v7097, 0.2
    %v7104 = vmul.f32 %v7098, 0.2
    %v7105 = vsel %vm7099, %v7096, %v7102
    %v7106 = vsel %vm7100, %v7097, %v7103
    %v7107 = vsel %vm7101, %v7098, %v7104
    %v7108 = vsel %vm1056, %v7105, -inf
    %v7109 = vsel %vm1056, %v7106, -inf
    %v7110 = vsel %vm1056, %v7107, -inf
    %v7111 = vmax.f32 %v7108, %v7109
    %v7112 = vmax.f32 %v7111, %v7110
    %v7113 = vrot.slane %v7112, 4
    %v7114 = vmax.f32 %v7112, %v7113
    %v7115 = vrot.slane %v7114, 2
    %v7116 = vmax.f32 %v7114, %v7115
    %v7117 = vrot.slane %v7116, 1
    %v7118 = vmax.f32 %v7116, %v7117
    %v7119 = vsub.f32 %v7105, %v7118
    %v7120 = vsub.f32 %v7106, %v7118
    %v7121 = vsub.f32 %v7107, %v7118
    %v7122 = vmul.f32 %v7119, 1.442695
    %v7123 = vpow.pop %v7122
    %v7124 = vmul.f32 %v7120, 1.442695
    %v7125 = vpow.pop %v7124
    %v7126 = vmul.f32 %v7121, 1.442695
    %v7127 = vpow.pop %v7126
    %7128 = vmatprep.subr.mxu0 0.0
    %7129 = vmatpush1.msra.mxu0 %v7123
    %7130 = vmatprep.subr.mxu0 0.0
    %7131 = vmatpush1.msra.mxu0 %v7125
    %7132 = vmatprep.subr.mxu0 0.0
    %7133 = vmatpush1.msra.mxu0 %v7127
    %7134 = vmatprep.subr.mxu0 0.0
    %7135 = vmatpush1.msra.mxu0 0.0
    %7136 = vmatprep.subr.mxu0 0.0
    %7137 = vmatpush1.msra.mxu0 0.0
    %7138 = vmatprep.subr.mxu0 0.0
    %7139 = vmatpush1.msra.mxu0 0.0
    %7140 = vmatprep.subr.mxu0 0.0
    %7141 = vmatpush1.msra.mxu0 0.0
    %7142 = vmatprep.subr.mxu0 0.0
    %7143 = vmatpush1.msra.mxu0 0.0
    %7144 = vmatprep.subr.mxu0 0.0
    %7145 = vmatpush1.msra.mxu0 0.0
    %7146 = vmatprep.subr.mxu0 0.0
    %7147 = vmatpush1.msra.mxu0 0.0
    %7148 = vmatprep.subr.mxu0 0.0
    %7149 = vmatpush1.msra.mxu0 0.0
    %7150 = vmatprep.subr.mxu0 0.0
    %7151 = vmatpush1.msra.mxu0 0.0
    %7152 = vmatprep.subr.mxu0 0.0
    %7153 = vmatpush1.msra.mxu0 0.0
    %7154 = vmatprep.subr.mxu0 0.0
    %7155 = vmatpush1.msra.mxu0 0.0
    %7156 = vmatprep.subr.mxu0 0.0
    %7157 = vmatpush1.msra.mxu0 0.0
    %7158 = vmatprep.subr.mxu0 0.0
    %7159 = vmatpush1.msra.mxu0 0.0
    %7160 = vmatprep.subr.mxu0 0.0
    %7161 = vmatpush1.msra.mxu0 0.0
    %7162 = vmatprep.subr.mxu0 0.0
    %7163 = vmatpush1.msra.mxu0 0.0
    %7164 = vmatprep.subr.mxu0 0.0
    %7165 = vmatpush1.msra.mxu0 0.0
    %7166 = vmatprep.subr.mxu0 0.0
    %7167 = vmatpush1.msra.mxu0 0.0
    %7168 = vmatprep.subr.mxu0 0.0
    %7169 = vmatpush1.msra.mxu0 0.0
    %7170 = vmatprep.subr.mxu0 0.0
    %7171 = vmatpush1.msra.mxu0 0.0
    %7172 = vmatprep.subr.mxu0 0.0
    %7173 = vmatpush1.msra.mxu0 0.0
    %7174 = vmatprep.subr.mxu0 0.0
    %7175 = vmatpush1.msra.mxu0 0.0
    %7176 = vmatprep.subr.mxu0 0.0
    %7177 = vmatpush1.msra.mxu0 0.0
    %7178 = vmatprep.subr.mxu0 0.0
    %7179 = vmatpush1.msra.mxu0 0.0
    %7180 = vmatprep.subr.mxu0 0.0
    %7181 = vmatpush1.msra.mxu0 0.0
    %7182 = vmatprep.subr.mxu0 0.0
    %7183 = vmatpush1.msra.mxu0 0.0
    %7184 = vmatprep.subr.mxu0 0.0
    %7185 = vmatpush1.msra.mxu0 0.0
    %7186 = vmatprep.subr.mxu0 0.0
    %7187 = vmatpush1.msra.mxu0 0.0
    %7188 = vmatprep.subr.mxu0 0.0
    %7189 = vmatpush1.msra.mxu0 0.0
    %7190 = vmatprep.subr.mxu0 0.0
    %7191 = vmatpush1.msra.mxu0 0.0
    %7192 = vmatprep.mubr.f32.mxu0 0.0
    %7193 = vmatmul.mubr.f32.gmra.mrb[0].mxu0 %v2309
    %v7194 = vpop.f32.mrb[0].mxu0
    %v7195 = vadd.f32 0.0, %v7194
    %v7196 = vpop.f32.mrb[0].mxu0
    %7197 = vmatprep.mubr.f32.mxu0 0.0
    %7198 = vmatmul.mubr.f32.gmra.mrb[0].mxu0 %v2312
    %v7199 = vpop.f32.mrb[0].mxu0
    %v7200 = vadd.f32 0.0, %v7199
    %v7201 = vpop.f32.mrb[0].mxu0
    %7202 = vdwg.mxu0
    %7203 = vmatprep.subr.mxu0 0.0
    %7204 = vmatpush1.msra.mxu0 %v7195
    %7205 = vmatprep.subr.mxu0 0.0
    %7206 = vmatpush1.msra.mxu0 %v7200
    %7207 = vmatprep.subr.mxu0 0.0
    %7208 = vmatpush1.msra.mxu0 0.0
    %7209 = vmatprep.subr.mxu0 0.0
    %7210 = vmatpush1.msra.mxu0 0.0
    %7211 = vmatprep.subr.mxu0 0.0
    %7212 = vmatpush1.msra.mxu0 0.0
    %7213 = vmatprep.subr.mxu0 0.0
    %7214 = vmatpush1.msra.mxu0 0.0
    %7215 = vmatprep.subr.mxu0 0.0
    %7216 = vmatpush1.msra.mxu0 0.0
    %7217 = vmatprep.subr.mxu0 0.0
    %7218 = vmatpush1.msra.mxu0 0.0
    %7219 = vmatprep.subr.mxu0 0.0
    %7220 = vmatpush1.msra.mxu0 0.0
    %7221 = vmatprep.subr.mxu0 0.0
    %7222 = vmatpush1.msra.mxu0 0.0
    %7223 = vmatprep.subr.mxu0 0.0
    %7224 = vmatpush1.msra.mxu0 0.0
    %7225 = vmatprep.subr.mxu0 0.0
    %7226 = vmatpush1.msra.mxu0 0.0
    %7227 = vmatprep.subr.mxu0 0.0
    %7228 = vmatpush1.msra.mxu0 0.0
    %7229 = vmatprep.subr.mxu0 0.0
    %7230 = vmatpush1.msra.mxu0 0.0
    %7231 = vmatprep.subr.mxu0 0.0
    %7232 = vmatpush1.msra.mxu0 0.0
    %7233 = vmatprep.subr.mxu0 0.0
    %7234 = vmatpush1.msra.mxu0 0.0
    %7235 = vmatprep.subr.mxu0 0.0
    %7236 = vmatpush1.msra.mxu0 0.0
    %7237 = vmatprep.subr.mxu0 0.0
    %7238 = vmatpush1.msra.mxu0 0.0
    %7239 = vmatprep.subr.mxu0 0.0
    %7240 = vmatpush1.msra.mxu0 0.0
    %7241 = vmatprep.subr.mxu0 0.0
    %7242 = vmatpush1.msra.mxu0 0.0
    %7243 = vmatprep.subr.mxu0 0.0
    %7244 = vmatpush1.msra.mxu0 0.0
    %7245 = vmatprep.subr.mxu0 0.0
    %7246 = vmatpush1.msra.mxu0 0.0
    %7247 = vmatprep.subr.mxu0 0.0
    %7248 = vmatpush1.msra.mxu0 0.0
    %7249 = vmatprep.subr.mxu0 0.0
    %7250 = vmatpush1.msra.mxu0 0.0
    %7251 = vmatprep.subr.mxu0 0.0
    %7252 = vmatpush1.msra.mxu0 0.0
    %7253 = vmatprep.subr.mxu0 0.0
    %7254 = vmatpush1.msra.mxu0 0.0
    %7255 = vmatprep.subr.mxu0 0.0
    %7256 = vmatpush1.msra.mxu0 0.0
    %7257 = vmatprep.subr.mxu0 0.0
    %7258 = vmatpush1.msra.mxu0 0.0
    %7259 = vmatprep.subr.mxu0 0.0
    %7260 = vmatpush1.msra.mxu0 0.0
    %7261 = vmatprep.subr.mxu0 0.0
    %7262 = vmatpush1.msra.mxu0 0.0
    %7263 = vmatprep.subr.mxu0 0.0
    %7264 = vmatpush1.msra.mxu0 0.0
    %7265 = vmatprep.subr.mxu0 0.0
    %7266 = vmatpush1.msra.mxu0 0.0
    %7267 = vmatprep.mubr.f32.mxu0 0.0
    %7268 = vmatmul.mubr.f32.gmra.mrb[0].mxu0 %v2093
    %v7269 = vpop.f32.mrb[0].mxu0
    %v7270 = vadd.f32 0.0, %v7269
    %v7271 = vpop.f32.mrb[0].mxu0
    %7272 = vmatprep.mubr.f32.mxu0 0.0
    %7273 = vmatmul.mubr.f32.gmra.mrb[0].mxu0 %v2096
    %v7274 = vpop.f32.mrb[0].mxu0
    %v7275 = vadd.f32 0.0, %v7274
    %v7276 = vpop.f32.mrb[0].mxu0
    %7277 = vmatprep.mubr.f32.mxu0 0.0
    %7278 = vmatmul.mubr.f32.gmra.mrb[0].mxu0 %v2099
    %v7279 = vpop.f32.mrb[0].mxu0
    %v7280 = vadd.f32 0.0, %v7279
    %v7281 = vpop.f32.mrb[0].mxu0
    %7282 = vdwg.mxu0
    %v7283 = vrcp.pop %v7270
    %v7284 = vmul.f32 %v7123, %v7283
    %v7285 = vrcp.pop %v7275
    %v7286 = vmul.f32 %v7125, %v7285
    %v7287 = vrcp.pop %v7280
    %v7288 = vmul.f32 %v7127, %v7287
    %v7290 = vsel %vm2191, %v6456, 0
    %v7293 = vsel %vm2191, %v6458, 0
    %7295 = vmatprep.subr.mxu0 %v6452
    %7296 = vmatpush1.msra.mxu0 %v6450
    %7297 = vmatprep.subr.mxu0 %v7293
    %7298 = vmatpush1.msra.mxu0 %v7290
    %7299 = vmatprep.subr.mxu0 0.0
    %7300 = vmatpush1.msra.mxu0 0.0
    %7301 = vmatprep.subr.mxu0 0.0
    %7302 = vmatpush1.msra.mxu0 0.0
    %7303 = vmatprep.subr.mxu0 0.0
    %7304 = vmatpush1.msra.mxu0 0.0
    %7305 = vmatprep.subr.mxu0 0.0
    %7306 = vmatpush1.msra.mxu0 0.0
    %7307 = vmatprep.subr.mxu0 0.0
    %7308 = vmatpush1.msra.mxu0 0.0
    %7309 = vmatprep.subr.mxu0 0.0
    %7310 = vmatpush1.msra.mxu0 0.0
    %7311 = vmatprep.subr.mxu0 0.0
    %7312 = vmatpush1.msra.mxu0 0.0
    %7313 = vmatprep.subr.mxu0 0.0
    %7314 = vmatpush1.msra.mxu0 0.0
    %7315 = vmatprep.subr.mxu0 0.0
    %7316 = vmatpush1.msra.mxu0 0.0
    %7317 = vmatprep.subr.mxu0 0.0
    %7318 = vmatpush1.msra.mxu0 0.0
    %7319 = vmatprep.subr.mxu0 0.0
    %7320 = vmatpush1.msra.mxu0 0.0
    %7321 = vmatprep.subr.mxu0 0.0
    %7322 = vmatpush1.msra.mxu0 0.0
    %7323 = vmatprep.subr.mxu0 0.0
    %7324 = vmatpush1.msra.mxu0 0.0
    %7325 = vmatprep.subr.mxu0 0.0
    %7326 = vmatpush1.msra.mxu0 0.0
    %7327 = vmatprep.subr.mxu0 0.0
    %7328 = vmatpush1.msra.mxu0 0.0
    %7329 = vmatprep.subr.mxu0 0.0
    %7330 = vmatpush1.msra.mxu0 0.0
    %7331 = vmatprep.subr.mxu0 0.0
    %7332 = vmatpush1.msra.mxu0 0.0
    %7333 = vmatprep.subr.mxu0 0.0
    %7334 = vmatpush1.msra.mxu0 0.0
    %7335 = vmatprep.subr.mxu0 0.0
    %7336 = vmatpush1.msra.mxu0 0.0
    %7337 = vmatprep.subr.mxu0 0.0
    %7338 = vmatpush1.msra.mxu0 0.0
    %7339 = vmatprep.subr.mxu0 0.0
    %7340 = vmatpush1.msra.mxu0 0.0
    %7341 = vmatprep.subr.mxu0 0.0
    %7342 = vmatpush1.msra.mxu0 0.0
    %7343 = vmatprep.subr.mxu0 0.0
    %7344 = vmatpush1.msra.mxu0 0.0
    %7345 = vmatprep.subr.mxu0 0.0
    %7346 = vmatpush1.msra.mxu0 0.0
    %7347 = vmatprep.subr.mxu0 0.0
    %7348 = vmatpush1.msra.mxu0 0.0
    %7349 = vmatprep.subr.mxu0 0.0
    %7350 = vmatpush1.msra.mxu0 0.0
    %7351 = vmatprep.subr.mxu0 0.0
    %7352 = vmatpush1.msra.mxu0 0.0
    %7353 = vmatprep.subr.mxu0 0.0
    %7354 = vmatpush1.msra.mxu0 0.0
    %7355 = vmatprep.subr.mxu0 0.0
    %7356 = vmatpush1.msra.mxu0 0.0
    %7357 = vmatprep.subr.mxu0 0.0
    %7358 = vmatpush1.msra.mxu0 0.0
    %7359 = vmatprep.mubr.f32.mxu0 0.0
    %7360 = vmatmul.mubr.f32.gmra.mrb[0].mxu0 %v2183
    %v7361 = vpop.f32.mrb[0].mxu0
    %v7362 = vadd.f32 0.0, %v7361
    %v7363 = vpop.f32.mrb[0].mxu0
    %v7364 = vadd.f32 0.0, %v7363
    %7365 = vmatprep.mubr.f32.mxu0 0.0
    %7366 = vmatmul.mubr.f32.gmra.mrb[0].mxu0 %v2186
    %v7367 = vpop.f32.mrb[0].mxu0
    %v7368 = vadd.f32 0.0, %v7367
    %v7369 = vpop.f32.mrb[0].mxu0
    %v7370 = vadd.f32 0.0, %v7369
    %7371 = vmatprep.mubr.f32.mxu0 0.0
    %7372 = vmatmul.mubr.f32.gmra.mrb[0].mxu0 %v2189
    %v7373 = vpop.f32.mrb[0].mxu0
    %v7374 = vadd.f32 0.0, %v7373
    %v7375 = vpop.f32.mrb[0].mxu0
    %v7376 = vadd.f32 0.0, %v7375
    %7377 = vdwg.mxu0
    %v7379 = vsel %vm1056, %v7284, 0
    %v7382 = vsel %vm1056, %v7286, 0
    %v7385 = vsel %vm1056, %v7288, 0
    %7387 = vmatprep.subr.mxu0 %v2577
    %7388 = vmatpush1.msra.mxu0 %v2574
    %7389 = vmatprep.subr.mxu0 0.0
    %7390 = vmatpush1.msra.mxu0 0.0
    %7391 = vmatprep.subr.mxu0 0.0
    %7392 = vmatpush1.msra.mxu0 0.0
    %7393 = vmatprep.subr.mxu0 0.0
    %7394 = vmatpush1.msra.mxu0 0.0
    %7395 = vmatprep.subr.mxu0 0.0
    %7396 = vmatpush1.msra.mxu0 0.0
    %7397 = vmatprep.subr.mxu0 0.0
    %7398 = vmatpush1.msra.mxu0 0.0
    %7399 = vmatprep.subr.mxu0 0.0
    %7400 = vmatpush1.msra.mxu0 0.0
    %7401 = vmatprep.subr.mxu0 0.0
    %7402 = vmatpush1.msra.mxu0 0.0
    %7403 = vmatprep.subr.mxu0 0.0
    %7404 = vmatpush1.msra.mxu0 0.0
    %7405 = vmatprep.subr.mxu0 0.0
    %7406 = vmatpush1.msra.mxu0 0.0
    %7407 = vmatprep.subr.mxu0 0.0
    %7408 = vmatpush1.msra.mxu0 0.0
    %7409 = vmatprep.subr.mxu0 0.0
    %7410 = vmatpush1.msra.mxu0 0.0
    %7411 = vmatprep.subr.mxu0 0.0
    %7412 = vmatpush1.msra.mxu0 0.0
    %7413 = vmatprep.subr.mxu0 0.0
    %7414 = vmatpush1.msra.mxu0 0.0
    %7415 = vmatprep.subr.mxu0 0.0
    %7416 = vmatpush1.msra.mxu0 0.0
    %7417 = vmatprep.subr.mxu0 0.0
    %7418 = vmatpush1.msra.mxu0 0.0
    %7419 = vmatprep.subr.mxu0 0.0
    %7420 = vmatpush1.msra.mxu0 0.0
    %7421 = vmatprep.subr.mxu0 0.0
    %7422 = vmatpush1.msra.mxu0 0.0
    %7423 = vmatprep.subr.mxu0 0.0
    %7424 = vmatpush1.msra.mxu0 0.0
    %7425 = vmatprep.subr.mxu0 0.0
    %7426 = vmatpush1.msra.mxu0 0.0
    %7427 = vmatprep.subr.mxu0 0.0
    %7428 = vmatpush1.msra.mxu0 0.0
    %7429 = vmatprep.subr.mxu0 0.0
    %7430 = vmatpush1.msra.mxu0 0.0
    %7431 = vmatprep.subr.mxu0 0.0
    %7432 = vmatpush1.msra.mxu0 0.0
    %7433 = vmatprep.subr.mxu0 0.0
    %7434 = vmatpush1.msra.mxu0 0.0
    %7435 = vmatprep.subr.mxu0 0.0
    %7436 = vmatpush1.msra.mxu0 0.0
    %7437 = vmatprep.subr.mxu0 0.0
    %7438 = vmatpush1.msra.mxu0 0.0
    %7439 = vmatprep.subr.mxu0 0.0
    %7440 = vmatpush1.msra.mxu0 0.0
    %7441 = vmatprep.subr.mxu0 0.0
    %7442 = vmatpush1.msra.mxu0 0.0
    %7443 = vmatprep.subr.mxu0 0.0
    %7444 = vmatpush1.msra.mxu0 0.0
    %7445 = vmatprep.subr.mxu0 0.0
    %7446 = vmatpush1.msra.mxu0 0.0
    %7447 = vmatprep.subr.mxu0 0.0
    %7448 = vmatpush1.msra.mxu0 0.0
    %7449 = vmatprep.subr.mxu0 0.0
    %7450 = vmatpush1.msra.mxu0 0.0
    %7451 = vmatprep.mubr.f32.mxu0 0.0
    %7452 = vmatmul.mubr.f32.gmra.mrb[0].mxu0 %v7379
    %v7453 = vpop.f32.mrb[0].mxu0
    %v7454 = vadd.f32 0.0, %v7453
    %v7455 = vpop.f32.mrb[0].mxu0
    %v7456 = vadd.f32 0.0, %v7455
    %7457 = vmatprep.mubr.f32.mxu0 0.0
    %7458 = vmatmul.mubr.f32.gmra.mrb[0].mxu0 %v7382
    %v7459 = vpop.f32.mrb[0].mxu0
    %v7460 = vadd.f32 0.0, %v7459
    %v7461 = vpop.f32.mrb[0].mxu0
    %v7462 = vadd.f32 0.0, %v7461
    %7463 = vmatprep.mubr.f32.mxu0 0.0
    %7464 = vmatmul.mubr.f32.gmra.mrb[0].mxu0 %v7385
    %v7465 = vpop.f32.mrb[0].mxu0
    %v7466 = vadd.f32 0.0, %v7465
    %v7467 = vpop.f32.mrb[0].mxu0
    %v7468 = vadd.f32 0.0, %v7467
    %7469 = vdwg.mxu0
    %v7470 = vmul.f32 %v7454, %v7362
    %v7471 = vmul.f32 %v7456, %v7364
    %v7472 = vmul.f32 %v7460, %v7368
    %v7473 = vmul.f32 %v7462, %v7370
    %v7474 = vmul.f32 %v7466, %v7374
    %v7475 = vmul.f32 %v7468, %v7376
    %v7477 = vlaneseq
    %v7478 = vshrl.u32 %v7477, 7
    %v7479 = vsub.s32 0, %v7478
    %v7480 = vrot.slane %v6376, %v7479
    %v7481 = vlaneseq
    %v7482 = vshrl.u32 %v7481, 7
    %v7483 = vsub.s32 1, %v7482
    %v7484 = vrot.slane %v6376, %v7483
    %7487 = vmatprep.subr.mxu0 %v7471
    %7488 = vmatpush1.msra.mxu0 %v7470
    %7489 = vmatprep.subr.mxu0 %v7473
    %7490 = vmatpush1.msra.mxu0 %v7472
    %7491 = vmatprep.subr.mxu0 %v7475
    %7492 = vmatpush1.msra.mxu0 %v7474
    %7493 = vmatprep.subr.mxu0 0.0
    %7494 = vmatpush1.msra.mxu0 0.0
    %7495 = vmatprep.subr.mxu0 0.0
    %7496 = vmatpush1.msra.mxu0 0.0
    %7497 = vmatprep.subr.mxu0 0.0
    %7498 = vmatpush1.msra.mxu0 0.0
    %7499 = vmatprep.subr.mxu0 0.0
    %7500 = vmatpush1.msra.mxu0 0.0
    %7501 = vmatprep.subr.mxu0 0.0
    %7502 = vmatpush1.msra.mxu0 0.0
    %7503 = vmatprep.subr.mxu0 0.0
    %7504 = vmatpush1.msra.mxu0 0.0
    %7505 = vmatprep.subr.mxu0 0.0
    %7506 = vmatpush1.msra.mxu0 0.0
    %7507 = vmatprep.subr.mxu0 0.0
    %7508 = vmatpush1.msra.mxu0 0.0
    %7509 = vmatprep.subr.mxu0 0.0
    %7510 = vmatpush1.msra.mxu0 0.0
    %7511 = vmatprep.subr.mxu0 0.0
    %7512 = vmatpush1.msra.mxu0 0.0
    %7513 = vmatprep.subr.mxu0 0.0
    %7514 = vmatpush1.msra.mxu0 0.0
    %7515 = vmatprep.subr.mxu0 0.0
    %7516 = vmatpush1.msra.mxu0 0.0
    %7517 = vmatprep.subr.mxu0 0.0
    %7518 = vmatpush1.msra.mxu0 0.0
    %7519 = vmatprep.subr.mxu0 0.0
    %7520 = vmatpush1.msra.mxu0 0.0
    %7521 = vmatprep.subr.mxu0 0.0
    %7522 = vmatpush1.msra.mxu0 0.0
    %7523 = vmatprep.subr.mxu0 0.0
    %7524 = vmatpush1.msra.mxu0 0.0
    %7525 = vmatprep.subr.mxu0 0.0
    %7526 = vmatpush1.msra.mxu0 0.0
    %7527 = vmatprep.subr.mxu0 0.0
    %7528 = vmatpush1.msra.mxu0 0.0
    %7529 = vmatprep.subr.mxu0 0.0
    %7530 = vmatpush1.msra.mxu0 0.0
    %7531 = vmatprep.subr.mxu0 0.0
    %7532 = vmatpush1.msra.mxu0 0.0
    %7533 = vmatprep.subr.mxu0 0.0
    %7534 = vmatpush1.msra.mxu0 0.0
    %7535 = vmatprep.subr.mxu0 0.0
    %7536 = vmatpush1.msra.mxu0 0.0
    %7537 = vmatprep.subr.mxu0 0.0
    %7538 = vmatpush1.msra.mxu0 0.0
    %7539 = vmatprep.subr.mxu0 0.0
    %7540 = vmatpush1.msra.mxu0 0.0
    %7541 = vmatprep.subr.mxu0 0.0
    %7542 = vmatpush1.msra.mxu0 0.0
    %7543 = vmatprep.subr.mxu0 0.0
    %7544 = vmatpush1.msra.mxu0 0.0
    %7545 = vmatprep.subr.mxu0 0.0
    %7546 = vmatpush1.msra.mxu0 0.0
    %7547 = vmatprep.subr.mxu0 0.0
    %7548 = vmatpush1.msra.mxu0 0.0
    %7549 = vmatprep.subr.mxu0 0.0
    %7550 = vmatpush1.msra.mxu0 0.0
    %7551 = vmatprep.mubr.f32.mxu0 0.0
    %7552 = vmatmul.mubr.f32.gmra.mrb[0].mxu0 %v2309
    %v7553 = vpop.f32.mrb[0].mxu0
    %v7554 = vadd.f32 %v7480, %v7553
    %v7555 = vpop.f32.mrb[0].mxu0
    %v7556 = vadd.f32 %v7484, %v7555
    %7557 = vmatprep.mubr.f32.mxu0 0.0
    %7558 = vmatmul.mubr.f32.gmra.mrb[0].mxu0 %v2312
    %v7559 = vpop.f32.mrb[0].mxu0
    %v7560 = vadd.f32 %v7480, %v7559
    %v7561 = vpop.f32.mrb[0].mxu0
    %v7562 = vadd.f32 %v7484, %v7561
    %7563 = vdwg.mxu0
    %v7564 = vld [vmem:[%s143] sm:$0xff]
    %v7565 = vld [vmem:[%s143 + $0x8] sm:$0xff]
    %v7566 = vld [vmem:[%s143 + $0x10] sm:$0xff]
    %v7567 = vld [vmem:[%s143 + $0x18] sm:$0xff]
    %v7568 = vld [vmem:[%s143 + $0x20] sm:$0xff]
    %v7569 = vld [vmem:[%s143 + $0x28] sm:$0xff]
    %v7570 = vld [vmem:[%s143 + $0x30] sm:$0xff]
    %v7571 = vld [vmem:[%s143 + $0x38] sm:$0xff]
    %v7572 = vld [vmem:[%s143 + $0x40] sm:$0xff]
    %v7573 = vld [vmem:[%s143 + $0x48] sm:$0xff]
    %v7574 = vld [vmem:[%s143 + $0x50] sm:$0xff]
    %v7575 = vld [vmem:[%s143 + $0x58] sm:$0xff]
    %v7576 = vld [vmem:[%s143 + $0x60] sm:$0xff]
    %v7577 = vld [vmem:[%s143 + $0x68] sm:$0xff]
    %v7578 = vld [vmem:[%s143 + $0x70] sm:$0xff]
    %v7579 = vld [vmem:[%s143 + $0x78] sm:$0xff]
    %v7580 = vld [vmem:[%s143 + $0x80] sm:$0xff]
    %v7581 = vld [vmem:[%s143 + $0x88] sm:$0xff]
    %v7582 = vld [vmem:[%s143 + $0x90] sm:$0xff]
    %v7583 = vld [vmem:[%s143 + $0x98] sm:$0xff]
    %v7584 = vld [vmem:[%s143 + $0xa0] sm:$0xff]
    %v7585 = vld [vmem:[%s143 + $0xa8] sm:$0xff]
    %v7586 = vld [vmem:[%s143 + $0xb0] sm:$0xff]
    %v7587 = vld [vmem:[%s143 + $0xb8] sm:$0xff]
    %v7588 = vld [vmem:[#allocation52] sm:$0x1]
    %v7589 = vld [vmem:[%s147] sm:$0xff]
    %v7590 = vld [vmem:[%s147 + $0x8] sm:$0xff]
    %v7591 = vld [vmem:[%s147 + $0x10] sm:$0xff]
    %v7592 = vld [vmem:[%s147 + $0x18] sm:$0xff]
    %v7593 = vld [vmem:[#allocation54] sm:$0x1]
    %v7595 = vlaneseq
    %v7596 = vshrl.u32 %v7595, 7
    %v7597 = vsub.s32 0, %v7596
    %v7598 = vrot.slane %v7588, %v7597
    %v7601 = vsel %vm1807, %v7556, 0
    %v7604 = vsel %vm1807, %v7562, 0
    %7606 = vmatprep.subr.mxu0 0.0
    %7607 = vmatpush1.msra.mxu0 %v7564
    %7608 = vmatprep.subr.mxu0 0.0
    %7609 = vmatpush1.msra.mxu0 %v7565
    %7610 = vmatprep.subr.mxu0 0.0
    %7611 = vmatpush1.msra.mxu0 %v7566
    %7612 = vmatprep.subr.mxu0 0.0
    %7613 = vmatpush1.msra.mxu0 %v7567
    %7614 = vmatprep.subr.mxu0 0.0
    %7615 = vmatpush1.msra.mxu0 %v7568
    %7616 = vmatprep.subr.mxu0 0.0
    %7617 = vmatpush1.msra.mxu0 %v7569
    %7618 = vmatprep.subr.mxu0 0.0
    %7619 = vmatpush1.msra.mxu0 %v7570
    %7620 = vmatprep.subr.mxu0 0.0
    %7621 = vmatpush1.msra.mxu0 %v7571
    %7622 = vmatprep.subr.mxu0 0.0
    %7623 = vmatpush1.msra.mxu0 %v7572
    %7624 = vmatprep.subr.mxu0 0.0
    %7625 = vmatpush1.msra.mxu0 %v7573
    %7626 = vmatprep.subr.mxu0 0.0
    %7627 = vmatpush1.msra.mxu0 %v7574
    %7628 = vmatprep.subr.mxu0 0.0
    %7629 = vmatpush1.msra.mxu0 %v7575
    %7630 = vmatprep.subr.mxu0 0.0
    %7631 = vmatpush1.msra.mxu0 %v7576
    %7632 = vmatprep.subr.mxu0 0.0
    %7633 = vmatpush1.msra.mxu0 %v7577
    %7634 = vmatprep.subr.mxu0 0.0
    %7635 = vmatpush1.msra.mxu0 %v7578
    %7636 = vmatprep.subr.mxu0 0.0
    %7637 = vmatpush1.msra.mxu0 %v7579
    %7638 = vmatprep.subr.mxu0 0.0
    %7639 = vmatpush1.msra.mxu0 %v7580
    %7640 = vmatprep.subr.mxu0 0.0
    %7641 = vmatpush1.msra.mxu0 %v7581
    %7642 = vmatprep.subr.mxu0 0.0
    %7643 = vmatpush1.msra.mxu0 %v7582
    %7644 = vmatprep.subr.mxu0 0.0
    %7645 = vmatpush1.msra.mxu0 %v7583
    %7646 = vmatprep.subr.mxu0 0.0
    %7647 = vmatpush1.msra.mxu0 %v7584
    %7648 = vmatprep.subr.mxu0 0.0
    %7649 = vmatpush1.msra.mxu0 %v7585
    %7650 = vmatprep.subr.mxu0 0.0
    %7651 = vmatpush1.msra.mxu0 %v7586
    %7652 = vmatprep.subr.mxu0 0.0
    %7653 = vmatpush1.msra.mxu0 %v7587
    %7654 = vmatprep.subr.mxu0 0.0
    %7655 = vmatpush1.msra.mxu0 0.0
    %7656 = vmatprep.subr.mxu0 0.0
    %7657 = vmatpush1.msra.mxu0 0.0
    %7658 = vmatprep.subr.mxu0 0.0
    %7659 = vmatpush1.msra.mxu0 0.0
    %7660 = vmatprep.subr.mxu0 0.0
    %7661 = vmatpush1.msra.mxu0 0.0
    %7662 = vmatprep.subr.mxu0 0.0
    %7663 = vmatpush1.msra.mxu0 0.0
    %7664 = vmatprep.subr.mxu0 0.0
    %7665 = vmatpush1.msra.mxu0 0.0
    %7666 = vmatprep.subr.mxu0 0.0
    %7667 = vmatpush1.msra.mxu0 0.0
    %7668 = vmatprep.subr.mxu0 0.0
    %7669 = vmatpush1.msra.mxu0 0.0
    %7670 = vmatprep.mubr.f32.mxu0 %v7601
    %7671 = vmatmul.mubr.f32.gmra.mrb[0].mxu0 %v7554
    %v7672 = vpop.f32.mrb[0].mxu0
    %v7673 = vadd.f32 %v7598, %v7672
    %v7674 = vpop.f32.mrb[0].mxu0
    %7675 = vmatprep.mubr.f32.mxu0 %v7604
    %7676 = vmatmul.mubr.f32.gmra.mrb[0].mxu0 %v7560
    %v7677 = vpop.f32.mrb[0].mxu0
    %v7678 = vadd.f32 %v7598, %v7677
    %v7679 = vpop.f32.mrb[0].mxu0
    %7680 = vdwg.mxu0
    %v7681 = vsel %vm1142, %v7673, 0.0
    %v7682 = vsel %vm1142, %v7678, 0.0
    %v7683 = vadd.f32 %v7681, %v7682
    %v7684 = vrot.slane %v7683, 4
    %v7685 = vadd.f32 %v7683, %v7684
    %v7686 = vrot.slane %v7685, 2
    %v7687 = vadd.f32 %v7685, %v7686
    %v7688 = vrot.slane %v7687, 1
    %v7689 = vadd.f32 %v7687, %v7688
    %v7690 = vmul.f32 %v7689, %v1152
    %v7691 = vsub.f32 %v7673, %v7690
    %v7692 = vsub.f32 %v7678, %v7690
    %v7693 = vmul.f32 %v7691, %v7691
    %v7694 = vmul.f32 %v7692, %v7692
    %v7695 = vsel %vm1142, %v7693, 0.0
    %v7696 = vsel %vm1142, %v7694, 0.0
    %v7697 = vadd.f32 %v7695, %v7696
    %v7698 = vrot.slane %v7697, 4
    %v7699 = vadd.f32 %v7697, %v7698
    %v7700 = vrot.slane %v7699, 2
    %v7701 = vadd.f32 %v7699, %v7700
    %v7702 = vrot.slane %v7701, 1
    %v7703 = vadd.f32 %v7701, %v7702
    %v7704 = vmul.f32 %v7703, %v1152
    %v7705 = vadd.f32 %v7704, 1e-05
    %v7706 = vrsqrt.pop %v7705
    %v7707 = vmul.f32 %v7691, %v7706
    %v7708 = vmul.f32 %v7692, %v7706
    %v7710 = vlaneseq
    %v7711 = vshrl.u32 %v7710, 7
    %v7712 = vsub.s32 0, %v7711
    %v7713 = vrot.slane %v7593, %v7712
    %v7716 = vsel %vm1142, %v7707, 0
    %v7719 = vsel %vm1142, %v7708, 0
    %7721 = vmatprep.subr.mxu0 0.0
    %7722 = vmatpush1.msra.mxu0 %v7589
    %7723 = vmatprep.subr.mxu0 0.0
    %7724 = vmatpush1.msra.mxu0 %v7590
    %7725 = vmatprep.subr.mxu0 0.0
    %7726 = vmatpush1.msra.mxu0 %v7591
    %7727 = vmatprep.subr.mxu0 0.0
    %7728 = vmatpush1.msra.mxu0 %v7592
    %7729 = vmatprep.subr.mxu0 0.0
    %7730 = vmatpush1.msra.mxu0 0.0
    %7731 = vmatprep.subr.mxu0 0.0
    %7732 = vmatpush1.msra.mxu0 0.0
    %7733 = vmatprep.subr.mxu0 0.0
    %7734 = vmatpush1.msra.mxu0 0.0
    %7735 = vmatprep.subr.mxu0 0.0
    %7736 = vmatpush1.msra.mxu0 0.0
    %7737 = vmatprep.subr.mxu0 0.0
    %7738 = vmatpush1.msra.mxu0 0.0
    %7739 = vmatprep.subr.mxu0 0.0
    %7740 = vmatpush1.msra.mxu0 0.0
    %7741 = vmatprep.subr.mxu0 0.0
    %7742 = vmatpush1.msra.mxu0 0.0
    %7743 = vmatprep.subr.mxu0 0.0
    %7744 = vmatpush1.msra.mxu0 0.0
    %7745 = vmatprep.subr.mxu0 0.0
    %7746 = vmatpush1.msra.mxu0 0.0
    %7747 = vmatprep.subr.mxu0 0.0
    %7748 = vmatpush1.msra.mxu0 0.0
    %7749 = vmatprep.subr.mxu0 0.0
    %7750 = vmatpush1.msra.mxu0 0.0
    %7751 = vmatprep.subr.mxu0 0.0
    %7752 = vmatpush1.msra.mxu0 0.0
    %7753 = vmatprep.subr.mxu0 0.0
    %7754 = vmatpush1.msra.mxu0 0.0
    %7755 = vmatprep.subr.mxu0 0.0
    %7756 = vmatpush1.msra.mxu0 0.0
    %7757 = vmatprep.subr.mxu0 0.0
    %7758 = vmatpush1.msra.mxu0 0.0
    %7759 = vmatprep.subr.mxu0 0.0
    %7760 = vmatpush1.msra.mxu0 0.0
    %7761 = vmatprep.subr.mxu0 0.0
    %7762 = vmatpush1.msra.mxu0 0.0
    %7763 = vmatprep.subr.mxu0 0.0
    %7764 = vmatpush1.msra.mxu0 0.0
    %7765 = vmatprep.subr.mxu0 0.0
    %7766 = vmatpush1.msra.mxu0 0.0
    %7767 = vmatprep.subr.mxu0 0.0
    %7768 = vmatpush1.msra.mxu0 0.0
    %7769 = vmatprep.subr.mxu0 0.0
    %7770 = vmatpush1.msra.mxu0 0.0
    %7771 = vmatprep.subr.mxu0 0.0
    %7772 = vmatpush1.msra.mxu0 0.0
    %7773 = vmatprep.subr.mxu0 0.0
    %7774 = vmatpush1.msra.mxu0 0.0
    %7775 = vmatprep.subr.mxu0 0.0
    %7776 = vmatpush1.msra.mxu0 0.0
    %7777 = vmatprep.subr.mxu0 0.0
    %7778 = vmatpush1.msra.mxu0 0.0
    %7779 = vmatprep.subr.mxu0 0.0
    %7780 = vmatpush1.msra.mxu0 0.0
    %7781 = vmatprep.subr.mxu0 0.0
    %7782 = vmatpush1.msra.mxu0 0.0
    %7783 = vmatprep.subr.mxu0 0.0
    %7784 = vmatpush1.msra.mxu0 0.0
    %7785 = vmatprep.mubr.f32.mxu0 0.0
    %7786 = vmatmul.mubr.f32.gmra.mrb[0].mxu0 %v7716
    %v7787 = vpop.f32.mrb[0].mxu0
    %v7788 = vadd.f32 %v7713, %v7787
    %v7789 = vpop.f32.mrb[0].mxu0
    %7790 = vmatprep.mubr.f32.mxu0 0.0
    %7791 = vmatmul.mubr.f32.gmra.mrb[0].mxu0 %v7719
    %v7792 = vpop.f32.mrb[0].mxu0
    %v7793 = vadd.f32 %v7713, %v7792
    %v7794 = vpop.f32.mrb[0].mxu0
    %7795 = vdwg.mxu0
    %v7796 = vmax.f32 %v7788, 0.0
    %v7797 = vmax.f32 %v7793, 0.0
    %v7798 = vld [vmem:[%s151] sm:$0xff]
    %v7799 = vld [vmem:[%s151 + $0x8] sm:$0xff]
    %v7800 = vld [vmem:[%s151 + $0x10] sm:$0xff]
    %v7801 = vld [vmem:[%s151 + $0x18] sm:$0xff]
    %v7802 = vld [vmem:[%s151 + $0x20] sm:$0xff]
    %v7803 = vld [vmem:[%s151 + $0x28] sm:$0xff]
    %v7804 = vld [vmem:[%s151 + $0x30] sm:$0xff]
    %v7805 = vld [vmem:[%s151 + $0x38] sm:$0xff]
    %v7806 = vld [vmem:[#allocation55] sm:$0x1]
    %v7808 = vsel %vm1142, %v7796, 0
    %v7811 = vsel %vm1142, %v7797, 0
    %7813 = vmatprep.subr.mxu0 0.0
    %7814 = vmatpush1.msra.mxu0 %v7802
    %7815 = vmatprep.subr.mxu0 0.0
    %7816 = vmatpush1.msra.mxu0 %v7803
    %7817 = vmatprep.subr.mxu0 0.0
    %7818 = vmatpush1.msra.mxu0 %v7804
    %7819 = vmatprep.subr.mxu0 0.0
    %7820 = vmatpush1.msra.mxu0 %v7805
    %7821 = vmatprep.subr.mxu0 0.0
    %7822 = vmatpush1.msra.mxu0 0.0
    %7823 = vmatprep.subr.mxu0 0.0
    %7824 = vmatpush1.msra.mxu0 0.0
    %7825 = vmatprep.subr.mxu0 0.0
    %7826 = vmatpush1.msra.mxu0 0.0
    %7827 = vmatprep.subr.mxu0 0.0
    %7828 = vmatpush1.msra.mxu0 0.0
    %7829 = vmatprep.subr.mxu0 0.0
    %7830 = vmatpush1.msra.mxu0 0.0
    %7831 = vmatprep.subr.mxu0 0.0
    %7832 = vmatpush1.msra.mxu0 0.0
    %7833 = vmatprep.subr.mxu0 0.0
    %7834 = vmatpush1.msra.mxu0 0.0
    %7835 = vmatprep.subr.mxu0 0.0
    %7836 = vmatpush1.msra.mxu0 0.0
    %7837 = vmatprep.subr.mxu0 0.0
    %7838 = vmatpush1.msra.mxu0 0.0
    %7839 = vmatprep.subr.mxu0 0.0
    %7840 = vmatpush1.msra.mxu0 0.0
    %7841 = vmatprep.subr.mxu0 0.0
    %7842 = vmatpush1.msra.mxu0 0.0
    %7843 = vmatprep.subr.mxu0 0.0
    %7844 = vmatpush1.msra.mxu0 0.0
    %7845 = vmatprep.subr.mxu0 0.0
    %7846 = vmatpush1.msra.mxu0 0.0
    %7847 = vmatprep.subr.mxu0 0.0
    %7848 = vmatpush1.msra.mxu0 0.0
    %7849 = vmatprep.subr.mxu0 0.0
    %7850 = vmatpush1.msra.mxu0 0.0
    %7851 = vmatprep.subr.mxu0 0.0
    %7852 = vmatpush1.msra.mxu0 0.0
    %7853 = vmatprep.subr.mxu0 0.0
    %7854 = vmatpush1.msra.mxu0 0.0
    %7855 = vmatprep.subr.mxu0 0.0
    %7856 = vmatpush1.msra.mxu0 0.0
    %7857 = vmatprep.subr.mxu0 0.0
    %7858 = vmatpush1.msra.mxu0 0.0
    %7859 = vmatprep.subr.mxu0 0.0
    %7860 = vmatpush1.msra.mxu0 0.0
    %7861 = vmatprep.subr.mxu0 0.0
    %7862 = vmatpush1.msra.mxu0 0.0
    %7863 = vmatprep.subr.mxu0 0.0
    %7864 = vmatpush1.msra.mxu0 0.0
    %7865 = vmatprep.subr.mxu0 0.0
    %7866 = vmatpush1.msra.mxu0 0.0
    %7867 = vmatprep.subr.mxu0 0.0
    %7868 = vmatpush1.msra.mxu0 0.0
    %7869 = vmatprep.subr.mxu0 0.0
    %7870 = vmatpush1.msra.mxu0 0.0
    %7871 = vmatprep.subr.mxu0 0.0
    %7872 = vmatpush1.msra.mxu0 0.0
    %7873 = vmatprep.subr.mxu0 0.0
    %7874 = vmatpush1.msra.mxu0 0.0
    %7875 = vmatprep.subr.mxu0 0.0
    %7876 = vmatpush1.msra.mxu0 0.0
    %7877 = vmatprep.mubr.f32.mxu0 0.0
    %7878 = vmatmul.mubr.f32.gmra.mrb[0].mxu0 %v7808
    %v7879 = vpop.f32.mrb[0].mxu0
    %v7880 = vadd.f32 0.0, %v7879
    %v7881 = vpop.f32.mrb[0].mxu0
    %7882 = vmatprep.mubr.f32.mxu0 0.0
    %7883 = vmatmul.mubr.f32.gmra.mrb[0].mxu0 %v7811
    %v7884 = vpop.f32.mrb[0].mxu0
    %v7885 = vadd.f32 0.0, %v7884
    %v7886 = vpop.f32.mrb[0].mxu0
    %7887 = vdwg.mxu0
    %7888 = vmatprep.subr.mxu0 0.0
    %7889 = vmatpush1.msra.mxu0 %v7798
    %7890 = vmatprep.subr.mxu0 0.0
    %7891 = vmatpush1.msra.mxu0 %v7799
    %7892 = vmatprep.subr.mxu0 0.0
    %7893 = vmatpush1.msra.mxu0 %v7800
    %7894 = vmatprep.subr.mxu0 0.0
    %7895 = vmatpush1.msra.mxu0 %v7801
    %7896 = vmatprep.subr.mxu0 0.0
    %7897 = vmatpush1.msra.mxu0 0.0
    %7898 = vmatprep.subr.mxu0 0.0
    %7899 = vmatpush1.msra.mxu0 0.0
    %7900 = vmatprep.subr.mxu0 0.0
    %7901 = vmatpush1.msra.mxu0 0.0
    %7902 = vmatprep.subr.mxu0 0.0
    %7903 = vmatpush1.msra.mxu0 0.0
    %7904 = vmatprep.subr.mxu0 0.0
    %7905 = vmatpush1.msra.mxu0 0.0
    %7906 = vmatprep.subr.mxu0 0.0
    %7907 = vmatpush1.msra.mxu0 0.0
    %7908 = vmatprep.subr.mxu0 0.0
    %7909 = vmatpush1.msra.mxu0 0.0
    %7910 = vmatprep.subr.mxu0 0.0
    %7911 = vmatpush1.msra.mxu0 0.0
    %7912 = vmatprep.subr.mxu0 0.0
    %7913 = vmatpush1.msra.mxu0 0.0
    %7914 = vmatprep.subr.mxu0 0.0
    %7915 = vmatpush1.msra.mxu0 0.0
    %7916 = vmatprep.subr.mxu0 0.0
    %7917 = vmatpush1.msra.mxu0 0.0
    %7918 = vmatprep.subr.mxu0 0.0
    %7919 = vmatpush1.msra.mxu0 0.0
    %7920 = vmatprep.subr.mxu0 0.0
    %7921 = vmatpush1.msra.mxu0 0.0
    %7922 = vmatprep.subr.mxu0 0.0
    %7923 = vmatpush1.msra.mxu0 0.0
    %7924 = vmatprep.subr.mxu0 0.0
    %7925 = vmatpush1.msra.mxu0 0.0
    %7926 = vmatprep.subr.mxu0 0.0
    %7927 = vmatpush1.msra.mxu0 0.0
    %7928 = vmatprep.subr.mxu0 0.0
    %7929 = vmatpush1.msra.mxu0 0.0
    %7930 = vmatprep.subr.mxu0 0.0
    %7931 = vmatpush1.msra.mxu0 0.0
    %7932 = vmatprep.subr.mxu0 0.0
    %7933 = vmatpush1.msra.mxu0 0.0
    %7934 = vmatprep.subr.mxu0 0.0
    %7935 = vmatpush1.msra.mxu0 0.0
    %7936 = vmatprep.subr.mxu0 0.0
    %7937 = vmatpush1.msra.mxu0 0.0
    %7938 = vmatprep.subr.mxu0 0.0
    %7939 = vmatpush1.msra.mxu0 0.0
    %7940 = vmatprep.subr.mxu0 0.0
    %7941 = vmatpush1.msra.mxu0 0.0
    %7942 = vmatprep.subr.mxu0 0.0
    %7943 = vmatpush1.msra.mxu0 0.0
    %7944 = vmatprep.subr.mxu0 0.0
    %7945 = vmatpush1.msra.mxu0 0.0
    %7946 = vmatprep.subr.mxu0 0.0
    %7947 = vmatpush1.msra.mxu0 0.0
    %7948 = vmatprep.subr.mxu0 0.0
    %7949 = vmatpush1.msra.mxu0 0.0
    %7950 = vmatprep.subr.mxu0 0.0
    %7951 = vmatpush1.msra.mxu0 0.0
    %7952 = vmatprep.mubr.f32.mxu0 0.0
    %7953 = vmatmul.mubr.f32.gmra.mrb[0].mxu0 %v6461
    %v7954 = vpop.f32.mrb[0].mxu0
    %v7955 = vadd.f32 %v7880, %v7954
    %v7956 = vpop.f32.mrb[0].mxu0
    %7957 = vmatprep.mubr.f32.mxu0 0.0
    %7958 = vmatmul.mubr.f32.gmra.mrb[0].mxu0 %v6464
    %v7959 = vpop.f32.mrb[0].mxu0
    %v7960 = vadd.f32 %v7885, %v7959
    %v7961 = vpop.f32.mrb[0].mxu0
    %7962 = vdwg.mxu0
    %v7964 = vlaneseq
    %v7965 = vshrl.u32 %v7964, 7
    %v7966 = vsub.s32 0, %v7965
    %v7967 = vrot.slane %v7806, %v7966
    %v7969 = vadd.f32 %v7955, %v7967
    %v7970 = vadd.f32 %v7960, %v7967
    %v7971 = vld [vmem:[%s155] sm:$0xff]
    %v7972 = vld [vmem:[%s155 + $0x8] sm:$0xff]
    %v7973 = vld [vmem:[%s155 + $0x10] sm:$0xff]
    %v7974 = vld [vmem:[%s155 + $0x18] sm:$0xff]
    %v7975 = vld [vmem:[#allocation57] sm:$0x1]
    %v7976 = vld [vmem:[%s159] sm:$0xff]
    %v7977 = vld [vmem:[%s159 + $0x8] sm:$0xff]
    %v7978 = vld [vmem:[%s159 + $0x10] sm:$0xff]
    %v7979 = vld [vmem:[%s159 + $0x18] sm:$0xff]
    %v7980 = vld [vmem:[#allocation58] sm:$0x1]
    %v7982 = vlaneseq
    %v7983 = vshrl.u32 %v7982, 7
    %v7984 = vsub.s32 0, %v7983
    %v7985 = vrot.slane %v7975, %v7984
    %v7988 = vsel %vm1142, %v7969, 0
    %v7991 = vsel %vm1142, %v7970, 0
    %7993 = vmatprep.subr.mxu0 0.0
    %7994 = vmatpush1.msra.mxu0 %v7971
    %7995 = vmatprep.subr.mxu0 0.0
    %7996 = vmatpush1.msra.mxu0 %v7972
    %7997 = vmatprep.subr.mxu0 0.0
    %7998 = vmatpush1.msra.mxu0 %v7973
    %7999 = vmatprep.subr.mxu0 0.0
    %8000 = vmatpush1.msra.mxu0 %v7974
    %8001 = vmatprep.subr.mxu0 0.0
    %8002 = vmatpush1.msra.mxu0 0.0
    %8003 = vmatprep.subr.mxu0 0.0
    %8004 = vmatpush1.msra.mxu0 0.0
    %8005 = vmatprep.subr.mxu0 0.0
    %8006 = vmatpush1.msra.mxu0 0.0
    %8007 = vmatprep.subr.mxu0 0.0
    %8008 = vmatpush1.msra.mxu0 0.0
    %8009 = vmatprep.subr.mxu0 0.0
    %8010 = vmatpush1.msra.mxu0 0.0
    %8011 = vmatprep.subr.mxu0 0.0
    %8012 = vmatpush1.msra.mxu0 0.0
    %8013 = vmatprep.subr.mxu0 0.0
    %8014 = vmatpush1.msra.mxu0 0.0
    %8015 = vmatprep.subr.mxu0 0.0
    %8016 = vmatpush1.msra.mxu0 0.0
    %8017 = vmatprep.subr.mxu0 0.0
    %8018 = vmatpush1.msra.mxu0 0.0
    %8019 = vmatprep.subr.mxu0 0.0
    %8020 = vmatpush1.msra.mxu0 0.0
    %8021 = vmatprep.subr.mxu0 0.0
    %8022 = vmatpush1.msra.mxu0 0.0
    %8023 = vmatprep.subr.mxu0 0.0
    %8024 = vmatpush1.msra.mxu0 0.0
    %8025 = vmatprep.subr.mxu0 0.0
    %8026 = vmatpush1.msra.mxu0 0.0
    %8027 = vmatprep.subr.mxu0 0.0
    %8028 = vmatpush1.msra.mxu0 0.0
    %8029 = vmatprep.subr.mxu0 0.0
    %8030 = vmatpush1.msra.mxu0 0.0
    %8031 = vmatprep.subr.mxu0 0.0
    %8032 = vmatpush1.msra.mxu0 0.0
    %8033 = vmatprep.subr.mxu0 0.0
    %8034 = vmatpush1.msra.mxu0 0.0
    %8035 = vmatprep.subr.mxu0 0.0
    %8036 = vmatpush1.msra.mxu0 0.0
    %8037 = vmatprep.subr.mxu0 0.0
    %8038 = vmatpush1.msra.mxu0 0.0
    %8039 = vmatprep.subr.mxu0 0.0
    %8040 = vmatpush1.msra.mxu0 0.0
    %8041 = vmatprep.subr.mxu0 0.0
    %8042 = vmatpush1.msra.mxu0 0.0
    %8043 = vmatprep.subr.mxu0 0.0
    %8044 = vmatpush1.msra.mxu0 0.0
    %8045 = vmatprep.subr.mxu0 0.0
    %8046 = vmatpush1.msra.mxu0 0.0
    %8047 = vmatprep.subr.mxu0 0.0
    %8048 = vmatpush1.msra.mxu0 0.0
    %8049 = vmatprep.subr.mxu0 0.0
    %8050 = vmatpush1.msra.mxu0 0.0
    %8051 = vmatprep.subr.mxu0 0.0
    %8052 = vmatpush1.msra.mxu0 0.0
    %8053 = vmatprep.subr.mxu0 0.0
    %8054 = vmatpush1.msra.mxu0 0.0
    %8055 = vmatprep.subr.mxu0 0.0
    %8056 = vmatpush1.msra.mxu0 0.0
    %8057 = vmatprep.mubr.f32.mxu0 0.0
    %8058 = vmatmul.mubr.f32.gmra.mrb[0].mxu0 %v7988
    %v8059 = vpop.f32.mrb[0].mxu0
    %v8060 = vadd.f32 %v7985, %v8059
    %v8061 = vpop.f32.mrb[0].mxu0
    %8062 = vmatprep.mubr.f32.mxu0 0.0
    %8063 = vmatmul.mubr.f32.gmra.mrb[0].mxu0 %v7991
    %v8064 = vpop.f32.mrb[0].mxu0
    %v8065 = vadd.f32 %v7985, %v8064
    %v8066 = vpop.f32.mrb[0].mxu0
    %8067 = vdwg.mxu0
    %v8068 = vsel %vm1142, %v8060, 0.0
    %v8069 = vsel %vm1142, %v8065, 0.0
    %v8070 = vadd.f32 %v8068, %v8069
    %v8071 = vrot.slane %v8070, 4
    %v8072 = vadd.f32 %v8070, %v8071
    %v8073 = vrot.slane %v8072, 2
    %v8074 = vadd.f32 %v8072, %v8073
    %v8075 = vrot.slane %v8074, 1
    %v8076 = vadd.f32 %v8074, %v8075
    %v8077 = vmul.f32 %v8076, %v1152
    %v8078 = vsub.f32 %v8060, %v8077
    %v8079 = vsub.f32 %v8065, %v8077
    %v8080 = vmul.f32 %v8078, %v8078
    %v8081 = vmul.f32 %v8079, %v8079
    %v8082 = vsel %vm1142, %v8080, 0.0
    %v8083 = vsel %vm1142, %v8081, 0.0
    %v8084 = vadd.f32 %v8082, %v8083
    %v8085 = vrot.slane %v8084, 4
    %v8086 = vadd.f32 %v8084, %v8085
    %v8087 = vrot.slane %v8086, 2
    %v8088 = vadd.f32 %v8086, %v8087
    %v8089 = vrot.slane %v8088, 1
    %v8090 = vadd.f32 %v8088, %v8089
    %v8091 = vmul.f32 %v8090, %v1152
    %v8092 = vadd.f32 %v8091, 1e-05
    %v8093 = vrsqrt.pop %v8092
    %v8094 = vmul.f32 %v8078, %v8093
    %v8095 = vmul.f32 %v8079, %v8093
    %v8097 = vlaneseq
    %v8098 = vshrl.u32 %v8097, 7
    %v8099 = vsub.s32 0, %v8098
    %v8100 = vrot.slane %v7980, %v8099
    %v8103 = vsel %vm1142, %v8094, 0
    %v8106 = vsel %vm1142, %v8095, 0
    %8108 = vmatprep.subr.mxu0 0.0
    %8109 = vmatpush1.msra.mxu0 %v7976
    %8110 = vmatprep.subr.mxu0 0.0
    %8111 = vmatpush1.msra.mxu0 %v7977
    %8112 = vmatprep.subr.mxu0 0.0
    %8113 = vmatpush1.msra.mxu0 %v7978
    %8114 = vmatprep.subr.mxu0 0.0
    %8115 = vmatpush1.msra.mxu0 %v7979
    %8116 = vmatprep.subr.mxu0 0.0
    %8117 = vmatpush1.msra.mxu0 0.0
    %8118 = vmatprep.subr.mxu0 0.0
    %8119 = vmatpush1.msra.mxu0 0.0
    %8120 = vmatprep.subr.mxu0 0.0
    %8121 = vmatpush1.msra.mxu0 0.0
    %8122 = vmatprep.subr.mxu0 0.0
    %8123 = vmatpush1.msra.mxu0 0.0
    %8124 = vmatprep.subr.mxu0 0.0
    %8125 = vmatpush1.msra.mxu0 0.0
    %8126 = vmatprep.subr.mxu0 0.0
    %8127 = vmatpush1.msra.mxu0 0.0
    %8128 = vmatprep.subr.mxu0 0.0
    %8129 = vmatpush1.msra.mxu0 0.0
    %8130 = vmatprep.subr.mxu0 0.0
    %8131 = vmatpush1.msra.mxu0 0.0
    %8132 = vmatprep.subr.mxu0 0.0
    %8133 = vmatpush1.msra.mxu0 0.0
    %8134 = vmatprep.subr.mxu0 0.0
    %8135 = vmatpush1.msra.mxu0 0.0
    %8136 = vmatprep.subr.mxu0 0.0
    %8137 = vmatpush1.msra.mxu0 0.0
    %8138 = vmatprep.subr.mxu0 0.0
    %8139 = vmatpush1.msra.mxu0 0.0
    %8140 = vmatprep.subr.mxu0 0.0
    %8141 = vmatpush1.msra.mxu0 0.0
    %8142 = vmatprep.subr.mxu0 0.0
    %8143 = vmatpush1.msra.mxu0 0.0
    %8144 = vmatprep.subr.mxu0 0.0
    %8145 = vmatpush1.msra.mxu0 0.0
    %8146 = vmatprep.subr.mxu0 0.0
    %8147 = vmatpush1.msra.mxu0 0.0
    %8148 = vmatprep.subr.mxu0 0.0
    %8149 = vmatpush1.msra.mxu0 0.0
    %8150 = vmatprep.subr.mxu0 0.0
    %8151 = vmatpush1.msra.mxu0 0.0
    %8152 = vmatprep.subr.mxu0 0.0
    %8153 = vmatpush1.msra.mxu0 0.0
    %8154 = vmatprep.subr.mxu0 0.0
    %8155 = vmatpush1.msra.mxu0 0.0
    %8156 = vmatprep.subr.mxu0 0.0
    %8157 = vmatpush1.msra.mxu0 0.0
    %8158 = vmatprep.subr.mxu0 0.0
    %8159 = vmatpush1.msra.mxu0 0.0
    %8160 = vmatprep.subr.mxu0 0.0
    %8161 = vmatpush1.msra.mxu0 0.0
    %8162 = vmatprep.subr.mxu0 0.0
    %8163 = vmatpush1.msra.mxu0 0.0
    %8164 = vmatprep.subr.mxu0 0.0
    %8165 = vmatpush1.msra.mxu0 0.0
    %8166 = vmatprep.subr.mxu0 0.0
    %8167 = vmatpush1.msra.mxu0 0.0
    %8168 = vmatprep.subr.mxu0 0.0
    %8169 = vmatpush1.msra.mxu0 0.0
    %8170 = vmatprep.subr.mxu0 0.0
    %8171 = vmatpush1.msra.mxu0 0.0
    %8172 = vmatprep.mubr.f32.mxu0 0.0
    %8173 = vmatmul.mubr.f32.gmra.mrb[0].mxu0 %v8103
    %v8174 = vpop.f32.mrb[0].mxu0
    %v8175 = vadd.f32 %v8100, %v8174
    %v8176 = vpop.f32.mrb[0].mxu0
    %8177 = vmatprep.mubr.f32.mxu0 0.0
    %8178 = vmatmul.mubr.f32.gmra.mrb[0].mxu0 %v8106
    %v8179 = vpop.f32.mrb[0].mxu0
    %v8180 = vadd.f32 %v8100, %v8179
    %v8181 = vpop.f32.mrb[0].mxu0
    %8182 = vdwg.mxu0
    %v8183 = vmax.f32 %v8175, 0.0
    %v8184 = vmax.f32 %v8180, 0.0
    %v8185 = vld [vmem:[%s163] sm:$0xff]
    %v8186 = vld [vmem:[%s163 + $0x8] sm:$0xff]
    %v8187 = vld [vmem:[%s163 + $0x10] sm:$0xff]
    %v8188 = vld [vmem:[%s163 + $0x18] sm:$0xff]
    %v8189 = vld [vmem:[#allocation60] sm:$0x1]
    %v8190 = vld [vmem:[%s167] sm:$0xff]
    %v8191 = vld [vmem:[%s167 + $0x8] sm:$0xff]
    %v8192 = vld [vmem:[%s167 + $0x10] sm:$0xff]
    %v8193 = vld [vmem:[%s167 + $0x18] sm:$0xff]
    %8194 = vmatprep.subr.mxu0 0.0
    %8195 = vmatpush1.msra.mxu0 %v8183
    %8196 = vmatprep.subr.mxu0 0.0
    %8197 = vmatpush1.msra.mxu0 %v8184
    %8198 = vmatprep.subr.mxu0 0.0
    %8199 = vmatpush1.msra.mxu0 0.0
    %8200 = vmatprep.subr.mxu0 0.0
    %8201 = vmatpush1.msra.mxu0 0.0
    %8202 = vmatprep.subr.mxu0 0.0
    %8203 = vmatpush1.msra.mxu0 0.0
    %8204 = vmatprep.subr.mxu0 0.0
    %8205 = vmatpush1.msra.mxu0 0.0
    %8206 = vmatprep.subr.mxu0 0.0
    %8207 = vmatpush1.msra.mxu0 0.0
    %8208 = vmatprep.subr.mxu0 0.0
    %8209 = vmatpush1.msra.mxu0 0.0
    %8210 = vmatprep.subr.mxu0 0.0
    %8211 = vmatpush1.msra.mxu0 0.0
    %8212 = vmatprep.subr.mxu0 0.0
    %8213 = vmatpush1.msra.mxu0 0.0
    %8214 = vmatprep.subr.mxu0 0.0
    %8215 = vmatpush1.msra.mxu0 0.0
    %8216 = vmatprep.subr.mxu0 0.0
    %8217 = vmatpush1.msra.mxu0 0.0
    %8218 = vmatprep.subr.mxu0 0.0
    %8219 = vmatpush1.msra.mxu0 0.0
    %8220 = vmatprep.subr.mxu0 0.0
    %8221 = vmatpush1.msra.mxu0 0.0
    %8222 = vmatprep.subr.mxu0 0.0
    %8223 = vmatpush1.msra.mxu0 0.0
    %8224 = vmatprep.subr.mxu0 0.0
    %8225 = vmatpush1.msra.mxu0 0.0
    %8226 = vmatprep.subr.mxu0 0.0
    %8227 = vmatpush1.msra.mxu0 0.0
    %8228 = vmatprep.subr.mxu0 0.0
    %8229 = vmatpush1.msra.mxu0 0.0
    %8230 = vmatprep.subr.mxu0 0.0
    %8231 = vmatpush1.msra.mxu0 0.0
    %8232 = vmatprep.subr.mxu0 0.0
    %8233 = vmatpush1.msra.mxu0 0.0
    %8234 = vmatprep.subr.mxu0 0.0
    %8235 = vmatpush1.msra.mxu0 0.0
    %8236 = vmatprep.subr.mxu0 0.0
    %8237 = vmatpush1.msra.mxu0 0.0
    %8238 = vmatprep.subr.mxu0 0.0
    %8239 = vmatpush1.msra.mxu0 0.0
    %8240 = vmatprep.subr.mxu0 0.0
    %8241 = vmatpush1.msra.mxu0 0.0
    %8242 = vmatprep.subr.mxu0 0.0
    %8243 = vmatpush1.msra.mxu0 0.0
    %8244 = vmatprep.subr.mxu0 0.0
    %8245 = vmatpush1.msra.mxu0 0.0
    %8246 = vmatprep.subr.mxu0 0.0
    %8247 = vmatpush1.msra.mxu0 0.0
    %8248 = vmatprep.subr.mxu0 0.0
    %8249 = vmatpush1.msra.mxu0 0.0
    %8250 = vmatprep.subr.mxu0 0.0
    %8251 = vmatpush1.msra.mxu0 0.0
    %8252 = vmatprep.subr.mxu0 0.0
    %8253 = vmatpush1.msra.mxu0 0.0
    %8254 = vmatprep.subr.mxu0 0.0
    %8255 = vmatpush1.msra.mxu0 0.0
    %8256 = vmatprep.subr.mxu0 0.0
    %8257 = vmatpush1.msra.mxu0 0.0
    %8258 = vmatprep.mubr.f32.mxu0 0.0
    %8259 = vmatmul.mubr.f32.gmra.mrb[0].mxu0 %v3387
    %v8260 = vpop.f32.mrb[0].mxu0
    %v8261 = vadd.f32 0.0, %v8260
    %v8262 = vpop.f32.mrb[0].mxu0
    %8263 = vmatprep.mubr.f32.mxu0 0.0
    %8264 = vmatmul.mubr.f32.gmra.mrb[0].mxu0 %v3390
    %v8265 = vpop.f32.mrb[0].mxu0
    %v8266 = vadd.f32 0.0, %v8265
    %v8267 = vpop.f32.mrb[0].mxu0
    %8268 = vdwg.mxu0
    %v8270 = vlaneseq
    %v8271 = vshrl.u32 %v8270, 7
    %v8272 = vsub.s32 0, %v8271
    %v8273 = vrot.slane %v8189, %v8272
    %v8276 = vsel %vm1142, %v8261, 0
    %v8279 = vsel %vm1142, %v8266, 0
    %8281 = vmatprep.subr.mxu0 0.0
    %8282 = vmatpush1.msra.mxu0 %v8185
    %8283 = vmatprep.subr.mxu0 0.0
    %8284 = vmatpush1.msra.mxu0 %v8186
    %8285 = vmatprep.subr.mxu0 0.0
    %8286 = vmatpush1.msra.mxu0 %v8187
    %8287 = vmatprep.subr.mxu0 0.0
    %8288 = vmatpush1.msra.mxu0 %v8188
    %8289 = vmatprep.subr.mxu0 0.0
    %8290 = vmatpush1.msra.mxu0 0.0
    %8291 = vmatprep.subr.mxu0 0.0
    %8292 = vmatpush1.msra.mxu0 0.0
    %8293 = vmatprep.subr.mxu0 0.0
    %8294 = vmatpush1.msra.mxu0 0.0
    %8295 = vmatprep.subr.mxu0 0.0
    %8296 = vmatpush1.msra.mxu0 0.0
    %8297 = vmatprep.subr.mxu0 0.0
    %8298 = vmatpush1.msra.mxu0 0.0
    %8299 = vmatprep.subr.mxu0 0.0
    %8300 = vmatpush1.msra.mxu0 0.0
    %8301 = vmatprep.subr.mxu0 0.0
    %8302 = vmatpush1.msra.mxu0 0.0
    %8303 = vmatprep.subr.mxu0 0.0
    %8304 = vmatpush1.msra.mxu0 0.0
    %8305 = vmatprep.subr.mxu0 0.0
    %8306 = vmatpush1.msra.mxu0 0.0
    %8307 = vmatprep.subr.mxu0 0.0
    %8308 = vmatpush1.msra.mxu0 0.0
    %8309 = vmatprep.subr.mxu0 0.0
    %8310 = vmatpush1.msra.mxu0 0.0
    %8311 = vmatprep.subr.mxu0 0.0
    %8312 = vmatpush1.msra.mxu0 0.0
    %8313 = vmatprep.subr.mxu0 0.0
    %8314 = vmatpush1.msra.mxu0 0.0
    %8315 = vmatprep.subr.mxu0 0.0
    %8316 = vmatpush1.msra.mxu0 0.0
    %8317 = vmatprep.subr.mxu0 0.0
    %8318 = vmatpush1.msra.mxu0 0.0
    %8319 = vmatprep.subr.mxu0 0.0
    %8320 = vmatpush1.msra.mxu0 0.0
    %8321 = vmatprep.subr.mxu0 0.0
    %8322 = vmatpush1.msra.mxu0 0.0
    %8323 = vmatprep.subr.mxu0 0.0
    %8324 = vmatpush1.msra.mxu0 0.0
    %8325 = vmatprep.subr.mxu0 0.0
    %8326 = vmatpush1.msra.mxu0 0.0
    %8327 = vmatprep.subr.mxu0 0.0
    %8328 = vmatpush1.msra.mxu0 0.0
    %8329 = vmatprep.subr.mxu0 0.0
    %8330 = vmatpush1.msra.mxu0 0.0
    %8331 = vmatprep.subr.mxu0 0.0
    %8332 = vmatpush1.msra.mxu0 0.0
    %8333 = vmatprep.subr.mxu0 0.0
    %8334 = vmatpush1.msra.mxu0 0.0
    %8335 = vmatprep.subr.mxu0 0.0
    %8336 = vmatpush1.msra.mxu0 0.0
    %8337 = vmatprep.subr.mxu0 0.0
    %8338 = vmatpush1.msra.mxu0 0.0
    %8339 = vmatprep.subr.mxu0 0.0
    %8340 = vmatpush1.msra.mxu0 0.0
    %8341 = vmatprep.subr.mxu0 0.0
    %8342 = vmatpush1.msra.mxu0 0.0
    %8343 = vmatprep.subr.mxu0 0.0
    %8344 = vmatpush1.msra.mxu0 0.0
    %8345 = vmatprep.mubr.f32.mxu0 0.0
    %8346 = vmatmul.mubr.f32.gmra.mrb[0].mxu0 %v8276
    %v8347 = vpop.f32.mrb[0].mxu0
    %v8348 = vadd.f32 %v8273, %v8347
    %v8349 = vpop.f32.mrb[0].mxu0
    %8350 = vmatprep.mubr.f32.mxu0 0.0
    %8351 = vmatmul.mubr.f32.gmra.mrb[0].mxu0 %v8279
    %v8352 = vpop.f32.mrb[0].mxu0
    %v8353 = vadd.f32 %v8273, %v8352
    %v8354 = vpop.f32.mrb[0].mxu0
    %8355 = vdwg.mxu0
    %v8357 = vsel %vm1142, %v8183, 0
    %v8360 = vsel %vm1142, %v8184, 0
    %8362 = vmatprep.subr.mxu0 0.0
    %8363 = vmatpush1.msra.mxu0 %v8190
    %8364 = vmatprep.subr.mxu0 0.0
    %8365 = vmatpush1.msra.mxu0 %v8191
    %8366 = vmatprep.subr.mxu0 0.0
    %8367 = vmatpush1.msra.mxu0 %v8192
    %8368 = vmatprep.subr.mxu0 0.0
    %8369 = vmatpush1.msra.mxu0 %v8193
    %8370 = vmatprep.subr.mxu0 0.0
    %8371 = vmatpush1.msra.mxu0 0.0
    %8372 = vmatprep.subr.mxu0 0.0
    %8373 = vmatpush1.msra.mxu0 0.0
    %8374 = vmatprep.subr.mxu0 0.0
    %8375 = vmatpush1.msra.mxu0 0.0
    %8376 = vmatprep.subr.mxu0 0.0
    %8377 = vmatpush1.msra.mxu0 0.0
    %8378 = vmatprep.subr.mxu0 0.0
    %8379 = vmatpush1.msra.mxu0 0.0
    %8380 = vmatprep.subr.mxu0 0.0
    %8381 = vmatpush1.msra.mxu0 0.0
    %8382 = vmatprep.subr.mxu0 0.0
    %8383 = vmatpush1.msra.mxu0 0.0
    %8384 = vmatprep.subr.mxu0 0.0
    %8385 = vmatpush1.msra.mxu0 0.0
    %8386 = vmatprep.subr.mxu0 0.0
    %8387 = vmatpush1.msra.mxu0 0.0
    %8388 = vmatprep.subr.mxu0 0.0
    %8389 = vmatpush1.msra.mxu0 0.0
    %8390 = vmatprep.subr.mxu0 0.0
    %8391 = vmatpush1.msra.mxu0 0.0
    %8392 = vmatprep.subr.mxu0 0.0
    %8393 = vmatpush1.msra.mxu0 0.0
    %8394 = vmatprep.subr.mxu0 0.0
    %8395 = vmatpush1.msra.mxu0 0.0
    %8396 = vmatprep.subr.mxu0 0.0
    %8397 = vmatpush1.msra.mxu0 0.0
    %8398 = vmatprep.subr.mxu0 0.0
    %8399 = vmatpush1.msra.mxu0 0.0
    %8400 = vmatprep.subr.mxu0 0.0
    %8401 = vmatpush1.msra.mxu0 0.0
    %8402 = vmatprep.subr.mxu0 0.0
    %8403 = vmatpush1.msra.mxu0 0.0
    %8404 = vmatprep.subr.mxu0 0.0
    %8405 = vmatpush1.msra.mxu0 0.0
    %8406 = vmatprep.subr.mxu0 0.0
    %8407 = vmatpush1.msra.mxu0 0.0
    %8408 = vmatprep.subr.mxu0 0.0
    %8409 = vmatpush1.msra.mxu0 0.0
    %8410 = vmatprep.subr.mxu0 0.0
    %8411 = vmatpush1.msra.mxu0 0.0
    %8412 = vmatprep.subr.mxu0 0.0
    %8413 = vmatpush1.msra.mxu0 0.0
    %8414 = vmatprep.subr.mxu0 0.0
    %8415 = vmatpush1.msra.mxu0 0.0
    %8416 = vmatprep.subr.mxu0 0.0
    %8417 = vmatpush1.msra.mxu0 0.0
    %8418 = vmatprep.subr.mxu0 0.0
    %8419 = vmatpush1.msra.mxu0 0.0
    %8420 = vmatprep.subr.mxu0 0.0
    %8421 = vmatpush1.msra.mxu0 0.0
    %8422 = vmatprep.subr.mxu0 0.0
    %8423 = vmatpush1.msra.mxu0 0.0
    %8424 = vmatprep.subr.mxu0 0.0
    %8425 = vmatpush1.msra.mxu0 0.0
    %8426 = vmatprep.mubr.f32.mxu0 0.0
    %8427 = vmatmul.mubr.f32.gmra.mrb[0].mxu0 %v8357
    %v8428 = vpop.f32.mrb[0].mxu0
    %v8429 = vadd.f32 0.0, %v8428
    %v8430 = vpop.f32.mrb[0].mxu0
    %8431 = vmatprep.mubr.f32.mxu0 0.0
    %8432 = vmatmul.mubr.f32.gmra.mrb[0].mxu0 %v8360
    %v8433 = vpop.f32.mrb[0].mxu0
    %v8434 = vadd.f32 0.0, %v8433
    %v8435 = vpop.f32.mrb[0].mxu0
    %8436 = vdwg.mxu0
    %v8437 = vadd.f32 %v8348, %v8429
    %v8438 = vadd.f32 %v8353, %v8434
    %vm8439 = vcmp.gt.f32.partialorder %v8437, 0.0
    %vm8440 = vcmp.gt.f32.partialorder %v8438, 0.0
    %v8441 = vmin.f32 %v8437, 0.0
    %v8442 = vmin.f32 %v8438, 0.0
    %v8443 = vmul.f32 %v8441, 1.442695
    %v8444 = vpow.pop %v8443
    %v8445 = vmul.f32 %v8442, 1.442695
    %v8446 = vpow.pop %v8445
    %v8447 = vsub.f32 %v8444, 1.0
    %v8448 = vsub.f32 %v8446, 1.0
    %v8449 = vsel %vm8439, %v8437, %v8447
    %v8450 = vsel %vm8440, %v8438, %v8448
    %v8451 = vld [vmem:[%s201] sm:$0xff]
    %v8452 = vld [vmem:[%s201 + $0x8] sm:$0xff]
    %v8453 = vld [vmem:[%s201 + $0x10] sm:$0xff]
    %v8454 = vld [vmem:[%s201 + $0x18] sm:$0xff]
    %v8455 = vld [vmem:[#allocation75] sm:$0x1]
    %v8456 = vld [vmem:[%s205] sm:$0xff]
    %v8457 = vld [vmem:[%s205 + $0x8] sm:$0xff]
    %v8458 = vld [vmem:[%s205 + $0x10] sm:$0xff]
    %v8459 = vld [vmem:[%s205 + $0x18] sm:$0xff]
    %v8460 = vld [vmem:[#allocation76] sm:$0x1]
    %v8462 = vlaneseq
    %v8463 = vshrl.u32 %v8462, 7
    %v8464 = vsub.s32 0, %v8463
    %v8465 = vrot.slane %v8455, %v8464
    %v8468 = vsel %vm1142, %v8449, 0
    %v8471 = vsel %vm1142, %v8450, 0
    %8473 = vmatprep.subr.mxu0 0.0
    %8474 = vmatpush1.msra.mxu0 %v8451
    %8475 = vmatprep.subr.mxu0 0.0
    %8476 = vmatpush1.msra.mxu0 %v8452
    %8477 = vmatprep.subr.mxu0 0.0
    %8478 = vmatpush1.msra.mxu0 %v8453
    %8479 = vmatprep.subr.mxu0 0.0
    %8480 = vmatpush1.msra.mxu0 %v8454
    %8481 = vmatprep.subr.mxu0 0.0
    %8482 = vmatpush1.msra.mxu0 0.0
    %8483 = vmatprep.subr.mxu0 0.0
    %8484 = vmatpush1.msra.mxu0 0.0
    %8485 = vmatprep.subr.mxu0 0.0
    %8486 = vmatpush1.msra.mxu0 0.0
    %8487 = vmatprep.subr.mxu0 0.0
    %8488 = vmatpush1.msra.mxu0 0.0
    %8489 = vmatprep.subr.mxu0 0.0
    %8490 = vmatpush1.msra.mxu0 0.0
    %8491 = vmatprep.subr.mxu0 0.0
    %8492 = vmatpush1.msra.mxu0 0.0
    %8493 = vmatprep.subr.mxu0 0.0
    %8494 = vmatpush1.msra.mxu0 0.0
    %8495 = vmatprep.subr.mxu0 0.0
    %8496 = vmatpush1.msra.mxu0 0.0
    %8497 = vmatprep.subr.mxu0 0.0
    %8498 = vmatpush1.msra.mxu0 0.0
    %8499 = vmatprep.subr.mxu0 0.0
    %8500 = vmatpush1.msra.mxu0 0.0
    %8501 = vmatprep.subr.mxu0 0.0
    %8502 = vmatpush1.msra.mxu0 0.0
    %8503 = vmatprep.subr.mxu0 0.0
    %8504 = vmatpush1.msra.mxu0 0.0
    %8505 = vmatprep.subr.mxu0 0.0
    %8506 = vmatpush1.msra.mxu0 0.0
    %8507 = vmatprep.subr.mxu0 0.0
    %8508 = vmatpush1.msra.mxu0 0.0
    %8509 = vmatprep.subr.mxu0 0.0
    %8510 = vmatpush1.msra.mxu0 0.0
    %8511 = vmatprep.subr.mxu0 0.0
    %8512 = vmatpush1.msra.mxu0 0.0
    %8513 = vmatprep.subr.mxu0 0.0
    %8514 = vmatpush1.msra.mxu0 0.0
    %8515 = vmatprep.subr.mxu0 0.0
    %8516 = vmatpush1.msra.mxu0 0.0
    %8517 = vmatprep.subr.mxu0 0.0
    %8518 = vmatpush1.msra.mxu0 0.0
    %8519 = vmatprep.subr.mxu0 0.0
    %8520 = vmatpush1.msra.mxu0 0.0
    %8521 = vmatprep.subr.mxu0 0.0
    %8522 = vmatpush1.msra.mxu0 0.0
    %8523 = vmatprep.subr.mxu0 0.0
    %8524 = vmatpush1.msra.mxu0 0.0
    %8525 = vmatprep.subr.mxu0 0.0
    %8526 = vmatpush1.msra.mxu0 0.0
    %8527 = vmatprep.subr.mxu0 0.0
    %8528 = vmatpush1.msra.mxu0 0.0
    %8529 = vmatprep.subr.mxu0 0.0
    %8530 = vmatpush1.msra.mxu0 0.0
    %8531 = vmatprep.subr.mxu0 0.0
    %8532 = vmatpush1.msra.mxu0 0.0
    %8533 = vmatprep.subr.mxu0 0.0
    %8534 = vmatpush1.msra.mxu0 0.0
    %8535 = vmatprep.subr.mxu0 0.0
    %8536 = vmatpush1.msra.mxu0 0.0
    %8537 = vmatprep.mubr.f32.mxu0 0.0
    %8538 = vmatmul.mubr.f32.gmra.mrb[0].mxu0 %v8468
    %v8539 = vpop.f32.mrb[0].mxu0
    %v8540 = vadd.f32 %v8465, %v8539
    %v8541 = vpop.f32.mrb[0].mxu0
    %8542 = vmatprep.mubr.f32.mxu0 0.0
    %8543 = vmatmul.mubr.f32.gmra.mrb[0].mxu0 %v8471
    %v8544 = vpop.f32.mrb[0].mxu0
    %v8545 = vadd.f32 %v8465, %v8544
    %v8546 = vpop.f32.mrb[0].mxu0
    %8547 = vdwg.mxu0
    %vm8548 = vcmp.gt.f32.partialorder %v8540, 0.0
    %vm8549 = vcmp.gt.f32.partialorder %v8545, 0.0
    %v8550 = vmul.f32 %v8540, 0.01
    %v8551 = vmul.f32 %v8545, 0.01
    %v8552 = vsel %vm8548, %v8540, %v8550
    %v8553 = vsel %vm8549, %v8545, %v8551
    %v8555 = vlaneseq
    %v8556 = vshrl.u32 %v8555, 7
    %v8557 = vsub.s32 0, %v8556
    %v8558 = vrot.slane %v8460, %v8557
    %v8561 = vsel %vm1142, %v8552, 0
    %v8564 = vsel %vm1142, %v8553, 0
    %8566 = vmatprep.subr.mxu0 0.0
    %8567 = vmatpush1.msra.mxu0 %v8456
    %8568 = vmatprep.subr.mxu0 0.0
    %8569 = vmatpush1.msra.mxu0 %v8457
    %8570 = vmatprep.subr.mxu0 0.0
    %8571 = vmatpush1.msra.mxu0 %v8458
    %8572 = vmatprep.subr.mxu0 0.0
    %8573 = vmatpush1.msra.mxu0 %v8459
    %8574 = vmatprep.subr.mxu0 0.0
    %8575 = vmatpush1.msra.mxu0 0.0
    %8576 = vmatprep.subr.mxu0 0.0
    %8577 = vmatpush1.msra.mxu0 0.0
    %8578 = vmatprep.subr.mxu0 0.0
    %8579 = vmatpush1.msra.mxu0 0.0
    %8580 = vmatprep.subr.mxu0 0.0
    %8581 = vmatpush1.msra.mxu0 0.0
    %8582 = vmatprep.subr.mxu0 0.0
    %8583 = vmatpush1.msra.mxu0 0.0
    %8584 = vmatprep.subr.mxu0 0.0
    %8585 = vmatpush1.msra.mxu0 0.0
    %8586 = vmatprep.subr.mxu0 0.0
    %8587 = vmatpush1.msra.mxu0 0.0
    %8588 = vmatprep.subr.mxu0 0.0
    %8589 = vmatpush1.msra.mxu0 0.0
    %8590 = vmatprep.subr.mxu0 0.0
    %8591 = vmatpush1.msra.mxu0 0.0
    %8592 = vmatprep.subr.mxu0 0.0
    %8593 = vmatpush1.msra.mxu0 0.0
    %8594 = vmatprep.subr.mxu0 0.0
    %8595 = vmatpush1.msra.mxu0 0.0
    %8596 = vmatprep.subr.mxu0 0.0
    %8597 = vmatpush1.msra.mxu0 0.0
    %8598 = vmatprep.subr.mxu0 0.0
    %8599 = vmatpush1.msra.mxu0 0.0
    %8600 = vmatprep.subr.mxu0 0.0
    %8601 = vmatpush1.msra.mxu0 0.0
    %8602 = vmatprep.subr.mxu0 0.0
    %8603 = vmatpush1.msra.mxu0 0.0
    %8604 = vmatprep.subr.mxu0 0.0
    %8605 = vmatpush1.msra.mxu0 0.0
    %8606 = vmatprep.subr.mxu0 0.0
    %8607 = vmatpush1.msra.mxu0 0.0
    %8608 = vmatprep.subr.mxu0 0.0
    %8609 = vmatpush1.msra.mxu0 0.0
    %8610 = vmatprep.subr.mxu0 0.0
    %8611 = vmatpush1.msra.mxu0 0.0
    %8612 = vmatprep.subr.mxu0 0.0
    %8613 = vmatpush1.msra.mxu0 0.0
    %8614 = vmatprep.subr.mxu0 0.0
    %8615 = vmatpush1.msra.mxu0 0.0
    %8616 = vmatprep.subr.mxu0 0.0
    %8617 = vmatpush1.msra.mxu0 0.0
    %8618 = vmatprep.subr.mxu0 0.0
    %8619 = vmatpush1.msra.mxu0 0.0
    %8620 = vmatprep.subr.mxu0 0.0
    %8621 = vmatpush1.msra.mxu0 0.0
    %8622 = vmatprep.subr.mxu0 0.0
    %8623 = vmatpush1.msra.mxu0 0.0
    %8624 = vmatprep.subr.mxu0 0.0
    %8625 = vmatpush1.msra.mxu0 0.0
    %8626 = vmatprep.subr.mxu0 0.0
    %8627 = vmatpush1.msra.mxu0 0.0
    %8628 = vmatprep.subr.mxu0 0.0
    %8629 = vmatpush1.msra.mxu0 0.0
    %8630 = vmatprep.mubr.f32.mxu0 0.0
    %8631 = vmatmul.mubr.f32.gmra.mrb[0].mxu0 %v8561
    %v8632 = vpop.f32.mrb[0].mxu0
    %v8633 = vadd.f32 %v8558, %v8632
    %v8634 = vpop.f32.mrb[0].mxu0
    %8635 = vmatprep.mubr.f32.mxu0 0.0
    %8636 = vmatmul.mubr.f32.gmra.mrb[0].mxu0 %v8564
    %v8637 = vpop.f32.mrb[0].mxu0
    %v8638 = vadd.f32 %v8558, %v8637
    %v8639 = vpop.f32.mrb[0].mxu0
    %8640 = vdwg.mxu0
    %vm8641 = vcmask 31744
    %v8642 = vsel %vm8641, %v8633, -inf
    %8643 = vmax.xlane.f32.xlu0 %v8642
    %v8644 = vpop.xlane.xlu0 %8643
    %v8645 = vsel %vm8641, %v8638, -inf
    %8646 = vmax.xlane.f32.xlu0 %v8645
    %v8647 = vpop.xlane.xlu0 %8646
    %v8648 = vsub.f32 %v8633, %v8644
    %v8649 = vsub.f32 %v8638, %v8647
    %v8650 = vmul.f32 %v8648, 1.442695
    %v8651 = vpow.pop %v8650
    %v8652 = vmul.f32 %v8649, 1.442695
    %v8653 = vpow.pop %v8652
    %v8654 = vsel %vm8641, %v8651, 0.0
    %8655 = vadd.xlane.f32.xlu0 %v8654
    %v8656 = vpop.xlane.xlu0 %8655
    %v8657 = vsel %vm8641, %v8653, 0.0
    %8658 = vadd.xlane.f32.xlu0 %v8657
    %v8659 = vpop.xlane.xlu0 %8658
    %v8660 = vlog2.pop %v8656
    %v8661 = vmul.f32 %v8660, 0.6931472
    %v8662 = vlog2.pop %v8659
    %v8663 = vmul.f32 %v8662, 0.6931472
    %v8664 = vsub.f32 %v8648, %v8661
    %v8665 = vsub.f32 %v8649, %v8663
    %8666 = vst.msk [vmem:[%s209] sm:$0xff] %vm8641, %v8664
    %8667 = vst.msk [vmem:[%s209 + $0x8] sm:$0xff] %vm8641, %v8665
    // Predicated region
    $region618: #{fognn_forward.1} parent=1 // pred_check
      _
    $region619: #{fognn_forward.1} parent=1 // pred_check_branch
      %8669 = sbr.rel (0) target = $region621
    $region620: #{fognn_forward.1} parent=1 // pred_region
      _
    $region621: #{fognn_forward.1} parent=1 // pred_fallthru
      _
    // Predicated region
    $region622: #{fognn_forward.1} parent=1 // pred_check
      _
    $region623: #{fognn_forward.1} parent=1 // pred_check_branch
      %8671 = sbr.rel (0) target = $region625
    $region624: #{fognn_forward.1} parent=1 // pred_region
      _
    $region625: #{fognn_forward.1} parent=1 // pred_fallthru
      _
    %8672 = vsyncpa [#allocation3], 1
    %8673 = vsyncpa [#allocation5], 1
    %8674 = vsyncpa [#allocation8], 1
    %8675 = vsyncpa [#allocation11], 1
    %8676 = vsyncpa [#allocation14], 1
    %8677 = vsyncpa [#allocation17], 1
    %8678 = vsyncpa [#allocation20], 1
    %8679 = vsyncpa [#allocation23], 1
    %8680 = vsyncpa [#allocation26], 1
    %8681 = vsyncpa [#allocation29], 1
    %8682 = vsyncpa [#allocation32], 1
    %8683 = vsyncpa [#allocation35], 1
    %8684 = vsyncpa [#allocation38], 1
    %8685 = vsyncpa [#allocation41], 1
    %8686 = vsyncpa [#allocation44], 1
    %8687 = vsyncpa [#allocation47], 1
    %8688 = vsyncpa [#allocation50], 1
    %8689 = vsyncpa [#allocation53], 1
    %8690 = vsyncpa [#allocation56], 1
    %8691 = vsyncpa [#allocation59], 1
    %8692 = vsyncpa [#allocation62], 1
    %8693 = vsyncpa [#allocation65], 1
    %8694 = vsyncpa [#allocation68], 1
    %8695 = vsyncpa [#allocation71], 1
    %8696 = vsyncpa [#allocation74], 1
    %8697 = vsyncpa [#allocation77], 1

</llo_original>
